<compile_context>
chip_gen: v5e
topology: v5e:2x2
jax: 0.10.0
libtpu: 0.0.40
codegen_flags: <defaults>
</compile_context>

<pallas_src>
import math

import jax
import jax.numpy as jnp
import numpy as np
from jax import lax
from jax.experimental import pallas as pl
from jax.experimental.pallas import tpu as pltpu

LRELU_SLOPE = 0.2      # dis_conv uses LeakyReLU(0.2)
_TILE_CAP = 8192       # max spatial (lane) tile per grid step (~1.2 MB bf16)


# ------------------------------ Pallas kernel ------------------------------ #
def _conv_matmul_kernel(w_ref, b_ref, a_ref, o_ref):
    """o[0] = leaky_relu(W @ A + b) with a lane-dense (Cout, tm) output tile."""
    acc = jnp.dot(                      # bf16 x bf16 -> f32 (native MXU path)
        w_ref[...],                     # (Cout, K)  bf16, resident
        a_ref[0],                       # (K, tm)    bf16
        preferred_element_type=jnp.float32,
    )
    acc = acc + b_ref[...]              # (Cout, 1) broadcasts along lanes
    acc = jnp.where(acc >= 0.0, acc, LRELU_SLOPE * acc)   # LeakyReLU(0.2)
    o_ref[0] = acc.astype(o_ref.dtype)


def conv_matmul_pallas(patches_t, w2, bias2, *, tm, out_dtype):
    """out[b] = leaky_relu(w2 @ patches_t[b] + bias2) for every batch image.

    patches_t: (B, K, M) bf16   w2: (Cout, K) bf16   bias2: (Cout, 1) f32
    returns    (B, Cout, M) out_dtype
    """
    B, K, M = patches_t.shape
    Cout = w2.shape[0]
    assert M % tm == 0, (M, tm)
    grid = (B, M // tm)
    return pl.pallas_call(
        _conv_matmul_kernel,
        out_shape=jax.ShapeDtypeStruct((B, Cout, M), out_dtype),
        grid_spec=pltpu.PrefetchScalarGridSpec(
            num_scalar_prefetch=0,
            grid=grid,
            in_specs=[
                pl.BlockSpec((Cout, K), lambda b, m: (0, 0)),      # weights (resident)
                pl.BlockSpec((Cout, 1), lambda b, m: (0, 0)),      # bias    (resident)
                pl.BlockSpec((1, K, tm), lambda b, m: (b, 0, m)),  # activations tile
            ],
            out_specs=pl.BlockSpec((1, Cout, tm), lambda b, m: (b, 0, m)),
        ),
        compiler_params=pltpu.CompilerParams(
            dimension_semantics=("parallel", "parallel"),
        ),
    )(w2, bias2, patches_t)


# -------------------------------- JAX glue --------------------------------- #
def _im2col_t(x_nchw, k, stride, pad):
    """(B,C,H,W) -> transposed patches (B, k*k*C, OH*OW) in bf16.

    K index order is (kh, kw, cin), matching the weight flatten below."""
    B, C, H, W = x_nchw.shape
    OH = (H + 2 * pad - k) // stride + 1
    OW = (W + 2 * pad - k) // stride + 1
    xp = jnp.pad(x_nchw.astype(jnp.bfloat16),
                 ((0, 0), (0, 0), (pad, pad), (pad, pad)))
    taps = [
        xp[:, :, kh:kh + stride * OH:stride, kw:kw + stride * OW:stride]
        for kh in range(k) for kw in range(k)
    ]
    pt = jnp.stack(taps, axis=1)                  # (B, k*k, C, OH, OW)
    return pt.reshape(B, k * k * C, OH * OW), OH, OW


def _pick_tile(m, cap=_TILE_CAP):
    """Largest tile that divides m, capped (exact for power-of-two m)."""
    return m if m <= cap else math.gcd(m, cap)


def dis_conv_pallas(x_nchw, w_oihw, bias, *, out_dtype=jnp.bfloat16):
    """5x5 / stride 2 / pad 2 conv + LeakyReLU(0.2); NCHW in, NCHW out."""
    Cout, Cin, KH, KW = w_oihw.shape
    patches_t, OH, OW = _im2col_t(x_nchw, KH, 2, 2)
    # flatten weights so K = kh*KW*Cin + kw*Cin + cin (matches im2col order)
    w2 = jnp.transpose(w_oihw, (0, 2, 3, 1)).reshape(Cout, KH * KW * Cin)
    y = conv_matmul_pallas(
        patches_t, w2.astype(jnp.bfloat16), bias.reshape(Cout, 1),
        tm=_pick_tile(OH * OW), out_dtype=out_dtype,
    )
    return y.reshape(x_nchw.shape[0], Cout, OH, OW)


@jax.jit
def global_dis_forward(x_nchw, params):
    x = x_nchw
    # conv1..conv3 outputs in bf16 (the next layer re-casts to bf16 anyway, so
    # this is bit-identical but halves inter-layer activation HBM traffic).
    for name in ("conv1", "conv2", "conv3"):
        w, b = params[name]
        x = dis_conv_pallas(x, w, b, out_dtype=jnp.bfloat16)
    w4, b4 = params["conv4"]
    x = dis_conv_pallas(x, w4, b4, out_dtype=jnp.float32)   # feeds the f32 Linear
    B = x.shape[0]
    flat = x.reshape(B, -1)                 # NCHW flatten == torch .view(B,-1)
    wl, bl = params["linear"]               # wl: (1, D) PyTorch layout, bl: (1,)
    # (B,4096)x(4096,1): both output dims are far below one (8,128) tile, so a
    # Pallas call is pure overhead here -> plain JAX.
    return jnp.dot(flat, wl.T, precision=lax.Precision.HIGHEST) + bl[None, :]


# ---------------------------- pure-JAX reference --------------------------- #
@jax.jit
def global_dis_reference(x_nchw, params):
    x = x_nchw
    for name in ("conv1", "conv2", "conv3", "conv4"):
        w, b = params[name]
        x = lax.conv_general_dilated(
            x, w, window_strides=(2, 2), padding=((2, 2), (2, 2)),
            dimension_numbers=("NCHW", "OIHW", "NCHW"),
            precision=lax.Precision.HIGHEST,
        ) + b[None, :, None, None]
        x = jnp.where(x >= 0.0, x, LRELU_SLOPE * x)
    flat = x.reshape(x.shape[0], -1)
    wl, bl = params["linear"]
    return jnp.dot(flat, wl.T, precision=lax.Precision.HIGHEST) + bl[None, :]


# --------------------------------- main ------------------------------------ #
def init_params(key, input_dim, cnum):
    shapes = {
        "conv1": ((cnum, input_dim, 5, 5), (cnum,)),
        "conv2": ((cnum * 2, cnum, 5, 5), (cnum * 2,)),
        "conv3": ((cnum * 4, cnum * 2, 5, 5), (cnum * 4,)),
        "conv4": ((cnum * 4, cnum * 4, 5, 5), (cnum * 4,)),
        "linear": ((1, cnum * 4 * 16 * 16), (1,)),
    }
    params = {}
    keys = jax.random.split(key, 2 * len(shapes))
    for i, (name, (ws, bs)) in enumerate(shapes.items()):
        w = 0.05 * jax.random.normal(keys[2 * i], ws, dtype=jnp.float32)
        b = 0.05 * jax.random.normal(keys[2 * i + 1], bs, dtype=jnp.float32)
        params[name] = (w, b)
    return params


if __name__ == "__main__":
    # config: input_dim=3, ndf(cnum)=4.  Spatial must be 256 so that after four
    # stride-2 convs the feature map is 16x16 (the nn.Linear hardcodes 16*16).
    B, input_dim, cnum, H, W = 2, 3, 4, 256, 256

    root = jax.random.PRNGKey(0)
    k_params, k_x = jax.random.split(root)
    params = init_params(k_params, input_dim, cnum)
    x = jax.random.normal(k_x, (B, input_dim, H, W), dtype=jnp.float32)

    out = jax.block_until_ready(global_dis_forward(x, params))
    ref = jax.block_until_ready(global_dis_reference(x, params))

    assert out.shape == (B, 1), out.shape
    # Kernel uses native bf16 MXU passes (f32 accumulate), so compare against
    # the f32/HIGHEST reference with a slightly wider tolerance (expected
    # error is ~1e-4 absolute; this leaves >10x margin).
    np.testing.assert_allclose(np.asarray(out), np.asarray(ref),
                               rtol=5e-3, atol=5e-3)
    print("KERNEL_OK")
</pallas_src>

<mosaic_0001>
module attributes {stable_mosaic.version = 11 : i64} {
  func.func @_conv_matmul_kernel(%arg0: i32, %arg1: i32, %arg2: memref<4x75xbf16, #tpu.memory_space<vmem>>, %arg3: memref<4x1xf32, #tpu.memory_space<vmem>>, %arg4: memref<1x75x8192xbf16, #tpu.memory_space<vmem>>, %arg5: memref<1x4x8192xbf16, #tpu.memory_space<vmem>>) attributes {dimension_semantics = [#tpu.dimension_semantics<parallel>, #tpu.dimension_semantics<parallel>], iteration_bounds = array<i64: 2, 2>, scalar_prefetch = 0 : i64, scratch_operands = 0 : i64, tpu.core_type = #tpu.core_type<tc>, window_params = [{pipeline_mode = #tpu.pipeline_mode<synchronous>, transform_indices = @transform_0, window_bounds = array<i64: 4, 75>}, {pipeline_mode = #tpu.pipeline_mode<synchronous>, transform_indices = @transform_1, window_bounds = array<i64: 4, 1>}, {transform_indices = @transform_2, window_bounds = array<i64: 1, 75, 8192>}, {transform_indices = @transform_3, window_bounds = array<i64: 1, 4, 8192>}]} {
    %c0 = arith.constant 0 : index
    %c0_0 = arith.constant 0 : index
    %0 = vector.load %arg2[%c0, %c0_0] : memref<4x75xbf16, #tpu.memory_space<vmem>>, vector<4x75xbf16>
    %c0_1 = arith.constant 0 : index
    %c0_2 = arith.constant 0 : index
    %c0_3 = arith.constant 0 : index
    %1 = vector.load %arg4[%c0_1, %c0_2, %c0_3] : memref<1x75x8192xbf16, #tpu.memory_space<vmem>>, vector<1x75x8192xbf16>
    %2 = vector.shape_cast %1 : vector<1x75x8192xbf16> to vector<75x8192xbf16>
    %cst = arith.constant dense<0.000000e+00> : vector<4x8192xf32>
    %3 = tpu.matmul %0, %2, %cst {dimension_numbers = #tpu.dot_dimension_numbers<[1], [0], [0], [1], [0, 0, 1, 1], [], []>} : vector<4x75xbf16>, vector<75x8192xbf16>, vector<4x8192xf32> -> vector<4x8192xf32>
    %c0_4 = arith.constant 0 : index
    %c0_5 = arith.constant 0 : index
    %4 = vector.load %arg3[%c0_4, %c0_5] : memref<4x1xf32, #tpu.memory_space<vmem>>, vector<4x1xf32>
    %5 = vector.broadcast %4 : vector<4x1xf32> to vector<4x8192xf32>
    %6 = arith.addf %3, %5 : vector<4x8192xf32>
    %cst_6 = arith.constant 0.000000e+00 : f32
    %7 = vector.broadcast %cst_6 : f32 to vector<4x8192xf32>
    %8 = arith.cmpf oge, %6, %7 : vector<4x8192xf32>
    %cst_7 = arith.constant 2.000000e-01 : f32
    %9 = vector.broadcast %cst_7 : f32 to vector<4x8192xf32>
    %10 = arith.mulf %9, %6 : vector<4x8192xf32>
    %11 = arith.select %8, %6, %10 : vector<4x8192xi1>, vector<4x8192xf32>
    %12 = arith.truncf %11 : vector<4x8192xf32> to vector<4x8192xbf16>
    %c0_8 = arith.constant 0 : index
    %c0_9 = arith.constant 0 : index
    %c0_10 = arith.constant 0 : index
    %13 = vector.load %arg5[%c0_8, %c0_9, %c0_10] : memref<1x4x8192xbf16, #tpu.memory_space<vmem>>, vector<1x4x8192xbf16>
    %14 = vector.shape_cast %13 : vector<1x4x8192xbf16> to vector<4x8192xbf16>
    %15 = vector.shape_cast %12 : vector<4x8192xbf16> to vector<1x4x8192xbf16>
    tpu.vector_store %arg5[%c0_8, %c0_9, %c0_10], %15 {strides = array<i32>} : memref<1x4x8192xbf16, #tpu.memory_space<vmem>>, vector<1x4x8192xbf16>,
    return
  }
  func.func @transform_0(%arg0: i32, %arg1: i32) -> (i32, i32) {
    %c0_i32 = arith.constant 0 : i32
    %c0_i32_0 = arith.constant 0 : i32
    %c0_i32_1 = arith.constant 0 : i32
    return %c0_i32, %c0_i32_0 : i32, i32
  }
  func.func @transform_1(%arg0: i32, %arg1: i32) -> (i32, i32) {
    %c0_i32 = arith.constant 0 : i32
    %c0_i32_0 = arith.constant 0 : i32
    %c0_i32_1 = arith.constant 0 : i32
    return %c0_i32, %c0_i32_0 : i32, i32
  }
  func.func @transform_2(%arg0: i32, %arg1: i32) -> (i32, i32, i32) {
    %c0_i32 = arith.constant 0 : i32
    %c0_i32_0 = arith.constant 0 : i32
    return %arg0, %c0_i32, %arg1 : i32, i32, i32
  }
  func.func @transform_3(%arg0: i32, %arg1: i32) -> (i32, i32, i32) {
    %c0_i32 = arith.constant 0 : i32
    %c0_i32_0 = arith.constant 0 : i32
    return %arg0, %c0_i32, %arg1 : i32, i32, i32
  }
}

module attributes {stable_mosaic.version = 11 : i64} {
  func.func @_conv_matmul_kernel(%arg0: i32, %arg1: i32, %arg2: memref<8x100xbf16, #tpu.memory_space<vmem>>, %arg3: memref<8x1xf32, #tpu.memory_space<vmem>>, %arg4: memref<1x100x4096xbf16, #tpu.memory_space<vmem>>, %arg5: memref<1x8x4096xbf16, #tpu.memory_space<vmem>>) attributes {dimension_semantics = [#tpu.dimension_semantics<parallel>, #tpu.dimension_semantics<parallel>], iteration_bounds = array<i64: 2, 1>, scalar_prefetch = 0 : i64, scratch_operands = 0 : i64, tpu.core_type = #tpu.core_type<tc>, window_params = [{pipeline_mode = #tpu.pipeline_mode<synchronous>, transform_indices = @transform_0, window_bounds = array<i64: 8, 100>}, {pipeline_mode = #tpu.pipeline_mode<synchronous>, transform_indices = @transform_1, window_bounds = array<i64: 8, 1>}, {transform_indices = @transform_2, window_bounds = array<i64: 1, 100, 4096>}, {transform_indices = @transform_3, window_bounds = array<i64: 1, 8, 4096>}]} {
    %c0 = arith.constant 0 : index
    %c0_0 = arith.constant 0 : index
    %0 = vector.load %arg2[%c0, %c0_0] : memref<8x100xbf16, #tpu.memory_space<vmem>>, vector<8x100xbf16>
    %c0_1 = arith.constant 0 : index
    %c0_2 = arith.constant 0 : index
    %c0_3 = arith.constant 0 : index
    %1 = vector.load %arg4[%c0_1, %c0_2, %c0_3] : memref<1x100x4096xbf16, #tpu.memory_space<vmem>>, vector<1x100x4096xbf16>
    %2 = vector.shape_cast %1 : vector<1x100x4096xbf16> to vector<100x4096xbf16>
    %cst = arith.constant dense<0.000000e+00> : vector<8x4096xf32>
    %3 = tpu.matmul %0, %2, %cst {dimension_numbers = #tpu.dot_dimension_numbers<[1], [0], [0], [1], [0, 0, 1, 1], [], []>} : vector<8x100xbf16>, vector<100x4096xbf16>, vector<8x4096xf32> -> vector<8x4096xf32>
    %c0_4 = arith.constant 0 : index
    %c0_5 = arith.constant 0 : index
    %4 = vector.load %arg3[%c0_4, %c0_5] : memref<8x1xf32, #tpu.memory_space<vmem>>, vector<8x1xf32>
    %5 = vector.broadcast %4 : vector<8x1xf32> to vector<8x4096xf32>
    %6 = arith.addf %3, %5 : vector<8x4096xf32>
    %cst_6 = arith.constant 0.000000e+00 : f32
    %7 = vector.broadcast %cst_6 : f32 to vector<8x4096xf32>
    %8 = arith.cmpf oge, %6, %7 : vector<8x4096xf32>
    %cst_7 = arith.constant 2.000000e-01 : f32
    %9 = vector.broadcast %cst_7 : f32 to vector<8x4096xf32>
    %10 = arith.mulf %9, %6 : vector<8x4096xf32>
    %11 = arith.select %8, %6, %10 : vector<8x4096xi1>, vector<8x4096xf32>
    %12 = arith.truncf %11 : vector<8x4096xf32> to vector<8x4096xbf16>
    %c0_8 = arith.constant 0 : index
    %c0_9 = arith.constant 0 : index
    %c0_10 = arith.constant 0 : index
    %13 = vector.load %arg5[%c0_8, %c0_9, %c0_10] : memref<1x8x4096xbf16, #tpu.memory_space<vmem>>, vector<1x8x4096xbf16>
    %14 = vector.shape_cast %13 : vector<1x8x4096xbf16> to vector<8x4096xbf16>
    %15 = vector.shape_cast %12 : vector<8x4096xbf16> to vector<1x8x4096xbf16>
    tpu.vector_store %arg5[%c0_8, %c0_9, %c0_10], %15 {strides = array<i32>} : memref<1x8x4096xbf16, #tpu.memory_space<vmem>>, vector<1x8x4096xbf16>,
    return
  }
  func.func @transform_0(%arg0: i32, %arg1: i32) -> (i32, i32) {
    %c0_i32 = arith.constant 0 : i32
    %c0_i32_0 = arith.constant 0 : i32
    %c0_i32_1 = arith.constant 0 : i32
    return %c0_i32, %c0_i32_0 : i32, i32
  }
  func.func @transform_1(%arg0: i32, %arg1: i32) -> (i32, i32) {
    %c0_i32 = arith.constant 0 : i32
    %c0_i32_0 = arith.constant 0 : i32
    %c0_i32_1 = arith.constant 0 : i32
    return %c0_i32, %c0_i32_0 : i32, i32
  }
  func.func @transform_2(%arg0: i32, %arg1: i32) -> (i32, i32, i32) {
    %c0_i32 = arith.constant 0 : i32
    %c0_i32_0 = arith.constant 0 : i32
    return %arg0, %c0_i32, %arg1 : i32, i32, i32
  }
  func.func @transform_3(%arg0: i32, %arg1: i32) -> (i32, i32, i32) {
    %c0_i32 = arith.constant 0 : i32
    %c0_i32_0 = arith.constant 0 : i32
    return %arg0, %c0_i32, %arg1 : i32, i32, i32
  }
}

module attributes {stable_mosaic.version = 11 : i64} {
  func.func @_conv_matmul_kernel(%arg0: i32, %arg1: i32, %arg2: memref<16x200xbf16, #tpu.memory_space<vmem>>, %arg3: memref<16x1xf32, #tpu.memory_space<vmem>>, %arg4: memref<1x200x1024xbf16, #tpu.memory_space<vmem>>, %arg5: memref<1x16x1024xbf16, #tpu.memory_space<vmem>>) attributes {dimension_semantics = [#tpu.dimension_semantics<parallel>, #tpu.dimension_semantics<parallel>], iteration_bounds = array<i64: 2, 1>, scalar_prefetch = 0 : i64, scratch_operands = 0 : i64, tpu.core_type = #tpu.core_type<tc>, window_params = [{pipeline_mode = #tpu.pipeline_mode<synchronous>, transform_indices = @transform_0, window_bounds = array<i64: 16, 200>}, {pipeline_mode = #tpu.pipeline_mode<synchronous>, transform_indices = @transform_1, window_bounds = array<i64: 16, 1>}, {transform_indices = @transform_2, window_bounds = array<i64: 1, 200, 1024>}, {transform_indices = @transform_3, window_bounds = array<i64: 1, 16, 1024>}]} {
    %c0 = arith.constant 0 : index
    %c0_0 = arith.constant 0 : index
    %0 = vector.load %arg2[%c0, %c0_0] : memref<16x200xbf16, #tpu.memory_space<vmem>>, vector<16x200xbf16>
    %c0_1 = arith.constant 0 : index
    %c0_2 = arith.constant 0 : index
    %c0_3 = arith.constant 0 : index
    %1 = vector.load %arg4[%c0_1, %c0_2, %c0_3] : memref<1x200x1024xbf16, #tpu.memory_space<vmem>>, vector<1x200x1024xbf16>
    %2 = vector.shape_cast %1 : vector<1x200x1024xbf16> to vector<200x1024xbf16>
    %cst = arith.constant dense<0.000000e+00> : vector<16x1024xf32>
    %3 = tpu.matmul %0, %2, %cst {dimension_numbers = #tpu.dot_dimension_numbers<[1], [0], [0], [1], [0, 0, 1, 1], [], []>} : vector<16x200xbf16>, vector<200x1024xbf16>, vector<16x1024xf32> -> vector<16x1024xf32>
    %c0_4 = arith.constant 0 : index
    %c0_5 = arith.constant 0 : index
    %4 = vector.load %arg3[%c0_4, %c0_5] : memref<16x1xf32, #tpu.memory_space<vmem>>, vector<16x1xf32>
    %5 = vector.broadcast %4 : vector<16x1xf32> to vector<16x1024xf32>
    %6 = arith.addf %3, %5 : vector<16x1024xf32>
    %cst_6 = arith.constant 0.000000e+00 : f32
    %7 = vector.broadcast %cst_6 : f32 to vector<16x1024xf32>
    %8 = arith.cmpf oge, %6, %7 : vector<16x1024xf32>
    %cst_7 = arith.constant 2.000000e-01 : f32
    %9 = vector.broadcast %cst_7 : f32 to vector<16x1024xf32>
    %10 = arith.mulf %9, %6 : vector<16x1024xf32>
    %11 = arith.select %8, %6, %10 : vector<16x1024xi1>, vector<16x1024xf32>
    %12 = arith.truncf %11 : vector<16x1024xf32> to vector<16x1024xbf16>
    %c0_8 = arith.constant 0 : index
    %c0_9 = arith.constant 0 : index
    %c0_10 = arith.constant 0 : index
    %13 = vector.load %arg5[%c0_8, %c0_9, %c0_10] : memref<1x16x1024xbf16, #tpu.memory_space<vmem>>, vector<1x16x1024xbf16>
    %14 = vector.shape_cast %13 : vector<1x16x1024xbf16> to vector<16x1024xbf16>
    %15 = vector.shape_cast %12 : vector<16x1024xbf16> to vector<1x16x1024xbf16>
    tpu.vector_store %arg5[%c0_8, %c0_9, %c0_10], %15 {strides = array<i32>} : memref<1x16x1024xbf16, #tpu.memory_space<vmem>>, vector<1x16x1024xbf16>,
    return
  }
  func.func @transform_0(%arg0: i32, %arg1: i32) -> (i32, i32) {
    %c0_i32 = arith.constant 0 : i32
    %c0_i32_0 = arith.constant 0 : i32
    %c0_i32_1 = arith.constant 0 : i32
    return %c0_i32, %c0_i32_0 : i32, i32
  }
  func.func @transform_1(%arg0: i32, %arg1: i32) -> (i32, i32) {
    %c0_i32 = arith.constant 0 : i32
    %c0_i32_0 = arith.constant 0 : i32
    %c0_i32_1 = arith.constant 0 : i32
    return %c0_i32, %c0_i32_0 : i32, i32
  }
  func.func @transform_2(%arg0: i32, %arg1: i32) -> (i32, i32, i32) {
    %c0_i32 = arith.constant 0 : i32
    %c0_i32_0 = arith.constant 0 : i32
    return %arg0, %c0_i32, %arg1 : i32, i32, i32
  }
  func.func @transform_3(%arg0: i32, %arg1: i32) -> (i32, i32, i32) {
    %c0_i32 = arith.constant 0 : i32
    %c0_i32_0 = arith.constant 0 : i32
    return %arg0, %c0_i32, %arg1 : i32, i32, i32
  }
}

module attributes {stable_mosaic.version = 11 : i64} {
  func.func @_conv_matmul_kernel(%arg0: i32, %arg1: i32, %arg2: memref<16x400xbf16, #tpu.memory_space<vmem>>, %arg3: memref<16x1xf32, #tpu.memory_space<vmem>>, %arg4: memref<1x400x256xbf16, #tpu.memory_space<vmem>>, %arg5: memref<1x16x256xf32, #tpu.memory_space<vmem>>) attributes {dimension_semantics = [#tpu.dimension_semantics<parallel>, #tpu.dimension_semantics<parallel>], iteration_bounds = array<i64: 2, 1>, scalar_prefetch = 0 : i64, scratch_operands = 0 : i64, tpu.core_type = #tpu.core_type<tc>, window_params = [{pipeline_mode = #tpu.pipeline_mode<synchronous>, transform_indices = @transform_0, window_bounds = array<i64: 16, 400>}, {pipeline_mode = #tpu.pipeline_mode<synchronous>, transform_indices = @transform_1, window_bounds = array<i64: 16, 1>}, {transform_indices = @transform_2, window_bounds = array<i64: 1, 400, 256>}, {transform_indices = @transform_3, window_bounds = array<i64: 1, 16, 256>}]} {
    %c0 = arith.constant 0 : index
    %c0_0 = arith.constant 0 : index
    %0 = vector.load %arg2[%c0, %c0_0] : memref<16x400xbf16, #tpu.memory_space<vmem>>, vector<16x400xbf16>
    %c0_1 = arith.constant 0 : index
    %c0_2 = arith.constant 0 : index
    %c0_3 = arith.constant 0 : index
    %1 = vector.load %arg4[%c0_1, %c0_2, %c0_3] : memref<1x400x256xbf16, #tpu.memory_space<vmem>>, vector<1x400x256xbf16>
    %2 = vector.shape_cast %1 : vector<1x400x256xbf16> to vector<400x256xbf16>
    %cst = arith.constant dense<0.000000e+00> : vector<16x256xf32>
    %3 = tpu.matmul %0, %2, %cst {dimension_numbers = #tpu.dot_dimension_numbers<[1], [0], [0], [1], [0, 0, 1, 1], [], []>} : vector<16x400xbf16>, vector<400x256xbf16>, vector<16x256xf32> -> vector<16x256xf32>
    %c0_4 = arith.constant 0 : index
    %c0_5 = arith.constant 0 : index
    %4 = vector.load %arg3[%c0_4, %c0_5] : memref<16x1xf32, #tpu.memory_space<vmem>>, vector<16x1xf32>
    %5 = vector.broadcast %4 : vector<16x1xf32> to vector<16x256xf32>
    %6 = arith.addf %3, %5 : vector<16x256xf32>
    %cst_6 = arith.constant 0.000000e+00 : f32
    %7 = vector.broadcast %cst_6 : f32 to vector<16x256xf32>
    %8 = arith.cmpf oge, %6, %7 : vector<16x256xf32>
    %cst_7 = arith.constant 2.000000e-01 : f32
    %9 = vector.broadcast %cst_7 : f32 to vector<16x256xf32>
    %10 = arith.mulf %9, %6 : vector<16x256xf32>
    %11 = arith.select %8, %6, %10 : vector<16x256xi1>, vector<16x256xf32>
    %c0_8 = arith.constant 0 : index
    %c0_9 = arith.constant 0 : index
    %c0_10 = arith.constant 0 : index
    %12 = vector.load %arg5[%c0_8, %c0_9, %c0_10] : memref<1x16x256xf32, #tpu.memory_space<vmem>>, vector<1x16x256xf32>
    %13 = vector.shape_cast %12 : vector<1x16x256xf32> to vector<16x256xf32>
    %14 = vector.shape_cast %11 : vector<16x256xf32> to vector<1x16x256xf32>
    tpu.vector_store %arg5[%c0_8, %c0_9, %c0_10], %14 {strides = array<i32>} : memref<1x16x256xf32, #tpu.memory_space<vmem>>, vector<1x16x256xf32>,
    return
  }
  func.func @transform_0(%arg0: i32, %arg1: i32) -> (i32, i32) {
    %c0_i32 = arith.constant 0 : i32
    %c0_i32_0 = arith.constant 0 : i32
    %c0_i32_1 = arith.constant 0 : i32
    return %c0_i32, %c0_i32_0 : i32, i32
  }
  func.func @transform_1(%arg0: i32, %arg1: i32) -> (i32, i32) {
    %c0_i32 = arith.constant 0 : i32
    %c0_i32_0 = arith.constant 0 : i32
    %c0_i32_1 = arith.constant 0 : i32
    return %c0_i32, %c0_i32_0 : i32, i32
  }
  func.func @transform_2(%arg0: i32, %arg1: i32) -> (i32, i32, i32) {
    %c0_i32 = arith.constant 0 : i32
    %c0_i32_0 = arith.constant 0 : i32
    return %arg0, %c0_i32, %arg1 : i32, i32, i32
  }
  func.func @transform_3(%arg0: i32, %arg1: i32) -> (i32, i32, i32) {
    %c0_i32 = arith.constant 0 : i32
    %c0_i32_0 = arith.constant 0 : i32
    return %arg0, %c0_i32, %arg1 : i32, i32, i32
  }
}

</mosaic_0001>

<llo_original>
// kernel: global_dis_forward.4
$region0: #{global_dis_forward.4}
  #allocation0 [shape = 'u32[]', space=smem, size = 0x4, offset = 0x4, fixed_abs, tag = 'smem constant byte address 0x4 - core index']
  #allocation1 [shape = 'u32[72,128]{1,0:T(1,128)}', space=vmem, size = 0x9000, scoped, tag = 'internal scratch']
  %s0 = inlined_call_operand.vmem [shape: bf16[4,75], index: 0, kind: input, shape index: {}]
  %s1 = inlined_call_operand.vmem [shape: f32[4,1], index: 1, kind: input, shape index: {}]
  %s2 = inlined_call_operand.vmem [shape: bf16[2,75,16384], index: 2, kind: input, shape index: {}]
  %s3 = inlined_call_operand.vmem [shape: bf16[2,4,16384], index: 3, kind: output, shape index: {}]
  %s4 = sld [smem:[#allocation0]]
  $region68: #{global_dis_forward.4} parent=0
    _
  %s6 = ssub.s32 1, %s4
  %s7 = scalar_select 0, %s6, %s4
  $region1: #{global_dis_forward.4} parent=0
    #allocation2 [shape = 'u8[2621440]{0}', space=vmem, size = 0x280000, scoped, tag = 'input window, operand 2']
    loop: start=0, step=1, limit=6
    $region2: #{global_dis_forward.4} parent=1 // loop_pre_header
      _
    $region3: #{global_dis_forward.4} parent=1 // loop_header
      %s9 = sphi 0, %s13
      %p10 = scmp.ge.s32.totalorder %s9, 6
      %s16 = sphi 0, %s28
      %s17 = sphi 0, %s24
      %s18 = sphi 0, %s16
      %s19 = sphi 0, %s17
      %s20 = sphi 0, %s18
      %s21 = sphi 0, %s19
      %s29 = sphi 0, %s29
      %s31 = sphi 0, %s29
      %s32 = sphi 0, %s31
      %s46 = sphi 0, %s32
      %s50 = sphi 0, %s50
      %s52 = sphi 0, %s50
      %s53 = sphi 0, %s52
      %s67 = sphi 0, %s53
      %s75 = sphi 0, %s77
      %s78 = sphi 0, %s75
      %s79 = sphi 0, %s78
      %s95 = sphi 0, %s79
      %s103 = sphi 0, %s105
      %s106 = sphi 0, %s103
      %s107 = sphi 0, %s106
      %s123 = sphi 0, %s107
    $region4: #{global_dis_forward.4} parent=1 // loop_header_branch
      %12 = sbr.rel (%p10) target = $region8
    $region5: #{global_dis_forward.4} parent=1 // loop_body
      %s14 = ssub.s32 %s9, 1
      %s15 = ssub.s32 %s9, 2
      %s22 = sadd.s32 1, %s17
      %p23 = scmp.ge.s32.totalorder %s22, 2
      %s24 = scalar_select %p23, 0, %s22
      %s25 = sadd.s32 1, %s16
      %s26 = scalar_select %p23, %s25, %s16
      %p27 = scmp.ge.s32.totalorder %s26, 2
      %s28 = scalar_select %p27, 0, %s26
      %s30 = sadd.s32 %s29, 1
      %p33 = scmp.eq.s32.totalorder %s9, 3
      %p34 = scmp.ne.s32.totalorder %s29, %s31
      %p35 = scmp.eq.s32.totalorder %s9, 0
      %p36 = por %p34, %p35
      %p37 = scmp.ne.s32.totalorder %s29, %s31
      %p38 = scmp.eq.s32.totalorder %s14, 3
      %p39 = por %p37, %p38
      %p40 = scmp.ne.s32.totalorder %s31, %s32
      %p41 = scmp.eq.s32.totalorder %s14, 0
      %p42 = por %p40, %p41
      %p43 = scmp.ne.s32.totalorder %s31, %s32
      %p44 = scmp.eq.s32.totalorder %s15, 3
      %p45 = por %p43, %p44
      %p47 = scmp.ne.s32.totalorder %s32, %s46
      %p48 = scmp.eq.s32.totalorder %s15, 0
      %p49 = por %p47, %p48
      %s51 = sadd.s32 %s50, 1
      %p54 = scmp.eq.s32.totalorder %s9, 3
      %p55 = scmp.ne.s32.totalorder %s50, %s52
      %p56 = scmp.eq.s32.totalorder %s9, 0
      %p57 = por %p55, %p56
      %p58 = scmp.ne.s32.totalorder %s50, %s52
      %p59 = scmp.eq.s32.totalorder %s14, 3
      %p60 = por %p58, %p59
      %p61 = scmp.ne.s32.totalorder %s52, %s53
      %p62 = scmp.eq.s32.totalorder %s14, 0
      %p63 = por %p61, %p62
      %p64 = scmp.ne.s32.totalorder %s52, %s53
      %p65 = scmp.eq.s32.totalorder %s15, 3
      %p66 = por %p64, %p65
      %p68 = scmp.ne.s32.totalorder %s53, %s67
      %p69 = scmp.eq.s32.totalorder %s15, 0
      %p70 = por %p68, %p69
      %s71 = ssub.s32 %s16, %s28
      %s72 = ssub.s32 %s17, %s24
      %s73 = sor.u32 %s71, %s72
      %p74 = scmp.eq.s32.totalorder %s73, 0
      %s76 = sadd.s32 %s75, 1
      %s77 = scalar_select %p74, %s75, %s76
      %p80 = pneg %p74
      %p81 = scmp.eq.s32.totalorder %s9, 3
      %p82 = por %p80, %p81
      %p83 = scmp.ne.s32.totalorder %s75, %s78
      %p84 = scmp.eq.s32.totalorder %s9, 0
      %p85 = por %p83, %p84
      %p86 = scmp.ne.s32.totalorder %s75, %s78
      %p87 = scmp.eq.s32.totalorder %s14, 3
      %p88 = por %p86, %p87
      %p89 = scmp.ne.s32.totalorder %s78, %s79
      %p90 = scmp.eq.s32.totalorder %s14, 0
      %p91 = por %p89, %p90
      %p92 = scmp.ne.s32.totalorder %s78, %s79
      %p93 = scmp.eq.s32.totalorder %s15, 3
      %p94 = por %p92, %p93
      %p96 = scmp.ne.s32.totalorder %s79, %s95
      %p97 = scmp.eq.s32.totalorder %s15, 0
      %p98 = por %p96, %p97
      %s99 = ssub.s32 %s16, %s28
      %s100 = ssub.s32 %s17, %s24
      %s101 = sor.u32 %s99, %s100
      %p102 = scmp.eq.s32.totalorder %s101, 0
      %s104 = sadd.s32 %s103, 1
      %s105 = scalar_select %p102, %s103, %s104
      %p108 = pneg %p102
      %p109 = scmp.eq.s32.totalorder %s9, 3
      %p110 = por %p108, %p109
      %p111 = scmp.ne.s32.totalorder %s103, %s106
      %p112 = scmp.eq.s32.totalorder %s9, 0
      %p113 = por %p111, %p112
      %p114 = scmp.ne.s32.totalorder %s103, %s106
      %p115 = scmp.eq.s32.totalorder %s14, 3
      %p116 = por %p114, %p115
      %p117 = scmp.ne.s32.totalorder %s106, %s107
      %p118 = scmp.eq.s32.totalorder %s14, 0
      %p119 = por %p117, %p118
      %p120 = scmp.ne.s32.totalorder %s106, %s107
      %p121 = scmp.eq.s32.totalorder %s15, 3
      %p122 = por %p120, %p121
      %p124 = scmp.ne.s32.totalorder %s107, %s123
      %p125 = scmp.eq.s32.totalorder %s15, 0
      %p126 = por %p124, %p125
      %p127 = scmp.le.s32.totalorder 1, %s9
      %p128 = scmp.lt.s32.totalorder %s9, 5
      %p129 = pnand %p127, %p128
      %p130 = pneg %p129
      // Predicated region
      $region9: #{global_dis_forward.4} parent=5 // pred_check
        _
      $region10: #{global_dis_forward.4} parent=5 // pred_check_branch
        %132 = sbr.rel (%p129) target = $region12
      $region11: #{global_dis_forward.4} parent=5 // pred_region
        %s133 = ssub.s32 %s9, 1
        // Predicated region
        $region13: #{global_dis_forward.4} parent=11 // pred_check
          %p134 = pneg %p42
        $region14: #{global_dis_forward.4} parent=11 // pred_check_branch
          %136 = sbr.rel (%p134) target = $region16
        $region15: #{global_dis_forward.4} parent=11 // pred_region
          _
        $region16: #{global_dis_forward.4} parent=11 // pred_fallthru
          _
        // Predicated region
        $region17: #{global_dis_forward.4} parent=11 // pred_check
          %p137 = pneg %p63
        $region18: #{global_dis_forward.4} parent=11 // pred_check_branch
          %139 = sbr.rel (%p137) target = $region20
        $region19: #{global_dis_forward.4} parent=11 // pred_region
          _
        $region20: #{global_dis_forward.4} parent=11 // pred_fallthru
          _
      $region12: #{global_dis_forward.4} parent=5 // pred_fallthru
        _
      %p140 = scmp.lt.s32.totalorder %s9, 4
      // Predicated region
      $region21: #{global_dis_forward.4} parent=5 // pred_check
        %p141 = pneg %p140
      $region22: #{global_dis_forward.4} parent=5 // pred_check_branch
        %143 = sbr.rel (%p141) target = $region24
      $region23: #{global_dis_forward.4} parent=5 // pred_region
        // Predicated region
        $region25: #{global_dis_forward.4} parent=23 // pred_check
          %p144 = pneg %p85
        $region26: #{global_dis_forward.4} parent=23 // pred_check_branch
          %146 = sbr.rel (%p144) target = $region28
        $region27: #{global_dis_forward.4} parent=23 // pred_region
          %s147 = sand.u32 %s75, 1
          %s148 = sand.u32 %s75, 1
          %s149 = smul.addr %s148, 2560
          %s150 = scalar_lea.vmem [#allocation2], %s149
          %s151 = smul.u32 64, %s17
          %s152 = smul.addr %s16, 1280
          %s153 = sadd.s32 %s151, %s152
          %s154 = smul.addr %s153, 4
          %s155 = scalar_lea.vmem %s2, %s154
          // Predicated region
          $region29: #{global_dis_forward.4} parent=27 // pred_check
            _
          $region30: #{global_dis_forward.4} parent=27 // pred_check_branch
            %157 = sbr.rel (0) target = $region32
          $region31: #{global_dis_forward.4} parent=27 // pred_region
            // Predicated region
            $region33: #{global_dis_forward.4} parent=31 // pred_check
              _
            $region34: #{global_dis_forward.4} parent=31 // pred_check_branch
              %159 = sbr.rel (0) target = $region36
            $region35: #{global_dis_forward.4} parent=31 // pred_region
              loop: start=0, step=1, limit=1
              $region37: #{global_dis_forward.4} parent=35 // loop_pre_header
                _
              $region38: #{global_dis_forward.4} parent=35 // loop_header
                %s161 = sphi 0, %s165
                %p162 = scmp.ge.s32.totalorder %s161, 1
                %s166 = sphi %s155, %s155
                %s167 = sphi %s150, %s150
              $region39: #{global_dis_forward.4} parent=35 // loop_header_branch
                %164 = sbr.rel (%p162) target = $region43
              $region40: #{global_dis_forward.4} parent=35 // loop_body
                %v168 = vld [vmem:[%s166] sm:$0xff]
                %169 = vst [vmem:[%s167] sm:$0xff] %v168
                %v170 = vld [vmem:[%s166 + $0x8] sm:$0xff]
                %171 = vst [vmem:[%s167 + $0x8] sm:$0xff] %v170
                %v172 = vld [vmem:[%s166 + $0x10] sm:$0xff]
                %173 = vst [vmem:[%s167 + $0x10] sm:$0xff] %v172
                %v174 = vld [vmem:[%s166 + $0x18] sm:$0xff]
                %175 = vst [vmem:[%s167 + $0x18] sm:$0xff] %v174
                %v176 = vld [vmem:[%s166 + $0x20] sm:$0xff]
                %177 = vst [vmem:[%s167 + $0x20] sm:$0xff] %v176
                %v178 = vld [vmem:[%s166 + $0x28] sm:$0xff]
                %179 = vst [vmem:[%s167 + $0x28] sm:$0xff] %v178
                %v180 = vld [vmem:[%s166 + $0x30] sm:$0xff]
                %181 = vst [vmem:[%s167 + $0x30] sm:$0xff] %v180
                %v182 = vld [vmem:[%s166 + $0x38] sm:$0xff]
                %183 = vst [vmem:[%s167 + $0x38] sm:$0xff] %v182
                %v184 = vld [vmem:[%s166 + $0x40] sm:$0xff]
                %185 = vst [vmem:[%s167 + $0x40] sm:$0xff] %v184
                %v186 = vld [vmem:[%s166 + $0x48] sm:$0xff]
                %187 = vst [vmem:[%s167 + $0x48] sm:$0xff] %v186
                %v188 = vld [vmem:[%s166 + $0x50] sm:$0xff]
                %189 = vst [vmem:[%s167 + $0x50] sm:$0xff] %v188
                %v190 = vld [vmem:[%s166 + $0x58] sm:$0xff]
                %191 = vst [vmem:[%s167 + $0x58] sm:$0xff] %v190
                %v192 = vld [vmem:[%s166 + $0x60] sm:$0xff]
                %193 = vst [vmem:[%s167 + $0x60] sm:$0xff] %v192
                %v194 = vld [vmem:[%s166 + $0x68] sm:$0xff]
                %195 = vst [vmem:[%s167 + $0x68] sm:$0xff] %v194
                %v196 = vld [vmem:[%s166 + $0x70] sm:$0xff]
                %197 = vst [vmem:[%s167 + $0x70] sm:$0xff] %v196
                %v198 = vld [vmem:[%s166 + $0x78] sm:$0xff]
                %199 = vst [vmem:[%s167 + $0x78] sm:$0xff] %v198
                %v200 = vld [vmem:[%s166 + $0x80] sm:$0xff]
                %201 = vst [vmem:[%s167 + $0x80] sm:$0xff] %v200
                %v202 = vld [vmem:[%s166 + $0x88] sm:$0xff]
                %203 = vst [vmem:[%s167 + $0x88] sm:$0xff] %v202
                %v204 = vld [vmem:[%s166 + $0x90] sm:$0xff]
                %205 = vst [vmem:[%s167 + $0x90] sm:$0xff] %v204
                %v206 = vld [vmem:[%s166 + $0x98] sm:$0xff]
                %207 = vst [vmem:[%s167 + $0x98] sm:$0xff] %v206
                %v208 = vld [vmem:[%s166 + $0xa0] sm:$0xff]
                %209 = vst [vmem:[%s167 + $0xa0] sm:$0xff] %v208
                %v210 = vld [vmem:[%s166 + $0xa8] sm:$0xff]
                %211 = vst [vmem:[%s167 + $0xa8] sm:$0xff] %v210
                %v212 = vld [vmem:[%s166 + $0xb0] sm:$0xff]
                %213 = vst [vmem:[%s167 + $0xb0] sm:$0xff] %v212
                %v214 = vld [vmem:[%s166 + $0xb8] sm:$0xff]
                %215 = vst [vmem:[%s167 + $0xb8] sm:$0xff] %v214
                %v216 = vld [vmem:[%s166 + $0xc0] sm:$0xff]
                %217 = vst [vmem:[%s167 + $0xc0] sm:$0xff] %v216
                %v218 = vld [vmem:[%s166 + $0xc8] sm:$0xff]
                %219 = vst [vmem:[%s167 + $0xc8] sm:$0xff] %v218
                %v220 = vld [vmem:[%s166 + $0xd0] sm:$0xff]
                %221 = vst [vmem:[%s167 + $0xd0] sm:$0xff] %v220
                %v222 = vld [vmem:[%s166 + $0xd8] sm:$0xff]
                %223 = vst [vmem:[%s167 + $0xd8] sm:$0xff] %v222
                %v224 = vld [vmem:[%s166 + $0xe0] sm:$0xff]
                %225 = vst [vmem:[%s167 + $0xe0] sm:$0xff] %v224
                %v226 = vld [vmem:[%s166 + $0xe8] sm:$0xff]
                %227 = vst [vmem:[%s167 + $0xe8] sm:$0xff] %v226
                %v228 = vld [vmem:[%s166 + $0xf0] sm:$0xff]
                %229 = vst [vmem:[%s167 + $0xf0] sm:$0xff] %v228
                %v230 = vld [vmem:[%s166 + $0xf8] sm:$0xff]
                %231 = vst [vmem:[%s167 + $0xf8] sm:$0xff] %v230
                %v232 = vld [vmem:[%s166 + $0x200] sm:$0xff]
                %233 = vst [vmem:[%s167 + $0x100] sm:$0xff] %v232
                %v234 = vld [vmem:[%s166 + $0x208] sm:$0xff]
                %235 = vst [vmem:[%s167 + $0x108] sm:$0xff] %v234
                %v236 = vld [vmem:[%s166 + $0x210] sm:$0xff]
                %237 = vst [vmem:[%s167 + $0x110] sm:$0xff] %v236
                %v238 = vld [vmem:[%s166 + $0x218] sm:$0xff]
                %239 = vst [vmem:[%s167 + $0x118] sm:$0xff] %v238
                %v240 = vld [vmem:[%s166 + $0x220] sm:$0xff]
                %241 = vst [vmem:[%s167 + $0x120] sm:$0xff] %v240
                %v242 = vld [vmem:[%s166 + $0x228] sm:$0xff]
                %243 = vst [vmem:[%s167 + $0x128] sm:$0xff] %v242
                %v244 = vld [vmem:[%s166 + $0x230] sm:$0xff]
                %245 = vst [vmem:[%s167 + $0x130] sm:$0xff] %v244
                %v246 = vld [vmem:[%s166 + $0x238] sm:$0xff]
                %247 = vst [vmem:[%s167 + $0x138] sm:$0xff] %v246
                %v248 = vld [vmem:[%s166 + $0x240] sm:$0xff]
                %249 = vst [vmem:[%s167 + $0x140] sm:$0xff] %v248
                %v250 = vld [vmem:[%s166 + $0x248] sm:$0xff]
                %251 = vst [vmem:[%s167 + $0x148] sm:$0xff] %v250
                %v252 = vld [vmem:[%s166 + $0x250] sm:$0xff]
                %253 = vst [vmem:[%s167 + $0x150] sm:$0xff] %v252
                %v254 = vld [vmem:[%s166 + $0x258] sm:$0xff]
                %255 = vst [vmem:[%s167 + $0x158] sm:$0xff] %v254
                %v256 = vld [vmem:[%s166 + $0x260] sm:$0xff]
                %257 = vst [vmem:[%s167 + $0x160] sm:$0xff] %v256
                %v258 = vld [vmem:[%s166 + $0x268] sm:$0xff]
                %259 = vst [vmem:[%s167 + $0x168] sm:$0xff] %v258
                %v260 = vld [vmem:[%s166 + $0x270] sm:$0xff]
                %261 = vst [vmem:[%s167 + $0x170] sm:$0xff] %v260
                %v262 = vld [vmem:[%s166 + $0x278] sm:$0xff]
                %263 = vst [vmem:[%s167 + $0x178] sm:$0xff] %v262
                %v264 = vld [vmem:[%s166 + $0x280] sm:$0xff]
                %265 = vst [vmem:[%s167 + $0x180] sm:$0xff] %v264
                %v266 = vld [vmem:[%s166 + $0x288] sm:$0xff]
                %267 = vst [vmem:[%s167 + $0x188] sm:$0xff] %v266
                %v268 = vld [vmem:[%s166 + $0x290] sm:$0xff]
                %269 = vst [vmem:[%s167 + $0x190] sm:$0xff] %v268
                %v270 = vld [vmem:[%s166 + $0x298] sm:$0xff]
                %271 = vst [vmem:[%s167 + $0x198] sm:$0xff] %v270
                %v272 = vld [vmem:[%s166 + $0x2a0] sm:$0xff]
                %273 = vst [vmem:[%s167 + $0x1a0] sm:$0xff] %v272
                %v274 = vld [vmem:[%s166 + $0x2a8] sm:$0xff]
                %275 = vst [vmem:[%s167 + $0x1a8] sm:$0xff] %v274
                %v276 = vld [vmem:[%s166 + $0x2b0] sm:$0xff]
                %277 = vst [vmem:[%s167 + $0x1b0] sm:$0xff] %v276
                %v278 = vld [vmem:[%s166 + $0x2b8] sm:$0xff]
                %279 = vst [vmem:[%s167 + $0x1b8] sm:$0xff] %v278
                %v280 = vld [vmem:[%s166 + $0x2c0] sm:$0xff]
                %281 = vst [vmem:[%s167 + $0x1c0] sm:$0xff] %v280
                %v282 = vld [vmem:[%s166 + $0x2c8] sm:$0xff]
                %283 = vst [vmem:[%s167 + $0x1c8] sm:$0xff] %v282
                %v284 = vld [vmem:[%s166 + $0x2d0] sm:$0xff]
                %285 = vst [vmem:[%s167 + $0x1d0] sm:$0xff] %v284
                %v286 = vld [vmem:[%s166 + $0x2d8] sm:$0xff]
                %287 = vst [vmem:[%s167 + $0x1d8] sm:$0xff] %v286
                %v288 = vld [vmem:[%s166 + $0x2e0] sm:$0xff]
                %289 = vst [vmem:[%s167 + $0x1e0] sm:$0xff] %v288
                %v290 = vld [vmem:[%s166 + $0x2e8] sm:$0xff]
                %291 = vst [vmem:[%s167 + $0x1e8] sm:$0xff] %v290
                %v292 = vld [vmem:[%s166 + $0x2f0] sm:$0xff]
                %293 = vst [vmem:[%s167 + $0x1f0] sm:$0xff] %v292
                %v294 = vld [vmem:[%s166 + $0x2f8] sm:$0xff]
                %295 = vst [vmem:[%s167 + $0x1f8] sm:$0xff] %v294
                %v296 = vld [vmem:[%s166 + $0x400] sm:$0xff]
                %297 = vst [vmem:[%s167 + $0x200] sm:$0xff] %v296
                %v298 = vld [vmem:[%s166 + $0x408] sm:$0xff]
                %299 = vst [vmem:[%s167 + $0x208] sm:$0xff] %v298
                %v300 = vld [vmem:[%s166 + $0x410] sm:$0xff]
                %301 = vst [vmem:[%s167 + $0x210] sm:$0xff] %v300
                %v302 = vld [vmem:[%s166 + $0x418] sm:$0xff]
                %303 = vst [vmem:[%s167 + $0x218] sm:$0xff] %v302
                %v304 = vld [vmem:[%s166 + $0x420] sm:$0xff]
                %305 = vst [vmem:[%s167 + $0x220] sm:$0xff] %v304
                %v306 = vld [vmem:[%s166 + $0x428] sm:$0xff]
                %307 = vst [vmem:[%s167 + $0x228] sm:$0xff] %v306
                %v308 = vld [vmem:[%s166 + $0x430] sm:$0xff]
                %309 = vst [vmem:[%s167 + $0x230] sm:$0xff] %v308
                %v310 = vld [vmem:[%s166 + $0x438] sm:$0xff]
                %311 = vst [vmem:[%s167 + $0x238] sm:$0xff] %v310
                %v312 = vld [vmem:[%s166 + $0x440] sm:$0xff]
                %313 = vst [vmem:[%s167 + $0x240] sm:$0xff] %v312
                %v314 = vld [vmem:[%s166 + $0x448] sm:$0xff]
                %315 = vst [vmem:[%s167 + $0x248] sm:$0xff] %v314
                %v316 = vld [vmem:[%s166 + $0x450] sm:$0xff]
                %317 = vst [vmem:[%s167 + $0x250] sm:$0xff] %v316
                %v318 = vld [vmem:[%s166 + $0x458] sm:$0xff]
                %319 = vst [vmem:[%s167 + $0x258] sm:$0xff] %v318
                %v320 = vld [vmem:[%s166 + $0x460] sm:$0xff]
                %321 = vst [vmem:[%s167 + $0x260] sm:$0xff] %v320
                %v322 = vld [vmem:[%s166 + $0x468] sm:$0xff]
                %323 = vst [vmem:[%s167 + $0x268] sm:$0xff] %v322
                %v324 = vld [vmem:[%s166 + $0x470] sm:$0xff]
                %325 = vst [vmem:[%s167 + $0x270] sm:$0xff] %v324
                %v326 = vld [vmem:[%s166 + $0x478] sm:$0xff]
                %327 = vst [vmem:[%s167 + $0x278] sm:$0xff] %v326
                %v328 = vld [vmem:[%s166 + $0x480] sm:$0xff]
                %329 = vst [vmem:[%s167 + $0x280] sm:$0xff] %v328
                %v330 = vld [vmem:[%s166 + $0x488] sm:$0xff]
                %331 = vst [vmem:[%s167 + $0x288] sm:$0xff] %v330
                %v332 = vld [vmem:[%s166 + $0x490] sm:$0xff]
                %333 = vst [vmem:[%s167 + $0x290] sm:$0xff] %v332
                %v334 = vld [vmem:[%s166 + $0x498] sm:$0xff]
                %335 = vst [vmem:[%s167 + $0x298] sm:$0xff] %v334
                %v336 = vld [vmem:[%s166 + $0x4a0] sm:$0xff]
                %337 = vst [vmem:[%s167 + $0x2a0] sm:$0xff] %v336
                %v338 = vld [vmem:[%s166 + $0x4a8] sm:$0xff]
                %339 = vst [vmem:[%s167 + $0x2a8] sm:$0xff] %v338
                %v340 = vld [vmem:[%s166 + $0x4b0] sm:$0xff]
                %341 = vst [vmem:[%s167 + $0x2b0] sm:$0xff] %v340
                %v342 = vld [vmem:[%s166 + $0x4b8] sm:$0xff]
                %343 = vst [vmem:[%s167 + $0x2b8] sm:$0xff] %v342
                %v344 = vld [vmem:[%s166 + $0x4c0] sm:$0xff]
                %345 = vst [vmem:[%s167 + $0x2c0] sm:$0xff] %v344
                %v346 = vld [vmem:[%s166 + $0x4c8] sm:$0xff]
                %347 = vst [vmem:[%s167 + $0x2c8] sm:$0xff] %v346
                %v348 = vld [vmem:[%s166 + $0x4d0] sm:$0xff]
                %349 = vst [vmem:[%s167 + $0x2d0] sm:$0xff] %v348
                %v350 = vld [vmem:[%s166 + $0x4d8] sm:$0xff]
                %351 = vst [vmem:[%s167 + $0x2d8] sm:$0xff] %v350
                %v352 = vld [vmem:[%s166 + $0x4e0] sm:$0xff]
                %353 = vst [vmem:[%s167 + $0x2e0] sm:$0xff] %v352
                %v354 = vld [vmem:[%s166 + $0x4e8] sm:$0xff]
                %355 = vst [vmem:[%s167 + $0x2e8] sm:$0xff] %v354
                %v356 = vld [vmem:[%s166 + $0x4f0] sm:$0xff]
                %357 = vst [vmem:[%s167 + $0x2f0] sm:$0xff] %v356
                %v358 = vld [vmem:[%s166 + $0x4f8] sm:$0xff]
                %359 = vst [vmem:[%s167 + $0x2f8] sm:$0xff] %v358
                %v360 = vld [vmem:[%s166 + $0x600] sm:$0xff]
                %361 = vst [vmem:[%s167 + $0x300] sm:$0xff] %v360
                %v362 = vld [vmem:[%s166 + $0x608] sm:$0xff]
                %363 = vst [vmem:[%s167 + $0x308] sm:$0xff] %v362
                %v364 = vld [vmem:[%s166 + $0x610] sm:$0xff]
                %365 = vst [vmem:[%s167 + $0x310] sm:$0xff] %v364
                %v366 = vld [vmem:[%s166 + $0x618] sm:$0xff]
                %367 = vst [vmem:[%s167 + $0x318] sm:$0xff] %v366
                %v368 = vld [vmem:[%s166 + $0x620] sm:$0xff]
                %369 = vst [vmem:[%s167 + $0x320] sm:$0xff] %v368
                %v370 = vld [vmem:[%s166 + $0x628] sm:$0xff]
                %371 = vst [vmem:[%s167 + $0x328] sm:$0xff] %v370
                %v372 = vld [vmem:[%s166 + $0x630] sm:$0xff]
                %373 = vst [vmem:[%s167 + $0x330] sm:$0xff] %v372
                %v374 = vld [vmem:[%s166 + $0x638] sm:$0xff]
                %375 = vst [vmem:[%s167 + $0x338] sm:$0xff] %v374
                %v376 = vld [vmem:[%s166 + $0x640] sm:$0xff]
                %377 = vst [vmem:[%s167 + $0x340] sm:$0xff] %v376
                %v378 = vld [vmem:[%s166 + $0x648] sm:$0xff]
                %379 = vst [vmem:[%s167 + $0x348] sm:$0xff] %v378
                %v380 = vld [vmem:[%s166 + $0x650] sm:$0xff]
                %381 = vst [vmem:[%s167 + $0x350] sm:$0xff] %v380
                %v382 = vld [vmem:[%s166 + $0x658] sm:$0xff]
                %383 = vst [vmem:[%s167 + $0x358] sm:$0xff] %v382
                %v384 = vld [vmem:[%s166 + $0x660] sm:$0xff]
                %385 = vst [vmem:[%s167 + $0x360] sm:$0xff] %v384
                %v386 = vld [vmem:[%s166 + $0x668] sm:$0xff]
                %387 = vst [vmem:[%s167 + $0x368] sm:$0xff] %v386
                %v388 = vld [vmem:[%s166 + $0x670] sm:$0xff]
                %389 = vst [vmem:[%s167 + $0x370] sm:$0xff] %v388
                %v390 = vld [vmem:[%s166 + $0x678] sm:$0xff]
                %391 = vst [vmem:[%s167 + $0x378] sm:$0xff] %v390
                %v392 = vld [vmem:[%s166 + $0x680] sm:$0xff]
                %393 = vst [vmem:[%s167 + $0x380] sm:$0xff] %v392
                %v394 = vld [vmem:[%s166 + $0x688] sm:$0xff]
                %395 = vst [vmem:[%s167 + $0x388] sm:$0xff] %v394
                %v396 = vld [vmem:[%s166 + $0x690] sm:$0xff]
                %397 = vst [vmem:[%s167 + $0x390] sm:$0xff] %v396
                %v398 = vld [vmem:[%s166 + $0x698] sm:$0xff]
                %399 = vst [vmem:[%s167 + $0x398] sm:$0xff] %v398
                %v400 = vld [vmem:[%s166 + $0x6a0] sm:$0xff]
                %401 = vst [vmem:[%s167 + $0x3a0] sm:$0xff] %v400
                %v402 = vld [vmem:[%s166 + $0x6a8] sm:$0xff]
                %403 = vst [vmem:[%s167 + $0x3a8] sm:$0xff] %v402
                %v404 = vld [vmem:[%s166 + $0x6b0] sm:$0xff]
                %405 = vst [vmem:[%s167 + $0x3b0] sm:$0xff] %v404
                %v406 = vld [vmem:[%s166 + $0x6b8] sm:$0xff]
                %407 = vst [vmem:[%s167 + $0x3b8] sm:$0xff] %v406
                %v408 = vld [vmem:[%s166 + $0x6c0] sm:$0xff]
                %409 = vst [vmem:[%s167 + $0x3c0] sm:$0xff] %v408
                %v410 = vld [vmem:[%s166 + $0x6c8] sm:$0xff]
                %411 = vst [vmem:[%s167 + $0x3c8] sm:$0xff] %v410
                %v412 = vld [vmem:[%s166 + $0x6d0] sm:$0xff]
                %413 = vst [vmem:[%s167 + $0x3d0] sm:$0xff] %v412
                %v414 = vld [vmem:[%s166 + $0x6d8] sm:$0xff]
                %415 = vst [vmem:[%s167 + $0x3d8] sm:$0xff] %v414
                %v416 = vld [vmem:[%s166 + $0x6e0] sm:$0xff]
                %417 = vst [vmem:[%s167 + $0x3e0] sm:$0xff] %v416
                %v418 = vld [vmem:[%s166 + $0x6e8] sm:$0xff]
                %419 = vst [vmem:[%s167 + $0x3e8] sm:$0xff] %v418
                %v420 = vld [vmem:[%s166 + $0x6f0] sm:$0xff]
                %421 = vst [vmem:[%s167 + $0x3f0] sm:$0xff] %v420
                %v422 = vld [vmem:[%s166 + $0x6f8] sm:$0xff]
                %423 = vst [vmem:[%s167 + $0x3f8] sm:$0xff] %v422
                %v424 = vld [vmem:[%s166 + $0x800] sm:$0xff]
                %425 = vst [vmem:[%s167 + $0x400] sm:$0xff] %v424
                %v426 = vld [vmem:[%s166 + $0x808] sm:$0xff]
                %427 = vst [vmem:[%s167 + $0x408] sm:$0xff] %v426
                %v428 = vld [vmem:[%s166 + $0x810] sm:$0xff]
                %429 = vst [vmem:[%s167 + $0x410] sm:$0xff] %v428
                %v430 = vld [vmem:[%s166 + $0x818] sm:$0xff]
                %431 = vst [vmem:[%s167 + $0x418] sm:$0xff] %v430
                %v432 = vld [vmem:[%s166 + $0x820] sm:$0xff]
                %433 = vst [vmem:[%s167 + $0x420] sm:$0xff] %v432
                %v434 = vld [vmem:[%s166 + $0x828] sm:$0xff]
                %435 = vst [vmem:[%s167 + $0x428] sm:$0xff] %v434
                %v436 = vld [vmem:[%s166 + $0x830] sm:$0xff]
                %437 = vst [vmem:[%s167 + $0x430] sm:$0xff] %v436
                %v438 = vld [vmem:[%s166 + $0x838] sm:$0xff]
                %439 = vst [vmem:[%s167 + $0x438] sm:$0xff] %v438
                %v440 = vld [vmem:[%s166 + $0x840] sm:$0xff]
                %441 = vst [vmem:[%s167 + $0x440] sm:$0xff] %v440
                %v442 = vld [vmem:[%s166 + $0x848] sm:$0xff]
                %443 = vst [vmem:[%s167 + $0x448] sm:$0xff] %v442
                %v444 = vld [vmem:[%s166 + $0x850] sm:$0xff]
                %445 = vst [vmem:[%s167 + $0x450] sm:$0xff] %v444
                %v446 = vld [vmem:[%s166 + $0x858] sm:$0xff]
                %447 = vst [vmem:[%s167 + $0x458] sm:$0xff] %v446
                %v448 = vld [vmem:[%s166 + $0x860] sm:$0xff]
                %449 = vst [vmem:[%s167 + $0x460] sm:$0xff] %v448
                %v450 = vld [vmem:[%s166 + $0x868] sm:$0xff]
                %451 = vst [vmem:[%s167 + $0x468] sm:$0xff] %v450
                %v452 = vld [vmem:[%s166 + $0x870] sm:$0xff]
                %453 = vst [vmem:[%s167 + $0x470] sm:$0xff] %v452
                %v454 = vld [vmem:[%s166 + $0x878] sm:$0xff]
                %455 = vst [vmem:[%s167 + $0x478] sm:$0xff] %v454
                %v456 = vld [vmem:[%s166 + $0x880] sm:$0xff]
                %457 = vst [vmem:[%s167 + $0x480] sm:$0xff] %v456
                %v458 = vld [vmem:[%s166 + $0x888] sm:$0xff]
                %459 = vst [vmem:[%s167 + $0x488] sm:$0xff] %v458
                %v460 = vld [vmem:[%s166 + $0x890] sm:$0xff]
                %461 = vst [vmem:[%s167 + $0x490] sm:$0xff] %v460
                %v462 = vld [vmem:[%s166 + $0x898] sm:$0xff]
                %463 = vst [vmem:[%s167 + $0x498] sm:$0xff] %v462
                %v464 = vld [vmem:[%s166 + $0x8a0] sm:$0xff]
                %465 = vst [vmem:[%s167 + $0x4a0] sm:$0xff] %v464
                %v466 = vld [vmem:[%s166 + $0x8a8] sm:$0xff]
                %467 = vst [vmem:[%s167 + $0x4a8] sm:$0xff] %v466
                %v468 = vld [vmem:[%s166 + $0x8b0] sm:$0xff]
                %469 = vst [vmem:[%s167 + $0x4b0] sm:$0xff] %v468
                %v470 = vld [vmem:[%s166 + $0x8b8] sm:$0xff]
                %471 = vst [vmem:[%s167 + $0x4b8] sm:$0xff] %v470
                %v472 = vld [vmem:[%s166 + $0x8c0] sm:$0xff]
                %473 = vst [vmem:[%s167 + $0x4c0] sm:$0xff] %v472
                %v474 = vld [vmem:[%s166 + $0x8c8] sm:$0xff]
                %475 = vst [vmem:[%s167 + $0x4c8] sm:$0xff] %v474
                %v476 = vld [vmem:[%s166 + $0x8d0] sm:$0xff]
                %477 = vst [vmem:[%s167 + $0x4d0] sm:$0xff] %v476
                %v478 = vld [vmem:[%s166 + $0x8d8] sm:$0xff]
                %479 = vst [vmem:[%s167 + $0x4d8] sm:$0xff] %v478
                %v480 = vld [vmem:[%s166 + $0x8e0] sm:$0xff]
                %481 = vst [vmem:[%s167 + $0x4e0] sm:$0xff] %v480
                %v482 = vld [vmem:[%s166 + $0x8e8] sm:$0xff]
                %483 = vst [vmem:[%s167 + $0x4e8] sm:$0xff] %v482
                %v484 = vld [vmem:[%s166 + $0x8f0] sm:$0xff]
                %485 = vst [vmem:[%s167 + $0x4f0] sm:$0xff] %v484
                %v486 = vld [vmem:[%s166 + $0x8f8] sm:$0xff]
                %487 = vst [vmem:[%s167 + $0x4f8] sm:$0xff] %v486
                %v488 = vld [vmem:[%s166 + $0xa00] sm:$0xff]
                %489 = vst [vmem:[%s167 + $0x500] sm:$0xff] %v488
                %v490 = vld [vmem:[%s166 + $0xa08] sm:$0xff]
                %491 = vst [vmem:[%s167 + $0x508] sm:$0xff] %v490
                %v492 = vld [vmem:[%s166 + $0xa10] sm:$0xff]
                %493 = vst [vmem:[%s167 + $0x510] sm:$0xff] %v492
                %v494 = vld [vmem:[%s166 + $0xa18] sm:$0xff]
                %495 = vst [vmem:[%s167 + $0x518] sm:$0xff] %v494
                %v496 = vld [vmem:[%s166 + $0xa20] sm:$0xff]
                %497 = vst [vmem:[%s167 + $0x520] sm:$0xff] %v496
                %v498 = vld [vmem:[%s166 + $0xa28] sm:$0xff]
                %499 = vst [vmem:[%s167 + $0x528] sm:$0xff] %v498
                %v500 = vld [vmem:[%s166 + $0xa30] sm:$0xff]
                %501 = vst [vmem:[%s167 + $0x530] sm:$0xff] %v500
                %v502 = vld [vmem:[%s166 + $0xa38] sm:$0xff]
                %503 = vst [vmem:[%s167 + $0x538] sm:$0xff] %v502
                %v504 = vld [vmem:[%s166 + $0xa40] sm:$0xff]
                %505 = vst [vmem:[%s167 + $0x540] sm:$0xff] %v504
                %v506 = vld [vmem:[%s166 + $0xa48] sm:$0xff]
                %507 = vst [vmem:[%s167 + $0x548] sm:$0xff] %v506
                %v508 = vld [vmem:[%s166 + $0xa50] sm:$0xff]
                %509 = vst [vmem:[%s167 + $0x550] sm:$0xff] %v508
                %v510 = vld [vmem:[%s166 + $0xa58] sm:$0xff]
                %511 = vst [vmem:[%s167 + $0x558] sm:$0xff] %v510
                %v512 = vld [vmem:[%s166 + $0xa60] sm:$0xff]
                %513 = vst [vmem:[%s167 + $0x560] sm:$0xff] %v512
                %v514 = vld [vmem:[%s166 + $0xa68] sm:$0xff]
                %515 = vst [vmem:[%s167 + $0x568] sm:$0xff] %v514
                %v516 = vld [vmem:[%s166 + $0xa70] sm:$0xff]
                %517 = vst [vmem:[%s167 + $0x570] sm:$0xff] %v516
                %v518 = vld [vmem:[%s166 + $0xa78] sm:$0xff]
                %519 = vst [vmem:[%s167 + $0x578] sm:$0xff] %v518
                %v520 = vld [vmem:[%s166 + $0xa80] sm:$0xff]
                %521 = vst [vmem:[%s167 + $0x580] sm:$0xff] %v520
                %v522 = vld [vmem:[%s166 + $0xa88] sm:$0xff]
                %523 = vst [vmem:[%s167 + $0x588] sm:$0xff] %v522
                %v524 = vld [vmem:[%s166 + $0xa90] sm:$0xff]
                %525 = vst [vmem:[%s167 + $0x590] sm:$0xff] %v524
                %v526 = vld [vmem:[%s166 + $0xa98] sm:$0xff]
                %527 = vst [vmem:[%s167 + $0x598] sm:$0xff] %v526
                %v528 = vld [vmem:[%s166 + $0xaa0] sm:$0xff]
                %529 = vst [vmem:[%s167 + $0x5a0] sm:$0xff] %v528
                %v530 = vld [vmem:[%s166 + $0xaa8] sm:$0xff]
                %531 = vst [vmem:[%s167 + $0x5a8] sm:$0xff] %v530
                %v532 = vld [vmem:[%s166 + $0xab0] sm:$0xff]
                %533 = vst [vmem:[%s167 + $0x5b0] sm:$0xff] %v532
                %v534 = vld [vmem:[%s166 + $0xab8] sm:$0xff]
                %535 = vst [vmem:[%s167 + $0x5b8] sm:$0xff] %v534
                %v536 = vld [vmem:[%s166 + $0xac0] sm:$0xff]
                %537 = vst [vmem:[%s167 + $0x5c0] sm:$0xff] %v536
                %v538 = vld [vmem:[%s166 + $0xac8] sm:$0xff]
                %539 = vst [vmem:[%s167 + $0x5c8] sm:$0xff] %v538
                %v540 = vld [vmem:[%s166 + $0xad0] sm:$0xff]
                %541 = vst [vmem:[%s167 + $0x5d0] sm:$0xff] %v540
                %v542 = vld [vmem:[%s166 + $0xad8] sm:$0xff]
                %543 = vst [vmem:[%s167 + $0x5d8] sm:$0xff] %v542
                %v544 = vld [vmem:[%s166 + $0xae0] sm:$0xff]
                %545 = vst [vmem:[%s167 + $0x5e0] sm:$0xff] %v544
                %v546 = vld [vmem:[%s166 + $0xae8] sm:$0xff]
                %547 = vst [vmem:[%s167 + $0x5e8] sm:$0xff] %v546
                %v548 = vld [vmem:[%s166 + $0xaf0] sm:$0xff]
                %549 = vst [vmem:[%s167 + $0x5f0] sm:$0xff] %v548
                %v550 = vld [vmem:[%s166 + $0xaf8] sm:$0xff]
                %551 = vst [vmem:[%s167 + $0x5f8] sm:$0xff] %v550
                %v552 = vld [vmem:[%s166 + $0xc00] sm:$0xff]
                %553 = vst [vmem:[%s167 + $0x600] sm:$0xff] %v552
                %v554 = vld [vmem:[%s166 + $0xc08] sm:$0xff]
                %555 = vst [vmem:[%s167 + $0x608] sm:$0xff] %v554
                %v556 = vld [vmem:[%s166 + $0xc10] sm:$0xff]
                %557 = vst [vmem:[%s167 + $0x610] sm:$0xff] %v556
                %v558 = vld [vmem:[%s166 + $0xc18] sm:$0xff]
                %559 = vst [vmem:[%s167 + $0x618] sm:$0xff] %v558
                %v560 = vld [vmem:[%s166 + $0xc20] sm:$0xff]
                %561 = vst [vmem:[%s167 + $0x620] sm:$0xff] %v560
                %v562 = vld [vmem:[%s166 + $0xc28] sm:$0xff]
                %563 = vst [vmem:[%s167 + $0x628] sm:$0xff] %v562
                %v564 = vld [vmem:[%s166 + $0xc30] sm:$0xff]
                %565 = vst [vmem:[%s167 + $0x630] sm:$0xff] %v564
                %v566 = vld [vmem:[%s166 + $0xc38] sm:$0xff]
                %567 = vst [vmem:[%s167 + $0x638] sm:$0xff] %v566
                %v568 = vld [vmem:[%s166 + $0xc40] sm:$0xff]
                %569 = vst [vmem:[%s167 + $0x640] sm:$0xff] %v568
                %v570 = vld [vmem:[%s166 + $0xc48] sm:$0xff]
                %571 = vst [vmem:[%s167 + $0x648] sm:$0xff] %v570
                %v572 = vld [vmem:[%s166 + $0xc50] sm:$0xff]
                %573 = vst [vmem:[%s167 + $0x650] sm:$0xff] %v572
                %v574 = vld [vmem:[%s166 + $0xc58] sm:$0xff]
                %575 = vst [vmem:[%s167 + $0x658] sm:$0xff] %v574
                %v576 = vld [vmem:[%s166 + $0xc60] sm:$0xff]
                %577 = vst [vmem:[%s167 + $0x660] sm:$0xff] %v576
                %v578 = vld [vmem:[%s166 + $0xc68] sm:$0xff]
                %579 = vst [vmem:[%s167 + $0x668] sm:$0xff] %v578
                %v580 = vld [vmem:[%s166 + $0xc70] sm:$0xff]
                %581 = vst [vmem:[%s167 + $0x670] sm:$0xff] %v580
                %v582 = vld [vmem:[%s166 + $0xc78] sm:$0xff]
                %583 = vst [vmem:[%s167 + $0x678] sm:$0xff] %v582
                %v584 = vld [vmem:[%s166 + $0xc80] sm:$0xff]
                %585 = vst [vmem:[%s167 + $0x680] sm:$0xff] %v584
                %v586 = vld [vmem:[%s166 + $0xc88] sm:$0xff]
                %587 = vst [vmem:[%s167 + $0x688] sm:$0xff] %v586
                %v588 = vld [vmem:[%s166 + $0xc90] sm:$0xff]
                %589 = vst [vmem:[%s167 + $0x690] sm:$0xff] %v588
                %v590 = vld [vmem:[%s166 + $0xc98] sm:$0xff]
                %591 = vst [vmem:[%s167 + $0x698] sm:$0xff] %v590
                %v592 = vld [vmem:[%s166 + $0xca0] sm:$0xff]
                %593 = vst [vmem:[%s167 + $0x6a0] sm:$0xff] %v592
                %v594 = vld [vmem:[%s166 + $0xca8] sm:$0xff]
                %595 = vst [vmem:[%s167 + $0x6a8] sm:$0xff] %v594
                %v596 = vld [vmem:[%s166 + $0xcb0] sm:$0xff]
                %597 = vst [vmem:[%s167 + $0x6b0] sm:$0xff] %v596
                %v598 = vld [vmem:[%s166 + $0xcb8] sm:$0xff]
                %599 = vst [vmem:[%s167 + $0x6b8] sm:$0xff] %v598
                %v600 = vld [vmem:[%s166 + $0xcc0] sm:$0xff]
                %601 = vst [vmem:[%s167 + $0x6c0] sm:$0xff] %v600
                %v602 = vld [vmem:[%s166 + $0xcc8] sm:$0xff]
                %603 = vst [vmem:[%s167 + $0x6c8] sm:$0xff] %v602
                %v604 = vld [vmem:[%s166 + $0xcd0] sm:$0xff]
                %605 = vst [vmem:[%s167 + $0x6d0] sm:$0xff] %v604
                %v606 = vld [vmem:[%s166 + $0xcd8] sm:$0xff]
                %607 = vst [vmem:[%s167 + $0x6d8] sm:$0xff] %v606
                %v608 = vld [vmem:[%s166 + $0xce0] sm:$0xff]
                %609 = vst [vmem:[%s167 + $0x6e0] sm:$0xff] %v608
                %v610 = vld [vmem:[%s166 + $0xce8] sm:$0xff]
                %611 = vst [vmem:[%s167 + $0x6e8] sm:$0xff] %v610
                %v612 = vld [vmem:[%s166 + $0xcf0] sm:$0xff]
                %613 = vst [vmem:[%s167 + $0x6f0] sm:$0xff] %v612
                %v614 = vld [vmem:[%s166 + $0xcf8] sm:$0xff]
                %615 = vst [vmem:[%s167 + $0x6f8] sm:$0xff] %v614
                %v616 = vld [vmem:[%s166 + $0xe00] sm:$0xff]
                %617 = vst [vmem:[%s167 + $0x700] sm:$0xff] %v616
                %v618 = vld [vmem:[%s166 + $0xe08] sm:$0xff]
                %619 = vst [vmem:[%s167 + $0x708] sm:$0xff] %v618
                %v620 = vld [vmem:[%s166 + $0xe10] sm:$0xff]
                %621 = vst [vmem:[%s167 + $0x710] sm:$0xff] %v620
                %v622 = vld [vmem:[%s166 + $0xe18] sm:$0xff]
                %623 = vst [vmem:[%s167 + $0x718] sm:$0xff] %v622
                %v624 = vld [vmem:[%s166 + $0xe20] sm:$0xff]
                %625 = vst [vmem:[%s167 + $0x720] sm:$0xff] %v624
                %v626 = vld [vmem:[%s166 + $0xe28] sm:$0xff]
                %627 = vst [vmem:[%s167 + $0x728] sm:$0xff] %v626
                %v628 = vld [vmem:[%s166 + $0xe30] sm:$0xff]
                %629 = vst [vmem:[%s167 + $0x730] sm:$0xff] %v628
                %v630 = vld [vmem:[%s166 + $0xe38] sm:$0xff]
                %631 = vst [vmem:[%s167 + $0x738] sm:$0xff] %v630
                %v632 = vld [vmem:[%s166 + $0xe40] sm:$0xff]
                %633 = vst [vmem:[%s167 + $0x740] sm:$0xff] %v632
                %v634 = vld [vmem:[%s166 + $0xe48] sm:$0xff]
                %635 = vst [vmem:[%s167 + $0x748] sm:$0xff] %v634
                %v636 = vld [vmem:[%s166 + $0xe50] sm:$0xff]
                %637 = vst [vmem:[%s167 + $0x750] sm:$0xff] %v636
                %v638 = vld [vmem:[%s166 + $0xe58] sm:$0xff]
                %639 = vst [vmem:[%s167 + $0x758] sm:$0xff] %v638
                %v640 = vld [vmem:[%s166 + $0xe60] sm:$0xff]
                %641 = vst [vmem:[%s167 + $0x760] sm:$0xff] %v640
                %v642 = vld [vmem:[%s166 + $0xe68] sm:$0xff]
                %643 = vst [vmem:[%s167 + $0x768] sm:$0xff] %v642
                %v644 = vld [vmem:[%s166 + $0xe70] sm:$0xff]
                %645 = vst [vmem:[%s167 + $0x770] sm:$0xff] %v644
                %v646 = vld [vmem:[%s166 + $0xe78] sm:$0xff]
                %647 = vst [vmem:[%s167 + $0x778] sm:$0xff] %v646
                %v648 = vld [vmem:[%s166 + $0xe80] sm:$0xff]
                %649 = vst [vmem:[%s167 + $0x780] sm:$0xff] %v648
                %v650 = vld [vmem:[%s166 + $0xe88] sm:$0xff]
                %651 = vst [vmem:[%s167 + $0x788] sm:$0xff] %v650
                %v652 = vld [vmem:[%s166 + $0xe90] sm:$0xff]
                %653 = vst [vmem:[%s167 + $0x790] sm:$0xff] %v652
                %v654 = vld [vmem:[%s166 + $0xe98] sm:$0xff]
                %655 = vst [vmem:[%s167 + $0x798] sm:$0xff] %v654
                %v656 = vld [vmem:[%s166 + $0xea0] sm:$0xff]
                %657 = vst [vmem:[%s167 + $0x7a0] sm:$0xff] %v656
                %v658 = vld [vmem:[%s166 + $0xea8] sm:$0xff]
                %659 = vst [vmem:[%s167 + $0x7a8] sm:$0xff] %v658
                %v660 = vld [vmem:[%s166 + $0xeb0] sm:$0xff]
                %661 = vst [vmem:[%s167 + $0x7b0] sm:$0xff] %v660
                %v662 = vld [vmem:[%s166 + $0xeb8] sm:$0xff]
                %663 = vst [vmem:[%s167 + $0x7b8] sm:$0xff] %v662
                %v664 = vld [vmem:[%s166 + $0xec0] sm:$0xff]
                %665 = vst [vmem:[%s167 + $0x7c0] sm:$0xff] %v664
                %v666 = vld [vmem:[%s166 + $0xec8] sm:$0xff]
                %667 = vst [vmem:[%s167 + $0x7c8] sm:$0xff] %v666
                %v668 = vld [vmem:[%s166 + $0xed0] sm:$0xff]
                %669 = vst [vmem:[%s167 + $0x7d0] sm:$0xff] %v668
                %v670 = vld [vmem:[%s166 + $0xed8] sm:$0xff]
                %671 = vst [vmem:[%s167 + $0x7d8] sm:$0xff] %v670
                %v672 = vld [vmem:[%s166 + $0xee0] sm:$0xff]
                %673 = vst [vmem:[%s167 + $0x7e0] sm:$0xff] %v672
                %v674 = vld [vmem:[%s166 + $0xee8] sm:$0xff]
                %675 = vst [vmem:[%s167 + $0x7e8] sm:$0xff] %v674
                %v676 = vld [vmem:[%s166 + $0xef0] sm:$0xff]
                %677 = vst [vmem:[%s167 + $0x7f0] sm:$0xff] %v676
                %v678 = vld [vmem:[%s166 + $0xef8] sm:$0xff]
                %679 = vst [vmem:[%s167 + $0x7f8] sm:$0xff] %v678
                %v680 = vld [vmem:[%s166 + $0x1000] sm:$0xff]
                %681 = vst [vmem:[%s167 + $0x800] sm:$0xff] %v680
                %v682 = vld [vmem:[%s166 + $0x1008] sm:$0xff]
                %683 = vst [vmem:[%s167 + $0x808] sm:$0xff] %v682
                %v684 = vld [vmem:[%s166 + $0x1010] sm:$0xff]
                %685 = vst [vmem:[%s167 + $0x810] sm:$0xff] %v684
                %v686 = vld [vmem:[%s166 + $0x1018] sm:$0xff]
                %687 = vst [vmem:[%s167 + $0x818] sm:$0xff] %v686
                %v688 = vld [vmem:[%s166 + $0x1020] sm:$0xff]
                %689 = vst [vmem:[%s167 + $0x820] sm:$0xff] %v688
                %v690 = vld [vmem:[%s166 + $0x1028] sm:$0xff]
                %691 = vst [vmem:[%s167 + $0x828] sm:$0xff] %v690
                %v692 = vld [vmem:[%s166 + $0x1030] sm:$0xff]
                %693 = vst [vmem:[%s167 + $0x830] sm:$0xff] %v692
                %v694 = vld [vmem:[%s166 + $0x1038] sm:$0xff]
                %695 = vst [vmem:[%s167 + $0x838] sm:$0xff] %v694
                %v696 = vld [vmem:[%s166 + $0x1040] sm:$0xff]
                %697 = vst [vmem:[%s167 + $0x840] sm:$0xff] %v696
                %v698 = vld [vmem:[%s166 + $0x1048] sm:$0xff]
                %699 = vst [vmem:[%s167 + $0x848] sm:$0xff] %v698
                %v700 = vld [vmem:[%s166 + $0x1050] sm:$0xff]
                %701 = vst [vmem:[%s167 + $0x850] sm:$0xff] %v700
                %v702 = vld [vmem:[%s166 + $0x1058] sm:$0xff]
                %703 = vst [vmem:[%s167 + $0x858] sm:$0xff] %v702
                %v704 = vld [vmem:[%s166 + $0x1060] sm:$0xff]
                %705 = vst [vmem:[%s167 + $0x860] sm:$0xff] %v704
                %v706 = vld [vmem:[%s166 + $0x1068] sm:$0xff]
                %707 = vst [vmem:[%s167 + $0x868] sm:$0xff] %v706
                %v708 = vld [vmem:[%s166 + $0x1070] sm:$0xff]
                %709 = vst [vmem:[%s167 + $0x870] sm:$0xff] %v708
                %v710 = vld [vmem:[%s166 + $0x1078] sm:$0xff]
                %711 = vst [vmem:[%s167 + $0x878] sm:$0xff] %v710
                %v712 = vld [vmem:[%s166 + $0x1080] sm:$0xff]
                %713 = vst [vmem:[%s167 + $0x880] sm:$0xff] %v712
                %v714 = vld [vmem:[%s166 + $0x1088] sm:$0xff]
                %715 = vst [vmem:[%s167 + $0x888] sm:$0xff] %v714
                %v716 = vld [vmem:[%s166 + $0x1090] sm:$0xff]
                %717 = vst [vmem:[%s167 + $0x890] sm:$0xff] %v716
                %v718 = vld [vmem:[%s166 + $0x1098] sm:$0xff]
                %719 = vst [vmem:[%s167 + $0x898] sm:$0xff] %v718
                %v720 = vld [vmem:[%s166 + $0x10a0] sm:$0xff]
                %721 = vst [vmem:[%s167 + $0x8a0] sm:$0xff] %v720
                %v722 = vld [vmem:[%s166 + $0x10a8] sm:$0xff]
                %723 = vst [vmem:[%s167 + $0x8a8] sm:$0xff] %v722
                %v724 = vld [vmem:[%s166 + $0x10b0] sm:$0xff]
                %725 = vst [vmem:[%s167 + $0x8b0] sm:$0xff] %v724
                %v726 = vld [vmem:[%s166 + $0x10b8] sm:$0xff]
                %727 = vst [vmem:[%s167 + $0x8b8] sm:$0xff] %v726
                %v728 = vld [vmem:[%s166 + $0x10c0] sm:$0xff]
                %729 = vst [vmem:[%s167 + $0x8c0] sm:$0xff] %v728
                %v730 = vld [vmem:[%s166 + $0x10c8] sm:$0xff]
                %731 = vst [vmem:[%s167 + $0x8c8] sm:$0xff] %v730
                %v732 = vld [vmem:[%s166 + $0x10d0] sm:$0xff]
                %733 = vst [vmem:[%s167 + $0x8d0] sm:$0xff] %v732
                %v734 = vld [vmem:[%s166 + $0x10d8] sm:$0xff]
                %735 = vst [vmem:[%s167 + $0x8d8] sm:$0xff] %v734
                %v736 = vld [vmem:[%s166 + $0x10e0] sm:$0xff]
                %737 = vst [vmem:[%s167 + $0x8e0] sm:$0xff] %v736
                %v738 = vld [vmem:[%s166 + $0x10e8] sm:$0xff]
                %739 = vst [vmem:[%s167 + $0x8e8] sm:$0xff] %v738
                %v740 = vld [vmem:[%s166 + $0x10f0] sm:$0xff]
                %741 = vst [vmem:[%s167 + $0x8f0] sm:$0xff] %v740
                %v742 = vld [vmem:[%s166 + $0x10f8] sm:$0xff]
                %743 = vst [vmem:[%s167 + $0x8f8] sm:$0xff] %v742
                %v744 = vld [vmem:[%s166 + $0x1200] sm:$0xff]
                %745 = vst [vmem:[%s167 + $0x900] sm:$0xff] %v744
                %v746 = vld [vmem:[%s166 + $0x1208] sm:$0xff]
                %747 = vst [vmem:[%s167 + $0x908] sm:$0xff] %v746
                %v748 = vld [vmem:[%s166 + $0x1210] sm:$0xff]
                %749 = vst [vmem:[%s167 + $0x910] sm:$0xff] %v748
                %v750 = vld [vmem:[%s166 + $0x1218] sm:$0xff]
                %751 = vst [vmem:[%s167 + $0x918] sm:$0xff] %v750
                %v752 = vld [vmem:[%s166 + $0x1220] sm:$0xff]
                %753 = vst [vmem:[%s167 + $0x920] sm:$0xff] %v752
                %v754 = vld [vmem:[%s166 + $0x1228] sm:$0xff]
                %755 = vst [vmem:[%s167 + $0x928] sm:$0xff] %v754
                %v756 = vld [vmem:[%s166 + $0x1230] sm:$0xff]
                %757 = vst [vmem:[%s167 + $0x930] sm:$0xff] %v756
                %v758 = vld [vmem:[%s166 + $0x1238] sm:$0xff]
                %759 = vst [vmem:[%s167 + $0x938] sm:$0xff] %v758
                %v760 = vld [vmem:[%s166 + $0x1240] sm:$0xff]
                %761 = vst [vmem:[%s167 + $0x940] sm:$0xff] %v760
                %v762 = vld [vmem:[%s166 + $0x1248] sm:$0xff]
                %763 = vst [vmem:[%s167 + $0x948] sm:$0xff] %v762
                %v764 = vld [vmem:[%s166 + $0x1250] sm:$0xff]
                %765 = vst [vmem:[%s167 + $0x950] sm:$0xff] %v764
                %v766 = vld [vmem:[%s166 + $0x1258] sm:$0xff]
                %767 = vst [vmem:[%s167 + $0x958] sm:$0xff] %v766
                %v768 = vld [vmem:[%s166 + $0x1260] sm:$0xff]
                %769 = vst [vmem:[%s167 + $0x960] sm:$0xff] %v768
                %v770 = vld [vmem:[%s166 + $0x1268] sm:$0xff]
                %771 = vst [vmem:[%s167 + $0x968] sm:$0xff] %v770
                %v772 = vld [vmem:[%s166 + $0x1270] sm:$0xff]
                %773 = vst [vmem:[%s167 + $0x970] sm:$0xff] %v772
                %v774 = vld [vmem:[%s166 + $0x1278] sm:$0xff]
                %775 = vst [vmem:[%s167 + $0x978] sm:$0xff] %v774
                %v776 = vld [vmem:[%s166 + $0x1280] sm:$0xff]
                %777 = vst [vmem:[%s167 + $0x980] sm:$0xff] %v776
                %v778 = vld [vmem:[%s166 + $0x1288] sm:$0xff]
                %779 = vst [vmem:[%s167 + $0x988] sm:$0xff] %v778
                %v780 = vld [vmem:[%s166 + $0x1290] sm:$0xff]
                %781 = vst [vmem:[%s167 + $0x990] sm:$0xff] %v780
                %v782 = vld [vmem:[%s166 + $0x1298] sm:$0xff]
                %783 = vst [vmem:[%s167 + $0x998] sm:$0xff] %v782
                %v784 = vld [vmem:[%s166 + $0x12a0] sm:$0xff]
                %785 = vst [vmem:[%s167 + $0x9a0] sm:$0xff] %v784
                %v786 = vld [vmem:[%s166 + $0x12a8] sm:$0xff]
                %787 = vst [vmem:[%s167 + $0x9a8] sm:$0xff] %v786
                %v788 = vld [vmem:[%s166 + $0x12b0] sm:$0xff]
                %789 = vst [vmem:[%s167 + $0x9b0] sm:$0xff] %v788
                %v790 = vld [vmem:[%s166 + $0x12b8] sm:$0xff]
                %791 = vst [vmem:[%s167 + $0x9b8] sm:$0xff] %v790
                %v792 = vld [vmem:[%s166 + $0x12c0] sm:$0xff]
                %793 = vst [vmem:[%s167 + $0x9c0] sm:$0xff] %v792
                %v794 = vld [vmem:[%s166 + $0x12c8] sm:$0xff]
                %795 = vst [vmem:[%s167 + $0x9c8] sm:$0xff] %v794
                %v796 = vld [vmem:[%s166 + $0x12d0] sm:$0xff]
                %797 = vst [vmem:[%s167 + $0x9d0] sm:$0xff] %v796
                %v798 = vld [vmem:[%s166 + $0x12d8] sm:$0xff]
                %799 = vst [vmem:[%s167 + $0x9d8] sm:$0xff] %v798
                %v800 = vld [vmem:[%s166 + $0x12e0] sm:$0xff]
                %801 = vst [vmem:[%s167 + $0x9e0] sm:$0xff] %v800
                %v802 = vld [vmem:[%s166 + $0x12e8] sm:$0xff]
                %803 = vst [vmem:[%s167 + $0x9e8] sm:$0xff] %v802
                %v804 = vld [vmem:[%s166 + $0x12f0] sm:$0xff]
                %805 = vst [vmem:[%s167 + $0x9f0] sm:$0xff] %v804
                %v806 = vld [vmem:[%s166 + $0x12f8] sm:$0xff]
                %807 = vst [vmem:[%s167 + $0x9f8] sm:$0xff] %v806
              $region41: #{global_dis_forward.4} parent=35 // loop_footer
                %s165 = sadd.s32 1, %s161
              $region42: #{global_dis_forward.4} parent=35 // loop_footer_branch
                %160 = sbr.rel target = $region38
              $region43: #{global_dis_forward.4} parent=35 // loop_exit
                _
            $region36: #{global_dis_forward.4} parent=31 // pred_fallthru
              _
            // Predicated region
            $region44: #{global_dis_forward.4} parent=31 // pred_check
              _
            $region45: #{global_dis_forward.4} parent=31 // pred_check_branch
              %809 = sbr.rel target = $region47
            $region46: #{global_dis_forward.4} parent=31 // pred_region
              _
            $region47: #{global_dis_forward.4} parent=31 // pred_fallthru
              _
          $region32: #{global_dis_forward.4} parent=27 // pred_fallthru
            _
          %810 = vnop
        $region28: #{global_dis_forward.4} parent=23 // pred_fallthru
          _
      $region24: #{global_dis_forward.4} parent=5 // pred_fallthru
        _
      %p811 = scmp.le.s32.totalorder 1, %s9
      %p812 = scmp.lt.s32.totalorder %s9, 5
      %p813 = pnand %p811, %p812
      %p814 = pneg %p813
      // Predicated region
      $region48: #{global_dis_forward.4} parent=5 // pred_check
        _
      $region49: #{global_dis_forward.4} parent=5 // pred_check_branch
        %816 = sbr.rel (%p813) target = $region51
      $region50: #{global_dis_forward.4} parent=5 // pred_region
        %s817 = ssub.s32 %s9, 1
        %s818 = sand.u32 %s78, 1
        %s819 = sand.u32 %s78, 1
        %s820 = smul.addr %s819, 2560
        %s821 = scalar_lea.vmem [#allocation2], %s820
        // Predicated region
        $region52: #{global_dis_forward.4} parent=50 // pred_check
          %p822 = pneg %p91
        $region53: #{global_dis_forward.4} parent=50 // pred_check_branch
          %824 = sbr.rel (%p822) target = $region55
        $region54: #{global_dis_forward.4} parent=50 // pred_region
          _
        $region55: #{global_dis_forward.4} parent=50 // pred_fallthru
          _
        %p825 = pneg %p42
        %p826 = pneg %p39
        %p827 = pneg %p63
        %p828 = pneg %p60
        %s829 = sand.u32 %s78, 1
        %s830 = sand.u32 %s78, 1
        %s831 = smul.addr %s830, 2560
        %s832 = scalar_lea.vmem [#allocation2], %s831
        %p833 = pneg %p91
        %p834 = pneg %p88
        %p835 = pneg %p119
        %p836 = pneg %p116
        %s837 = smul.u32 64, %s19
        %p838 = scmp.lt.s32.totalorder %s18, 1
        %s839 = scalar_select %p838, %s18, 1
        %p840 = scmp.lt.s32.totalorder %s837, 127
        %s841 = scalar_select %p840, %s837, 127
        %s842 = smul.addr %s839, 128
        %s843 = sadd.s32 %s841, %s842
        %s844 = smul.addr %s843, 2
        %s845 = scalar_lea.vmem %s3, %s844
        %s846 = smul.u32 64, %s19
        %s847 = smul.u32 64, %s19
        %p848 = scmp.lt.s32.totalorder %s18, 1
        %s849 = scalar_select %p848, %s18, 1
        %p850 = scmp.lt.s32.totalorder %s847, 127
        %s851 = scalar_select %p850, %s847, 127
        %s852 = smul.addr %s849, 128
        %s853 = sadd.s32 %s851, %s852
        %s854 = smul.addr %s853, 2
        %s855 = scalar_lea.vmem %s3, %s854
        %s856 = smul.u32 64, %s19
        %v858 = vld [vmem:[%s0] sm:$0x3]
        %v859 = vld [vmem:[%s821] sm:$0xff]
        %v860 = vld [vmem:[%s821 + $0x8] sm:$0xff]
        %v861 = vld [vmem:[%s821 + $0x10] sm:$0xff]
        %v862 = vld [vmem:[%s821 + $0x18] sm:$0xff]
        %v863 = vld [vmem:[%s821 + $0x20] sm:$0xff]
        %v864 = vld [vmem:[%s821 + $0x28] sm:$0xff]
        %v865 = vld [vmem:[%s821 + $0x30] sm:$0xff]
        %v866 = vld [vmem:[%s821 + $0x38] sm:$0xff]
        %v867 = vld [vmem:[%s821 + $0x40] sm:$0xff]
        %v868 = vld [vmem:[%s821 + $0x48] sm:$0xff]
        %v869 = vld [vmem:[%s821 + $0x50] sm:$0xff]
        %v870 = vld [vmem:[%s821 + $0x58] sm:$0xff]
        %v871 = vld [vmem:[%s821 + $0x60] sm:$0xff]
        %v872 = vld [vmem:[%s821 + $0x68] sm:$0xff]
        %v873 = vld [vmem:[%s821 + $0x70] sm:$0xff]
        %v874 = vld [vmem:[%s821 + $0x78] sm:$0xff]
        %v875 = vld [vmem:[%s821 + $0x80] sm:$0xff]
        %v876 = vld [vmem:[%s821 + $0x88] sm:$0xff]
        %v877 = vld [vmem:[%s821 + $0x90] sm:$0xff]
        %v878 = vld [vmem:[%s821 + $0x98] sm:$0xff]
        %v879 = vld [vmem:[%s821 + $0xa0] sm:$0xff]
        %v880 = vld [vmem:[%s821 + $0xa8] sm:$0xff]
        %v881 = vld [vmem:[%s821 + $0xb0] sm:$0xff]
        %v882 = vld [vmem:[%s821 + $0xb8] sm:$0xff]
        %v883 = vld [vmem:[%s821 + $0xc0] sm:$0xff]
        %v884 = vld [vmem:[%s821 + $0xc8] sm:$0xff]
        %v885 = vld [vmem:[%s821 + $0xd0] sm:$0xff]
        %v886 = vld [vmem:[%s821 + $0xd8] sm:$0xff]
        %v887 = vld [vmem:[%s821 + $0xe0] sm:$0xff]
        %v888 = vld [vmem:[%s821 + $0xe8] sm:$0xff]
        %v889 = vld [vmem:[%s821 + $0xf0] sm:$0xff]
        %v890 = vld [vmem:[%s821 + $0xf8] sm:$0xff]
        %v891 = vld [vmem:[%s821 + $0x100] sm:$0xff]
        %v892 = vld [vmem:[%s821 + $0x108] sm:$0xff]
        %v893 = vld [vmem:[%s821 + $0x110] sm:$0xff]
        %v894 = vld [vmem:[%s821 + $0x118] sm:$0xff]
        %v895 = vld [vmem:[%s821 + $0x120] sm:$0xff]
        %v896 = vld [vmem:[%s821 + $0x128] sm:$0xff]
        %v897 = vld [vmem:[%s821 + $0x130] sm:$0xff]
        %v898 = vld [vmem:[%s821 + $0x138] sm:$0xff]
        %v899 = vld [vmem:[%s821 + $0x140] sm:$0xff]
        %v900 = vld [vmem:[%s821 + $0x148] sm:$0xff]
        %v901 = vld [vmem:[%s821 + $0x150] sm:$0xff]
        %v902 = vld [vmem:[%s821 + $0x158] sm:$0xff]
        %v903 = vld [vmem:[%s821 + $0x160] sm:$0xff]
        %v904 = vld [vmem:[%s821 + $0x168] sm:$0xff]
        %v905 = vld [vmem:[%s821 + $0x170] sm:$0xff]
        %v906 = vld [vmem:[%s821 + $0x178] sm:$0xff]
        %v907 = vld [vmem:[%s821 + $0x180] sm:$0xff]
        %v908 = vld [vmem:[%s821 + $0x188] sm:$0xff]
        %v909 = vld [vmem:[%s821 + $0x190] sm:$0xff]
        %v910 = vld [vmem:[%s821 + $0x198] sm:$0xff]
        %v911 = vld [vmem:[%s821 + $0x1a0] sm:$0xff]
        %v912 = vld [vmem:[%s821 + $0x1a8] sm:$0xff]
        %v913 = vld [vmem:[%s821 + $0x1b0] sm:$0xff]
        %v914 = vld [vmem:[%s821 + $0x1b8] sm:$0xff]
        %v915 = vld [vmem:[%s821 + $0x1c0] sm:$0xff]
        %v916 = vld [vmem:[%s821 + $0x1c8] sm:$0xff]
        %v917 = vld [vmem:[%s821 + $0x1d0] sm:$0xff]
        %v918 = vld [vmem:[%s821 + $0x1d8] sm:$0xff]
        %v919 = vld [vmem:[%s821 + $0x1e0] sm:$0xff]
        %v920 = vld [vmem:[%s821 + $0x1e8] sm:$0xff]
        %v921 = vld [vmem:[%s821 + $0x1f0] sm:$0xff]
        %v922 = vld [vmem:[%s821 + $0x1f8] sm:$0xff]
        %v923 = vld [vmem:[%s821 + $0x200] sm:$0xff]
        %v924 = vld [vmem:[%s821 + $0x208] sm:$0xff]
        %v925 = vld [vmem:[%s821 + $0x210] sm:$0xff]
        %v926 = vld [vmem:[%s821 + $0x218] sm:$0xff]
        %v927 = vld [vmem:[%s821 + $0x220] sm:$0xff]
        %v928 = vld [vmem:[%s821 + $0x228] sm:$0xff]
        %v929 = vld [vmem:[%s821 + $0x230] sm:$0xff]
        %v930 = vld [vmem:[%s821 + $0x238] sm:$0xff]
        %v931 = vld [vmem:[%s821 + $0x240] sm:$0xff]
        %v932 = vld [vmem:[%s821 + $0x248] sm:$0xff]
        %v933 = vld [vmem:[%s821 + $0x250] sm:$0xff]
        %v934 = vld [vmem:[%s821 + $0x258] sm:$0xff]
        %v935 = vld [vmem:[%s821 + $0x260] sm:$0xff]
        %v936 = vld [vmem:[%s821 + $0x268] sm:$0xff]
        %v937 = vld [vmem:[%s821 + $0x270] sm:$0xff]
        %v938 = vld [vmem:[%s821 + $0x278] sm:$0xff]
        %v939 = vld [vmem:[%s821 + $0x280] sm:$0xff]
        %v940 = vld [vmem:[%s821 + $0x288] sm:$0xff]
        %v941 = vld [vmem:[%s821 + $0x290] sm:$0xff]
        %v942 = vld [vmem:[%s821 + $0x298] sm:$0xff]
        %v943 = vld [vmem:[%s821 + $0x2a0] sm:$0xff]
        %v944 = vld [vmem:[%s821 + $0x2a8] sm:$0xff]
        %v945 = vld [vmem:[%s821 + $0x2b0] sm:$0xff]
        %v946 = vld [vmem:[%s821 + $0x2b8] sm:$0xff]
        %v947 = vld [vmem:[%s821 + $0x2c0] sm:$0xff]
        %v948 = vld [vmem:[%s821 + $0x2c8] sm:$0xff]
        %v949 = vld [vmem:[%s821 + $0x2d0] sm:$0xff]
        %v950 = vld [vmem:[%s821 + $0x2d8] sm:$0xff]
        %v951 = vld [vmem:[%s821 + $0x2e0] sm:$0xff]
        %v952 = vld [vmem:[%s821 + $0x2e8] sm:$0xff]
        %v953 = vld [vmem:[%s821 + $0x2f0] sm:$0xff]
        %v954 = vld [vmem:[%s821 + $0x2f8] sm:$0xff]
        %v955 = vld [vmem:[%s821 + $0x300] sm:$0xff]
        %v956 = vld [vmem:[%s821 + $0x308] sm:$0xff]
        %v957 = vld [vmem:[%s821 + $0x310] sm:$0xff]
        %v958 = vld [vmem:[%s821 + $0x318] sm:$0xff]
        %v959 = vld [vmem:[%s821 + $0x320] sm:$0xff]
        %v960 = vld [vmem:[%s821 + $0x328] sm:$0xff]
        %v961 = vld [vmem:[%s821 + $0x330] sm:$0xff]
        %v962 = vld [vmem:[%s821 + $0x338] sm:$0xff]
        %v963 = vld [vmem:[%s821 + $0x340] sm:$0xff]
        %v964 = vld [vmem:[%s821 + $0x348] sm:$0xff]
        %v965 = vld [vmem:[%s821 + $0x350] sm:$0xff]
        %v966 = vld [vmem:[%s821 + $0x358] sm:$0xff]
        %v967 = vld [vmem:[%s821 + $0x360] sm:$0xff]
        %v968 = vld [vmem:[%s821 + $0x368] sm:$0xff]
        %v969 = vld [vmem:[%s821 + $0x370] sm:$0xff]
        %v970 = vld [vmem:[%s821 + $0x378] sm:$0xff]
        %v971 = vld [vmem:[%s821 + $0x380] sm:$0xff]
        %v972 = vld [vmem:[%s821 + $0x388] sm:$0xff]
        %v973 = vld [vmem:[%s821 + $0x390] sm:$0xff]
        %v974 = vld [vmem:[%s821 + $0x398] sm:$0xff]
        %v975 = vld [vmem:[%s821 + $0x3a0] sm:$0xff]
        %v976 = vld [vmem:[%s821 + $0x3a8] sm:$0xff]
        %v977 = vld [vmem:[%s821 + $0x3b0] sm:$0xff]
        %v978 = vld [vmem:[%s821 + $0x3b8] sm:$0xff]
        %v979 = vld [vmem:[%s821 + $0x3c0] sm:$0xff]
        %v980 = vld [vmem:[%s821 + $0x3c8] sm:$0xff]
        %v981 = vld [vmem:[%s821 + $0x3d0] sm:$0xff]
        %v982 = vld [vmem:[%s821 + $0x3d8] sm:$0xff]
        %v983 = vld [vmem:[%s821 + $0x3e0] sm:$0xff]
        %v984 = vld [vmem:[%s821 + $0x3e8] sm:$0xff]
        %v985 = vld [vmem:[%s821 + $0x3f0] sm:$0xff]
        %v986 = vld [vmem:[%s821 + $0x3f8] sm:$0xff]
        %v987 = vld [vmem:[%s821 + $0x400] sm:$0xff]
        %v988 = vld [vmem:[%s821 + $0x408] sm:$0xff]
        %v989 = vld [vmem:[%s821 + $0x410] sm:$0xff]
        %v990 = vld [vmem:[%s821 + $0x418] sm:$0xff]
        %v991 = vld [vmem:[%s821 + $0x420] sm:$0xff]
        %v992 = vld [vmem:[%s821 + $0x428] sm:$0xff]
        %v993 = vld [vmem:[%s821 + $0x430] sm:$0xff]
        %v994 = vld [vmem:[%s821 + $0x438] sm:$0xff]
        %v995 = vld [vmem:[%s821 + $0x440] sm:$0xff]
        %v996 = vld [vmem:[%s821 + $0x448] sm:$0xff]
        %v997 = vld [vmem:[%s821 + $0x450] sm:$0xff]
        %v998 = vld [vmem:[%s821 + $0x458] sm:$0xff]
        %v999 = vld [vmem:[%s821 + $0x460] sm:$0xff]
        %v1000 = vld [vmem:[%s821 + $0x468] sm:$0xff]
        %v1001 = vld [vmem:[%s821 + $0x470] sm:$0xff]
        %v1002 = vld [vmem:[%s821 + $0x478] sm:$0xff]
        %v1003 = vld [vmem:[%s821 + $0x480] sm:$0xff]
        %v1004 = vld [vmem:[%s821 + $0x488] sm:$0xff]
        %v1005 = vld [vmem:[%s821 + $0x490] sm:$0xff]
        %v1006 = vld [vmem:[%s821 + $0x498] sm:$0xff]
        %v1007 = vld [vmem:[%s821 + $0x4a0] sm:$0xff]
        %v1008 = vld [vmem:[%s821 + $0x4a8] sm:$0xff]
        %v1009 = vld [vmem:[%s821 + $0x4b0] sm:$0xff]
        %v1010 = vld [vmem:[%s821 + $0x4b8] sm:$0xff]
        %v1011 = vld [vmem:[%s821 + $0x4c0] sm:$0xff]
        %v1012 = vld [vmem:[%s821 + $0x4c8] sm:$0xff]
        %v1013 = vld [vmem:[%s821 + $0x4d0] sm:$0xff]
        %v1014 = vld [vmem:[%s821 + $0x4d8] sm:$0xff]
        %v1015 = vld [vmem:[%s821 + $0x4e0] sm:$0xff]
        %v1016 = vld [vmem:[%s821 + $0x4e8] sm:$0xff]
        %v1017 = vld [vmem:[%s821 + $0x4f0] sm:$0xff]
        %v1018 = vld [vmem:[%s821 + $0x4f8] sm:$0xff]
        %v1019 = vld [vmem:[%s821 + $0x500] sm:$0xff]
        %v1020 = vld [vmem:[%s821 + $0x508] sm:$0xff]
        %v1021 = vld [vmem:[%s821 + $0x510] sm:$0xff]
        %v1022 = vld [vmem:[%s821 + $0x518] sm:$0xff]
        %v1023 = vld [vmem:[%s821 + $0x520] sm:$0xff]
        %v1024 = vld [vmem:[%s821 + $0x528] sm:$0xff]
        %v1025 = vld [vmem:[%s821 + $0x530] sm:$0xff]
        %v1026 = vld [vmem:[%s821 + $0x538] sm:$0xff]
        %v1027 = vld [vmem:[%s821 + $0x540] sm:$0xff]
        %v1028 = vld [vmem:[%s821 + $0x548] sm:$0xff]
        %v1029 = vld [vmem:[%s821 + $0x550] sm:$0xff]
        %v1030 = vld [vmem:[%s821 + $0x558] sm:$0xff]
        %v1031 = vld [vmem:[%s821 + $0x560] sm:$0xff]
        %v1032 = vld [vmem:[%s821 + $0x568] sm:$0xff]
        %v1033 = vld [vmem:[%s821 + $0x570] sm:$0xff]
        %v1034 = vld [vmem:[%s821 + $0x578] sm:$0xff]
        %v1035 = vld [vmem:[%s821 + $0x580] sm:$0xff]
        %v1036 = vld [vmem:[%s821 + $0x588] sm:$0xff]
        %v1037 = vld [vmem:[%s821 + $0x590] sm:$0xff]
        %v1038 = vld [vmem:[%s821 + $0x598] sm:$0xff]
        %v1039 = vld [vmem:[%s821 + $0x5a0] sm:$0xff]
        %v1040 = vld [vmem:[%s821 + $0x5a8] sm:$0xff]
        %v1041 = vld [vmem:[%s821 + $0x5b0] sm:$0xff]
        %v1042 = vld [vmem:[%s821 + $0x5b8] sm:$0xff]
        %v1043 = vld [vmem:[%s821 + $0x5c0] sm:$0xff]
        %v1044 = vld [vmem:[%s821 + $0x5c8] sm:$0xff]
        %v1045 = vld [vmem:[%s821 + $0x5d0] sm:$0xff]
        %v1046 = vld [vmem:[%s821 + $0x5d8] sm:$0xff]
        %v1047 = vld [vmem:[%s821 + $0x5e0] sm:$0xff]
        %v1048 = vld [vmem:[%s821 + $0x5e8] sm:$0xff]
        %v1049 = vld [vmem:[%s821 + $0x5f0] sm:$0xff]
        %v1050 = vld [vmem:[%s821 + $0x5f8] sm:$0xff]
        %v1051 = vld [vmem:[%s821 + $0x600] sm:$0xff]
        %v1052 = vld [vmem:[%s821 + $0x608] sm:$0xff]
        %v1053 = vld [vmem:[%s821 + $0x610] sm:$0xff]
        %v1054 = vld [vmem:[%s821 + $0x618] sm:$0xff]
        %v1055 = vld [vmem:[%s821 + $0x620] sm:$0xff]
        %v1056 = vld [vmem:[%s821 + $0x628] sm:$0xff]
        %v1057 = vld [vmem:[%s821 + $0x630] sm:$0xff]
        %v1058 = vld [vmem:[%s821 + $0x638] sm:$0xff]
        %v1059 = vld [vmem:[%s821 + $0x640] sm:$0xff]
        %v1060 = vld [vmem:[%s821 + $0x648] sm:$0xff]
        %v1061 = vld [vmem:[%s821 + $0x650] sm:$0xff]
        %v1062 = vld [vmem:[%s821 + $0x658] sm:$0xff]
        %v1063 = vld [vmem:[%s821 + $0x660] sm:$0xff]
        %v1064 = vld [vmem:[%s821 + $0x668] sm:$0xff]
        %v1065 = vld [vmem:[%s821 + $0x670] sm:$0xff]
        %v1066 = vld [vmem:[%s821 + $0x678] sm:$0xff]
        %v1067 = vld [vmem:[%s821 + $0x680] sm:$0xff]
        %v1068 = vld [vmem:[%s821 + $0x688] sm:$0xff]
        %v1069 = vld [vmem:[%s821 + $0x690] sm:$0xff]
        %v1070 = vld [vmem:[%s821 + $0x698] sm:$0xff]
        %v1071 = vld [vmem:[%s821 + $0x6a0] sm:$0xff]
        %v1072 = vld [vmem:[%s821 + $0x6a8] sm:$0xff]
        %v1073 = vld [vmem:[%s821 + $0x6b0] sm:$0xff]
        %v1074 = vld [vmem:[%s821 + $0x6b8] sm:$0xff]
        %v1075 = vld [vmem:[%s821 + $0x6c0] sm:$0xff]
        %v1076 = vld [vmem:[%s821 + $0x6c8] sm:$0xff]
        %v1077 = vld [vmem:[%s821 + $0x6d0] sm:$0xff]
        %v1078 = vld [vmem:[%s821 + $0x6d8] sm:$0xff]
        %v1079 = vld [vmem:[%s821 + $0x6e0] sm:$0xff]
        %v1080 = vld [vmem:[%s821 + $0x6e8] sm:$0xff]
        %v1081 = vld [vmem:[%s821 + $0x6f0] sm:$0xff]
        %v1082 = vld [vmem:[%s821 + $0x6f8] sm:$0xff]
        %v1083 = vld [vmem:[%s821 + $0x700] sm:$0xff]
        %v1084 = vld [vmem:[%s821 + $0x708] sm:$0xff]
        %v1085 = vld [vmem:[%s821 + $0x710] sm:$0xff]
        %v1086 = vld [vmem:[%s821 + $0x718] sm:$0xff]
        %v1087 = vld [vmem:[%s821 + $0x720] sm:$0xff]
        %v1088 = vld [vmem:[%s821 + $0x728] sm:$0xff]
        %v1089 = vld [vmem:[%s821 + $0x730] sm:$0xff]
        %v1090 = vld [vmem:[%s821 + $0x738] sm:$0xff]
        %v1091 = vld [vmem:[%s821 + $0x740] sm:$0xff]
        %v1092 = vld [vmem:[%s821 + $0x748] sm:$0xff]
        %v1093 = vld [vmem:[%s821 + $0x750] sm:$0xff]
        %v1094 = vld [vmem:[%s821 + $0x758] sm:$0xff]
        %v1095 = vld [vmem:[%s821 + $0x760] sm:$0xff]
        %v1096 = vld [vmem:[%s821 + $0x768] sm:$0xff]
        %v1097 = vld [vmem:[%s821 + $0x770] sm:$0xff]
        %v1098 = vld [vmem:[%s821 + $0x778] sm:$0xff]
        %v1099 = vld [vmem:[%s821 + $0x780] sm:$0xff]
        %v1100 = vld [vmem:[%s821 + $0x788] sm:$0xff]
        %v1101 = vld [vmem:[%s821 + $0x790] sm:$0xff]
        %v1102 = vld [vmem:[%s821 + $0x798] sm:$0xff]
        %v1103 = vld [vmem:[%s821 + $0x7a0] sm:$0xff]
        %v1104 = vld [vmem:[%s821 + $0x7a8] sm:$0xff]
        %v1105 = vld [vmem:[%s821 + $0x7b0] sm:$0xff]
        %v1106 = vld [vmem:[%s821 + $0x7b8] sm:$0xff]
        %v1107 = vld [vmem:[%s821 + $0x7c0] sm:$0xff]
        %v1108 = vld [vmem:[%s821 + $0x7c8] sm:$0xff]
        %v1109 = vld [vmem:[%s821 + $0x7d0] sm:$0xff]
        %v1110 = vld [vmem:[%s821 + $0x7d8] sm:$0xff]
        %v1111 = vld [vmem:[%s821 + $0x7e0] sm:$0xff]
        %v1112 = vld [vmem:[%s821 + $0x7e8] sm:$0xff]
        %v1113 = vld [vmem:[%s821 + $0x7f0] sm:$0xff]
        %v1114 = vld [vmem:[%s821 + $0x7f8] sm:$0xff]
        %v1115 = vld [vmem:[%s821 + $0x800] sm:$0xff]
        %v1116 = vld [vmem:[%s821 + $0x808] sm:$0xff]
        %v1117 = vld [vmem:[%s821 + $0x810] sm:$0xff]
        %v1118 = vld [vmem:[%s821 + $0x818] sm:$0xff]
        %v1119 = vld [vmem:[%s821 + $0x820] sm:$0xff]
        %v1120 = vld [vmem:[%s821 + $0x828] sm:$0xff]
        %v1121 = vld [vmem:[%s821 + $0x830] sm:$0xff]
        %v1122 = vld [vmem:[%s821 + $0x838] sm:$0xff]
        %v1123 = vld [vmem:[%s821 + $0x840] sm:$0xff]
        %v1124 = vld [vmem:[%s821 + $0x848] sm:$0xff]
        %v1125 = vld [vmem:[%s821 + $0x850] sm:$0xff]
        %v1126 = vld [vmem:[%s821 + $0x858] sm:$0xff]
        %v1127 = vld [vmem:[%s821 + $0x860] sm:$0xff]
        %v1128 = vld [vmem:[%s821 + $0x868] sm:$0xff]
        %v1129 = vld [vmem:[%s821 + $0x870] sm:$0xff]
        %v1130 = vld [vmem:[%s821 + $0x878] sm:$0xff]
        %v1131 = vld [vmem:[%s821 + $0x880] sm:$0xff]
        %v1132 = vld [vmem:[%s821 + $0x888] sm:$0xff]
        %v1133 = vld [vmem:[%s821 + $0x890] sm:$0xff]
        %v1134 = vld [vmem:[%s821 + $0x898] sm:$0xff]
        %v1135 = vld [vmem:[%s821 + $0x8a0] sm:$0xff]
        %v1136 = vld [vmem:[%s821 + $0x8a8] sm:$0xff]
        %v1137 = vld [vmem:[%s821 + $0x8b0] sm:$0xff]
        %v1138 = vld [vmem:[%s821 + $0x8b8] sm:$0xff]
        %v1139 = vld [vmem:[%s821 + $0x8c0] sm:$0xff]
        %v1140 = vld [vmem:[%s821 + $0x8c8] sm:$0xff]
        %v1141 = vld [vmem:[%s821 + $0x8d0] sm:$0xff]
        %v1142 = vld [vmem:[%s821 + $0x8d8] sm:$0xff]
        %v1143 = vld [vmem:[%s821 + $0x8e0] sm:$0xff]
        %v1144 = vld [vmem:[%s821 + $0x8e8] sm:$0xff]
        %v1145 = vld [vmem:[%s821 + $0x8f0] sm:$0xff]
        %v1146 = vld [vmem:[%s821 + $0x8f8] sm:$0xff]
        %v1147 = vld [vmem:[%s821 + $0x900] sm:$0x33]
        %v1148 = vld [vmem:[%s821 + $0x908] sm:$0x33]
        %v1149 = vld [vmem:[%s821 + $0x910] sm:$0x33]
        %v1150 = vld [vmem:[%s821 + $0x918] sm:$0x33]
        %v1151 = vld [vmem:[%s821 + $0x920] sm:$0x33]
        %v1152 = vld [vmem:[%s821 + $0x928] sm:$0x33]
        %v1153 = vld [vmem:[%s821 + $0x930] sm:$0x33]
        %v1154 = vld [vmem:[%s821 + $0x938] sm:$0x33]
        %v1155 = vld [vmem:[%s821 + $0x940] sm:$0x33]
        %v1156 = vld [vmem:[%s821 + $0x948] sm:$0x33]
        %v1157 = vld [vmem:[%s821 + $0x950] sm:$0x33]
        %v1158 = vld [vmem:[%s821 + $0x958] sm:$0x33]
        %v1159 = vld [vmem:[%s821 + $0x960] sm:$0x33]
        %v1160 = vld [vmem:[%s821 + $0x968] sm:$0x33]
        %v1161 = vld [vmem:[%s821 + $0x970] sm:$0x33]
        %v1162 = vld [vmem:[%s821 + $0x978] sm:$0x33]
        %v1163 = vld [vmem:[%s821 + $0x980] sm:$0x33]
        %v1164 = vld [vmem:[%s821 + $0x988] sm:$0x33]
        %v1165 = vld [vmem:[%s821 + $0x990] sm:$0x33]
        %v1166 = vld [vmem:[%s821 + $0x998] sm:$0x33]
        %v1167 = vld [vmem:[%s821 + $0x9a0] sm:$0x33]
        %v1168 = vld [vmem:[%s821 + $0x9a8] sm:$0x33]
        %v1169 = vld [vmem:[%s821 + $0x9b0] sm:$0x33]
        %v1170 = vld [vmem:[%s821 + $0x9b8] sm:$0x33]
        %v1171 = vld [vmem:[%s821 + $0x9c0] sm:$0x33]
        %v1172 = vld [vmem:[%s821 + $0x9c8] sm:$0x33]
        %v1173 = vld [vmem:[%s821 + $0x9d0] sm:$0x33]
        %v1174 = vld [vmem:[%s821 + $0x9d8] sm:$0x33]
        %v1175 = vld [vmem:[%s821 + $0x9e0] sm:$0x33]
        %v1176 = vld [vmem:[%s821 + $0x9e8] sm:$0x33]
        %v1177 = vld [vmem:[%s821 + $0x9f0] sm:$0x33]
        %v1178 = vld [vmem:[%s821 + $0x9f8] sm:$0x33]
        %v1179 = vld [vmem:[%s1] sm:$0xf]
        %1181 = vset.pattern.permute.xlu0 0
        %1182 = vperm.xlu0 %1181, %v1179
        %v1183 = vpop.permute.xlu0 %1182
        %v1505 = vunpack.c.l.b16 %v859
        %v1506 = vunpack.c.h.b16 %v859
        %v1507 = vunpack.c.l.b16 %v860
        %v1508 = vunpack.c.h.b16 %v860
        %v1509 = vunpack.c.l.b16 %v861
        %v1510 = vunpack.c.h.b16 %v861
        %v1511 = vunpack.c.l.b16 %v862
        %v1512 = vunpack.c.h.b16 %v862
        %v1513 = vunpack.c.l.b16 %v863
        %v1514 = vunpack.c.h.b16 %v863
        %v1515 = vunpack.c.l.b16 %v864
        %v1516 = vunpack.c.h.b16 %v864
        %v1517 = vunpack.c.l.b16 %v865
        %v1518 = vunpack.c.h.b16 %v865
        %v1519 = vunpack.c.l.b16 %v866
        %v1520 = vunpack.c.h.b16 %v866
        %v1521 = vunpack.c.l.b16 %v867
        %v1522 = vunpack.c.h.b16 %v867
        %v1523 = vunpack.c.l.b16 %v868
        %v1524 = vunpack.c.h.b16 %v868
        %v1525 = vunpack.c.l.b16 %v869
        %v1526 = vunpack.c.h.b16 %v869
        %v1527 = vunpack.c.l.b16 %v870
        %v1528 = vunpack.c.h.b16 %v870
        %v1529 = vunpack.c.l.b16 %v871
        %v1530 = vunpack.c.h.b16 %v871
        %v1531 = vunpack.c.l.b16 %v872
        %v1532 = vunpack.c.h.b16 %v872
        %v1533 = vunpack.c.l.b16 %v873
        %v1534 = vunpack.c.h.b16 %v873
        %v1535 = vunpack.c.l.b16 %v874
        %v1536 = vunpack.c.h.b16 %v874
        %v1537 = vunpack.c.l.b16 %v875
        %v1538 = vunpack.c.h.b16 %v875
        %v1539 = vunpack.c.l.b16 %v876
        %v1540 = vunpack.c.h.b16 %v876
        %v1541 = vunpack.c.l.b16 %v877
        %v1542 = vunpack.c.h.b16 %v877
        %v1543 = vunpack.c.l.b16 %v878
        %v1544 = vunpack.c.h.b16 %v878
        %v1545 = vunpack.c.l.b16 %v879
        %v1546 = vunpack.c.h.b16 %v879
        %v1547 = vunpack.c.l.b16 %v880
        %v1548 = vunpack.c.h.b16 %v880
        %v1549 = vunpack.c.l.b16 %v881
        %v1550 = vunpack.c.h.b16 %v881
        %v1551 = vunpack.c.l.b16 %v882
        %v1552 = vunpack.c.h.b16 %v882
        %v1553 = vunpack.c.l.b16 %v883
        %v1554 = vunpack.c.h.b16 %v883
        %v1555 = vunpack.c.l.b16 %v884
        %v1556 = vunpack.c.h.b16 %v884
        %v1557 = vunpack.c.l.b16 %v885
        %v1558 = vunpack.c.h.b16 %v885
        %v1559 = vunpack.c.l.b16 %v886
        %v1560 = vunpack.c.h.b16 %v886
        %v1561 = vunpack.c.l.b16 %v887
        %v1562 = vunpack.c.h.b16 %v887
        %v1563 = vunpack.c.l.b16 %v888
        %v1564 = vunpack.c.h.b16 %v888
        %v1565 = vunpack.c.l.b16 %v889
        %v1566 = vunpack.c.h.b16 %v889
        %v1567 = vunpack.c.l.b16 %v890
        %v1568 = vunpack.c.h.b16 %v890
        %v1569 = vunpack.c.l.b16 %v891
        %v1570 = vunpack.c.h.b16 %v891
        %v1571 = vunpack.c.l.b16 %v892
        %v1572 = vunpack.c.h.b16 %v892
        %v1573 = vunpack.c.l.b16 %v893
        %v1574 = vunpack.c.h.b16 %v893
        %v1575 = vunpack.c.l.b16 %v894
        %v1576 = vunpack.c.h.b16 %v894
        %v1577 = vunpack.c.l.b16 %v895
        %v1578 = vunpack.c.h.b16 %v895
        %v1579 = vunpack.c.l.b16 %v896
        %v1580 = vunpack.c.h.b16 %v896
        %v1581 = vunpack.c.l.b16 %v897
        %v1582 = vunpack.c.h.b16 %v897
        %v1583 = vunpack.c.l.b16 %v898
        %v1584 = vunpack.c.h.b16 %v898
        %v1585 = vunpack.c.l.b16 %v899
        %v1586 = vunpack.c.h.b16 %v899
        %v1587 = vunpack.c.l.b16 %v900
        %v1588 = vunpack.c.h.b16 %v900
        %v1589 = vunpack.c.l.b16 %v901
        %v1590 = vunpack.c.h.b16 %v901
        %v1591 = vunpack.c.l.b16 %v902
        %v1592 = vunpack.c.h.b16 %v902
        %v1593 = vunpack.c.l.b16 %v903
        %v1594 = vunpack.c.h.b16 %v903
        %v1595 = vunpack.c.l.b16 %v904
        %v1596 = vunpack.c.h.b16 %v904
        %v1597 = vunpack.c.l.b16 %v905
        %v1598 = vunpack.c.h.b16 %v905
        %v1599 = vunpack.c.l.b16 %v906
        %v1600 = vunpack.c.h.b16 %v906
        %v1601 = vunpack.c.l.b16 %v907
        %v1602 = vunpack.c.h.b16 %v907
        %v1603 = vunpack.c.l.b16 %v908
        %v1604 = vunpack.c.h.b16 %v908
        %v1605 = vunpack.c.l.b16 %v909
        %v1606 = vunpack.c.h.b16 %v909
        %v1607 = vunpack.c.l.b16 %v910
        %v1608 = vunpack.c.h.b16 %v910
        %v1609 = vunpack.c.l.b16 %v911
        %v1610 = vunpack.c.h.b16 %v911
        %v1611 = vunpack.c.l.b16 %v912
        %v1612 = vunpack.c.h.b16 %v912
        %v1613 = vunpack.c.l.b16 %v913
        %v1614 = vunpack.c.h.b16 %v913
        %v1615 = vunpack.c.l.b16 %v914
        %v1616 = vunpack.c.h.b16 %v914
        %v1617 = vunpack.c.l.b16 %v915
        %v1618 = vunpack.c.h.b16 %v915
        %v1619 = vunpack.c.l.b16 %v916
        %v1620 = vunpack.c.h.b16 %v916
        %v1621 = vunpack.c.l.b16 %v917
        %v1622 = vunpack.c.h.b16 %v917
        %v1623 = vunpack.c.l.b16 %v918
        %v1624 = vunpack.c.h.b16 %v918
        %v1625 = vunpack.c.l.b16 %v919
        %v1626 = vunpack.c.h.b16 %v919
        %v1627 = vunpack.c.l.b16 %v920
        %v1628 = vunpack.c.h.b16 %v920
        %v1629 = vunpack.c.l.b16 %v921
        %v1630 = vunpack.c.h.b16 %v921
        %v1631 = vunpack.c.l.b16 %v922
        %v1632 = vunpack.c.h.b16 %v922
        %v1633 = vunpack.c.l.b16 %v923
        %v1634 = vunpack.c.h.b16 %v923
        %v1635 = vunpack.c.l.b16 %v924
        %v1636 = vunpack.c.h.b16 %v924
        %v1637 = vunpack.c.l.b16 %v925
        %v1638 = vunpack.c.h.b16 %v925
        %v1639 = vunpack.c.l.b16 %v926
        %v1640 = vunpack.c.h.b16 %v926
        %v1641 = vunpack.c.l.b16 %v927
        %v1642 = vunpack.c.h.b16 %v927
        %v1643 = vunpack.c.l.b16 %v928
        %v1644 = vunpack.c.h.b16 %v928
        %v1645 = vunpack.c.l.b16 %v929
        %v1646 = vunpack.c.h.b16 %v929
        %v1647 = vunpack.c.l.b16 %v930
        %v1648 = vunpack.c.h.b16 %v930
        %v1649 = vunpack.c.l.b16 %v931
        %v1650 = vunpack.c.h.b16 %v931
        %v1651 = vunpack.c.l.b16 %v932
        %v1652 = vunpack.c.h.b16 %v932
        %v1653 = vunpack.c.l.b16 %v933
        %v1654 = vunpack.c.h.b16 %v933
        %v1655 = vunpack.c.l.b16 %v934
        %v1656 = vunpack.c.h.b16 %v934
        %v1657 = vunpack.c.l.b16 %v935
        %v1658 = vunpack.c.h.b16 %v935
        %v1659 = vunpack.c.l.b16 %v936
        %v1660 = vunpack.c.h.b16 %v936
        %v1661 = vunpack.c.l.b16 %v937
        %v1662 = vunpack.c.h.b16 %v937
        %v1663 = vunpack.c.l.b16 %v938
        %v1664 = vunpack.c.h.b16 %v938
        %v1665 = vunpack.c.l.b16 %v939
        %v1666 = vunpack.c.h.b16 %v939
        %v1667 = vunpack.c.l.b16 %v940
        %v1668 = vunpack.c.h.b16 %v940
        %v1669 = vunpack.c.l.b16 %v941
        %v1670 = vunpack.c.h.b16 %v941
        %v1671 = vunpack.c.l.b16 %v942
        %v1672 = vunpack.c.h.b16 %v942
        %v1673 = vunpack.c.l.b16 %v943
        %v1674 = vunpack.c.h.b16 %v943
        %v1675 = vunpack.c.l.b16 %v944
        %v1676 = vunpack.c.h.b16 %v944
        %v1677 = vunpack.c.l.b16 %v945
        %v1678 = vunpack.c.h.b16 %v945
        %v1679 = vunpack.c.l.b16 %v946
        %v1680 = vunpack.c.h.b16 %v946
        %v1681 = vunpack.c.l.b16 %v947
        %v1682 = vunpack.c.h.b16 %v947
        %v1683 = vunpack.c.l.b16 %v948
        %v1684 = vunpack.c.h.b16 %v948
        %v1685 = vunpack.c.l.b16 %v949
        %v1686 = vunpack.c.h.b16 %v949
        %v1687 = vunpack.c.l.b16 %v950
        %v1688 = vunpack.c.h.b16 %v950
        %v1689 = vunpack.c.l.b16 %v951
        %v1690 = vunpack.c.h.b16 %v951
        %v1691 = vunpack.c.l.b16 %v952
        %v1692 = vunpack.c.h.b16 %v952
        %v1693 = vunpack.c.l.b16 %v953
        %v1694 = vunpack.c.h.b16 %v953
        %v1695 = vunpack.c.l.b16 %v954
        %v1696 = vunpack.c.h.b16 %v954
        %v1697 = vunpack.c.l.b16 %v955
        %v1698 = vunpack.c.h.b16 %v955
        %v1699 = vunpack.c.l.b16 %v956
        %v1700 = vunpack.c.h.b16 %v956
        %v1701 = vunpack.c.l.b16 %v957
        %v1702 = vunpack.c.h.b16 %v957
        %v1703 = vunpack.c.l.b16 %v958
        %v1704 = vunpack.c.h.b16 %v958
        %v1705 = vunpack.c.l.b16 %v959
        %v1706 = vunpack.c.h.b16 %v959
        %v1707 = vunpack.c.l.b16 %v960
        %v1708 = vunpack.c.h.b16 %v960
        %v1709 = vunpack.c.l.b16 %v961
        %v1710 = vunpack.c.h.b16 %v961
        %v1711 = vunpack.c.l.b16 %v962
        %v1712 = vunpack.c.h.b16 %v962
        %v1713 = vunpack.c.l.b16 %v963
        %v1714 = vunpack.c.h.b16 %v963
        %v1715 = vunpack.c.l.b16 %v964
        %v1716 = vunpack.c.h.b16 %v964
        %v1717 = vunpack.c.l.b16 %v965
        %v1718 = vunpack.c.h.b16 %v965
        %v1719 = vunpack.c.l.b16 %v966
        %v1720 = vunpack.c.h.b16 %v966
        %v1721 = vunpack.c.l.b16 %v967
        %v1722 = vunpack.c.h.b16 %v967
        %v1723 = vunpack.c.l.b16 %v968
        %v1724 = vunpack.c.h.b16 %v968
        %v1725 = vunpack.c.l.b16 %v969
        %v1726 = vunpack.c.h.b16 %v969
        %v1727 = vunpack.c.l.b16 %v970
        %v1728 = vunpack.c.h.b16 %v970
        %v1729 = vunpack.c.l.b16 %v971
        %v1730 = vunpack.c.h.b16 %v971
        %v1731 = vunpack.c.l.b16 %v972
        %v1732 = vunpack.c.h.b16 %v972
        %v1733 = vunpack.c.l.b16 %v973
        %v1734 = vunpack.c.h.b16 %v973
        %v1735 = vunpack.c.l.b16 %v974
        %v1736 = vunpack.c.h.b16 %v974
        %v1737 = vunpack.c.l.b16 %v975
        %v1738 = vunpack.c.h.b16 %v975
        %v1739 = vunpack.c.l.b16 %v976
        %v1740 = vunpack.c.h.b16 %v976
        %v1741 = vunpack.c.l.b16 %v977
        %v1742 = vunpack.c.h.b16 %v977
        %v1743 = vunpack.c.l.b16 %v978
        %v1744 = vunpack.c.h.b16 %v978
        %v1745 = vunpack.c.l.b16 %v979
        %v1746 = vunpack.c.h.b16 %v979
        %v1747 = vunpack.c.l.b16 %v980
        %v1748 = vunpack.c.h.b16 %v980
        %v1749 = vunpack.c.l.b16 %v981
        %v1750 = vunpack.c.h.b16 %v981
        %v1751 = vunpack.c.l.b16 %v982
        %v1752 = vunpack.c.h.b16 %v982
        %v1753 = vunpack.c.l.b16 %v983
        %v1754 = vunpack.c.h.b16 %v983
        %v1755 = vunpack.c.l.b16 %v984
        %v1756 = vunpack.c.h.b16 %v984
        %v1757 = vunpack.c.l.b16 %v985
        %v1758 = vunpack.c.h.b16 %v985
        %v1759 = vunpack.c.l.b16 %v986
        %v1760 = vunpack.c.h.b16 %v986
        %v1761 = vunpack.c.l.b16 %v987
        %v1762 = vunpack.c.h.b16 %v987
        %v1763 = vunpack.c.l.b16 %v988
        %v1764 = vunpack.c.h.b16 %v988
        %v1765 = vunpack.c.l.b16 %v989
        %v1766 = vunpack.c.h.b16 %v989
        %v1767 = vunpack.c.l.b16 %v990
        %v1768 = vunpack.c.h.b16 %v990
        %v1769 = vunpack.c.l.b16 %v991
        %v1770 = vunpack.c.h.b16 %v991
        %v1771 = vunpack.c.l.b16 %v992
        %v1772 = vunpack.c.h.b16 %v992
        %v1773 = vunpack.c.l.b16 %v993
        %v1774 = vunpack.c.h.b16 %v993
        %v1775 = vunpack.c.l.b16 %v994
        %v1776 = vunpack.c.h.b16 %v994
        %v1777 = vunpack.c.l.b16 %v995
        %v1778 = vunpack.c.h.b16 %v995
        %v1779 = vunpack.c.l.b16 %v996
        %v1780 = vunpack.c.h.b16 %v996
        %v1781 = vunpack.c.l.b16 %v997
        %v1782 = vunpack.c.h.b16 %v997
        %v1783 = vunpack.c.l.b16 %v998
        %v1784 = vunpack.c.h.b16 %v998
        %v1785 = vunpack.c.l.b16 %v999
        %v1786 = vunpack.c.h.b16 %v999
        %v1787 = vunpack.c.l.b16 %v1000
        %v1788 = vunpack.c.h.b16 %v1000
        %v1789 = vunpack.c.l.b16 %v1001
        %v1790 = vunpack.c.h.b16 %v1001
        %v1791 = vunpack.c.l.b16 %v1002
        %v1792 = vunpack.c.h.b16 %v1002
        %v1793 = vunpack.c.l.b16 %v1003
        %v1794 = vunpack.c.h.b16 %v1003
        %v1795 = vunpack.c.l.b16 %v1004
        %v1796 = vunpack.c.h.b16 %v1004
        %v1797 = vunpack.c.l.b16 %v1005
        %v1798 = vunpack.c.h.b16 %v1005
        %v1799 = vunpack.c.l.b16 %v1006
        %v1800 = vunpack.c.h.b16 %v1006
        %v1801 = vunpack.c.l.b16 %v1007
        %v1802 = vunpack.c.h.b16 %v1007
        %v1803 = vunpack.c.l.b16 %v1008
        %v1804 = vunpack.c.h.b16 %v1008
        %v1805 = vunpack.c.l.b16 %v1009
        %v1806 = vunpack.c.h.b16 %v1009
        %v1807 = vunpack.c.l.b16 %v1010
        %v1808 = vunpack.c.h.b16 %v1010
        %v1809 = vunpack.c.l.b16 %v1011
        %v1810 = vunpack.c.h.b16 %v1011
        %v1811 = vunpack.c.l.b16 %v1012
        %v1812 = vunpack.c.h.b16 %v1012
        %v1813 = vunpack.c.l.b16 %v1013
        %v1814 = vunpack.c.h.b16 %v1013
        %v1815 = vunpack.c.l.b16 %v1014
        %v1816 = vunpack.c.h.b16 %v1014
        %v1817 = vunpack.c.l.b16 %v1015
        %v1818 = vunpack.c.h.b16 %v1015
        %v1819 = vunpack.c.l.b16 %v1016
        %v1820 = vunpack.c.h.b16 %v1016
        %v1821 = vunpack.c.l.b16 %v1017
        %v1822 = vunpack.c.h.b16 %v1017
        %v1823 = vunpack.c.l.b16 %v1018
        %v1824 = vunpack.c.h.b16 %v1018
        %v1825 = vunpack.c.l.b16 %v1019
        %v1826 = vunpack.c.h.b16 %v1019
        %v1827 = vunpack.c.l.b16 %v1020
        %v1828 = vunpack.c.h.b16 %v1020
        %v1829 = vunpack.c.l.b16 %v1021
        %v1830 = vunpack.c.h.b16 %v1021
        %v1831 = vunpack.c.l.b16 %v1022
        %v1832 = vunpack.c.h.b16 %v1022
        %v1833 = vunpack.c.l.b16 %v1023
        %v1834 = vunpack.c.h.b16 %v1023
        %v1835 = vunpack.c.l.b16 %v1024
        %v1836 = vunpack.c.h.b16 %v1024
        %v1837 = vunpack.c.l.b16 %v1025
        %v1838 = vunpack.c.h.b16 %v1025
        %v1839 = vunpack.c.l.b16 %v1026
        %v1840 = vunpack.c.h.b16 %v1026
        %v1841 = vunpack.c.l.b16 %v1027
        %v1842 = vunpack.c.h.b16 %v1027
        %v1843 = vunpack.c.l.b16 %v1028
        %v1844 = vunpack.c.h.b16 %v1028
        %v1845 = vunpack.c.l.b16 %v1029
        %v1846 = vunpack.c.h.b16 %v1029
        %v1847 = vunpack.c.l.b16 %v1030
        %v1848 = vunpack.c.h.b16 %v1030
        %v1849 = vunpack.c.l.b16 %v1031
        %v1850 = vunpack.c.h.b16 %v1031
        %v1851 = vunpack.c.l.b16 %v1032
        %v1852 = vunpack.c.h.b16 %v1032
        %v1853 = vunpack.c.l.b16 %v1033
        %v1854 = vunpack.c.h.b16 %v1033
        %v1855 = vunpack.c.l.b16 %v1034
        %v1856 = vunpack.c.h.b16 %v1034
        %v1857 = vunpack.c.l.b16 %v1035
        %v1858 = vunpack.c.h.b16 %v1035
        %v1859 = vunpack.c.l.b16 %v1036
        %v1860 = vunpack.c.h.b16 %v1036
        %v1861 = vunpack.c.l.b16 %v1037
        %v1862 = vunpack.c.h.b16 %v1037
        %v1863 = vunpack.c.l.b16 %v1038
        %v1864 = vunpack.c.h.b16 %v1038
        %v1865 = vunpack.c.l.b16 %v1039
        %v1866 = vunpack.c.h.b16 %v1039
        %v1867 = vunpack.c.l.b16 %v1040
        %v1868 = vunpack.c.h.b16 %v1040
        %v1869 = vunpack.c.l.b16 %v1041
        %v1870 = vunpack.c.h.b16 %v1041
        %v1871 = vunpack.c.l.b16 %v1042
        %v1872 = vunpack.c.h.b16 %v1042
        %v1873 = vunpack.c.l.b16 %v1043
        %v1874 = vunpack.c.h.b16 %v1043
        %v1875 = vunpack.c.l.b16 %v1044
        %v1876 = vunpack.c.h.b16 %v1044
        %v1877 = vunpack.c.l.b16 %v1045
        %v1878 = vunpack.c.h.b16 %v1045
        %v1879 = vunpack.c.l.b16 %v1046
        %v1880 = vunpack.c.h.b16 %v1046
        %v1881 = vunpack.c.l.b16 %v1047
        %v1882 = vunpack.c.h.b16 %v1047
        %v1883 = vunpack.c.l.b16 %v1048
        %v1884 = vunpack.c.h.b16 %v1048
        %v1885 = vunpack.c.l.b16 %v1049
        %v1886 = vunpack.c.h.b16 %v1049
        %v1887 = vunpack.c.l.b16 %v1050
        %v1888 = vunpack.c.h.b16 %v1050
        %v1889 = vunpack.c.l.b16 %v1051
        %v1890 = vunpack.c.h.b16 %v1051
        %v1891 = vunpack.c.l.b16 %v1052
        %v1892 = vunpack.c.h.b16 %v1052
        %v1893 = vunpack.c.l.b16 %v1053
        %v1894 = vunpack.c.h.b16 %v1053
        %v1895 = vunpack.c.l.b16 %v1054
        %v1896 = vunpack.c.h.b16 %v1054
        %v1897 = vunpack.c.l.b16 %v1055
        %v1898 = vunpack.c.h.b16 %v1055
        %v1899 = vunpack.c.l.b16 %v1056
        %v1900 = vunpack.c.h.b16 %v1056
        %v1901 = vunpack.c.l.b16 %v1057
        %v1902 = vunpack.c.h.b16 %v1057
        %v1903 = vunpack.c.l.b16 %v1058
        %v1904 = vunpack.c.h.b16 %v1058
        %v1905 = vunpack.c.l.b16 %v1059
        %v1906 = vunpack.c.h.b16 %v1059
        %v1907 = vunpack.c.l.b16 %v1060
        %v1908 = vunpack.c.h.b16 %v1060
        %v1909 = vunpack.c.l.b16 %v1061
        %v1910 = vunpack.c.h.b16 %v1061
        %v1911 = vunpack.c.l.b16 %v1062
        %v1912 = vunpack.c.h.b16 %v1062
        %v1913 = vunpack.c.l.b16 %v1063
        %v1914 = vunpack.c.h.b16 %v1063
        %v1915 = vunpack.c.l.b16 %v1064
        %v1916 = vunpack.c.h.b16 %v1064
        %v1917 = vunpack.c.l.b16 %v1065
        %v1918 = vunpack.c.h.b16 %v1065
        %v1919 = vunpack.c.l.b16 %v1066
        %v1920 = vunpack.c.h.b16 %v1066
        %v1921 = vunpack.c.l.b16 %v1067
        %v1922 = vunpack.c.h.b16 %v1067
        %v1923 = vunpack.c.l.b16 %v1068
        %v1924 = vunpack.c.h.b16 %v1068
        %v1925 = vunpack.c.l.b16 %v1069
        %v1926 = vunpack.c.h.b16 %v1069
        %v1927 = vunpack.c.l.b16 %v1070
        %v1928 = vunpack.c.h.b16 %v1070
        %v1929 = vunpack.c.l.b16 %v1071
        %v1930 = vunpack.c.h.b16 %v1071
        %v1931 = vunpack.c.l.b16 %v1072
        %v1932 = vunpack.c.h.b16 %v1072
        %v1933 = vunpack.c.l.b16 %v1073
        %v1934 = vunpack.c.h.b16 %v1073
        %v1935 = vunpack.c.l.b16 %v1074
        %v1936 = vunpack.c.h.b16 %v1074
        %v1937 = vunpack.c.l.b16 %v1075
        %v1938 = vunpack.c.h.b16 %v1075
        %v1939 = vunpack.c.l.b16 %v1076
        %v1940 = vunpack.c.h.b16 %v1076
        %v1941 = vunpack.c.l.b16 %v1077
        %v1942 = vunpack.c.h.b16 %v1077
        %v1943 = vunpack.c.l.b16 %v1078
        %v1944 = vunpack.c.h.b16 %v1078
        %v1945 = vunpack.c.l.b16 %v1079
        %v1946 = vunpack.c.h.b16 %v1079
        %v1947 = vunpack.c.l.b16 %v1080
        %v1948 = vunpack.c.h.b16 %v1080
        %v1949 = vunpack.c.l.b16 %v1081
        %v1950 = vunpack.c.h.b16 %v1081
        %v1951 = vunpack.c.l.b16 %v1082
        %v1952 = vunpack.c.h.b16 %v1082
        %v1953 = vunpack.c.l.b16 %v1083
        %v1954 = vunpack.c.h.b16 %v1083
        %v1955 = vunpack.c.l.b16 %v1084
        %v1956 = vunpack.c.h.b16 %v1084
        %v1957 = vunpack.c.l.b16 %v1085
        %v1958 = vunpack.c.h.b16 %v1085
        %v1959 = vunpack.c.l.b16 %v1086
        %v1960 = vunpack.c.h.b16 %v1086
        %v1961 = vunpack.c.l.b16 %v1087
        %v1962 = vunpack.c.h.b16 %v1087
        %v1963 = vunpack.c.l.b16 %v1088
        %v1964 = vunpack.c.h.b16 %v1088
        %v1965 = vunpack.c.l.b16 %v1089
        %v1966 = vunpack.c.h.b16 %v1089
        %v1967 = vunpack.c.l.b16 %v1090
        %v1968 = vunpack.c.h.b16 %v1090
        %v1969 = vunpack.c.l.b16 %v1091
        %v1970 = vunpack.c.h.b16 %v1091
        %v1971 = vunpack.c.l.b16 %v1092
        %v1972 = vunpack.c.h.b16 %v1092
        %v1973 = vunpack.c.l.b16 %v1093
        %v1974 = vunpack.c.h.b16 %v1093
        %v1975 = vunpack.c.l.b16 %v1094
        %v1976 = vunpack.c.h.b16 %v1094
        %v1977 = vunpack.c.l.b16 %v1095
        %v1978 = vunpack.c.h.b16 %v1095
        %v1979 = vunpack.c.l.b16 %v1096
        %v1980 = vunpack.c.h.b16 %v1096
        %v1981 = vunpack.c.l.b16 %v1097
        %v1982 = vunpack.c.h.b16 %v1097
        %v1983 = vunpack.c.l.b16 %v1098
        %v1984 = vunpack.c.h.b16 %v1098
        %v1985 = vunpack.c.l.b16 %v1099
        %v1986 = vunpack.c.h.b16 %v1099
        %v1987 = vunpack.c.l.b16 %v1100
        %v1988 = vunpack.c.h.b16 %v1100
        %v1989 = vunpack.c.l.b16 %v1101
        %v1990 = vunpack.c.h.b16 %v1101
        %v1991 = vunpack.c.l.b16 %v1102
        %v1992 = vunpack.c.h.b16 %v1102
        %v1993 = vunpack.c.l.b16 %v1103
        %v1994 = vunpack.c.h.b16 %v1103
        %v1995 = vunpack.c.l.b16 %v1104
        %v1996 = vunpack.c.h.b16 %v1104
        %v1997 = vunpack.c.l.b16 %v1105
        %v1998 = vunpack.c.h.b16 %v1105
        %v1999 = vunpack.c.l.b16 %v1106
        %v2000 = vunpack.c.h.b16 %v1106
        %v2001 = vunpack.c.l.b16 %v1107
        %v2002 = vunpack.c.h.b16 %v1107
        %v2003 = vunpack.c.l.b16 %v1108
        %v2004 = vunpack.c.h.b16 %v1108
        %v2005 = vunpack.c.l.b16 %v1109
        %v2006 = vunpack.c.h.b16 %v1109
        %v2007 = vunpack.c.l.b16 %v1110
        %v2008 = vunpack.c.h.b16 %v1110
        %v2009 = vunpack.c.l.b16 %v1111
        %v2010 = vunpack.c.h.b16 %v1111
        %v2011 = vunpack.c.l.b16 %v1112
        %v2012 = vunpack.c.h.b16 %v1112
        %v2013 = vunpack.c.l.b16 %v1113
        %v2014 = vunpack.c.h.b16 %v1113
        %v2015 = vunpack.c.l.b16 %v1114
        %v2016 = vunpack.c.h.b16 %v1114
        %v2017 = vunpack.c.l.b16 %v1115
        %v2018 = vunpack.c.h.b16 %v1115
        %v2019 = vunpack.c.l.b16 %v1116
        %v2020 = vunpack.c.h.b16 %v1116
        %v2021 = vunpack.c.l.b16 %v1117
        %v2022 = vunpack.c.h.b16 %v1117
        %v2023 = vunpack.c.l.b16 %v1118
        %v2024 = vunpack.c.h.b16 %v1118
        %v2025 = vunpack.c.l.b16 %v1119
        %v2026 = vunpack.c.h.b16 %v1119
        %v2027 = vunpack.c.l.b16 %v1120
        %v2028 = vunpack.c.h.b16 %v1120
        %v2029 = vunpack.c.l.b16 %v1121
        %v2030 = vunpack.c.h.b16 %v1121
        %v2031 = vunpack.c.l.b16 %v1122
        %v2032 = vunpack.c.h.b16 %v1122
        %v2033 = vunpack.c.l.b16 %v1123
        %v2034 = vunpack.c.h.b16 %v1123
        %v2035 = vunpack.c.l.b16 %v1124
        %v2036 = vunpack.c.h.b16 %v1124
        %v2037 = vunpack.c.l.b16 %v1125
        %v2038 = vunpack.c.h.b16 %v1125
        %v2039 = vunpack.c.l.b16 %v1126
        %v2040 = vunpack.c.h.b16 %v1126
        %v2041 = vunpack.c.l.b16 %v1127
        %v2042 = vunpack.c.h.b16 %v1127
        %v2043 = vunpack.c.l.b16 %v1128
        %v2044 = vunpack.c.h.b16 %v1128
        %v2045 = vunpack.c.l.b16 %v1129
        %v2046 = vunpack.c.h.b16 %v1129
        %v2047 = vunpack.c.l.b16 %v1130
        %v2048 = vunpack.c.h.b16 %v1130
        %v2049 = vunpack.c.l.b16 %v1131
        %v2050 = vunpack.c.h.b16 %v1131
        %v2051 = vunpack.c.l.b16 %v1132
        %v2052 = vunpack.c.h.b16 %v1132
        %v2053 = vunpack.c.l.b16 %v1133
        %v2054 = vunpack.c.h.b16 %v1133
        %v2055 = vunpack.c.l.b16 %v1134
        %v2056 = vunpack.c.h.b16 %v1134
        %v2057 = vunpack.c.l.b16 %v1135
        %v2058 = vunpack.c.h.b16 %v1135
        %v2059 = vunpack.c.l.b16 %v1136
        %v2060 = vunpack.c.h.b16 %v1136
        %v2061 = vunpack.c.l.b16 %v1137
        %v2062 = vunpack.c.h.b16 %v1137
        %v2063 = vunpack.c.l.b16 %v1138
        %v2064 = vunpack.c.h.b16 %v1138
        %v2065 = vunpack.c.l.b16 %v1139
        %v2066 = vunpack.c.h.b16 %v1139
        %v2067 = vunpack.c.l.b16 %v1140
        %v2068 = vunpack.c.h.b16 %v1140
        %v2069 = vunpack.c.l.b16 %v1141
        %v2070 = vunpack.c.h.b16 %v1141
        %v2071 = vunpack.c.l.b16 %v1142
        %v2072 = vunpack.c.h.b16 %v1142
        %v2073 = vunpack.c.l.b16 %v1143
        %v2074 = vunpack.c.h.b16 %v1143
        %v2075 = vunpack.c.l.b16 %v1144
        %v2076 = vunpack.c.h.b16 %v1144
        %v2077 = vunpack.c.l.b16 %v1145
        %v2078 = vunpack.c.h.b16 %v1145
        %v2079 = vunpack.c.l.b16 %v1146
        %v2080 = vunpack.c.h.b16 %v1146
        %v2081 = vunpack.c.l.b16 %v1147
        %v2082 = vunpack.c.h.b16 %v1147
        %v2083 = vunpack.c.l.b16 %v1148
        %v2084 = vunpack.c.h.b16 %v1148
        %v2085 = vunpack.c.l.b16 %v1149
        %v2086 = vunpack.c.h.b16 %v1149
        %v2087 = vunpack.c.l.b16 %v1150
        %v2088 = vunpack.c.h.b16 %v1150
        %v2089 = vunpack.c.l.b16 %v1151
        %v2090 = vunpack.c.h.b16 %v1151
        %v2091 = vunpack.c.l.b16 %v1152
        %v2092 = vunpack.c.h.b16 %v1152
        %v2093 = vunpack.c.l.b16 %v1153
        %v2094 = vunpack.c.h.b16 %v1153
        %v2095 = vunpack.c.l.b16 %v1154
        %v2096 = vunpack.c.h.b16 %v1154
        %v2097 = vunpack.c.l.b16 %v1155
        %v2098 = vunpack.c.h.b16 %v1155
        %v2099 = vunpack.c.l.b16 %v1156
        %v2100 = vunpack.c.h.b16 %v1156
        %v2101 = vunpack.c.l.b16 %v1157
        %v2102 = vunpack.c.h.b16 %v1157
        %v2103 = vunpack.c.l.b16 %v1158
        %v2104 = vunpack.c.h.b16 %v1158
        %v2105 = vunpack.c.l.b16 %v1159
        %v2106 = vunpack.c.h.b16 %v1159
        %v2107 = vunpack.c.l.b16 %v1160
        %v2108 = vunpack.c.h.b16 %v1160
        %v2109 = vunpack.c.l.b16 %v1161
        %v2110 = vunpack.c.h.b16 %v1161
        %v2111 = vunpack.c.l.b16 %v1162
        %v2112 = vunpack.c.h.b16 %v1162
        %v2113 = vunpack.c.l.b16 %v1163
        %v2114 = vunpack.c.h.b16 %v1163
        %v2115 = vunpack.c.l.b16 %v1164
        %v2116 = vunpack.c.h.b16 %v1164
        %v2117 = vunpack.c.l.b16 %v1165
        %v2118 = vunpack.c.h.b16 %v1165
        %v2119 = vunpack.c.l.b16 %v1166
        %v2120 = vunpack.c.h.b16 %v1166
        %v2121 = vunpack.c.l.b16 %v1167
        %v2122 = vunpack.c.h.b16 %v1167
        %v2123 = vunpack.c.l.b16 %v1168
        %v2124 = vunpack.c.h.b16 %v1168
        %v2125 = vunpack.c.l.b16 %v1169
        %v2126 = vunpack.c.h.b16 %v1169
        %v2127 = vunpack.c.l.b16 %v1170
        %v2128 = vunpack.c.h.b16 %v1170
        %v2129 = vunpack.c.l.b16 %v1171
        %v2130 = vunpack.c.h.b16 %v1171
        %v2131 = vunpack.c.l.b16 %v1172
        %v2132 = vunpack.c.h.b16 %v1172
        %v2133 = vunpack.c.l.b16 %v1173
        %v2134 = vunpack.c.h.b16 %v1173
        %v2135 = vunpack.c.l.b16 %v1174
        %v2136 = vunpack.c.h.b16 %v1174
        %v2137 = vunpack.c.l.b16 %v1175
        %v2138 = vunpack.c.h.b16 %v1175
        %v2139 = vunpack.c.l.b16 %v1176
        %v2140 = vunpack.c.h.b16 %v1176
        %v2141 = vunpack.c.l.b16 %v1177
        %v2142 = vunpack.c.h.b16 %v1177
        %v2143 = vunpack.c.l.b16 %v1178
        %v2144 = vunpack.c.h.b16 %v1178
        %v2145 = vpack.c.b16 %v1569, %v1505
        %v2146 = vpack.c.b16 %v1570, %v1506
        %v2147 = vpack.c.b16 %v1571, %v1507
        %v2148 = vpack.c.b16 %v1572, %v1508
        %v2149 = vpack.c.b16 %v1573, %v1509
        %v2150 = vpack.c.b16 %v1574, %v1510
        %v2151 = vpack.c.b16 %v1575, %v1511
        %v2152 = vpack.c.b16 %v1576, %v1512
        %v2153 = vpack.c.b16 %v1577, %v1513
        %v2154 = vpack.c.b16 %v1578, %v1514
        %v2155 = vpack.c.b16 %v1579, %v1515
        %v2156 = vpack.c.b16 %v1580, %v1516
        %v2157 = vpack.c.b16 %v1581, %v1517
        %v2158 = vpack.c.b16 %v1582, %v1518
        %v2159 = vpack.c.b16 %v1583, %v1519
        %v2160 = vpack.c.b16 %v1584, %v1520
        %v2161 = vpack.c.b16 %v1585, %v1521
        %v2162 = vpack.c.b16 %v1586, %v1522
        %v2163 = vpack.c.b16 %v1587, %v1523
        %v2164 = vpack.c.b16 %v1588, %v1524
        %v2165 = vpack.c.b16 %v1589, %v1525
        %v2166 = vpack.c.b16 %v1590, %v1526
        %v2167 = vpack.c.b16 %v1591, %v1527
        %v2168 = vpack.c.b16 %v1592, %v1528
        %v2169 = vpack.c.b16 %v1593, %v1529
        %v2170 = vpack.c.b16 %v1594, %v1530
        %v2171 = vpack.c.b16 %v1595, %v1531
        %v2172 = vpack.c.b16 %v1596, %v1532
        %v2173 = vpack.c.b16 %v1597, %v1533
        %v2174 = vpack.c.b16 %v1598, %v1534
        %v2175 = vpack.c.b16 %v1599, %v1535
        %v2176 = vpack.c.b16 %v1600, %v1536
        %v2177 = vpack.c.b16 %v1601, %v1537
        %v2178 = vpack.c.b16 %v1602, %v1538
        %v2179 = vpack.c.b16 %v1603, %v1539
        %v2180 = vpack.c.b16 %v1604, %v1540
        %v2181 = vpack.c.b16 %v1605, %v1541
        %v2182 = vpack.c.b16 %v1606, %v1542
        %v2183 = vpack.c.b16 %v1607, %v1543
        %v2184 = vpack.c.b16 %v1608, %v1544
        %v2185 = vpack.c.b16 %v1609, %v1545
        %v2186 = vpack.c.b16 %v1610, %v1546
        %v2187 = vpack.c.b16 %v1611, %v1547
        %v2188 = vpack.c.b16 %v1612, %v1548
        %v2189 = vpack.c.b16 %v1613, %v1549
        %v2190 = vpack.c.b16 %v1614, %v1550
        %v2191 = vpack.c.b16 %v1615, %v1551
        %v2192 = vpack.c.b16 %v1616, %v1552
        %v2193 = vpack.c.b16 %v1617, %v1553
        %v2194 = vpack.c.b16 %v1618, %v1554
        %v2195 = vpack.c.b16 %v1619, %v1555
        %v2196 = vpack.c.b16 %v1620, %v1556
        %v2197 = vpack.c.b16 %v1621, %v1557
        %v2198 = vpack.c.b16 %v1622, %v1558
        %v2199 = vpack.c.b16 %v1623, %v1559
        %v2200 = vpack.c.b16 %v1624, %v1560
        %v2201 = vpack.c.b16 %v1625, %v1561
        %v2202 = vpack.c.b16 %v1626, %v1562
        %v2203 = vpack.c.b16 %v1627, %v1563
        %v2204 = vpack.c.b16 %v1628, %v1564
        %v2205 = vpack.c.b16 %v1629, %v1565
        %v2206 = vpack.c.b16 %v1630, %v1566
        %v2207 = vpack.c.b16 %v1631, %v1567
        %v2208 = vpack.c.b16 %v1632, %v1568
        %v2209 = vpack.c.b16 %v1697, %v1633
        %v2210 = vpack.c.b16 %v1698, %v1634
        %v2211 = vpack.c.b16 %v1699, %v1635
        %v2212 = vpack.c.b16 %v1700, %v1636
        %v2213 = vpack.c.b16 %v1701, %v1637
        %v2214 = vpack.c.b16 %v1702, %v1638
        %v2215 = vpack.c.b16 %v1703, %v1639
        %v2216 = vpack.c.b16 %v1704, %v1640
        %v2217 = vpack.c.b16 %v1705, %v1641
        %v2218 = vpack.c.b16 %v1706, %v1642
        %v2219 = vpack.c.b16 %v1707, %v1643
        %v2220 = vpack.c.b16 %v1708, %v1644
        %v2221 = vpack.c.b16 %v1709, %v1645
        %v2222 = vpack.c.b16 %v1710, %v1646
        %v2223 = vpack.c.b16 %v1711, %v1647
        %v2224 = vpack.c.b16 %v1712, %v1648
        %v2225 = vpack.c.b16 %v1713, %v1649
        %v2226 = vpack.c.b16 %v1714, %v1650
        %v2227 = vpack.c.b16 %v1715, %v1651
        %v2228 = vpack.c.b16 %v1716, %v1652
        %v2229 = vpack.c.b16 %v1717, %v1653
        %v2230 = vpack.c.b16 %v1718, %v1654
        %v2231 = vpack.c.b16 %v1719, %v1655
        %v2232 = vpack.c.b16 %v1720, %v1656
        %v2233 = vpack.c.b16 %v1721, %v1657
        %v2234 = vpack.c.b16 %v1722, %v1658
        %v2235 = vpack.c.b16 %v1723, %v1659
        %v2236 = vpack.c.b16 %v1724, %v1660
        %v2237 = vpack.c.b16 %v1725, %v1661
        %v2238 = vpack.c.b16 %v1726, %v1662
        %v2239 = vpack.c.b16 %v1727, %v1663
        %v2240 = vpack.c.b16 %v1728, %v1664
        %v2241 = vpack.c.b16 %v1729, %v1665
        %v2242 = vpack.c.b16 %v1730, %v1666
        %v2243 = vpack.c.b16 %v1731, %v1667
        %v2244 = vpack.c.b16 %v1732, %v1668
        %v2245 = vpack.c.b16 %v1733, %v1669
        %v2246 = vpack.c.b16 %v1734, %v1670
        %v2247 = vpack.c.b16 %v1735, %v1671
        %v2248 = vpack.c.b16 %v1736, %v1672
        %v2249 = vpack.c.b16 %v1737, %v1673
        %v2250 = vpack.c.b16 %v1738, %v1674
        %v2251 = vpack.c.b16 %v1739, %v1675
        %v2252 = vpack.c.b16 %v1740, %v1676
        %v2253 = vpack.c.b16 %v1741, %v1677
        %v2254 = vpack.c.b16 %v1742, %v1678
        %v2255 = vpack.c.b16 %v1743, %v1679
        %v2256 = vpack.c.b16 %v1744, %v1680
        %v2257 = vpack.c.b16 %v1745, %v1681
        %v2258 = vpack.c.b16 %v1746, %v1682
        %v2259 = vpack.c.b16 %v1747, %v1683
        %v2260 = vpack.c.b16 %v1748, %v1684
        %v2261 = vpack.c.b16 %v1749, %v1685
        %v2262 = vpack.c.b16 %v1750, %v1686
        %v2263 = vpack.c.b16 %v1751, %v1687
        %v2264 = vpack.c.b16 %v1752, %v1688
        %v2265 = vpack.c.b16 %v1753, %v1689
        %v2266 = vpack.c.b16 %v1754, %v1690
        %v2267 = vpack.c.b16 %v1755, %v1691
        %v2268 = vpack.c.b16 %v1756, %v1692
        %v2269 = vpack.c.b16 %v1757, %v1693
        %v2270 = vpack.c.b16 %v1758, %v1694
        %v2271 = vpack.c.b16 %v1759, %v1695
        %v2272 = vpack.c.b16 %v1760, %v1696
        %v2273 = vpack.c.b16 %v1825, %v1761
        %v2274 = vpack.c.b16 %v1826, %v1762
        %v2275 = vpack.c.b16 %v1827, %v1763
        %v2276 = vpack.c.b16 %v1828, %v1764
        %v2277 = vpack.c.b16 %v1829, %v1765
        %v2278 = vpack.c.b16 %v1830, %v1766
        %v2279 = vpack.c.b16 %v1831, %v1767
        %v2280 = vpack.c.b16 %v1832, %v1768
        %v2281 = vpack.c.b16 %v1833, %v1769
        %v2282 = vpack.c.b16 %v1834, %v1770
        %v2283 = vpack.c.b16 %v1835, %v1771
        %v2284 = vpack.c.b16 %v1836, %v1772
        %v2285 = vpack.c.b16 %v1837, %v1773
        %v2286 = vpack.c.b16 %v1838, %v1774
        %v2287 = vpack.c.b16 %v1839, %v1775
        %v2288 = vpack.c.b16 %v1840, %v1776
        %v2289 = vpack.c.b16 %v1841, %v1777
        %v2290 = vpack.c.b16 %v1842, %v1778
        %v2291 = vpack.c.b16 %v1843, %v1779
        %v2292 = vpack.c.b16 %v1844, %v1780
        %v2293 = vpack.c.b16 %v1845, %v1781
        %v2294 = vpack.c.b16 %v1846, %v1782
        %v2295 = vpack.c.b16 %v1847, %v1783
        %v2296 = vpack.c.b16 %v1848, %v1784
        %v2297 = vpack.c.b16 %v1849, %v1785
        %v2298 = vpack.c.b16 %v1850, %v1786
        %v2299 = vpack.c.b16 %v1851, %v1787
        %v2300 = vpack.c.b16 %v1852, %v1788
        %v2301 = vpack.c.b16 %v1853, %v1789
        %v2302 = vpack.c.b16 %v1854, %v1790
        %v2303 = vpack.c.b16 %v1855, %v1791
        %v2304 = vpack.c.b16 %v1856, %v1792
        %v2305 = vpack.c.b16 %v1857, %v1793
        %v2306 = vpack.c.b16 %v1858, %v1794
        %v2307 = vpack.c.b16 %v1859, %v1795
        %v2308 = vpack.c.b16 %v1860, %v1796
        %v2309 = vpack.c.b16 %v1861, %v1797
        %v2310 = vpack.c.b16 %v1862, %v1798
        %v2311 = vpack.c.b16 %v1863, %v1799
        %v2312 = vpack.c.b16 %v1864, %v1800
        %v2313 = vpack.c.b16 %v1865, %v1801
        %v2314 = vpack.c.b16 %v1866, %v1802
        %v2315 = vpack.c.b16 %v1867, %v1803
        %v2316 = vpack.c.b16 %v1868, %v1804
        %v2317 = vpack.c.b16 %v1869, %v1805
        %v2318 = vpack.c.b16 %v1870, %v1806
        %v2319 = vpack.c.b16 %v1871, %v1807
        %v2320 = vpack.c.b16 %v1872, %v1808
        %v2321 = vpack.c.b16 %v1873, %v1809
        %v2322 = vpack.c.b16 %v1874, %v1810
        %v2323 = vpack.c.b16 %v1875, %v1811
        %v2324 = vpack.c.b16 %v1876, %v1812
        %v2325 = vpack.c.b16 %v1877, %v1813
        %v2326 = vpack.c.b16 %v1878, %v1814
        %v2327 = vpack.c.b16 %v1879, %v1815
        %v2328 = vpack.c.b16 %v1880, %v1816
        %v2329 = vpack.c.b16 %v1881, %v1817
        %v2330 = vpack.c.b16 %v1882, %v1818
        %v2331 = vpack.c.b16 %v1883, %v1819
        %v2332 = vpack.c.b16 %v1884, %v1820
        %v2333 = vpack.c.b16 %v1885, %v1821
        %v2334 = vpack.c.b16 %v1886, %v1822
        %v2335 = vpack.c.b16 %v1887, %v1823
        %v2336 = vpack.c.b16 %v1888, %v1824
        %v2337 = vpack.c.b16 %v1953, %v1889
        %v2338 = vpack.c.b16 %v1954, %v1890
        %v2339 = vpack.c.b16 %v1955, %v1891
        %v2340 = vpack.c.b16 %v1956, %v1892
        %v2341 = vpack.c.b16 %v1957, %v1893
        %v2342 = vpack.c.b16 %v1958, %v1894
        %v2343 = vpack.c.b16 %v1959, %v1895
        %v2344 = vpack.c.b16 %v1960, %v1896
        %v2345 = vpack.c.b16 %v1961, %v1897
        %v2346 = vpack.c.b16 %v1962, %v1898
        %v2347 = vpack.c.b16 %v1963, %v1899
        %v2348 = vpack.c.b16 %v1964, %v1900
        %v2349 = vpack.c.b16 %v1965, %v1901
        %v2350 = vpack.c.b16 %v1966, %v1902
        %v2351 = vpack.c.b16 %v1967, %v1903
        %v2352 = vpack.c.b16 %v1968, %v1904
        %v2353 = vpack.c.b16 %v1969, %v1905
        %v2354 = vpack.c.b16 %v1970, %v1906
        %v2355 = vpack.c.b16 %v1971, %v1907
        %v2356 = vpack.c.b16 %v1972, %v1908
        %v2357 = vpack.c.b16 %v1973, %v1909
        %v2358 = vpack.c.b16 %v1974, %v1910
        %v2359 = vpack.c.b16 %v1975, %v1911
        %v2360 = vpack.c.b16 %v1976, %v1912
        %v2361 = vpack.c.b16 %v1977, %v1913
        %v2362 = vpack.c.b16 %v1978, %v1914
        %v2363 = vpack.c.b16 %v1979, %v1915
        %v2364 = vpack.c.b16 %v1980, %v1916
        %v2365 = vpack.c.b16 %v1981, %v1917
        %v2366 = vpack.c.b16 %v1982, %v1918
        %v2367 = vpack.c.b16 %v1983, %v1919
        %v2368 = vpack.c.b16 %v1984, %v1920
        %v2369 = vpack.c.b16 %v1985, %v1921
        %v2370 = vpack.c.b16 %v1986, %v1922
        %v2371 = vpack.c.b16 %v1987, %v1923
        %v2372 = vpack.c.b16 %v1988, %v1924
        %v2373 = vpack.c.b16 %v1989, %v1925
        %v2374 = vpack.c.b16 %v1990, %v1926
        %v2375 = vpack.c.b16 %v1991, %v1927
        %v2376 = vpack.c.b16 %v1992, %v1928
        %v2377 = vpack.c.b16 %v1993, %v1929
        %v2378 = vpack.c.b16 %v1994, %v1930
        %v2379 = vpack.c.b16 %v1995, %v1931
        %v2380 = vpack.c.b16 %v1996, %v1932
        %v2381 = vpack.c.b16 %v1997, %v1933
        %v2382 = vpack.c.b16 %v1998, %v1934
        %v2383 = vpack.c.b16 %v1999, %v1935
        %v2384 = vpack.c.b16 %v2000, %v1936
        %v2385 = vpack.c.b16 %v2001, %v1937
        %v2386 = vpack.c.b16 %v2002, %v1938
        %v2387 = vpack.c.b16 %v2003, %v1939
        %v2388 = vpack.c.b16 %v2004, %v1940
        %v2389 = vpack.c.b16 %v2005, %v1941
        %v2390 = vpack.c.b16 %v2006, %v1942
        %v2391 = vpack.c.b16 %v2007, %v1943
        %v2392 = vpack.c.b16 %v2008, %v1944
        %v2393 = vpack.c.b16 %v2009, %v1945
        %v2394 = vpack.c.b16 %v2010, %v1946
        %v2395 = vpack.c.b16 %v2011, %v1947
        %v2396 = vpack.c.b16 %v2012, %v1948
        %v2397 = vpack.c.b16 %v2013, %v1949
        %v2398 = vpack.c.b16 %v2014, %v1950
        %v2399 = vpack.c.b16 %v2015, %v1951
        %v2400 = vpack.c.b16 %v2016, %v1952
        %v2401 = vpack.c.b16 %v2081, %v2017
        %v2402 = vpack.c.b16 %v2082, %v2018
        %v2403 = vpack.c.b16 %v2083, %v2019
        %v2404 = vpack.c.b16 %v2084, %v2020
        %v2405 = vpack.c.b16 %v2085, %v2021
        %v2406 = vpack.c.b16 %v2086, %v2022
        %v2407 = vpack.c.b16 %v2087, %v2023
        %v2408 = vpack.c.b16 %v2088, %v2024
        %v2409 = vpack.c.b16 %v2089, %v2025
        %v2410 = vpack.c.b16 %v2090, %v2026
        %v2411 = vpack.c.b16 %v2091, %v2027
        %v2412 = vpack.c.b16 %v2092, %v2028
        %v2413 = vpack.c.b16 %v2093, %v2029
        %v2414 = vpack.c.b16 %v2094, %v2030
        %v2415 = vpack.c.b16 %v2095, %v2031
        %v2416 = vpack.c.b16 %v2096, %v2032
        %v2417 = vpack.c.b16 %v2097, %v2033
        %v2418 = vpack.c.b16 %v2098, %v2034
        %v2419 = vpack.c.b16 %v2099, %v2035
        %v2420 = vpack.c.b16 %v2100, %v2036
        %v2421 = vpack.c.b16 %v2101, %v2037
        %v2422 = vpack.c.b16 %v2102, %v2038
        %v2423 = vpack.c.b16 %v2103, %v2039
        %v2424 = vpack.c.b16 %v2104, %v2040
        %v2425 = vpack.c.b16 %v2105, %v2041
        %v2426 = vpack.c.b16 %v2106, %v2042
        %v2427 = vpack.c.b16 %v2107, %v2043
        %v2428 = vpack.c.b16 %v2108, %v2044
        %v2429 = vpack.c.b16 %v2109, %v2045
        %v2430 = vpack.c.b16 %v2110, %v2046
        %v2431 = vpack.c.b16 %v2111, %v2047
        %v2432 = vpack.c.b16 %v2112, %v2048
        %v2433 = vpack.c.b16 %v2113, %v2049
        %v2434 = vpack.c.b16 %v2114, %v2050
        %v2435 = vpack.c.b16 %v2115, %v2051
        %v2436 = vpack.c.b16 %v2116, %v2052
        %v2437 = vpack.c.b16 %v2117, %v2053
        %v2438 = vpack.c.b16 %v2118, %v2054
        %v2439 = vpack.c.b16 %v2119, %v2055
        %v2440 = vpack.c.b16 %v2120, %v2056
        %v2441 = vpack.c.b16 %v2121, %v2057
        %v2442 = vpack.c.b16 %v2122, %v2058
        %v2443 = vpack.c.b16 %v2123, %v2059
        %v2444 = vpack.c.b16 %v2124, %v2060
        %v2445 = vpack.c.b16 %v2125, %v2061
        %v2446 = vpack.c.b16 %v2126, %v2062
        %v2447 = vpack.c.b16 %v2127, %v2063
        %v2448 = vpack.c.b16 %v2128, %v2064
        %v2449 = vpack.c.b16 %v2129, %v2065
        %v2450 = vpack.c.b16 %v2130, %v2066
        %v2451 = vpack.c.b16 %v2131, %v2067
        %v2452 = vpack.c.b16 %v2132, %v2068
        %v2453 = vpack.c.b16 %v2133, %v2069
        %v2454 = vpack.c.b16 %v2134, %v2070
        %v2455 = vpack.c.b16 %v2135, %v2071
        %v2456 = vpack.c.b16 %v2136, %v2072
        %v2457 = vpack.c.b16 %v2137, %v2073
        %v2458 = vpack.c.b16 %v2138, %v2074
        %v2459 = vpack.c.b16 %v2139, %v2075
        %v2460 = vpack.c.b16 %v2140, %v2076
        %v2461 = vpack.c.b16 %v2141, %v2077
        %v2462 = vpack.c.b16 %v2142, %v2078
        %v2463 = vpack.c.b16 %v2143, %v2079
        %v2464 = vpack.c.b16 %v2144, %v2080
        %vm2721 = vcmask 613376
        %v2723 = vsel %vm2721, %v858, 0
        %vm2725 = vcmask 1044480
        %vm2726 = vcmask 1045504
        %v2727 = vsel %vm2725, 4294967295, 65535
        %v2728 = vsel %vm2726, %v2727, 0
        %v2730 = vand.u32 %v2401, %v2728
        %v2733 = vand.u32 %v2402, %v2728
        %v2736 = vand.u32 %v2403, %v2728
        %v2739 = vand.u32 %v2404, %v2728
        %v2742 = vand.u32 %v2405, %v2728
        %v2745 = vand.u32 %v2406, %v2728
        %v2748 = vand.u32 %v2407, %v2728
        %v2751 = vand.u32 %v2408, %v2728
        %v2754 = vand.u32 %v2409, %v2728
        %v2757 = vand.u32 %v2410, %v2728
        %v2760 = vand.u32 %v2411, %v2728
        %v2763 = vand.u32 %v2412, %v2728
        %v2766 = vand.u32 %v2413, %v2728
        %v2769 = vand.u32 %v2414, %v2728
        %v2772 = vand.u32 %v2415, %v2728
        %v2775 = vand.u32 %v2416, %v2728
        %v2778 = vand.u32 %v2417, %v2728
        %v2781 = vand.u32 %v2418, %v2728
        %v2784 = vand.u32 %v2419, %v2728
        %v2787 = vand.u32 %v2420, %v2728
        %v2790 = vand.u32 %v2421, %v2728
        %v2793 = vand.u32 %v2422, %v2728
        %v2796 = vand.u32 %v2423, %v2728
        %v2799 = vand.u32 %v2424, %v2728
        %v2802 = vand.u32 %v2425, %v2728
        %v2805 = vand.u32 %v2426, %v2728
        %v2808 = vand.u32 %v2427, %v2728
        %v2811 = vand.u32 %v2428, %v2728
        %v2814 = vand.u32 %v2429, %v2728
        %v2817 = vand.u32 %v2430, %v2728
        %v2820 = vand.u32 %v2431, %v2728
        %v2823 = vand.u32 %v2432, %v2728
        %v2826 = vand.u32 %v2433, %v2728
        %v2829 = vand.u32 %v2434, %v2728
        %v2832 = vand.u32 %v2435, %v2728
        %v2835 = vand.u32 %v2436, %v2728
        %v2838 = vand.u32 %v2437, %v2728
        %v2841 = vand.u32 %v2438, %v2728
        %v2844 = vand.u32 %v2439, %v2728
        %v2847 = vand.u32 %v2440, %v2728
        %v2850 = vand.u32 %v2441, %v2728
        %v2853 = vand.u32 %v2442, %v2728
        %v2856 = vand.u32 %v2443, %v2728
        %v2859 = vand.u32 %v2444, %v2728
        %v2862 = vand.u32 %v2445, %v2728
        %v2865 = vand.u32 %v2446, %v2728
        %v2868 = vand.u32 %v2447, %v2728
        %v2871 = vand.u32 %v2448, %v2728
        %v2874 = vand.u32 %v2449, %v2728
        %v2877 = vand.u32 %v2450, %v2728
        %v2880 = vand.u32 %v2451, %v2728
        %v2883 = vand.u32 %v2452, %v2728
        %v2886 = vand.u32 %v2453, %v2728
        %v2889 = vand.u32 %v2454, %v2728
        %v2892 = vand.u32 %v2455, %v2728
        %v2895 = vand.u32 %v2456, %v2728
        %v2898 = vand.u32 %v2457, %v2728
        %v2901 = vand.u32 %v2458, %v2728
        %v2904 = vand.u32 %v2459, %v2728
        %v2907 = vand.u32 %v2460, %v2728
        %v2910 = vand.u32 %v2461, %v2728
        %v2913 = vand.u32 %v2462, %v2728
        %v2916 = vand.u32 %v2463, %v2728
        %v2919 = vand.u32 %v2464, %v2728
        %2921 = vmatpush.bf16.msra.mxu0 0
        %2922 = vmatpush.bf16.msra.mxu0 0
        %2923 = vmatpush.bf16.msra.mxu0 0
        %2924 = vmatpush.bf16.msra.mxu0 %v2730
        %2925 = vmatpush.bf16.msra.mxu0 %v2337
        %2926 = vmatpush.bf16.msra.mxu0 %v2273
        %2927 = vmatpush.bf16.msra.mxu0 %v2209
        %2928 = vmatpush.bf16.msra.mxu0 %v2145
        %2929 = vmatmul.bf16.gmra.mxu0 %v2723
        %v2930 = vpop.f32.mrf.mxu0
        %v2931 = vadd.f32 %v1183, %v2930
        %v2932 = vpop.f32.mrf.mxu0
        %2933 = vdwg.mxu0
        %2934 = vmatpush.bf16.msra.mxu0 0
        %2935 = vmatpush.bf16.msra.mxu0 0
        %2936 = vmatpush.bf16.msra.mxu0 0
        %2937 = vmatpush.bf16.msra.mxu0 %v2733
        %2938 = vmatpush.bf16.msra.mxu0 %v2338
        %2939 = vmatpush.bf16.msra.mxu0 %v2274
        %2940 = vmatpush.bf16.msra.mxu0 %v2210
        %2941 = vmatpush.bf16.msra.mxu0 %v2146
        %2942 = vmatmul.bf16.gmra.mxu0 %v2723
        %v2943 = vpop.f32.mrf.mxu0
        %v2944 = vadd.f32 %v1183, %v2943
        %v2945 = vpop.f32.mrf.mxu0
        %2946 = vdwg.mxu0
        %2947 = vmatpush.bf16.msra.mxu0 0
        %2948 = vmatpush.bf16.msra.mxu0 0
        %2949 = vmatpush.bf16.msra.mxu0 0
        %2950 = vmatpush.bf16.msra.mxu0 %v2736
        %2951 = vmatpush.bf16.msra.mxu0 %v2339
        %2952 = vmatpush.bf16.msra.mxu0 %v2275
        %2953 = vmatpush.bf16.msra.mxu0 %v2211
        %2954 = vmatpush.bf16.msra.mxu0 %v2147
        %2955 = vmatmul.bf16.gmra.mxu0 %v2723
        %v2956 = vpop.f32.mrf.mxu0
        %v2957 = vadd.f32 %v1183, %v2956
        %v2958 = vpop.f32.mrf.mxu0
        %2959 = vdwg.mxu0
        %2960 = vmatpush.bf16.msra.mxu0 0
        %2961 = vmatpush.bf16.msra.mxu0 0
        %2962 = vmatpush.bf16.msra.mxu0 0
        %2963 = vmatpush.bf16.msra.mxu0 %v2739
        %2964 = vmatpush.bf16.msra.mxu0 %v2340
        %2965 = vmatpush.bf16.msra.mxu0 %v2276
        %2966 = vmatpush.bf16.msra.mxu0 %v2212
        %2967 = vmatpush.bf16.msra.mxu0 %v2148
        %2968 = vmatmul.bf16.gmra.mxu0 %v2723
        %v2969 = vpop.f32.mrf.mxu0
        %v2970 = vadd.f32 %v1183, %v2969
        %v2971 = vpop.f32.mrf.mxu0
        %2972 = vdwg.mxu0
        %2973 = vmatpush.bf16.msra.mxu0 0
        %2974 = vmatpush.bf16.msra.mxu0 0
        %2975 = vmatpush.bf16.msra.mxu0 0
        %2976 = vmatpush.bf16.msra.mxu0 %v2742
        %2977 = vmatpush.bf16.msra.mxu0 %v2341
        %2978 = vmatpush.bf16.msra.mxu0 %v2277
        %2979 = vmatpush.bf16.msra.mxu0 %v2213
        %2980 = vmatpush.bf16.msra.mxu0 %v2149
        %2981 = vmatmul.bf16.gmra.mxu0 %v2723
        %v2982 = vpop.f32.mrf.mxu0
        %v2983 = vadd.f32 %v1183, %v2982
        %v2984 = vpop.f32.mrf.mxu0
        %2985 = vdwg.mxu0
        %2986 = vmatpush.bf16.msra.mxu0 0
        %2987 = vmatpush.bf16.msra.mxu0 0
        %2988 = vmatpush.bf16.msra.mxu0 0
        %2989 = vmatpush.bf16.msra.mxu0 %v2745
        %2990 = vmatpush.bf16.msra.mxu0 %v2342
        %2991 = vmatpush.bf16.msra.mxu0 %v2278
        %2992 = vmatpush.bf16.msra.mxu0 %v2214
        %2993 = vmatpush.bf16.msra.mxu0 %v2150
        %2994 = vmatmul.bf16.gmra.mxu0 %v2723
        %v2995 = vpop.f32.mrf.mxu0
        %v2996 = vadd.f32 %v1183, %v2995
        %v2997 = vpop.f32.mrf.mxu0
        %2998 = vdwg.mxu0
        %2999 = vmatpush.bf16.msra.mxu0 0
        %3000 = vmatpush.bf16.msra.mxu0 0
        %3001 = vmatpush.bf16.msra.mxu0 0
        %3002 = vmatpush.bf16.msra.mxu0 %v2748
        %3003 = vmatpush.bf16.msra.mxu0 %v2343
        %3004 = vmatpush.bf16.msra.mxu0 %v2279
        %3005 = vmatpush.bf16.msra.mxu0 %v2215
        %3006 = vmatpush.bf16.msra.mxu0 %v2151
        %3007 = vmatmul.bf16.gmra.mxu0 %v2723
        %v3008 = vpop.f32.mrf.mxu0
        %v3009 = vadd.f32 %v1183, %v3008
        %v3010 = vpop.f32.mrf.mxu0
        %3011 = vdwg.mxu0
        %3012 = vmatpush.bf16.msra.mxu0 0
        %3013 = vmatpush.bf16.msra.mxu0 0
        %3014 = vmatpush.bf16.msra.mxu0 0
        %3015 = vmatpush.bf16.msra.mxu0 %v2751
        %3016 = vmatpush.bf16.msra.mxu0 %v2344
        %3017 = vmatpush.bf16.msra.mxu0 %v2280
        %3018 = vmatpush.bf16.msra.mxu0 %v2216
        %3019 = vmatpush.bf16.msra.mxu0 %v2152
        %3020 = vmatmul.bf16.gmra.mxu0 %v2723
        %v3021 = vpop.f32.mrf.mxu0
        %v3022 = vadd.f32 %v1183, %v3021
        %v3023 = vpop.f32.mrf.mxu0
        %3024 = vdwg.mxu0
        %3025 = vmatpush.bf16.msra.mxu0 0
        %3026 = vmatpush.bf16.msra.mxu0 0
        %3027 = vmatpush.bf16.msra.mxu0 0
        %3028 = vmatpush.bf16.msra.mxu0 %v2754
        %3029 = vmatpush.bf16.msra.mxu0 %v2345
        %3030 = vmatpush.bf16.msra.mxu0 %v2281
        %3031 = vmatpush.bf16.msra.mxu0 %v2217
        %3032 = vmatpush.bf16.msra.mxu0 %v2153
        %3033 = vmatmul.bf16.gmra.mxu0 %v2723
        %v3034 = vpop.f32.mrf.mxu0
        %v3035 = vadd.f32 %v1183, %v3034
        %v3036 = vpop.f32.mrf.mxu0
        %3037 = vdwg.mxu0
        %3038 = vmatpush.bf16.msra.mxu0 0
        %3039 = vmatpush.bf16.msra.mxu0 0
        %3040 = vmatpush.bf16.msra.mxu0 0
        %3041 = vmatpush.bf16.msra.mxu0 %v2757
        %3042 = vmatpush.bf16.msra.mxu0 %v2346
        %3043 = vmatpush.bf16.msra.mxu0 %v2282
        %3044 = vmatpush.bf16.msra.mxu0 %v2218
        %3045 = vmatpush.bf16.msra.mxu0 %v2154
        %3046 = vmatmul.bf16.gmra.mxu0 %v2723
        %v3047 = vpop.f32.mrf.mxu0
        %v3048 = vadd.f32 %v1183, %v3047
        %v3049 = vpop.f32.mrf.mxu0
        %3050 = vdwg.mxu0
        %3051 = vmatpush.bf16.msra.mxu0 0
        %3052 = vmatpush.bf16.msra.mxu0 0
        %3053 = vmatpush.bf16.msra.mxu0 0
        %3054 = vmatpush.bf16.msra.mxu0 %v2760
        %3055 = vmatpush.bf16.msra.mxu0 %v2347
        %3056 = vmatpush.bf16.msra.mxu0 %v2283
        %3057 = vmatpush.bf16.msra.mxu0 %v2219
        %3058 = vmatpush.bf16.msra.mxu0 %v2155
        %3059 = vmatmul.bf16.gmra.mxu0 %v2723
        %v3060 = vpop.f32.mrf.mxu0
        %v3061 = vadd.f32 %v1183, %v3060
        %v3062 = vpop.f32.mrf.mxu0
        %3063 = vdwg.mxu0
        %3064 = vmatpush.bf16.msra.mxu0 0
        %3065 = vmatpush.bf16.msra.mxu0 0
        %3066 = vmatpush.bf16.msra.mxu0 0
        %3067 = vmatpush.bf16.msra.mxu0 %v2763
        %3068 = vmatpush.bf16.msra.mxu0 %v2348
        %3069 = vmatpush.bf16.msra.mxu0 %v2284
        %3070 = vmatpush.bf16.msra.mxu0 %v2220
        %3071 = vmatpush.bf16.msra.mxu0 %v2156
        %3072 = vmatmul.bf16.gmra.mxu0 %v2723
        %v3073 = vpop.f32.mrf.mxu0
        %v3074 = vadd.f32 %v1183, %v3073
        %v3075 = vpop.f32.mrf.mxu0
        %3076 = vdwg.mxu0
        %3077 = vmatpush.bf16.msra.mxu0 0
        %3078 = vmatpush.bf16.msra.mxu0 0
        %3079 = vmatpush.bf16.msra.mxu0 0
        %3080 = vmatpush.bf16.msra.mxu0 %v2766
        %3081 = vmatpush.bf16.msra.mxu0 %v2349
        %3082 = vmatpush.bf16.msra.mxu0 %v2285
        %3083 = vmatpush.bf16.msra.mxu0 %v2221
        %3084 = vmatpush.bf16.msra.mxu0 %v2157
        %3085 = vmatmul.bf16.gmra.mxu0 %v2723
        %v3086 = vpop.f32.mrf.mxu0
        %v3087 = vadd.f32 %v1183, %v3086
        %v3088 = vpop.f32.mrf.mxu0
        %3089 = vdwg.mxu0
        %3090 = vmatpush.bf16.msra.mxu0 0
        %3091 = vmatpush.bf16.msra.mxu0 0
        %3092 = vmatpush.bf16.msra.mxu0 0
        %3093 = vmatpush.bf16.msra.mxu0 %v2769
        %3094 = vmatpush.bf16.msra.mxu0 %v2350
        %3095 = vmatpush.bf16.msra.mxu0 %v2286
        %3096 = vmatpush.bf16.msra.mxu0 %v2222
        %3097 = vmatpush.bf16.msra.mxu0 %v2158
        %3098 = vmatmul.bf16.gmra.mxu0 %v2723
        %v3099 = vpop.f32.mrf.mxu0
        %v3100 = vadd.f32 %v1183, %v3099
        %v3101 = vpop.f32.mrf.mxu0
        %3102 = vdwg.mxu0
        %3103 = vmatpush.bf16.msra.mxu0 0
        %3104 = vmatpush.bf16.msra.mxu0 0
        %3105 = vmatpush.bf16.msra.mxu0 0
        %3106 = vmatpush.bf16.msra.mxu0 %v2772
        %3107 = vmatpush.bf16.msra.mxu0 %v2351
        %3108 = vmatpush.bf16.msra.mxu0 %v2287
        %3109 = vmatpush.bf16.msra.mxu0 %v2223
        %3110 = vmatpush.bf16.msra.mxu0 %v2159
        %3111 = vmatmul.bf16.gmra.mxu0 %v2723
        %v3112 = vpop.f32.mrf.mxu0
        %v3113 = vadd.f32 %v1183, %v3112
        %v3114 = vpop.f32.mrf.mxu0
        %3115 = vdwg.mxu0
        %3116 = vmatpush.bf16.msra.mxu0 0
        %3117 = vmatpush.bf16.msra.mxu0 0
        %3118 = vmatpush.bf16.msra.mxu0 0
        %3119 = vmatpush.bf16.msra.mxu0 %v2775
        %3120 = vmatpush.bf16.msra.mxu0 %v2352
        %3121 = vmatpush.bf16.msra.mxu0 %v2288
        %3122 = vmatpush.bf16.msra.mxu0 %v2224
        %3123 = vmatpush.bf16.msra.mxu0 %v2160
        %3124 = vmatmul.bf16.gmra.mxu0 %v2723
        %v3125 = vpop.f32.mrf.mxu0
        %v3126 = vadd.f32 %v1183, %v3125
        %v3127 = vpop.f32.mrf.mxu0
        %3128 = vdwg.mxu0
        %3129 = vmatpush.bf16.msra.mxu0 0
        %3130 = vmatpush.bf16.msra.mxu0 0
        %3131 = vmatpush.bf16.msra.mxu0 0
        %3132 = vmatpush.bf16.msra.mxu0 %v2778
        %3133 = vmatpush.bf16.msra.mxu0 %v2353
        %3134 = vmatpush.bf16.msra.mxu0 %v2289
        %3135 = vmatpush.bf16.msra.mxu0 %v2225
        %3136 = vmatpush.bf16.msra.mxu0 %v2161
        %3137 = vmatmul.bf16.gmra.mxu0 %v2723
        %v3138 = vpop.f32.mrf.mxu0
        %v3139 = vadd.f32 %v1183, %v3138
        %v3140 = vpop.f32.mrf.mxu0
        %3141 = vdwg.mxu0
        %3142 = vmatpush.bf16.msra.mxu0 0
        %3143 = vmatpush.bf16.msra.mxu0 0
        %3144 = vmatpush.bf16.msra.mxu0 0
        %3145 = vmatpush.bf16.msra.mxu0 %v2781
        %3146 = vmatpush.bf16.msra.mxu0 %v2354
        %3147 = vmatpush.bf16.msra.mxu0 %v2290
        %3148 = vmatpush.bf16.msra.mxu0 %v2226
        %3149 = vmatpush.bf16.msra.mxu0 %v2162
        %3150 = vmatmul.bf16.gmra.mxu0 %v2723
        %v3151 = vpop.f32.mrf.mxu0
        %v3152 = vadd.f32 %v1183, %v3151
        %v3153 = vpop.f32.mrf.mxu0
        %3154 = vdwg.mxu0
        %3155 = vmatpush.bf16.msra.mxu0 0
        %3156 = vmatpush.bf16.msra.mxu0 0
        %3157 = vmatpush.bf16.msra.mxu0 0
        %3158 = vmatpush.bf16.msra.mxu0 %v2784
        %3159 = vmatpush.bf16.msra.mxu0 %v2355
        %3160 = vmatpush.bf16.msra.mxu0 %v2291
        %3161 = vmatpush.bf16.msra.mxu0 %v2227
        %3162 = vmatpush.bf16.msra.mxu0 %v2163
        %3163 = vmatmul.bf16.gmra.mxu0 %v2723
        %v3164 = vpop.f32.mrf.mxu0
        %v3165 = vadd.f32 %v1183, %v3164
        %v3166 = vpop.f32.mrf.mxu0
        %3167 = vdwg.mxu0
        %3168 = vmatpush.bf16.msra.mxu0 0
        %3169 = vmatpush.bf16.msra.mxu0 0
        %3170 = vmatpush.bf16.msra.mxu0 0
        %3171 = vmatpush.bf16.msra.mxu0 %v2787
        %3172 = vmatpush.bf16.msra.mxu0 %v2356
        %3173 = vmatpush.bf16.msra.mxu0 %v2292
        %3174 = vmatpush.bf16.msra.mxu0 %v2228
        %3175 = vmatpush.bf16.msra.mxu0 %v2164
        %3176 = vmatmul.bf16.gmra.mxu0 %v2723
        %v3177 = vpop.f32.mrf.mxu0
        %v3178 = vadd.f32 %v1183, %v3177
        %v3179 = vpop.f32.mrf.mxu0
        %3180 = vdwg.mxu0
        %3181 = vmatpush.bf16.msra.mxu0 0
        %3182 = vmatpush.bf16.msra.mxu0 0
        %3183 = vmatpush.bf16.msra.mxu0 0
        %3184 = vmatpush.bf16.msra.mxu0 %v2790
        %3185 = vmatpush.bf16.msra.mxu0 %v2357
        %3186 = vmatpush.bf16.msra.mxu0 %v2293
        %3187 = vmatpush.bf16.msra.mxu0 %v2229
        %3188 = vmatpush.bf16.msra.mxu0 %v2165
        %3189 = vmatmul.bf16.gmra.mxu0 %v2723
        %v3190 = vpop.f32.mrf.mxu0
        %v3191 = vadd.f32 %v1183, %v3190
        %v3192 = vpop.f32.mrf.mxu0
        %3193 = vdwg.mxu0
        %3194 = vmatpush.bf16.msra.mxu0 0
        %3195 = vmatpush.bf16.msra.mxu0 0
        %3196 = vmatpush.bf16.msra.mxu0 0
        %3197 = vmatpush.bf16.msra.mxu0 %v2793
        %3198 = vmatpush.bf16.msra.mxu0 %v2358
        %3199 = vmatpush.bf16.msra.mxu0 %v2294
        %3200 = vmatpush.bf16.msra.mxu0 %v2230
        %3201 = vmatpush.bf16.msra.mxu0 %v2166
        %3202 = vmatmul.bf16.gmra.mxu0 %v2723
        %v3203 = vpop.f32.mrf.mxu0
        %v3204 = vadd.f32 %v1183, %v3203
        %v3205 = vpop.f32.mrf.mxu0
        %3206 = vdwg.mxu0
        %3207 = vmatpush.bf16.msra.mxu0 0
        %3208 = vmatpush.bf16.msra.mxu0 0
        %3209 = vmatpush.bf16.msra.mxu0 0
        %3210 = vmatpush.bf16.msra.mxu0 %v2796
        %3211 = vmatpush.bf16.msra.mxu0 %v2359
        %3212 = vmatpush.bf16.msra.mxu0 %v2295
        %3213 = vmatpush.bf16.msra.mxu0 %v2231
        %3214 = vmatpush.bf16.msra.mxu0 %v2167
        %3215 = vmatmul.bf16.gmra.mxu0 %v2723
        %v3216 = vpop.f32.mrf.mxu0
        %v3217 = vadd.f32 %v1183, %v3216
        %v3218 = vpop.f32.mrf.mxu0
        %3219 = vdwg.mxu0
        %3220 = vmatpush.bf16.msra.mxu0 0
        %3221 = vmatpush.bf16.msra.mxu0 0
        %3222 = vmatpush.bf16.msra.mxu0 0
        %3223 = vmatpush.bf16.msra.mxu0 %v2799
        %3224 = vmatpush.bf16.msra.mxu0 %v2360
        %3225 = vmatpush.bf16.msra.mxu0 %v2296
        %3226 = vmatpush.bf16.msra.mxu0 %v2232
        %3227 = vmatpush.bf16.msra.mxu0 %v2168
        %3228 = vmatmul.bf16.gmra.mxu0 %v2723
        %v3229 = vpop.f32.mrf.mxu0
        %v3230 = vadd.f32 %v1183, %v3229
        %v3231 = vpop.f32.mrf.mxu0
        %3232 = vdwg.mxu0
        %3233 = vmatpush.bf16.msra.mxu0 0
        %3234 = vmatpush.bf16.msra.mxu0 0
        %3235 = vmatpush.bf16.msra.mxu0 0
        %3236 = vmatpush.bf16.msra.mxu0 %v2802
        %3237 = vmatpush.bf16.msra.mxu0 %v2361
        %3238 = vmatpush.bf16.msra.mxu0 %v2297
        %3239 = vmatpush.bf16.msra.mxu0 %v2233
        %3240 = vmatpush.bf16.msra.mxu0 %v2169
        %3241 = vmatmul.bf16.gmra.mxu0 %v2723
        %v3242 = vpop.f32.mrf.mxu0
        %v3243 = vadd.f32 %v1183, %v3242
        %v3244 = vpop.f32.mrf.mxu0
        %3245 = vdwg.mxu0
        %3246 = vmatpush.bf16.msra.mxu0 0
        %3247 = vmatpush.bf16.msra.mxu0 0
        %3248 = vmatpush.bf16.msra.mxu0 0
        %3249 = vmatpush.bf16.msra.mxu0 %v2805
        %3250 = vmatpush.bf16.msra.mxu0 %v2362
        %3251 = vmatpush.bf16.msra.mxu0 %v2298
        %3252 = vmatpush.bf16.msra.mxu0 %v2234
        %3253 = vmatpush.bf16.msra.mxu0 %v2170
        %3254 = vmatmul.bf16.gmra.mxu0 %v2723
        %v3255 = vpop.f32.mrf.mxu0
        %v3256 = vadd.f32 %v1183, %v3255
        %v3257 = vpop.f32.mrf.mxu0
        %3258 = vdwg.mxu0
        %3259 = vmatpush.bf16.msra.mxu0 0
        %3260 = vmatpush.bf16.msra.mxu0 0
        %3261 = vmatpush.bf16.msra.mxu0 0
        %3262 = vmatpush.bf16.msra.mxu0 %v2808
        %3263 = vmatpush.bf16.msra.mxu0 %v2363
        %3264 = vmatpush.bf16.msra.mxu0 %v2299
        %3265 = vmatpush.bf16.msra.mxu0 %v2235
        %3266 = vmatpush.bf16.msra.mxu0 %v2171
        %3267 = vmatmul.bf16.gmra.mxu0 %v2723
        %v3268 = vpop.f32.mrf.mxu0
        %v3269 = vadd.f32 %v1183, %v3268
        %v3270 = vpop.f32.mrf.mxu0
        %3271 = vdwg.mxu0
        %3272 = vmatpush.bf16.msra.mxu0 0
        %3273 = vmatpush.bf16.msra.mxu0 0
        %3274 = vmatpush.bf16.msra.mxu0 0
        %3275 = vmatpush.bf16.msra.mxu0 %v2811
        %3276 = vmatpush.bf16.msra.mxu0 %v2364
        %3277 = vmatpush.bf16.msra.mxu0 %v2300
        %3278 = vmatpush.bf16.msra.mxu0 %v2236
        %3279 = vmatpush.bf16.msra.mxu0 %v2172
        %3280 = vmatmul.bf16.gmra.mxu0 %v2723
        %v3281 = vpop.f32.mrf.mxu0
        %v3282 = vadd.f32 %v1183, %v3281
        %v3283 = vpop.f32.mrf.mxu0
        %3284 = vdwg.mxu0
        %3285 = vmatpush.bf16.msra.mxu0 0
        %3286 = vmatpush.bf16.msra.mxu0 0
        %3287 = vmatpush.bf16.msra.mxu0 0
        %3288 = vmatpush.bf16.msra.mxu0 %v2814
        %3289 = vmatpush.bf16.msra.mxu0 %v2365
        %3290 = vmatpush.bf16.msra.mxu0 %v2301
        %3291 = vmatpush.bf16.msra.mxu0 %v2237
        %3292 = vmatpush.bf16.msra.mxu0 %v2173
        %3293 = vmatmul.bf16.gmra.mxu0 %v2723
        %v3294 = vpop.f32.mrf.mxu0
        %v3295 = vadd.f32 %v1183, %v3294
        %v3296 = vpop.f32.mrf.mxu0
        %3297 = vdwg.mxu0
        %3298 = vmatpush.bf16.msra.mxu0 0
        %3299 = vmatpush.bf16.msra.mxu0 0
        %3300 = vmatpush.bf16.msra.mxu0 0
        %3301 = vmatpush.bf16.msra.mxu0 %v2817
        %3302 = vmatpush.bf16.msra.mxu0 %v2366
        %3303 = vmatpush.bf16.msra.mxu0 %v2302
        %3304 = vmatpush.bf16.msra.mxu0 %v2238
        %3305 = vmatpush.bf16.msra.mxu0 %v2174
        %3306 = vmatmul.bf16.gmra.mxu0 %v2723
        %v3307 = vpop.f32.mrf.mxu0
        %v3308 = vadd.f32 %v1183, %v3307
        %v3309 = vpop.f32.mrf.mxu0
        %3310 = vdwg.mxu0
        %3311 = vmatpush.bf16.msra.mxu0 0
        %3312 = vmatpush.bf16.msra.mxu0 0
        %3313 = vmatpush.bf16.msra.mxu0 0
        %3314 = vmatpush.bf16.msra.mxu0 %v2820
        %3315 = vmatpush.bf16.msra.mxu0 %v2367
        %3316 = vmatpush.bf16.msra.mxu0 %v2303
        %3317 = vmatpush.bf16.msra.mxu0 %v2239
        %3318 = vmatpush.bf16.msra.mxu0 %v2175
        %3319 = vmatmul.bf16.gmra.mxu0 %v2723
        %v3320 = vpop.f32.mrf.mxu0
        %v3321 = vadd.f32 %v1183, %v3320
        %v3322 = vpop.f32.mrf.mxu0
        %3323 = vdwg.mxu0
        %3324 = vmatpush.bf16.msra.mxu0 0
        %3325 = vmatpush.bf16.msra.mxu0 0
        %3326 = vmatpush.bf16.msra.mxu0 0
        %3327 = vmatpush.bf16.msra.mxu0 %v2823
        %3328 = vmatpush.bf16.msra.mxu0 %v2368
        %3329 = vmatpush.bf16.msra.mxu0 %v2304
        %3330 = vmatpush.bf16.msra.mxu0 %v2240
        %3331 = vmatpush.bf16.msra.mxu0 %v2176
        %3332 = vmatmul.bf16.gmra.mxu0 %v2723
        %v3333 = vpop.f32.mrf.mxu0
        %v3334 = vadd.f32 %v1183, %v3333
        %v3335 = vpop.f32.mrf.mxu0
        %3336 = vdwg.mxu0
        %3337 = vmatpush.bf16.msra.mxu0 0
        %3338 = vmatpush.bf16.msra.mxu0 0
        %3339 = vmatpush.bf16.msra.mxu0 0
        %3340 = vmatpush.bf16.msra.mxu0 %v2826
        %3341 = vmatpush.bf16.msra.mxu0 %v2369
        %3342 = vmatpush.bf16.msra.mxu0 %v2305
        %3343 = vmatpush.bf16.msra.mxu0 %v2241
        %3344 = vmatpush.bf16.msra.mxu0 %v2177
        %3345 = vmatmul.bf16.gmra.mxu0 %v2723
        %v3346 = vpop.f32.mrf.mxu0
        %v3347 = vadd.f32 %v1183, %v3346
        %v3348 = vpop.f32.mrf.mxu0
        %3349 = vdwg.mxu0
        %3350 = vmatpush.bf16.msra.mxu0 0
        %3351 = vmatpush.bf16.msra.mxu0 0
        %3352 = vmatpush.bf16.msra.mxu0 0
        %3353 = vmatpush.bf16.msra.mxu0 %v2829
        %3354 = vmatpush.bf16.msra.mxu0 %v2370
        %3355 = vmatpush.bf16.msra.mxu0 %v2306
        %3356 = vmatpush.bf16.msra.mxu0 %v2242
        %3357 = vmatpush.bf16.msra.mxu0 %v2178
        %3358 = vmatmul.bf16.gmra.mxu0 %v2723
        %v3359 = vpop.f32.mrf.mxu0
        %v3360 = vadd.f32 %v1183, %v3359
        %v3361 = vpop.f32.mrf.mxu0
        %3362 = vdwg.mxu0
        %3363 = vmatpush.bf16.msra.mxu0 0
        %3364 = vmatpush.bf16.msra.mxu0 0
        %3365 = vmatpush.bf16.msra.mxu0 0
        %3366 = vmatpush.bf16.msra.mxu0 %v2832
        %3367 = vmatpush.bf16.msra.mxu0 %v2371
        %3368 = vmatpush.bf16.msra.mxu0 %v2307
        %3369 = vmatpush.bf16.msra.mxu0 %v2243
        %3370 = vmatpush.bf16.msra.mxu0 %v2179
        %3371 = vmatmul.bf16.gmra.mxu0 %v2723
        %v3372 = vpop.f32.mrf.mxu0
        %v3373 = vadd.f32 %v1183, %v3372
        %v3374 = vpop.f32.mrf.mxu0
        %3375 = vdwg.mxu0
        %3376 = vmatpush.bf16.msra.mxu0 0
        %3377 = vmatpush.bf16.msra.mxu0 0
        %3378 = vmatpush.bf16.msra.mxu0 0
        %3379 = vmatpush.bf16.msra.mxu0 %v2835
        %3380 = vmatpush.bf16.msra.mxu0 %v2372
        %3381 = vmatpush.bf16.msra.mxu0 %v2308
        %3382 = vmatpush.bf16.msra.mxu0 %v2244
        %3383 = vmatpush.bf16.msra.mxu0 %v2180
        %3384 = vmatmul.bf16.gmra.mxu0 %v2723
        %v3385 = vpop.f32.mrf.mxu0
        %v3386 = vadd.f32 %v1183, %v3385
        %v3387 = vpop.f32.mrf.mxu0
        %3388 = vdwg.mxu0
        %3389 = vmatpush.bf16.msra.mxu0 0
        %3390 = vmatpush.bf16.msra.mxu0 0
        %3391 = vmatpush.bf16.msra.mxu0 0
        %3392 = vmatpush.bf16.msra.mxu0 %v2838
        %3393 = vmatpush.bf16.msra.mxu0 %v2373
        %3394 = vmatpush.bf16.msra.mxu0 %v2309
        %3395 = vmatpush.bf16.msra.mxu0 %v2245
        %3396 = vmatpush.bf16.msra.mxu0 %v2181
        %3397 = vmatmul.bf16.gmra.mxu0 %v2723
        %v3398 = vpop.f32.mrf.mxu0
        %v3399 = vadd.f32 %v1183, %v3398
        %v3400 = vpop.f32.mrf.mxu0
        %3401 = vdwg.mxu0
        %3402 = vmatpush.bf16.msra.mxu0 0
        %3403 = vmatpush.bf16.msra.mxu0 0
        %3404 = vmatpush.bf16.msra.mxu0 0
        %3405 = vmatpush.bf16.msra.mxu0 %v2841
        %3406 = vmatpush.bf16.msra.mxu0 %v2374
        %3407 = vmatpush.bf16.msra.mxu0 %v2310
        %3408 = vmatpush.bf16.msra.mxu0 %v2246
        %3409 = vmatpush.bf16.msra.mxu0 %v2182
        %3410 = vmatmul.bf16.gmra.mxu0 %v2723
        %v3411 = vpop.f32.mrf.mxu0
        %v3412 = vadd.f32 %v1183, %v3411
        %v3413 = vpop.f32.mrf.mxu0
        %3414 = vdwg.mxu0
        %3415 = vmatpush.bf16.msra.mxu0 0
        %3416 = vmatpush.bf16.msra.mxu0 0
        %3417 = vmatpush.bf16.msra.mxu0 0
        %3418 = vmatpush.bf16.msra.mxu0 %v2844
        %3419 = vmatpush.bf16.msra.mxu0 %v2375
        %3420 = vmatpush.bf16.msra.mxu0 %v2311
        %3421 = vmatpush.bf16.msra.mxu0 %v2247
        %3422 = vmatpush.bf16.msra.mxu0 %v2183
        %3423 = vmatmul.bf16.gmra.mxu0 %v2723
        %v3424 = vpop.f32.mrf.mxu0
        %v3425 = vadd.f32 %v1183, %v3424
        %v3426 = vpop.f32.mrf.mxu0
        %3427 = vdwg.mxu0
        %3428 = vmatpush.bf16.msra.mxu0 0
        %3429 = vmatpush.bf16.msra.mxu0 0
        %3430 = vmatpush.bf16.msra.mxu0 0
        %3431 = vmatpush.bf16.msra.mxu0 %v2847
        %3432 = vmatpush.bf16.msra.mxu0 %v2376
        %3433 = vmatpush.bf16.msra.mxu0 %v2312
        %3434 = vmatpush.bf16.msra.mxu0 %v2248
        %3435 = vmatpush.bf16.msra.mxu0 %v2184
        %3436 = vmatmul.bf16.gmra.mxu0 %v2723
        %v3437 = vpop.f32.mrf.mxu0
        %v3438 = vadd.f32 %v1183, %v3437
        %v3439 = vpop.f32.mrf.mxu0
        %3440 = vdwg.mxu0
        %3441 = vmatpush.bf16.msra.mxu0 0
        %3442 = vmatpush.bf16.msra.mxu0 0
        %3443 = vmatpush.bf16.msra.mxu0 0
        %3444 = vmatpush.bf16.msra.mxu0 %v2850
        %3445 = vmatpush.bf16.msra.mxu0 %v2377
        %3446 = vmatpush.bf16.msra.mxu0 %v2313
        %3447 = vmatpush.bf16.msra.mxu0 %v2249
        %3448 = vmatpush.bf16.msra.mxu0 %v2185
        %3449 = vmatmul.bf16.gmra.mxu0 %v2723
        %v3450 = vpop.f32.mrf.mxu0
        %v3451 = vadd.f32 %v1183, %v3450
        %v3452 = vpop.f32.mrf.mxu0
        %3453 = vdwg.mxu0
        %3454 = vmatpush.bf16.msra.mxu0 0
        %3455 = vmatpush.bf16.msra.mxu0 0
        %3456 = vmatpush.bf16.msra.mxu0 0
        %3457 = vmatpush.bf16.msra.mxu0 %v2853
        %3458 = vmatpush.bf16.msra.mxu0 %v2378
        %3459 = vmatpush.bf16.msra.mxu0 %v2314
        %3460 = vmatpush.bf16.msra.mxu0 %v2250
        %3461 = vmatpush.bf16.msra.mxu0 %v2186
        %3462 = vmatmul.bf16.gmra.mxu0 %v2723
        %v3463 = vpop.f32.mrf.mxu0
        %v3464 = vadd.f32 %v1183, %v3463
        %v3465 = vpop.f32.mrf.mxu0
        %3466 = vdwg.mxu0
        %3467 = vmatpush.bf16.msra.mxu0 0
        %3468 = vmatpush.bf16.msra.mxu0 0
        %3469 = vmatpush.bf16.msra.mxu0 0
        %3470 = vmatpush.bf16.msra.mxu0 %v2856
        %3471 = vmatpush.bf16.msra.mxu0 %v2379
        %3472 = vmatpush.bf16.msra.mxu0 %v2315
        %3473 = vmatpush.bf16.msra.mxu0 %v2251
        %3474 = vmatpush.bf16.msra.mxu0 %v2187
        %3475 = vmatmul.bf16.gmra.mxu0 %v2723
        %v3476 = vpop.f32.mrf.mxu0
        %v3477 = vadd.f32 %v1183, %v3476
        %v3478 = vpop.f32.mrf.mxu0
        %3479 = vdwg.mxu0
        %3480 = vmatpush.bf16.msra.mxu0 0
        %3481 = vmatpush.bf16.msra.mxu0 0
        %3482 = vmatpush.bf16.msra.mxu0 0
        %3483 = vmatpush.bf16.msra.mxu0 %v2859
        %3484 = vmatpush.bf16.msra.mxu0 %v2380
        %3485 = vmatpush.bf16.msra.mxu0 %v2316
        %3486 = vmatpush.bf16.msra.mxu0 %v2252
        %3487 = vmatpush.bf16.msra.mxu0 %v2188
        %3488 = vmatmul.bf16.gmra.mxu0 %v2723
        %v3489 = vpop.f32.mrf.mxu0
        %v3490 = vadd.f32 %v1183, %v3489
        %v3491 = vpop.f32.mrf.mxu0
        %3492 = vdwg.mxu0
        %3493 = vmatpush.bf16.msra.mxu0 0
        %3494 = vmatpush.bf16.msra.mxu0 0
        %3495 = vmatpush.bf16.msra.mxu0 0
        %3496 = vmatpush.bf16.msra.mxu0 %v2862
        %3497 = vmatpush.bf16.msra.mxu0 %v2381
        %3498 = vmatpush.bf16.msra.mxu0 %v2317
        %3499 = vmatpush.bf16.msra.mxu0 %v2253
        %3500 = vmatpush.bf16.msra.mxu0 %v2189
        %3501 = vmatmul.bf16.gmra.mxu0 %v2723
        %v3502 = vpop.f32.mrf.mxu0
        %v3503 = vadd.f32 %v1183, %v3502
        %v3504 = vpop.f32.mrf.mxu0
        %3505 = vdwg.mxu0
        %3506 = vmatpush.bf16.msra.mxu0 0
        %3507 = vmatpush.bf16.msra.mxu0 0
        %3508 = vmatpush.bf16.msra.mxu0 0
        %3509 = vmatpush.bf16.msra.mxu0 %v2865
        %3510 = vmatpush.bf16.msra.mxu0 %v2382
        %3511 = vmatpush.bf16.msra.mxu0 %v2318
        %3512 = vmatpush.bf16.msra.mxu0 %v2254
        %3513 = vmatpush.bf16.msra.mxu0 %v2190
        %3514 = vmatmul.bf16.gmra.mxu0 %v2723
        %v3515 = vpop.f32.mrf.mxu0
        %v3516 = vadd.f32 %v1183, %v3515
        %v3517 = vpop.f32.mrf.mxu0
        %3518 = vdwg.mxu0
        %3519 = vmatpush.bf16.msra.mxu0 0
        %3520 = vmatpush.bf16.msra.mxu0 0
        %3521 = vmatpush.bf16.msra.mxu0 0
        %3522 = vmatpush.bf16.msra.mxu0 %v2868
        %3523 = vmatpush.bf16.msra.mxu0 %v2383
        %3524 = vmatpush.bf16.msra.mxu0 %v2319
        %3525 = vmatpush.bf16.msra.mxu0 %v2255
        %3526 = vmatpush.bf16.msra.mxu0 %v2191
        %3527 = vmatmul.bf16.gmra.mxu0 %v2723
        %v3528 = vpop.f32.mrf.mxu0
        %v3529 = vadd.f32 %v1183, %v3528
        %v3530 = vpop.f32.mrf.mxu0
        %3531 = vdwg.mxu0
        %3532 = vmatpush.bf16.msra.mxu0 0
        %3533 = vmatpush.bf16.msra.mxu0 0
        %3534 = vmatpush.bf16.msra.mxu0 0
        %3535 = vmatpush.bf16.msra.mxu0 %v2871
        %3536 = vmatpush.bf16.msra.mxu0 %v2384
        %3537 = vmatpush.bf16.msra.mxu0 %v2320
        %3538 = vmatpush.bf16.msra.mxu0 %v2256
        %3539 = vmatpush.bf16.msra.mxu0 %v2192
        %3540 = vmatmul.bf16.gmra.mxu0 %v2723
        %v3541 = vpop.f32.mrf.mxu0
        %v3542 = vadd.f32 %v1183, %v3541
        %v3543 = vpop.f32.mrf.mxu0
        %3544 = vdwg.mxu0
        %3545 = vmatpush.bf16.msra.mxu0 0
        %3546 = vmatpush.bf16.msra.mxu0 0
        %3547 = vmatpush.bf16.msra.mxu0 0
        %3548 = vmatpush.bf16.msra.mxu0 %v2874
        %3549 = vmatpush.bf16.msra.mxu0 %v2385
        %3550 = vmatpush.bf16.msra.mxu0 %v2321
        %3551 = vmatpush.bf16.msra.mxu0 %v2257
        %3552 = vmatpush.bf16.msra.mxu0 %v2193
        %3553 = vmatmul.bf16.gmra.mxu0 %v2723
        %v3554 = vpop.f32.mrf.mxu0
        %v3555 = vadd.f32 %v1183, %v3554
        %v3556 = vpop.f32.mrf.mxu0
        %3557 = vdwg.mxu0
        %3558 = vmatpush.bf16.msra.mxu0 0
        %3559 = vmatpush.bf16.msra.mxu0 0
        %3560 = vmatpush.bf16.msra.mxu0 0
        %3561 = vmatpush.bf16.msra.mxu0 %v2877
        %3562 = vmatpush.bf16.msra.mxu0 %v2386
        %3563 = vmatpush.bf16.msra.mxu0 %v2322
        %3564 = vmatpush.bf16.msra.mxu0 %v2258
        %3565 = vmatpush.bf16.msra.mxu0 %v2194
        %3566 = vmatmul.bf16.gmra.mxu0 %v2723
        %v3567 = vpop.f32.mrf.mxu0
        %v3568 = vadd.f32 %v1183, %v3567
        %v3569 = vpop.f32.mrf.mxu0
        %3570 = vdwg.mxu0
        %3571 = vmatpush.bf16.msra.mxu0 0
        %3572 = vmatpush.bf16.msra.mxu0 0
        %3573 = vmatpush.bf16.msra.mxu0 0
        %3574 = vmatpush.bf16.msra.mxu0 %v2880
        %3575 = vmatpush.bf16.msra.mxu0 %v2387
        %3576 = vmatpush.bf16.msra.mxu0 %v2323
        %3577 = vmatpush.bf16.msra.mxu0 %v2259
        %3578 = vmatpush.bf16.msra.mxu0 %v2195
        %3579 = vmatmul.bf16.gmra.mxu0 %v2723
        %v3580 = vpop.f32.mrf.mxu0
        %v3581 = vadd.f32 %v1183, %v3580
        %v3582 = vpop.f32.mrf.mxu0
        %3583 = vdwg.mxu0
        %3584 = vmatpush.bf16.msra.mxu0 0
        %3585 = vmatpush.bf16.msra.mxu0 0
        %3586 = vmatpush.bf16.msra.mxu0 0
        %3587 = vmatpush.bf16.msra.mxu0 %v2883
        %3588 = vmatpush.bf16.msra.mxu0 %v2388
        %3589 = vmatpush.bf16.msra.mxu0 %v2324
        %3590 = vmatpush.bf16.msra.mxu0 %v2260
        %3591 = vmatpush.bf16.msra.mxu0 %v2196
        %3592 = vmatmul.bf16.gmra.mxu0 %v2723
        %v3593 = vpop.f32.mrf.mxu0
        %v3594 = vadd.f32 %v1183, %v3593
        %v3595 = vpop.f32.mrf.mxu0
        %3596 = vdwg.mxu0
        %3597 = vmatpush.bf16.msra.mxu0 0
        %3598 = vmatpush.bf16.msra.mxu0 0
        %3599 = vmatpush.bf16.msra.mxu0 0
        %3600 = vmatpush.bf16.msra.mxu0 %v2886
        %3601 = vmatpush.bf16.msra.mxu0 %v2389
        %3602 = vmatpush.bf16.msra.mxu0 %v2325
        %3603 = vmatpush.bf16.msra.mxu0 %v2261
        %3604 = vmatpush.bf16.msra.mxu0 %v2197
        %3605 = vmatmul.bf16.gmra.mxu0 %v2723
        %v3606 = vpop.f32.mrf.mxu0
        %v3607 = vadd.f32 %v1183, %v3606
        %v3608 = vpop.f32.mrf.mxu0
        %3609 = vdwg.mxu0
        %3610 = vmatpush.bf16.msra.mxu0 0
        %3611 = vmatpush.bf16.msra.mxu0 0
        %3612 = vmatpush.bf16.msra.mxu0 0
        %3613 = vmatpush.bf16.msra.mxu0 %v2889
        %3614 = vmatpush.bf16.msra.mxu0 %v2390
        %3615 = vmatpush.bf16.msra.mxu0 %v2326
        %3616 = vmatpush.bf16.msra.mxu0 %v2262
        %3617 = vmatpush.bf16.msra.mxu0 %v2198
        %3618 = vmatmul.bf16.gmra.mxu0 %v2723
        %v3619 = vpop.f32.mrf.mxu0
        %v3620 = vadd.f32 %v1183, %v3619
        %v3621 = vpop.f32.mrf.mxu0
        %3622 = vdwg.mxu0
        %3623 = vmatpush.bf16.msra.mxu0 0
        %3624 = vmatpush.bf16.msra.mxu0 0
        %3625 = vmatpush.bf16.msra.mxu0 0
        %3626 = vmatpush.bf16.msra.mxu0 %v2892
        %3627 = vmatpush.bf16.msra.mxu0 %v2391
        %3628 = vmatpush.bf16.msra.mxu0 %v2327
        %3629 = vmatpush.bf16.msra.mxu0 %v2263
        %3630 = vmatpush.bf16.msra.mxu0 %v2199
        %3631 = vmatmul.bf16.gmra.mxu0 %v2723
        %v3632 = vpop.f32.mrf.mxu0
        %v3633 = vadd.f32 %v1183, %v3632
        %v3634 = vpop.f32.mrf.mxu0
        %3635 = vdwg.mxu0
        %3636 = vmatpush.bf16.msra.mxu0 0
        %3637 = vmatpush.bf16.msra.mxu0 0
        %3638 = vmatpush.bf16.msra.mxu0 0
        %3639 = vmatpush.bf16.msra.mxu0 %v2895
        %3640 = vmatpush.bf16.msra.mxu0 %v2392
        %3641 = vmatpush.bf16.msra.mxu0 %v2328
        %3642 = vmatpush.bf16.msra.mxu0 %v2264
        %3643 = vmatpush.bf16.msra.mxu0 %v2200
        %3644 = vmatmul.bf16.gmra.mxu0 %v2723
        %v3645 = vpop.f32.mrf.mxu0
        %v3646 = vadd.f32 %v1183, %v3645
        %v3647 = vpop.f32.mrf.mxu0
        %3648 = vdwg.mxu0
        %3649 = vmatpush.bf16.msra.mxu0 0
        %3650 = vmatpush.bf16.msra.mxu0 0
        %3651 = vmatpush.bf16.msra.mxu0 0
        %3652 = vmatpush.bf16.msra.mxu0 %v2898
        %3653 = vmatpush.bf16.msra.mxu0 %v2393
        %3654 = vmatpush.bf16.msra.mxu0 %v2329
        %3655 = vmatpush.bf16.msra.mxu0 %v2265
        %3656 = vmatpush.bf16.msra.mxu0 %v2201
        %3657 = vmatmul.bf16.gmra.mxu0 %v2723
        %v3658 = vpop.f32.mrf.mxu0
        %v3659 = vadd.f32 %v1183, %v3658
        %v3660 = vpop.f32.mrf.mxu0
        %3661 = vdwg.mxu0
        %3662 = vmatpush.bf16.msra.mxu0 0
        %3663 = vmatpush.bf16.msra.mxu0 0
        %3664 = vmatpush.bf16.msra.mxu0 0
        %3665 = vmatpush.bf16.msra.mxu0 %v2901
        %3666 = vmatpush.bf16.msra.mxu0 %v2394
        %3667 = vmatpush.bf16.msra.mxu0 %v2330
        %3668 = vmatpush.bf16.msra.mxu0 %v2266
        %3669 = vmatpush.bf16.msra.mxu0 %v2202
        %3670 = vmatmul.bf16.gmra.mxu0 %v2723
        %v3671 = vpop.f32.mrf.mxu0
        %v3672 = vadd.f32 %v1183, %v3671
        %v3673 = vpop.f32.mrf.mxu0
        %3674 = vdwg.mxu0
        %3675 = vmatpush.bf16.msra.mxu0 0
        %3676 = vmatpush.bf16.msra.mxu0 0
        %3677 = vmatpush.bf16.msra.mxu0 0
        %3678 = vmatpush.bf16.msra.mxu0 %v2904
        %3679 = vmatpush.bf16.msra.mxu0 %v2395
        %3680 = vmatpush.bf16.msra.mxu0 %v2331
        %3681 = vmatpush.bf16.msra.mxu0 %v2267
        %3682 = vmatpush.bf16.msra.mxu0 %v2203
        %3683 = vmatmul.bf16.gmra.mxu0 %v2723
        %v3684 = vpop.f32.mrf.mxu0
        %v3685 = vadd.f32 %v1183, %v3684
        %v3686 = vpop.f32.mrf.mxu0
        %3687 = vdwg.mxu0
        %3688 = vmatpush.bf16.msra.mxu0 0
        %3689 = vmatpush.bf16.msra.mxu0 0
        %3690 = vmatpush.bf16.msra.mxu0 0
        %3691 = vmatpush.bf16.msra.mxu0 %v2907
        %3692 = vmatpush.bf16.msra.mxu0 %v2396
        %3693 = vmatpush.bf16.msra.mxu0 %v2332
        %3694 = vmatpush.bf16.msra.mxu0 %v2268
        %3695 = vmatpush.bf16.msra.mxu0 %v2204
        %3696 = vmatmul.bf16.gmra.mxu0 %v2723
        %v3697 = vpop.f32.mrf.mxu0
        %v3698 = vadd.f32 %v1183, %v3697
        %v3699 = vpop.f32.mrf.mxu0
        %3700 = vdwg.mxu0
        %3701 = vmatpush.bf16.msra.mxu0 0
        %3702 = vmatpush.bf16.msra.mxu0 0
        %3703 = vmatpush.bf16.msra.mxu0 0
        %3704 = vmatpush.bf16.msra.mxu0 %v2910
        %3705 = vmatpush.bf16.msra.mxu0 %v2397
        %3706 = vmatpush.bf16.msra.mxu0 %v2333
        %3707 = vmatpush.bf16.msra.mxu0 %v2269
        %3708 = vmatpush.bf16.msra.mxu0 %v2205
        %3709 = vmatmul.bf16.gmra.mxu0 %v2723
        %v3710 = vpop.f32.mrf.mxu0
        %v3711 = vadd.f32 %v1183, %v3710
        %v3712 = vpop.f32.mrf.mxu0
        %3713 = vdwg.mxu0
        %3714 = vmatpush.bf16.msra.mxu0 0
        %3715 = vmatpush.bf16.msra.mxu0 0
        %3716 = vmatpush.bf16.msra.mxu0 0
        %3717 = vmatpush.bf16.msra.mxu0 %v2913
        %3718 = vmatpush.bf16.msra.mxu0 %v2398
        %3719 = vmatpush.bf16.msra.mxu0 %v2334
        %3720 = vmatpush.bf16.msra.mxu0 %v2270
        %3721 = vmatpush.bf16.msra.mxu0 %v2206
        %3722 = vmatmul.bf16.gmra.mxu0 %v2723
        %v3723 = vpop.f32.mrf.mxu0
        %v3724 = vadd.f32 %v1183, %v3723
        %v3725 = vpop.f32.mrf.mxu0
        %3726 = vdwg.mxu0
        %3727 = vmatpush.bf16.msra.mxu0 0
        %3728 = vmatpush.bf16.msra.mxu0 0
        %3729 = vmatpush.bf16.msra.mxu0 0
        %3730 = vmatpush.bf16.msra.mxu0 %v2916
        %3731 = vmatpush.bf16.msra.mxu0 %v2399
        %3732 = vmatpush.bf16.msra.mxu0 %v2335
        %3733 = vmatpush.bf16.msra.mxu0 %v2271
        %3734 = vmatpush.bf16.msra.mxu0 %v2207
        %3735 = vmatmul.bf16.gmra.mxu0 %v2723
        %v3736 = vpop.f32.mrf.mxu0
        %v3737 = vadd.f32 %v1183, %v3736
        %v3738 = vpop.f32.mrf.mxu0
        %3739 = vdwg.mxu0
        %3740 = vmatpush.bf16.msra.mxu0 0
        %3741 = vmatpush.bf16.msra.mxu0 0
        %3742 = vmatpush.bf16.msra.mxu0 0
        %3743 = vmatpush.bf16.msra.mxu0 %v2919
        %3744 = vmatpush.bf16.msra.mxu0 %v2400
        %3745 = vmatpush.bf16.msra.mxu0 %v2336
        %3746 = vmatpush.bf16.msra.mxu0 %v2272
        %3747 = vmatpush.bf16.msra.mxu0 %v2208
        %3748 = vmatmul.bf16.gmra.mxu0 %v2723
        %v3749 = vpop.f32.mrf.mxu0
        %v3750 = vadd.f32 %v1183, %v3749
        %v3751 = vpop.f32.mrf.mxu0
        %3752 = vdwg.mxu0
        %vm3753 = vcmp.ge.f32.partialorder %v2931, 0.0
        %vm3754 = vcmp.ge.f32.partialorder %v2944, 0.0
        %vm3755 = vcmp.ge.f32.partialorder %v2957, 0.0
        %vm3756 = vcmp.ge.f32.partialorder %v2970, 0.0
        %vm3757 = vcmp.ge.f32.partialorder %v2983, 0.0
        %vm3758 = vcmp.ge.f32.partialorder %v2996, 0.0
        %vm3759 = vcmp.ge.f32.partialorder %v3009, 0.0
        %vm3760 = vcmp.ge.f32.partialorder %v3022, 0.0
        %vm3761 = vcmp.ge.f32.partialorder %v3035, 0.0
        %vm3762 = vcmp.ge.f32.partialorder %v3048, 0.0
        %vm3763 = vcmp.ge.f32.partialorder %v3061, 0.0
        %vm3764 = vcmp.ge.f32.partialorder %v3074, 0.0
        %vm3765 = vcmp.ge.f32.partialorder %v3087, 0.0
        %vm3766 = vcmp.ge.f32.partialorder %v3100, 0.0
        %vm3767 = vcmp.ge.f32.partialorder %v3113, 0.0
        %vm3768 = vcmp.ge.f32.partialorder %v3126, 0.0
        %vm3769 = vcmp.ge.f32.partialorder %v3139, 0.0
        %vm3770 = vcmp.ge.f32.partialorder %v3152, 0.0
        %vm3771 = vcmp.ge.f32.partialorder %v3165, 0.0
        %vm3772 = vcmp.ge.f32.partialorder %v3178, 0.0
        %vm3773 = vcmp.ge.f32.partialorder %v3191, 0.0
        %vm3774 = vcmp.ge.f32.partialorder %v3204, 0.0
        %vm3775 = vcmp.ge.f32.partialorder %v3217, 0.0
        %vm3776 = vcmp.ge.f32.partialorder %v3230, 0.0
        %vm3777 = vcmp.ge.f32.partialorder %v3243, 0.0
        %vm3778 = vcmp.ge.f32.partialorder %v3256, 0.0
        %vm3779 = vcmp.ge.f32.partialorder %v3269, 0.0
        %vm3780 = vcmp.ge.f32.partialorder %v3282, 0.0
        %vm3781 = vcmp.ge.f32.partialorder %v3295, 0.0
        %vm3782 = vcmp.ge.f32.partialorder %v3308, 0.0
        %vm3783 = vcmp.ge.f32.partialorder %v3321, 0.0
        %vm3784 = vcmp.ge.f32.partialorder %v3334, 0.0
        %vm3785 = vcmp.ge.f32.partialorder %v3347, 0.0
        %vm3786 = vcmp.ge.f32.partialorder %v3360, 0.0
        %vm3787 = vcmp.ge.f32.partialorder %v3373, 0.0
        %vm3788 = vcmp.ge.f32.partialorder %v3386, 0.0
        %vm3789 = vcmp.ge.f32.partialorder %v3399, 0.0
        %vm3790 = vcmp.ge.f32.partialorder %v3412, 0.0
        %vm3791 = vcmp.ge.f32.partialorder %v3425, 0.0
        %vm3792 = vcmp.ge.f32.partialorder %v3438, 0.0
        %vm3793 = vcmp.ge.f32.partialorder %v3451, 0.0
        %vm3794 = vcmp.ge.f32.partialorder %v3464, 0.0
        %vm3795 = vcmp.ge.f32.partialorder %v3477, 0.0
        %vm3796 = vcmp.ge.f32.partialorder %v3490, 0.0
        %vm3797 = vcmp.ge.f32.partialorder %v3503, 0.0
        %vm3798 = vcmp.ge.f32.partialorder %v3516, 0.0
        %vm3799 = vcmp.ge.f32.partialorder %v3529, 0.0
        %vm3800 = vcmp.ge.f32.partialorder %v3542, 0.0
        %vm3801 = vcmp.ge.f32.partialorder %v3555, 0.0
        %vm3802 = vcmp.ge.f32.partialorder %v3568, 0.0
        %vm3803 = vcmp.ge.f32.partialorder %v3581, 0.0
        %vm3804 = vcmp.ge.f32.partialorder %v3594, 0.0
        %vm3805 = vcmp.ge.f32.partialorder %v3607, 0.0
        %vm3806 = vcmp.ge.f32.partialorder %v3620, 0.0
        %vm3807 = vcmp.ge.f32.partialorder %v3633, 0.0
        %vm3808 = vcmp.ge.f32.partialorder %v3646, 0.0
        %vm3809 = vcmp.ge.f32.partialorder %v3659, 0.0
        %vm3810 = vcmp.ge.f32.partialorder %v3672, 0.0
        %vm3811 = vcmp.ge.f32.partialorder %v3685, 0.0
        %vm3812 = vcmp.ge.f32.partialorder %v3698, 0.0
        %vm3813 = vcmp.ge.f32.partialorder %v3711, 0.0
        %vm3814 = vcmp.ge.f32.partialorder %v3724, 0.0
        %vm3815 = vcmp.ge.f32.partialorder %v3737, 0.0
        %vm3816 = vcmp.ge.f32.partialorder %v3750, 0.0
        %v3817 = vmul.f32 %v2931, 0.2
        %v3818 = vmul.f32 %v2944, 0.2
        %v3819 = vmul.f32 %v2957, 0.2
        %v3820 = vmul.f32 %v2970, 0.2
        %v3821 = vmul.f32 %v2983, 0.2
        %v3822 = vmul.f32 %v2996, 0.2
        %v3823 = vmul.f32 %v3009, 0.2
        %v3824 = vmul.f32 %v3022, 0.2
        %v3825 = vmul.f32 %v3035, 0.2
        %v3826 = vmul.f32 %v3048, 0.2
        %v3827 = vmul.f32 %v3061, 0.2
        %v3828 = vmul.f32 %v3074, 0.2
        %v3829 = vmul.f32 %v3087, 0.2
        %v3830 = vmul.f32 %v3100, 0.2
        %v3831 = vmul.f32 %v3113, 0.2
        %v3832 = vmul.f32 %v3126, 0.2
        %v3833 = vmul.f32 %v3139, 0.2
        %v3834 = vmul.f32 %v3152, 0.2
        %v3835 = vmul.f32 %v3165, 0.2
        %v3836 = vmul.f32 %v3178, 0.2
        %v3837 = vmul.f32 %v3191, 0.2
        %v3838 = vmul.f32 %v3204, 0.2
        %v3839 = vmul.f32 %v3217, 0.2
        %v3840 = vmul.f32 %v3230, 0.2
        %v3841 = vmul.f32 %v3243, 0.2
        %v3842 = vmul.f32 %v3256, 0.2
        %v3843 = vmul.f32 %v3269, 0.2
        %v3844 = vmul.f32 %v3282, 0.2
        %v3845 = vmul.f32 %v3295, 0.2
        %v3846 = vmul.f32 %v3308, 0.2
        %v3847 = vmul.f32 %v3321, 0.2
        %v3848 = vmul.f32 %v3334, 0.2
        %v3849 = vmul.f32 %v3347, 0.2
        %v3850 = vmul.f32 %v3360, 0.2
        %v3851 = vmul.f32 %v3373, 0.2
        %v3852 = vmul.f32 %v3386, 0.2
        %v3853 = vmul.f32 %v3399, 0.2
        %v3854 = vmul.f32 %v3412, 0.2
        %v3855 = vmul.f32 %v3425, 0.2
        %v3856 = vmul.f32 %v3438, 0.2
        %v3857 = vmul.f32 %v3451, 0.2
        %v3858 = vmul.f32 %v3464, 0.2
        %v3859 = vmul.f32 %v3477, 0.2
        %v3860 = vmul.f32 %v3490, 0.2
        %v3861 = vmul.f32 %v3503, 0.2
        %v3862 = vmul.f32 %v3516, 0.2
        %v3863 = vmul.f32 %v3529, 0.2
        %v3864 = vmul.f32 %v3542, 0.2
        %v3865 = vmul.f32 %v3555, 0.2
        %v3866 = vmul.f32 %v3568, 0.2
        %v3867 = vmul.f32 %v3581, 0.2
        %v3868 = vmul.f32 %v3594, 0.2
        %v3869 = vmul.f32 %v3607, 0.2
        %v3870 = vmul.f32 %v3620, 0.2
        %v3871 = vmul.f32 %v3633, 0.2
        %v3872 = vmul.f32 %v3646, 0.2
        %v3873 = vmul.f32 %v3659, 0.2
        %v3874 = vmul.f32 %v3672, 0.2
        %v3875 = vmul.f32 %v3685, 0.2
        %v3876 = vmul.f32 %v3698, 0.2
        %v3877 = vmul.f32 %v3711, 0.2
        %v3878 = vmul.f32 %v3724, 0.2
        %v3879 = vmul.f32 %v3737, 0.2
        %v3880 = vmul.f32 %v3750, 0.2
        %v3881 = vsel %vm3753, %v2931, %v3817
        %v3882 = vsel %vm3754, %v2944, %v3818
        %v3883 = vsel %vm3755, %v2957, %v3819
        %v3884 = vsel %vm3756, %v2970, %v3820
        %v3885 = vsel %vm3757, %v2983, %v3821
        %v3886 = vsel %vm3758, %v2996, %v3822
        %v3887 = vsel %vm3759, %v3009, %v3823
        %v3888 = vsel %vm3760, %v3022, %v3824
        %v3889 = vsel %vm3761, %v3035, %v3825
        %v3890 = vsel %vm3762, %v3048, %v3826
        %v3891 = vsel %vm3763, %v3061, %v3827
        %v3892 = vsel %vm3764, %v3074, %v3828
        %v3893 = vsel %vm3765, %v3087, %v3829
        %v3894 = vsel %vm3766, %v3100, %v3830
        %v3895 = vsel %vm3767, %v3113, %v3831
        %v3896 = vsel %vm3768, %v3126, %v3832
        %v3897 = vsel %vm3769, %v3139, %v3833
        %v3898 = vsel %vm3770, %v3152, %v3834
        %v3899 = vsel %vm3771, %v3165, %v3835
        %v3900 = vsel %vm3772, %v3178, %v3836
        %v3901 = vsel %vm3773, %v3191, %v3837
        %v3902 = vsel %vm3774, %v3204, %v3838
        %v3903 = vsel %vm3775, %v3217, %v3839
        %v3904 = vsel %vm3776, %v3230, %v3840
        %v3905 = vsel %vm3777, %v3243, %v3841
        %v3906 = vsel %vm3778, %v3256, %v3842
        %v3907 = vsel %vm3779, %v3269, %v3843
        %v3908 = vsel %vm3780, %v3282, %v3844
        %v3909 = vsel %vm3781, %v3295, %v3845
        %v3910 = vsel %vm3782, %v3308, %v3846
        %v3911 = vsel %vm3783, %v3321, %v3847
        %v3912 = vsel %vm3784, %v3334, %v3848
        %v3913 = vsel %vm3785, %v3347, %v3849
        %v3914 = vsel %vm3786, %v3360, %v3850
        %v3915 = vsel %vm3787, %v3373, %v3851
        %v3916 = vsel %vm3788, %v3386, %v3852
        %v3917 = vsel %vm3789, %v3399, %v3853
        %v3918 = vsel %vm3790, %v3412, %v3854
        %v3919 = vsel %vm3791, %v3425, %v3855
        %v3920 = vsel %vm3792, %v3438, %v3856
        %v3921 = vsel %vm3793, %v3451, %v3857
        %v3922 = vsel %vm3794, %v3464, %v3858
        %v3923 = vsel %vm3795, %v3477, %v3859
        %v3924 = vsel %vm3796, %v3490, %v3860
        %v3925 = vsel %vm3797, %v3503, %v3861
        %v3926 = vsel %vm3798, %v3516, %v3862
        %v3927 = vsel %vm3799, %v3529, %v3863
        %v3928 = vsel %vm3800, %v3542, %v3864
        %v3929 = vsel %vm3801, %v3555, %v3865
        %v3930 = vsel %vm3802, %v3568, %v3866
        %v3931 = vsel %vm3803, %v3581, %v3867
        %v3932 = vsel %vm3804, %v3594, %v3868
        %v3933 = vsel %vm3805, %v3607, %v3869
        %v3934 = vsel %vm3806, %v3620, %v3870
        %v3935 = vsel %vm3807, %v3633, %v3871
        %v3936 = vsel %vm3808, %v3646, %v3872
        %v3937 = vsel %vm3809, %v3659, %v3873
        %v3938 = vsel %vm3810, %v3672, %v3874
        %v3939 = vsel %vm3811, %v3685, %v3875
        %v3940 = vsel %vm3812, %v3698, %v3876
        %v3941 = vsel %vm3813, %v3711, %v3877
        %v3942 = vsel %vm3814, %v3724, %v3878
        %v3943 = vsel %vm3815, %v3737, %v3879
        %v3944 = vsel %vm3816, %v3750, %v3880
        %v3945 = vpack.c.bf16 %v3882, %v3881
        %v3946 = vpack.c.bf16 %v3884, %v3883
        %v3947 = vpack.c.bf16 %v3886, %v3885
        %v3948 = vpack.c.bf16 %v3888, %v3887
        %v3949 = vpack.c.bf16 %v3890, %v3889
        %v3950 = vpack.c.bf16 %v3892, %v3891
        %v3951 = vpack.c.bf16 %v3894, %v3893
        %v3952 = vpack.c.bf16 %v3896, %v3895
        %v3953 = vpack.c.bf16 %v3898, %v3897
        %v3954 = vpack.c.bf16 %v3900, %v3899
        %v3955 = vpack.c.bf16 %v3902, %v3901
        %v3956 = vpack.c.bf16 %v3904, %v3903
        %v3957 = vpack.c.bf16 %v3906, %v3905
        %v3958 = vpack.c.bf16 %v3908, %v3907
        %v3959 = vpack.c.bf16 %v3910, %v3909
        %v3960 = vpack.c.bf16 %v3912, %v3911
        %v3961 = vpack.c.bf16 %v3914, %v3913
        %v3962 = vpack.c.bf16 %v3916, %v3915
        %v3963 = vpack.c.bf16 %v3918, %v3917
        %v3964 = vpack.c.bf16 %v3920, %v3919
        %v3965 = vpack.c.bf16 %v3922, %v3921
        %v3966 = vpack.c.bf16 %v3924, %v3923
        %v3967 = vpack.c.bf16 %v3926, %v3925
        %v3968 = vpack.c.bf16 %v3928, %v3927
        %v3969 = vpack.c.bf16 %v3930, %v3929
        %v3970 = vpack.c.bf16 %v3932, %v3931
        %v3971 = vpack.c.bf16 %v3934, %v3933
        %v3972 = vpack.c.bf16 %v3936, %v3935
        %v3973 = vpack.c.bf16 %v3938, %v3937
        %v3974 = vpack.c.bf16 %v3940, %v3939
        %v3975 = vpack.c.bf16 %v3942, %v3941
        %v3976 = vpack.c.bf16 %v3944, %v3943
        %v4009 = vrot.slane %v3945, 2
        %v4010 = vrot.slane %v3946, 4
        %v4011 = vrot.slane %v3946, 6
        %v4012 = vrot.slane %v3947, 2
        %v4013 = vrot.slane %v3948, 4
        %v4014 = vrot.slane %v3948, 6
        %v4015 = vrot.slane %v3949, 2
        %v4016 = vrot.slane %v3950, 4
        %v4017 = vrot.slane %v3950, 6
        %v4018 = vrot.slane %v3951, 2
        %v4019 = vrot.slane %v3952, 4
        %v4020 = vrot.slane %v3952, 6
        %v4021 = vrot.slane %v3953, 2
        %v4022 = vrot.slane %v3954, 4
        %v4023 = vrot.slane %v3954, 6
        %v4024 = vrot.slane %v3955, 2
        %v4025 = vrot.slane %v3956, 4
        %v4026 = vrot.slane %v3956, 6
        %v4027 = vrot.slane %v3957, 2
        %v4028 = vrot.slane %v3958, 4
        %v4029 = vrot.slane %v3958, 6
        %v4030 = vrot.slane %v3959, 2
        %v4031 = vrot.slane %v3960, 4
        %v4032 = vrot.slane %v3960, 6
        %v4033 = vrot.slane %v3961, 2
        %v4034 = vrot.slane %v3962, 4
        %v4035 = vrot.slane %v3962, 6
        %v4036 = vrot.slane %v3963, 2
        %v4037 = vrot.slane %v3964, 4
        %v4038 = vrot.slane %v3964, 6
        %v4039 = vrot.slane %v3965, 2
        %v4040 = vrot.slane %v3966, 4
        %v4041 = vrot.slane %v3966, 6
        %v4042 = vrot.slane %v3967, 2
        %v4043 = vrot.slane %v3968, 4
        %v4044 = vrot.slane %v3968, 6
        %v4045 = vrot.slane %v3969, 2
        %v4046 = vrot.slane %v3970, 4
        %v4047 = vrot.slane %v3970, 6
        %v4048 = vrot.slane %v3971, 2
        %v4049 = vrot.slane %v3972, 4
        %v4050 = vrot.slane %v3972, 6
        %v4051 = vrot.slane %v3973, 2
        %v4052 = vrot.slane %v3974, 4
        %v4053 = vrot.slane %v3974, 6
        %v4054 = vrot.slane %v3975, 2
        %v4055 = vrot.slane %v3976, 4
        %v4056 = vrot.slane %v3976, 6
        %vm4057 = vcmask 1041408
        %v4060 = vsel %vm4057, %v3945, %v4009
        %vm4061 = vcmask 1045508
        %v4064 = vsel %vm4061, %v4010, %v4011
        %vm4065 = vcmask 1043456
        %v4066 = vsel %vm4065, %v4060, %v4064
        %v4069 = vsel %vm4057, %v3947, %v4012
        %v4072 = vsel %vm4061, %v4013, %v4014
        %v4073 = vsel %vm4065, %v4069, %v4072
        %v4076 = vsel %vm4057, %v3949, %v4015
        %v4079 = vsel %vm4061, %v4016, %v4017
        %v4080 = vsel %vm4065, %v4076, %v4079
        %v4083 = vsel %vm4057, %v3951, %v4018
        %v4086 = vsel %vm4061, %v4019, %v4020
        %v4087 = vsel %vm4065, %v4083, %v4086
        %v4090 = vsel %vm4057, %v3953, %v4021
        %v4093 = vsel %vm4061, %v4022, %v4023
        %v4094 = vsel %vm4065, %v4090, %v4093
        %v4097 = vsel %vm4057, %v3955, %v4024
        %v4100 = vsel %vm4061, %v4025, %v4026
        %v4101 = vsel %vm4065, %v4097, %v4100
        %v4104 = vsel %vm4057, %v3957, %v4027
        %v4107 = vsel %vm4061, %v4028, %v4029
        %v4108 = vsel %vm4065, %v4104, %v4107
        %v4111 = vsel %vm4057, %v3959, %v4030
        %v4114 = vsel %vm4061, %v4031, %v4032
        %v4115 = vsel %vm4065, %v4111, %v4114
        %v4118 = vsel %vm4057, %v3961, %v4033
        %v4121 = vsel %vm4061, %v4034, %v4035
        %v4122 = vsel %vm4065, %v4118, %v4121
        %v4125 = vsel %vm4057, %v3963, %v4036
        %v4128 = vsel %vm4061, %v4037, %v4038
        %v4129 = vsel %vm4065, %v4125, %v4128
        %v4132 = vsel %vm4057, %v3965, %v4039
        %v4135 = vsel %vm4061, %v4040, %v4041
        %v4136 = vsel %vm4065, %v4132, %v4135
        %v4139 = vsel %vm4057, %v3967, %v4042
        %v4142 = vsel %vm4061, %v4043, %v4044
        %v4143 = vsel %vm4065, %v4139, %v4142
        %v4146 = vsel %vm4057, %v3969, %v4045
        %v4149 = vsel %vm4061, %v4046, %v4047
        %v4150 = vsel %vm4065, %v4146, %v4149
        %v4153 = vsel %vm4057, %v3971, %v4048
        %v4156 = vsel %vm4061, %v4049, %v4050
        %v4157 = vsel %vm4065, %v4153, %v4156
        %v4160 = vsel %vm4057, %v3973, %v4051
        %v4163 = vsel %vm4061, %v4052, %v4053
        %v4164 = vsel %vm4065, %v4160, %v4163
        %v4167 = vsel %vm4057, %v3975, %v4054
        %v4170 = vsel %vm4061, %v4055, %v4056
        %v4171 = vsel %vm4065, %v4167, %v4170
        %4188 = vst [vmem:[%s855] sm:$0xff] %v4066
        %4189 = vst [vmem:[%s855 + $0x8] sm:$0xff] %v4073
        %4190 = vst [vmem:[%s855 + $0x10] sm:$0xff] %v4080
        %4191 = vst [vmem:[%s855 + $0x18] sm:$0xff] %v4087
        %4192 = vst [vmem:[%s855 + $0x20] sm:$0xff] %v4094
        %4193 = vst [vmem:[%s855 + $0x28] sm:$0xff] %v4101
        %4194 = vst [vmem:[%s855 + $0x30] sm:$0xff] %v4108
        %4195 = vst [vmem:[%s855 + $0x38] sm:$0xff] %v4115
        %4196 = vst [vmem:[%s855 + $0x40] sm:$0xff] %v4122
        %4197 = vst [vmem:[%s855 + $0x48] sm:$0xff] %v4129
        %4198 = vst [vmem:[%s855 + $0x50] sm:$0xff] %v4136
        %4199 = vst [vmem:[%s855 + $0x58] sm:$0xff] %v4143
        %4200 = vst [vmem:[%s855 + $0x60] sm:$0xff] %v4150
        %4201 = vst [vmem:[%s855 + $0x68] sm:$0xff] %v4157
        %4202 = vst [vmem:[%s855 + $0x70] sm:$0xff] %v4164
        %4203 = vst [vmem:[%s855 + $0x78] sm:$0xff] %v4171
        %s4204 = smul.u32 64, %s19
        %p4205 = scmp.lt.s32.totalorder %s18, 1
        %s4206 = scalar_select %p4205, %s18, 1
        %p4207 = scmp.lt.s32.totalorder %s4204, 127
        %s4208 = scalar_select %p4207, %s4204, 127
        %s4209 = smul.addr %s4206, 128
        %s4210 = sadd.s32 %s4208, %s4209
        %s4211 = smul.addr %s4210, 2
        %s4212 = scalar_lea.vmem %s3, %s4211
        // Predicated region
        $region56: #{global_dis_forward.4} parent=50 // pred_check
          %p4213 = pneg %p116
        $region57: #{global_dis_forward.4} parent=50 // pred_check_branch
          %4215 = sbr.rel (%p4213) target = $region59
        $region58: #{global_dis_forward.4} parent=50 // pred_region
          %s4216 = smul.u32 64, %s19
        $region59: #{global_dis_forward.4} parent=50 // pred_fallthru
          _
      $region51: #{global_dis_forward.4} parent=5 // pred_fallthru
        _
      %p4217 = scmp.le.s32.totalorder 2, %s9
      // Predicated region
      $region60: #{global_dis_forward.4} parent=5 // pred_check
        %p4218 = pneg %p4217
      $region61: #{global_dis_forward.4} parent=5 // pred_check_branch
        %4220 = sbr.rel (%p4218) target = $region63
      $region62: #{global_dis_forward.4} parent=5 // pred_region
        %s4221 = ssub.s32 %s9, 2
        // Predicated region
        $region64: #{global_dis_forward.4} parent=62 // pred_check
          %p4222 = pneg %p122
        $region65: #{global_dis_forward.4} parent=62 // pred_check_branch
          %4224 = sbr.rel (%p4222) target = $region67
        $region66: #{global_dis_forward.4} parent=62 // pred_region
          %s4225 = smul.u32 64, %s21
          %p4226 = scmp.lt.s32.totalorder %s20, 1
          %s4227 = scalar_select %p4226, %s20, 1
          %p4228 = scmp.lt.s32.totalorder %s4225, 127
          %s4229 = scalar_select %p4228, %s4225, 127
          %s4230 = smul.addr %s4227, 128
          %s4231 = sadd.s32 %s4229, %s4230
          %s4232 = smul.addr %s4231, 2
          %s4233 = scalar_lea.vmem %s3, %s4232
        $region67: #{global_dis_forward.4} parent=62 // pred_fallthru
          _
      $region63: #{global_dis_forward.4} parent=5 // pred_fallthru
        _
    $region6: #{global_dis_forward.4} parent=1 // loop_footer
      %s13 = sadd.s32 1, %s9
    $region7: #{global_dis_forward.4} parent=1 // loop_footer_branch
      %8 = sbr.rel target = $region3
    $region8: #{global_dis_forward.4} parent=1 // loop_exit
      _

// kernel: global_dis_forward.5
$region0: #{global_dis_forward.5}
  #allocation0 [shape = 'u32[]', space=smem, size = 0x4, offset = 0x4, fixed_abs, tag = 'smem constant byte address 0x4 - core index']
  #allocation1 [shape = 'u32[72,128]{1,0:T(1,128)}', space=vmem, size = 0x9000, scoped, tag = 'internal scratch']
  %s0 = inlined_call_operand.vmem [shape: bf16[8,100], index: 0, kind: input, shape index: {}]
  %s1 = inlined_call_operand.vmem [shape: f32[8,1], index: 1, kind: input, shape index: {}]
  %s2 = inlined_call_operand.vmem [shape: bf16[2,100,4096], index: 2, kind: input, shape index: {}]
  %s3 = inlined_call_operand.vmem [shape: bf16[2,8,4096], index: 3, kind: output, shape index: {}]
  %s4 = sld [smem:[#allocation0]]
  $region45: #{global_dis_forward.5} parent=0
    _
  %s6 = ssub.s32 1, %s4
  %s7 = scalar_select 0, %s6, %s4
  loop: start=0, step=1, limit=4
  $region2: #{global_dis_forward.5} parent=0 // loop_pre_header
    _
  $region3: #{global_dis_forward.5} parent=0 // loop_header
    %s9 = sphi 0, %s13
    %p10 = scmp.ge.s32.totalorder %s9, 4
    %s16 = sphi 0, %s28
    %s17 = sphi 0, %s24
    %s18 = sphi 0, %s16
    %s19 = sphi 0, %s17
    %s20 = sphi 0, %s18
    %s21 = sphi 0, %s19
    %s29 = sphi 0, %s29
    %s31 = sphi 0, %s29
    %s32 = sphi 0, %s31
    %s46 = sphi 0, %s32
    %s50 = sphi 0, %s50
    %s52 = sphi 0, %s50
    %s53 = sphi 0, %s52
    %s67 = sphi 0, %s53
    %s75 = sphi 0, %s77
    %s78 = sphi 0, %s75
    %s79 = sphi 0, %s78
    %s95 = sphi 0, %s79
    %s103 = sphi 0, %s105
    %s106 = sphi 0, %s103
    %s107 = sphi 0, %s106
    %s123 = sphi 0, %s107
  $region4: #{global_dis_forward.5} parent=0 // loop_header_branch
    %12 = sbr.rel (%p10) target = $region8
  $region5: #{global_dis_forward.5} parent=0 // loop_body
    %s14 = ssub.s32 %s9, 1
    %s15 = ssub.s32 %s9, 2
    %s22 = sadd.s32 1, %s17
    %p23 = scmp.ge.s32.totalorder %s22, 1
    %s24 = scalar_select %p23, 0, %s22
    %s25 = sadd.s32 1, %s16
    %s26 = scalar_select %p23, %s25, %s16
    %p27 = scmp.ge.s32.totalorder %s26, 2
    %s28 = scalar_select %p27, 0, %s26
    %s30 = sadd.s32 %s29, 1
    %p33 = scmp.eq.s32.totalorder %s9, 1
    %p34 = scmp.ne.s32.totalorder %s29, %s31
    %p35 = scmp.eq.s32.totalorder %s9, 0
    %p36 = por %p34, %p35
    %p37 = scmp.ne.s32.totalorder %s29, %s31
    %p38 = scmp.eq.s32.totalorder %s14, 1
    %p39 = por %p37, %p38
    %p40 = scmp.ne.s32.totalorder %s31, %s32
    %p41 = scmp.eq.s32.totalorder %s14, 0
    %p42 = por %p40, %p41
    %p43 = scmp.ne.s32.totalorder %s31, %s32
    %p44 = scmp.eq.s32.totalorder %s15, 1
    %p45 = por %p43, %p44
    %p47 = scmp.ne.s32.totalorder %s32, %s46
    %p48 = scmp.eq.s32.totalorder %s15, 0
    %p49 = por %p47, %p48
    %s51 = sadd.s32 %s50, 1
    %p54 = scmp.eq.s32.totalorder %s9, 1
    %p55 = scmp.ne.s32.totalorder %s50, %s52
    %p56 = scmp.eq.s32.totalorder %s9, 0
    %p57 = por %p55, %p56
    %p58 = scmp.ne.s32.totalorder %s50, %s52
    %p59 = scmp.eq.s32.totalorder %s14, 1
    %p60 = por %p58, %p59
    %p61 = scmp.ne.s32.totalorder %s52, %s53
    %p62 = scmp.eq.s32.totalorder %s14, 0
    %p63 = por %p61, %p62
    %p64 = scmp.ne.s32.totalorder %s52, %s53
    %p65 = scmp.eq.s32.totalorder %s15, 1
    %p66 = por %p64, %p65
    %p68 = scmp.ne.s32.totalorder %s53, %s67
    %p69 = scmp.eq.s32.totalorder %s15, 0
    %p70 = por %p68, %p69
    %s71 = ssub.s32 %s16, %s28
    %s72 = ssub.s32 %s17, %s24
    %s73 = sor.u32 %s71, %s72
    %p74 = scmp.eq.s32.totalorder %s73, 0
    %s76 = sadd.s32 %s75, 1
    %s77 = scalar_select %p74, %s75, %s76
    %p80 = pneg %p74
    %p81 = scmp.eq.s32.totalorder %s9, 1
    %p82 = por %p80, %p81
    %p83 = scmp.ne.s32.totalorder %s75, %s78
    %p84 = scmp.eq.s32.totalorder %s9, 0
    %p85 = por %p83, %p84
    %p86 = scmp.ne.s32.totalorder %s75, %s78
    %p87 = scmp.eq.s32.totalorder %s14, 1
    %p88 = por %p86, %p87
    %p89 = scmp.ne.s32.totalorder %s78, %s79
    %p90 = scmp.eq.s32.totalorder %s14, 0
    %p91 = por %p89, %p90
    %p92 = scmp.ne.s32.totalorder %s78, %s79
    %p93 = scmp.eq.s32.totalorder %s15, 1
    %p94 = por %p92, %p93
    %p96 = scmp.ne.s32.totalorder %s79, %s95
    %p97 = scmp.eq.s32.totalorder %s15, 0
    %p98 = por %p96, %p97
    %s99 = ssub.s32 %s16, %s28
    %s100 = ssub.s32 %s17, %s24
    %s101 = sor.u32 %s99, %s100
    %p102 = scmp.eq.s32.totalorder %s101, 0
    %s104 = sadd.s32 %s103, 1
    %s105 = scalar_select %p102, %s103, %s104
    %p108 = pneg %p102
    %p109 = scmp.eq.s32.totalorder %s9, 1
    %p110 = por %p108, %p109
    %p111 = scmp.ne.s32.totalorder %s103, %s106
    %p112 = scmp.eq.s32.totalorder %s9, 0
    %p113 = por %p111, %p112
    %p114 = scmp.ne.s32.totalorder %s103, %s106
    %p115 = scmp.eq.s32.totalorder %s14, 1
    %p116 = por %p114, %p115
    %p117 = scmp.ne.s32.totalorder %s106, %s107
    %p118 = scmp.eq.s32.totalorder %s14, 0
    %p119 = por %p117, %p118
    %p120 = scmp.ne.s32.totalorder %s106, %s107
    %p121 = scmp.eq.s32.totalorder %s15, 1
    %p122 = por %p120, %p121
    %p124 = scmp.ne.s32.totalorder %s107, %s123
    %p125 = scmp.eq.s32.totalorder %s15, 0
    %p126 = por %p124, %p125
    %p127 = scmp.le.s32.totalorder 1, %s9
    %p128 = scmp.lt.s32.totalorder %s9, 3
    %p129 = pnand %p127, %p128
    %p130 = pneg %p129
    // Predicated region
    $region9: #{global_dis_forward.5} parent=5 // pred_check
      _
    $region10: #{global_dis_forward.5} parent=5 // pred_check_branch
      %132 = sbr.rel (%p129) target = $region12
    $region11: #{global_dis_forward.5} parent=5 // pred_region
      %s133 = ssub.s32 %s9, 1
      // Predicated region
      $region13: #{global_dis_forward.5} parent=11 // pred_check
        %p134 = pneg %p42
      $region14: #{global_dis_forward.5} parent=11 // pred_check_branch
        %136 = sbr.rel (%p134) target = $region16
      $region15: #{global_dis_forward.5} parent=11 // pred_region
        _
      $region16: #{global_dis_forward.5} parent=11 // pred_fallthru
        _
      // Predicated region
      $region17: #{global_dis_forward.5} parent=11 // pred_check
        %p137 = pneg %p63
      $region18: #{global_dis_forward.5} parent=11 // pred_check_branch
        %139 = sbr.rel (%p137) target = $region20
      $region19: #{global_dis_forward.5} parent=11 // pred_region
        _
      $region20: #{global_dis_forward.5} parent=11 // pred_fallthru
        _
    $region12: #{global_dis_forward.5} parent=5 // pred_fallthru
      _
    %p140 = scmp.lt.s32.totalorder %s9, 2
    // Predicated region
    $region21: #{global_dis_forward.5} parent=5 // pred_check
      %p141 = pneg %p140
    $region22: #{global_dis_forward.5} parent=5 // pred_check_branch
      %143 = sbr.rel (%p141) target = $region24
    $region23: #{global_dis_forward.5} parent=5 // pred_region
      // Predicated region
      $region25: #{global_dis_forward.5} parent=23 // pred_check
        %p144 = pneg %p85
      $region26: #{global_dis_forward.5} parent=23 // pred_check_branch
        %146 = sbr.rel (%p144) target = $region28
      $region27: #{global_dis_forward.5} parent=23 // pred_region
        %s147 = smul.u32 32, %s17
        %p148 = scmp.lt.s32.totalorder %s16, 1
        %s149 = scalar_select %p148, %s16, 1
        %p150 = scmp.lt.s32.totalorder %s147, 31
        %s151 = scalar_select %p150, %s147, 31
        %s152 = smul.addr %s149, 416
        %s153 = sadd.s32 %s151, %s152
        %s154 = smul.addr %s153, 4
        %s155 = scalar_lea.vmem %s2, %s154
        %s156 = smul.u32 32, %s17
      $region28: #{global_dis_forward.5} parent=23 // pred_fallthru
        _
    $region24: #{global_dis_forward.5} parent=5 // pred_fallthru
      _
    %p157 = scmp.le.s32.totalorder 1, %s9
    %p158 = scmp.lt.s32.totalorder %s9, 3
    %p159 = pnand %p157, %p158
    %p160 = pneg %p159
    // Predicated region
    $region29: #{global_dis_forward.5} parent=5 // pred_check
      _
    $region30: #{global_dis_forward.5} parent=5 // pred_check_branch
      %162 = sbr.rel (%p159) target = $region32
    $region31: #{global_dis_forward.5} parent=5 // pred_region
      %s163 = ssub.s32 %s9, 1
      %p164 = pneg %p42
      %p165 = pneg %p39
      %p166 = pneg %p63
      %p167 = pneg %p60
      %s168 = smul.u32 32, %s19
      %p169 = scmp.lt.s32.totalorder %s18, 1
      %s170 = scalar_select %p169, %s18, 1
      %p171 = scmp.lt.s32.totalorder %s168, 31
      %s172 = scalar_select %p171, %s168, 31
      %s173 = smul.addr %s170, 416
      %s174 = sadd.s32 %s172, %s173
      %s175 = smul.addr %s174, 4
      %s176 = scalar_lea.vmem %s2, %s175
      %p177 = pneg %p91
      %p178 = pneg %p88
      %p179 = pneg %p119
      %p180 = pneg %p116
      %s181 = smul.u32 32, %s19
      %p182 = scmp.lt.s32.totalorder %s18, 1
      %s183 = scalar_select %p182, %s18, 1
      %p184 = scmp.lt.s32.totalorder %s181, 31
      %s185 = scalar_select %p184, %s181, 31
      %s186 = smul.addr %s183, 32
      %s187 = sadd.s32 %s185, %s186
      %s188 = smul.addr %s187, 4
      %s189 = scalar_lea.vmem %s3, %s188
      %s190 = smul.u32 32, %s19
      %p191 = scmp.lt.s32.totalorder %s18, 1
      %s192 = scalar_select %p191, %s18, 1
      %p193 = scmp.lt.s32.totalorder %s190, 31
      %s194 = scalar_select %p193, %s190, 31
      %s195 = smul.addr %s192, 416
      %s196 = sadd.s32 %s194, %s195
      %s197 = smul.addr %s196, 4
      %s198 = scalar_lea.vmem %s2, %s197
      %s199 = smul.u32 32, %s19
      %s200 = smul.u32 32, %s19
      %p201 = scmp.lt.s32.totalorder %s18, 1
      %s202 = scalar_select %p201, %s18, 1
      %p203 = scmp.lt.s32.totalorder %s200, 31
      %s204 = scalar_select %p203, %s200, 31
      %s205 = smul.addr %s202, 32
      %s206 = sadd.s32 %s204, %s205
      %s207 = smul.addr %s206, 4
      %s208 = scalar_lea.vmem %s3, %s207
      %s209 = smul.u32 32, %s19
      %v211 = vld [vmem:[%s0] sm:$0xf]
      %v212 = vld [vmem:[%s198] sm:$0xff]
      %v213 = vld [vmem:[%s198 + $0x8] sm:$0xff]
      %v214 = vld [vmem:[%s198 + $0x10] sm:$0xff]
      %v215 = vld [vmem:[%s198 + $0x18] sm:$0xff]
      %v216 = vld [vmem:[%s198 + $0x20] sm:$0xff]
      %v217 = vld [vmem:[%s198 + $0x28] sm:$0xff]
      %v218 = vld [vmem:[%s198 + $0x30] sm:$0xff]
      %v219 = vld [vmem:[%s198 + $0x38] sm:$0xff]
      %v220 = vld [vmem:[%s198 + $0x40] sm:$0xff]
      %v221 = vld [vmem:[%s198 + $0x48] sm:$0xff]
      %v222 = vld [vmem:[%s198 + $0x50] sm:$0xff]
      %v223 = vld [vmem:[%s198 + $0x58] sm:$0xff]
      %v224 = vld [vmem:[%s198 + $0x60] sm:$0xff]
      %v225 = vld [vmem:[%s198 + $0x68] sm:$0xff]
      %v226 = vld [vmem:[%s198 + $0x70] sm:$0xff]
      %v227 = vld [vmem:[%s198 + $0x78] sm:$0xff]
      %v228 = vld [vmem:[%s198 + $0x80] sm:$0xff]
      %v229 = vld [vmem:[%s198 + $0x88] sm:$0xff]
      %v230 = vld [vmem:[%s198 + $0x90] sm:$0xff]
      %v231 = vld [vmem:[%s198 + $0x98] sm:$0xff]
      %v232 = vld [vmem:[%s198 + $0xa0] sm:$0xff]
      %v233 = vld [vmem:[%s198 + $0xa8] sm:$0xff]
      %v234 = vld [vmem:[%s198 + $0xb0] sm:$0xff]
      %v235 = vld [vmem:[%s198 + $0xb8] sm:$0xff]
      %v236 = vld [vmem:[%s198 + $0xc0] sm:$0xff]
      %v237 = vld [vmem:[%s198 + $0xc8] sm:$0xff]
      %v238 = vld [vmem:[%s198 + $0xd0] sm:$0xff]
      %v239 = vld [vmem:[%s198 + $0xd8] sm:$0xff]
      %v240 = vld [vmem:[%s198 + $0xe0] sm:$0xff]
      %v241 = vld [vmem:[%s198 + $0xe8] sm:$0xff]
      %v242 = vld [vmem:[%s198 + $0xf0] sm:$0xff]
      %v243 = vld [vmem:[%s198 + $0xf8] sm:$0xff]
      %v244 = vld [vmem:[%s198 + $0x100] sm:$0xff]
      %v245 = vld [vmem:[%s198 + $0x108] sm:$0xff]
      %v246 = vld [vmem:[%s198 + $0x110] sm:$0xff]
      %v247 = vld [vmem:[%s198 + $0x118] sm:$0xff]
      %v248 = vld [vmem:[%s198 + $0x120] sm:$0xff]
      %v249 = vld [vmem:[%s198 + $0x128] sm:$0xff]
      %v250 = vld [vmem:[%s198 + $0x130] sm:$0xff]
      %v251 = vld [vmem:[%s198 + $0x138] sm:$0xff]
      %v252 = vld [vmem:[%s198 + $0x140] sm:$0xff]
      %v253 = vld [vmem:[%s198 + $0x148] sm:$0xff]
      %v254 = vld [vmem:[%s198 + $0x150] sm:$0xff]
      %v255 = vld [vmem:[%s198 + $0x158] sm:$0xff]
      %v256 = vld [vmem:[%s198 + $0x160] sm:$0xff]
      %v257 = vld [vmem:[%s198 + $0x168] sm:$0xff]
      %v258 = vld [vmem:[%s198 + $0x170] sm:$0xff]
      %v259 = vld [vmem:[%s198 + $0x178] sm:$0xff]
      %v260 = vld [vmem:[%s198 + $0x180] sm:$0xff]
      %v261 = vld [vmem:[%s198 + $0x188] sm:$0xff]
      %v262 = vld [vmem:[%s198 + $0x190] sm:$0xff]
      %v263 = vld [vmem:[%s198 + $0x198] sm:$0xff]
      %v264 = vld [vmem:[%s198 + $0x1a0] sm:$0xff]
      %v265 = vld [vmem:[%s198 + $0x1a8] sm:$0xff]
      %v266 = vld [vmem:[%s198 + $0x1b0] sm:$0xff]
      %v267 = vld [vmem:[%s198 + $0x1b8] sm:$0xff]
      %v268 = vld [vmem:[%s198 + $0x1c0] sm:$0xff]
      %v269 = vld [vmem:[%s198 + $0x1c8] sm:$0xff]
      %v270 = vld [vmem:[%s198 + $0x1d0] sm:$0xff]
      %v271 = vld [vmem:[%s198 + $0x1d8] sm:$0xff]
      %v272 = vld [vmem:[%s198 + $0x1e0] sm:$0xff]
      %v273 = vld [vmem:[%s198 + $0x1e8] sm:$0xff]
      %v274 = vld [vmem:[%s198 + $0x1f0] sm:$0xff]
      %v275 = vld [vmem:[%s198 + $0x1f8] sm:$0xff]
      %v276 = vld [vmem:[%s198 + $0x200] sm:$0xff]
      %v277 = vld [vmem:[%s198 + $0x208] sm:$0xff]
      %v278 = vld [vmem:[%s198 + $0x210] sm:$0xff]
      %v279 = vld [vmem:[%s198 + $0x218] sm:$0xff]
      %v280 = vld [vmem:[%s198 + $0x220] sm:$0xff]
      %v281 = vld [vmem:[%s198 + $0x228] sm:$0xff]
      %v282 = vld [vmem:[%s198 + $0x230] sm:$0xff]
      %v283 = vld [vmem:[%s198 + $0x238] sm:$0xff]
      %v284 = vld [vmem:[%s198 + $0x240] sm:$0xff]
      %v285 = vld [vmem:[%s198 + $0x248] sm:$0xff]
      %v286 = vld [vmem:[%s198 + $0x250] sm:$0xff]
      %v287 = vld [vmem:[%s198 + $0x258] sm:$0xff]
      %v288 = vld [vmem:[%s198 + $0x260] sm:$0xff]
      %v289 = vld [vmem:[%s198 + $0x268] sm:$0xff]
      %v290 = vld [vmem:[%s198 + $0x270] sm:$0xff]
      %v291 = vld [vmem:[%s198 + $0x278] sm:$0xff]
      %v292 = vld [vmem:[%s198 + $0x280] sm:$0xff]
      %v293 = vld [vmem:[%s198 + $0x288] sm:$0xff]
      %v294 = vld [vmem:[%s198 + $0x290] sm:$0xff]
      %v295 = vld [vmem:[%s198 + $0x298] sm:$0xff]
      %v296 = vld [vmem:[%s198 + $0x2a0] sm:$0xff]
      %v297 = vld [vmem:[%s198 + $0x2a8] sm:$0xff]
      %v298 = vld [vmem:[%s198 + $0x2b0] sm:$0xff]
      %v299 = vld [vmem:[%s198 + $0x2b8] sm:$0xff]
      %v300 = vld [vmem:[%s198 + $0x2c0] sm:$0xff]
      %v301 = vld [vmem:[%s198 + $0x2c8] sm:$0xff]
      %v302 = vld [vmem:[%s198 + $0x2d0] sm:$0xff]
      %v303 = vld [vmem:[%s198 + $0x2d8] sm:$0xff]
      %v304 = vld [vmem:[%s198 + $0x2e0] sm:$0xff]
      %v305 = vld [vmem:[%s198 + $0x2e8] sm:$0xff]
      %v306 = vld [vmem:[%s198 + $0x2f0] sm:$0xff]
      %v307 = vld [vmem:[%s198 + $0x2f8] sm:$0xff]
      %v308 = vld [vmem:[%s198 + $0x300] sm:$0xff]
      %v309 = vld [vmem:[%s198 + $0x308] sm:$0xff]
      %v310 = vld [vmem:[%s198 + $0x310] sm:$0xff]
      %v311 = vld [vmem:[%s198 + $0x318] sm:$0xff]
      %v312 = vld [vmem:[%s198 + $0x320] sm:$0xff]
      %v313 = vld [vmem:[%s198 + $0x328] sm:$0xff]
      %v314 = vld [vmem:[%s198 + $0x330] sm:$0xff]
      %v315 = vld [vmem:[%s198 + $0x338] sm:$0xff]
      %v316 = vld [vmem:[%s198 + $0x340] sm:$0xff]
      %v317 = vld [vmem:[%s198 + $0x348] sm:$0xff]
      %v318 = vld [vmem:[%s198 + $0x350] sm:$0xff]
      %v319 = vld [vmem:[%s198 + $0x358] sm:$0xff]
      %v320 = vld [vmem:[%s198 + $0x360] sm:$0xff]
      %v321 = vld [vmem:[%s198 + $0x368] sm:$0xff]
      %v322 = vld [vmem:[%s198 + $0x370] sm:$0xff]
      %v323 = vld [vmem:[%s198 + $0x378] sm:$0xff]
      %v324 = vld [vmem:[%s198 + $0x380] sm:$0xff]
      %v325 = vld [vmem:[%s198 + $0x388] sm:$0xff]
      %v326 = vld [vmem:[%s198 + $0x390] sm:$0xff]
      %v327 = vld [vmem:[%s198 + $0x398] sm:$0xff]
      %v328 = vld [vmem:[%s198 + $0x3a0] sm:$0xff]
      %v329 = vld [vmem:[%s198 + $0x3a8] sm:$0xff]
      %v330 = vld [vmem:[%s198 + $0x3b0] sm:$0xff]
      %v331 = vld [vmem:[%s198 + $0x3b8] sm:$0xff]
      %v332 = vld [vmem:[%s198 + $0x3c0] sm:$0xff]
      %v333 = vld [vmem:[%s198 + $0x3c8] sm:$0xff]
      %v334 = vld [vmem:[%s198 + $0x3d0] sm:$0xff]
      %v335 = vld [vmem:[%s198 + $0x3d8] sm:$0xff]
      %v336 = vld [vmem:[%s198 + $0x3e0] sm:$0xff]
      %v337 = vld [vmem:[%s198 + $0x3e8] sm:$0xff]
      %v338 = vld [vmem:[%s198 + $0x3f0] sm:$0xff]
      %v339 = vld [vmem:[%s198 + $0x3f8] sm:$0xff]
      %v340 = vld [vmem:[%s198 + $0x400] sm:$0xff]
      %v341 = vld [vmem:[%s198 + $0x408] sm:$0xff]
      %v342 = vld [vmem:[%s198 + $0x410] sm:$0xff]
      %v343 = vld [vmem:[%s198 + $0x418] sm:$0xff]
      %v344 = vld [vmem:[%s198 + $0x420] sm:$0xff]
      %v345 = vld [vmem:[%s198 + $0x428] sm:$0xff]
      %v346 = vld [vmem:[%s198 + $0x430] sm:$0xff]
      %v347 = vld [vmem:[%s198 + $0x438] sm:$0xff]
      %v348 = vld [vmem:[%s198 + $0x440] sm:$0xff]
      %v349 = vld [vmem:[%s198 + $0x448] sm:$0xff]
      %v350 = vld [vmem:[%s198 + $0x450] sm:$0xff]
      %v351 = vld [vmem:[%s198 + $0x458] sm:$0xff]
      %v352 = vld [vmem:[%s198 + $0x460] sm:$0xff]
      %v353 = vld [vmem:[%s198 + $0x468] sm:$0xff]
      %v354 = vld [vmem:[%s198 + $0x470] sm:$0xff]
      %v355 = vld [vmem:[%s198 + $0x478] sm:$0xff]
      %v356 = vld [vmem:[%s198 + $0x480] sm:$0xff]
      %v357 = vld [vmem:[%s198 + $0x488] sm:$0xff]
      %v358 = vld [vmem:[%s198 + $0x490] sm:$0xff]
      %v359 = vld [vmem:[%s198 + $0x498] sm:$0xff]
      %v360 = vld [vmem:[%s198 + $0x4a0] sm:$0xff]
      %v361 = vld [vmem:[%s198 + $0x4a8] sm:$0xff]
      %v362 = vld [vmem:[%s198 + $0x4b0] sm:$0xff]
      %v363 = vld [vmem:[%s198 + $0x4b8] sm:$0xff]
      %v364 = vld [vmem:[%s198 + $0x4c0] sm:$0xff]
      %v365 = vld [vmem:[%s198 + $0x4c8] sm:$0xff]
      %v366 = vld [vmem:[%s198 + $0x4d0] sm:$0xff]
      %v367 = vld [vmem:[%s198 + $0x4d8] sm:$0xff]
      %v368 = vld [vmem:[%s198 + $0x4e0] sm:$0xff]
      %v369 = vld [vmem:[%s198 + $0x4e8] sm:$0xff]
      %v370 = vld [vmem:[%s198 + $0x4f0] sm:$0xff]
      %v371 = vld [vmem:[%s198 + $0x4f8] sm:$0xff]
      %v372 = vld [vmem:[%s198 + $0x500] sm:$0xff]
      %v373 = vld [vmem:[%s198 + $0x508] sm:$0xff]
      %v374 = vld [vmem:[%s198 + $0x510] sm:$0xff]
      %v375 = vld [vmem:[%s198 + $0x518] sm:$0xff]
      %v376 = vld [vmem:[%s198 + $0x520] sm:$0xff]
      %v377 = vld [vmem:[%s198 + $0x528] sm:$0xff]
      %v378 = vld [vmem:[%s198 + $0x530] sm:$0xff]
      %v379 = vld [vmem:[%s198 + $0x538] sm:$0xff]
      %v380 = vld [vmem:[%s198 + $0x540] sm:$0xff]
      %v381 = vld [vmem:[%s198 + $0x548] sm:$0xff]
      %v382 = vld [vmem:[%s198 + $0x550] sm:$0xff]
      %v383 = vld [vmem:[%s198 + $0x558] sm:$0xff]
      %v384 = vld [vmem:[%s198 + $0x560] sm:$0xff]
      %v385 = vld [vmem:[%s198 + $0x568] sm:$0xff]
      %v386 = vld [vmem:[%s198 + $0x570] sm:$0xff]
      %v387 = vld [vmem:[%s198 + $0x578] sm:$0xff]
      %v388 = vld [vmem:[%s198 + $0x580] sm:$0xff]
      %v389 = vld [vmem:[%s198 + $0x588] sm:$0xff]
      %v390 = vld [vmem:[%s198 + $0x590] sm:$0xff]
      %v391 = vld [vmem:[%s198 + $0x598] sm:$0xff]
      %v392 = vld [vmem:[%s198 + $0x5a0] sm:$0xff]
      %v393 = vld [vmem:[%s198 + $0x5a8] sm:$0xff]
      %v394 = vld [vmem:[%s198 + $0x5b0] sm:$0xff]
      %v395 = vld [vmem:[%s198 + $0x5b8] sm:$0xff]
      %v396 = vld [vmem:[%s198 + $0x5c0] sm:$0xff]
      %v397 = vld [vmem:[%s198 + $0x5c8] sm:$0xff]
      %v398 = vld [vmem:[%s198 + $0x5d0] sm:$0xff]
      %v399 = vld [vmem:[%s198 + $0x5d8] sm:$0xff]
      %v400 = vld [vmem:[%s198 + $0x5e0] sm:$0xff]
      %v401 = vld [vmem:[%s198 + $0x5e8] sm:$0xff]
      %v402 = vld [vmem:[%s198 + $0x5f0] sm:$0xff]
      %v403 = vld [vmem:[%s198 + $0x5f8] sm:$0xff]
      %v404 = vld [vmem:[%s198 + $0x600] sm:$0x33]
      %v405 = vld [vmem:[%s198 + $0x608] sm:$0x33]
      %v406 = vld [vmem:[%s198 + $0x610] sm:$0x33]
      %v407 = vld [vmem:[%s198 + $0x618] sm:$0x33]
      %v408 = vld [vmem:[%s198 + $0x620] sm:$0x33]
      %v409 = vld [vmem:[%s198 + $0x628] sm:$0x33]
      %v410 = vld [vmem:[%s198 + $0x630] sm:$0x33]
      %v411 = vld [vmem:[%s198 + $0x638] sm:$0x33]
      %v412 = vld [vmem:[%s198 + $0x640] sm:$0x33]
      %v413 = vld [vmem:[%s198 + $0x648] sm:$0x33]
      %v414 = vld [vmem:[%s198 + $0x650] sm:$0x33]
      %v415 = vld [vmem:[%s198 + $0x658] sm:$0x33]
      %v416 = vld [vmem:[%s198 + $0x660] sm:$0x33]
      %v417 = vld [vmem:[%s198 + $0x668] sm:$0x33]
      %v418 = vld [vmem:[%s198 + $0x670] sm:$0x33]
      %v419 = vld [vmem:[%s198 + $0x678] sm:$0x33]
      %v420 = vld [vmem:[%s1] sm:$0xff]
      %422 = vset.pattern.permute.xlu0 0
      %423 = vperm.xlu0 %422, %v420
      %v424 = vpop.permute.xlu0 %423
      %v634 = vunpack.c.l.b16 %v212
      %v635 = vunpack.c.h.b16 %v212
      %v636 = vunpack.c.l.b16 %v213
      %v637 = vunpack.c.h.b16 %v213
      %v638 = vunpack.c.l.b16 %v214
      %v639 = vunpack.c.h.b16 %v214
      %v640 = vunpack.c.l.b16 %v215
      %v641 = vunpack.c.h.b16 %v215
      %v642 = vunpack.c.l.b16 %v216
      %v643 = vunpack.c.h.b16 %v216
      %v644 = vunpack.c.l.b16 %v217
      %v645 = vunpack.c.h.b16 %v217
      %v646 = vunpack.c.l.b16 %v218
      %v647 = vunpack.c.h.b16 %v218
      %v648 = vunpack.c.l.b16 %v219
      %v649 = vunpack.c.h.b16 %v219
      %v650 = vunpack.c.l.b16 %v220
      %v651 = vunpack.c.h.b16 %v220
      %v652 = vunpack.c.l.b16 %v221
      %v653 = vunpack.c.h.b16 %v221
      %v654 = vunpack.c.l.b16 %v222
      %v655 = vunpack.c.h.b16 %v222
      %v656 = vunpack.c.l.b16 %v223
      %v657 = vunpack.c.h.b16 %v223
      %v658 = vunpack.c.l.b16 %v224
      %v659 = vunpack.c.h.b16 %v224
      %v660 = vunpack.c.l.b16 %v225
      %v661 = vunpack.c.h.b16 %v225
      %v662 = vunpack.c.l.b16 %v226
      %v663 = vunpack.c.h.b16 %v226
      %v664 = vunpack.c.l.b16 %v227
      %v665 = vunpack.c.h.b16 %v227
      %v666 = vunpack.c.l.b16 %v228
      %v667 = vunpack.c.h.b16 %v228
      %v668 = vunpack.c.l.b16 %v229
      %v669 = vunpack.c.h.b16 %v229
      %v670 = vunpack.c.l.b16 %v230
      %v671 = vunpack.c.h.b16 %v230
      %v672 = vunpack.c.l.b16 %v231
      %v673 = vunpack.c.h.b16 %v231
      %v674 = vunpack.c.l.b16 %v232
      %v675 = vunpack.c.h.b16 %v232
      %v676 = vunpack.c.l.b16 %v233
      %v677 = vunpack.c.h.b16 %v233
      %v678 = vunpack.c.l.b16 %v234
      %v679 = vunpack.c.h.b16 %v234
      %v680 = vunpack.c.l.b16 %v235
      %v681 = vunpack.c.h.b16 %v235
      %v682 = vunpack.c.l.b16 %v236
      %v683 = vunpack.c.h.b16 %v236
      %v684 = vunpack.c.l.b16 %v237
      %v685 = vunpack.c.h.b16 %v237
      %v686 = vunpack.c.l.b16 %v238
      %v687 = vunpack.c.h.b16 %v238
      %v688 = vunpack.c.l.b16 %v239
      %v689 = vunpack.c.h.b16 %v239
      %v690 = vunpack.c.l.b16 %v240
      %v691 = vunpack.c.h.b16 %v240
      %v692 = vunpack.c.l.b16 %v241
      %v693 = vunpack.c.h.b16 %v241
      %v694 = vunpack.c.l.b16 %v242
      %v695 = vunpack.c.h.b16 %v242
      %v696 = vunpack.c.l.b16 %v243
      %v697 = vunpack.c.h.b16 %v243
      %v698 = vunpack.c.l.b16 %v244
      %v699 = vunpack.c.h.b16 %v244
      %v700 = vunpack.c.l.b16 %v245
      %v701 = vunpack.c.h.b16 %v245
      %v702 = vunpack.c.l.b16 %v246
      %v703 = vunpack.c.h.b16 %v246
      %v704 = vunpack.c.l.b16 %v247
      %v705 = vunpack.c.h.b16 %v247
      %v706 = vunpack.c.l.b16 %v248
      %v707 = vunpack.c.h.b16 %v248
      %v708 = vunpack.c.l.b16 %v249
      %v709 = vunpack.c.h.b16 %v249
      %v710 = vunpack.c.l.b16 %v250
      %v711 = vunpack.c.h.b16 %v250
      %v712 = vunpack.c.l.b16 %v251
      %v713 = vunpack.c.h.b16 %v251
      %v714 = vunpack.c.l.b16 %v252
      %v715 = vunpack.c.h.b16 %v252
      %v716 = vunpack.c.l.b16 %v253
      %v717 = vunpack.c.h.b16 %v253
      %v718 = vunpack.c.l.b16 %v254
      %v719 = vunpack.c.h.b16 %v254
      %v720 = vunpack.c.l.b16 %v255
      %v721 = vunpack.c.h.b16 %v255
      %v722 = vunpack.c.l.b16 %v256
      %v723 = vunpack.c.h.b16 %v256
      %v724 = vunpack.c.l.b16 %v257
      %v725 = vunpack.c.h.b16 %v257
      %v726 = vunpack.c.l.b16 %v258
      %v727 = vunpack.c.h.b16 %v258
      %v728 = vunpack.c.l.b16 %v259
      %v729 = vunpack.c.h.b16 %v259
      %v730 = vunpack.c.l.b16 %v260
      %v731 = vunpack.c.h.b16 %v260
      %v732 = vunpack.c.l.b16 %v261
      %v733 = vunpack.c.h.b16 %v261
      %v734 = vunpack.c.l.b16 %v262
      %v735 = vunpack.c.h.b16 %v262
      %v736 = vunpack.c.l.b16 %v263
      %v737 = vunpack.c.h.b16 %v263
      %v738 = vunpack.c.l.b16 %v264
      %v739 = vunpack.c.h.b16 %v264
      %v740 = vunpack.c.l.b16 %v265
      %v741 = vunpack.c.h.b16 %v265
      %v742 = vunpack.c.l.b16 %v266
      %v743 = vunpack.c.h.b16 %v266
      %v744 = vunpack.c.l.b16 %v267
      %v745 = vunpack.c.h.b16 %v267
      %v746 = vunpack.c.l.b16 %v268
      %v747 = vunpack.c.h.b16 %v268
      %v748 = vunpack.c.l.b16 %v269
      %v749 = vunpack.c.h.b16 %v269
      %v750 = vunpack.c.l.b16 %v270
      %v751 = vunpack.c.h.b16 %v270
      %v752 = vunpack.c.l.b16 %v271
      %v753 = vunpack.c.h.b16 %v271
      %v754 = vunpack.c.l.b16 %v272
      %v755 = vunpack.c.h.b16 %v272
      %v756 = vunpack.c.l.b16 %v273
      %v757 = vunpack.c.h.b16 %v273
      %v758 = vunpack.c.l.b16 %v274
      %v759 = vunpack.c.h.b16 %v274
      %v760 = vunpack.c.l.b16 %v275
      %v761 = vunpack.c.h.b16 %v275
      %v762 = vunpack.c.l.b16 %v276
      %v763 = vunpack.c.h.b16 %v276
      %v764 = vunpack.c.l.b16 %v277
      %v765 = vunpack.c.h.b16 %v277
      %v766 = vunpack.c.l.b16 %v278
      %v767 = vunpack.c.h.b16 %v278
      %v768 = vunpack.c.l.b16 %v279
      %v769 = vunpack.c.h.b16 %v279
      %v770 = vunpack.c.l.b16 %v280
      %v771 = vunpack.c.h.b16 %v280
      %v772 = vunpack.c.l.b16 %v281
      %v773 = vunpack.c.h.b16 %v281
      %v774 = vunpack.c.l.b16 %v282
      %v775 = vunpack.c.h.b16 %v282
      %v776 = vunpack.c.l.b16 %v283
      %v777 = vunpack.c.h.b16 %v283
      %v778 = vunpack.c.l.b16 %v284
      %v779 = vunpack.c.h.b16 %v284
      %v780 = vunpack.c.l.b16 %v285
      %v781 = vunpack.c.h.b16 %v285
      %v782 = vunpack.c.l.b16 %v286
      %v783 = vunpack.c.h.b16 %v286
      %v784 = vunpack.c.l.b16 %v287
      %v785 = vunpack.c.h.b16 %v287
      %v786 = vunpack.c.l.b16 %v288
      %v787 = vunpack.c.h.b16 %v288
      %v788 = vunpack.c.l.b16 %v289
      %v789 = vunpack.c.h.b16 %v289
      %v790 = vunpack.c.l.b16 %v290
      %v791 = vunpack.c.h.b16 %v290
      %v792 = vunpack.c.l.b16 %v291
      %v793 = vunpack.c.h.b16 %v291
      %v794 = vunpack.c.l.b16 %v292
      %v795 = vunpack.c.h.b16 %v292
      %v796 = vunpack.c.l.b16 %v293
      %v797 = vunpack.c.h.b16 %v293
      %v798 = vunpack.c.l.b16 %v294
      %v799 = vunpack.c.h.b16 %v294
      %v800 = vunpack.c.l.b16 %v295
      %v801 = vunpack.c.h.b16 %v295
      %v802 = vunpack.c.l.b16 %v296
      %v803 = vunpack.c.h.b16 %v296
      %v804 = vunpack.c.l.b16 %v297
      %v805 = vunpack.c.h.b16 %v297
      %v806 = vunpack.c.l.b16 %v298
      %v807 = vunpack.c.h.b16 %v298
      %v808 = vunpack.c.l.b16 %v299
      %v809 = vunpack.c.h.b16 %v299
      %v810 = vunpack.c.l.b16 %v300
      %v811 = vunpack.c.h.b16 %v300
      %v812 = vunpack.c.l.b16 %v301
      %v813 = vunpack.c.h.b16 %v301
      %v814 = vunpack.c.l.b16 %v302
      %v815 = vunpack.c.h.b16 %v302
      %v816 = vunpack.c.l.b16 %v303
      %v817 = vunpack.c.h.b16 %v303
      %v818 = vunpack.c.l.b16 %v304
      %v819 = vunpack.c.h.b16 %v304
      %v820 = vunpack.c.l.b16 %v305
      %v821 = vunpack.c.h.b16 %v305
      %v822 = vunpack.c.l.b16 %v306
      %v823 = vunpack.c.h.b16 %v306
      %v824 = vunpack.c.l.b16 %v307
      %v825 = vunpack.c.h.b16 %v307
      %v826 = vunpack.c.l.b16 %v308
      %v827 = vunpack.c.h.b16 %v308
      %v828 = vunpack.c.l.b16 %v309
      %v829 = vunpack.c.h.b16 %v309
      %v830 = vunpack.c.l.b16 %v310
      %v831 = vunpack.c.h.b16 %v310
      %v832 = vunpack.c.l.b16 %v311
      %v833 = vunpack.c.h.b16 %v311
      %v834 = vunpack.c.l.b16 %v312
      %v835 = vunpack.c.h.b16 %v312
      %v836 = vunpack.c.l.b16 %v313
      %v837 = vunpack.c.h.b16 %v313
      %v838 = vunpack.c.l.b16 %v314
      %v839 = vunpack.c.h.b16 %v314
      %v840 = vunpack.c.l.b16 %v315
      %v841 = vunpack.c.h.b16 %v315
      %v842 = vunpack.c.l.b16 %v316
      %v843 = vunpack.c.h.b16 %v316
      %v844 = vunpack.c.l.b16 %v317
      %v845 = vunpack.c.h.b16 %v317
      %v846 = vunpack.c.l.b16 %v318
      %v847 = vunpack.c.h.b16 %v318
      %v848 = vunpack.c.l.b16 %v319
      %v849 = vunpack.c.h.b16 %v319
      %v850 = vunpack.c.l.b16 %v320
      %v851 = vunpack.c.h.b16 %v320
      %v852 = vunpack.c.l.b16 %v321
      %v853 = vunpack.c.h.b16 %v321
      %v854 = vunpack.c.l.b16 %v322
      %v855 = vunpack.c.h.b16 %v322
      %v856 = vunpack.c.l.b16 %v323
      %v857 = vunpack.c.h.b16 %v323
      %v858 = vunpack.c.l.b16 %v324
      %v859 = vunpack.c.h.b16 %v324
      %v860 = vunpack.c.l.b16 %v325
      %v861 = vunpack.c.h.b16 %v325
      %v862 = vunpack.c.l.b16 %v326
      %v863 = vunpack.c.h.b16 %v326
      %v864 = vunpack.c.l.b16 %v327
      %v865 = vunpack.c.h.b16 %v327
      %v866 = vunpack.c.l.b16 %v328
      %v867 = vunpack.c.h.b16 %v328
      %v868 = vunpack.c.l.b16 %v329
      %v869 = vunpack.c.h.b16 %v329
      %v870 = vunpack.c.l.b16 %v330
      %v871 = vunpack.c.h.b16 %v330
      %v872 = vunpack.c.l.b16 %v331
      %v873 = vunpack.c.h.b16 %v331
      %v874 = vunpack.c.l.b16 %v332
      %v875 = vunpack.c.h.b16 %v332
      %v876 = vunpack.c.l.b16 %v333
      %v877 = vunpack.c.h.b16 %v333
      %v878 = vunpack.c.l.b16 %v334
      %v879 = vunpack.c.h.b16 %v334
      %v880 = vunpack.c.l.b16 %v335
      %v881 = vunpack.c.h.b16 %v335
      %v882 = vunpack.c.l.b16 %v336
      %v883 = vunpack.c.h.b16 %v336
      %v884 = vunpack.c.l.b16 %v337
      %v885 = vunpack.c.h.b16 %v337
      %v886 = vunpack.c.l.b16 %v338
      %v887 = vunpack.c.h.b16 %v338
      %v888 = vunpack.c.l.b16 %v339
      %v889 = vunpack.c.h.b16 %v339
      %v890 = vunpack.c.l.b16 %v340
      %v891 = vunpack.c.h.b16 %v340
      %v892 = vunpack.c.l.b16 %v341
      %v893 = vunpack.c.h.b16 %v341
      %v894 = vunpack.c.l.b16 %v342
      %v895 = vunpack.c.h.b16 %v342
      %v896 = vunpack.c.l.b16 %v343
      %v897 = vunpack.c.h.b16 %v343
      %v898 = vunpack.c.l.b16 %v344
      %v899 = vunpack.c.h.b16 %v344
      %v900 = vunpack.c.l.b16 %v345
      %v901 = vunpack.c.h.b16 %v345
      %v902 = vunpack.c.l.b16 %v346
      %v903 = vunpack.c.h.b16 %v346
      %v904 = vunpack.c.l.b16 %v347
      %v905 = vunpack.c.h.b16 %v347
      %v906 = vunpack.c.l.b16 %v348
      %v907 = vunpack.c.h.b16 %v348
      %v908 = vunpack.c.l.b16 %v349
      %v909 = vunpack.c.h.b16 %v349
      %v910 = vunpack.c.l.b16 %v350
      %v911 = vunpack.c.h.b16 %v350
      %v912 = vunpack.c.l.b16 %v351
      %v913 = vunpack.c.h.b16 %v351
      %v914 = vunpack.c.l.b16 %v352
      %v915 = vunpack.c.h.b16 %v352
      %v916 = vunpack.c.l.b16 %v353
      %v917 = vunpack.c.h.b16 %v353
      %v918 = vunpack.c.l.b16 %v354
      %v919 = vunpack.c.h.b16 %v354
      %v920 = vunpack.c.l.b16 %v355
      %v921 = vunpack.c.h.b16 %v355
      %v922 = vunpack.c.l.b16 %v356
      %v923 = vunpack.c.h.b16 %v356
      %v924 = vunpack.c.l.b16 %v357
      %v925 = vunpack.c.h.b16 %v357
      %v926 = vunpack.c.l.b16 %v358
      %v927 = vunpack.c.h.b16 %v358
      %v928 = vunpack.c.l.b16 %v359
      %v929 = vunpack.c.h.b16 %v359
      %v930 = vunpack.c.l.b16 %v360
      %v931 = vunpack.c.h.b16 %v360
      %v932 = vunpack.c.l.b16 %v361
      %v933 = vunpack.c.h.b16 %v361
      %v934 = vunpack.c.l.b16 %v362
      %v935 = vunpack.c.h.b16 %v362
      %v936 = vunpack.c.l.b16 %v363
      %v937 = vunpack.c.h.b16 %v363
      %v938 = vunpack.c.l.b16 %v364
      %v939 = vunpack.c.h.b16 %v364
      %v940 = vunpack.c.l.b16 %v365
      %v941 = vunpack.c.h.b16 %v365
      %v942 = vunpack.c.l.b16 %v366
      %v943 = vunpack.c.h.b16 %v366
      %v944 = vunpack.c.l.b16 %v367
      %v945 = vunpack.c.h.b16 %v367
      %v946 = vunpack.c.l.b16 %v368
      %v947 = vunpack.c.h.b16 %v368
      %v948 = vunpack.c.l.b16 %v369
      %v949 = vunpack.c.h.b16 %v369
      %v950 = vunpack.c.l.b16 %v370
      %v951 = vunpack.c.h.b16 %v370
      %v952 = vunpack.c.l.b16 %v371
      %v953 = vunpack.c.h.b16 %v371
      %v954 = vunpack.c.l.b16 %v372
      %v955 = vunpack.c.h.b16 %v372
      %v956 = vunpack.c.l.b16 %v373
      %v957 = vunpack.c.h.b16 %v373
      %v958 = vunpack.c.l.b16 %v374
      %v959 = vunpack.c.h.b16 %v374
      %v960 = vunpack.c.l.b16 %v375
      %v961 = vunpack.c.h.b16 %v375
      %v962 = vunpack.c.l.b16 %v376
      %v963 = vunpack.c.h.b16 %v376
      %v964 = vunpack.c.l.b16 %v377
      %v965 = vunpack.c.h.b16 %v377
      %v966 = vunpack.c.l.b16 %v378
      %v967 = vunpack.c.h.b16 %v378
      %v968 = vunpack.c.l.b16 %v379
      %v969 = vunpack.c.h.b16 %v379
      %v970 = vunpack.c.l.b16 %v380
      %v971 = vunpack.c.h.b16 %v380
      %v972 = vunpack.c.l.b16 %v381
      %v973 = vunpack.c.h.b16 %v381
      %v974 = vunpack.c.l.b16 %v382
      %v975 = vunpack.c.h.b16 %v382
      %v976 = vunpack.c.l.b16 %v383
      %v977 = vunpack.c.h.b16 %v383
      %v978 = vunpack.c.l.b16 %v384
      %v979 = vunpack.c.h.b16 %v384
      %v980 = vunpack.c.l.b16 %v385
      %v981 = vunpack.c.h.b16 %v385
      %v982 = vunpack.c.l.b16 %v386
      %v983 = vunpack.c.h.b16 %v386
      %v984 = vunpack.c.l.b16 %v387
      %v985 = vunpack.c.h.b16 %v387
      %v986 = vunpack.c.l.b16 %v388
      %v987 = vunpack.c.h.b16 %v388
      %v988 = vunpack.c.l.b16 %v389
      %v989 = vunpack.c.h.b16 %v389
      %v990 = vunpack.c.l.b16 %v390
      %v991 = vunpack.c.h.b16 %v390
      %v992 = vunpack.c.l.b16 %v391
      %v993 = vunpack.c.h.b16 %v391
      %v994 = vunpack.c.l.b16 %v392
      %v995 = vunpack.c.h.b16 %v392
      %v996 = vunpack.c.l.b16 %v393
      %v997 = vunpack.c.h.b16 %v393
      %v998 = vunpack.c.l.b16 %v394
      %v999 = vunpack.c.h.b16 %v394
      %v1000 = vunpack.c.l.b16 %v395
      %v1001 = vunpack.c.h.b16 %v395
      %v1002 = vunpack.c.l.b16 %v396
      %v1003 = vunpack.c.h.b16 %v396
      %v1004 = vunpack.c.l.b16 %v397
      %v1005 = vunpack.c.h.b16 %v397
      %v1006 = vunpack.c.l.b16 %v398
      %v1007 = vunpack.c.h.b16 %v398
      %v1008 = vunpack.c.l.b16 %v399
      %v1009 = vunpack.c.h.b16 %v399
      %v1010 = vunpack.c.l.b16 %v400
      %v1011 = vunpack.c.h.b16 %v400
      %v1012 = vunpack.c.l.b16 %v401
      %v1013 = vunpack.c.h.b16 %v401
      %v1014 = vunpack.c.l.b16 %v402
      %v1015 = vunpack.c.h.b16 %v402
      %v1016 = vunpack.c.l.b16 %v403
      %v1017 = vunpack.c.h.b16 %v403
      %v1018 = vunpack.c.l.b16 %v404
      %v1019 = vunpack.c.h.b16 %v404
      %v1020 = vunpack.c.l.b16 %v405
      %v1021 = vunpack.c.h.b16 %v405
      %v1022 = vunpack.c.l.b16 %v406
      %v1023 = vunpack.c.h.b16 %v406
      %v1024 = vunpack.c.l.b16 %v407
      %v1025 = vunpack.c.h.b16 %v407
      %v1026 = vunpack.c.l.b16 %v408
      %v1027 = vunpack.c.h.b16 %v408
      %v1028 = vunpack.c.l.b16 %v409
      %v1029 = vunpack.c.h.b16 %v409
      %v1030 = vunpack.c.l.b16 %v410
      %v1031 = vunpack.c.h.b16 %v410
      %v1032 = vunpack.c.l.b16 %v411
      %v1033 = vunpack.c.h.b16 %v411
      %v1034 = vunpack.c.l.b16 %v412
      %v1035 = vunpack.c.h.b16 %v412
      %v1036 = vunpack.c.l.b16 %v413
      %v1037 = vunpack.c.h.b16 %v413
      %v1038 = vunpack.c.l.b16 %v414
      %v1039 = vunpack.c.h.b16 %v414
      %v1040 = vunpack.c.l.b16 %v415
      %v1041 = vunpack.c.h.b16 %v415
      %v1042 = vunpack.c.l.b16 %v416
      %v1043 = vunpack.c.h.b16 %v416
      %v1044 = vunpack.c.l.b16 %v417
      %v1045 = vunpack.c.h.b16 %v417
      %v1046 = vunpack.c.l.b16 %v418
      %v1047 = vunpack.c.h.b16 %v418
      %v1048 = vunpack.c.l.b16 %v419
      %v1049 = vunpack.c.h.b16 %v419
      %v1050 = vpack.c.b16 %v666, %v634
      %v1051 = vpack.c.b16 %v667, %v635
      %v1052 = vpack.c.b16 %v668, %v636
      %v1053 = vpack.c.b16 %v669, %v637
      %v1054 = vpack.c.b16 %v670, %v638
      %v1055 = vpack.c.b16 %v671, %v639
      %v1056 = vpack.c.b16 %v672, %v640
      %v1057 = vpack.c.b16 %v673, %v641
      %v1058 = vpack.c.b16 %v674, %v642
      %v1059 = vpack.c.b16 %v675, %v643
      %v1060 = vpack.c.b16 %v676, %v644
      %v1061 = vpack.c.b16 %v677, %v645
      %v1062 = vpack.c.b16 %v678, %v646
      %v1063 = vpack.c.b16 %v679, %v647
      %v1064 = vpack.c.b16 %v680, %v648
      %v1065 = vpack.c.b16 %v681, %v649
      %v1066 = vpack.c.b16 %v682, %v650
      %v1067 = vpack.c.b16 %v683, %v651
      %v1068 = vpack.c.b16 %v684, %v652
      %v1069 = vpack.c.b16 %v685, %v653
      %v1070 = vpack.c.b16 %v686, %v654
      %v1071 = vpack.c.b16 %v687, %v655
      %v1072 = vpack.c.b16 %v688, %v656
      %v1073 = vpack.c.b16 %v689, %v657
      %v1074 = vpack.c.b16 %v690, %v658
      %v1075 = vpack.c.b16 %v691, %v659
      %v1076 = vpack.c.b16 %v692, %v660
      %v1077 = vpack.c.b16 %v693, %v661
      %v1078 = vpack.c.b16 %v694, %v662
      %v1079 = vpack.c.b16 %v695, %v663
      %v1080 = vpack.c.b16 %v696, %v664
      %v1081 = vpack.c.b16 %v697, %v665
      %v1082 = vpack.c.b16 %v730, %v698
      %v1083 = vpack.c.b16 %v731, %v699
      %v1084 = vpack.c.b16 %v732, %v700
      %v1085 = vpack.c.b16 %v733, %v701
      %v1086 = vpack.c.b16 %v734, %v702
      %v1087 = vpack.c.b16 %v735, %v703
      %v1088 = vpack.c.b16 %v736, %v704
      %v1089 = vpack.c.b16 %v737, %v705
      %v1090 = vpack.c.b16 %v738, %v706
      %v1091 = vpack.c.b16 %v739, %v707
      %v1092 = vpack.c.b16 %v740, %v708
      %v1093 = vpack.c.b16 %v741, %v709
      %v1094 = vpack.c.b16 %v742, %v710
      %v1095 = vpack.c.b16 %v743, %v711
      %v1096 = vpack.c.b16 %v744, %v712
      %v1097 = vpack.c.b16 %v745, %v713
      %v1098 = vpack.c.b16 %v746, %v714
      %v1099 = vpack.c.b16 %v747, %v715
      %v1100 = vpack.c.b16 %v748, %v716
      %v1101 = vpack.c.b16 %v749, %v717
      %v1102 = vpack.c.b16 %v750, %v718
      %v1103 = vpack.c.b16 %v751, %v719
      %v1104 = vpack.c.b16 %v752, %v720
      %v1105 = vpack.c.b16 %v753, %v721
      %v1106 = vpack.c.b16 %v754, %v722
      %v1107 = vpack.c.b16 %v755, %v723
      %v1108 = vpack.c.b16 %v756, %v724
      %v1109 = vpack.c.b16 %v757, %v725
      %v1110 = vpack.c.b16 %v758, %v726
      %v1111 = vpack.c.b16 %v759, %v727
      %v1112 = vpack.c.b16 %v760, %v728
      %v1113 = vpack.c.b16 %v761, %v729
      %v1114 = vpack.c.b16 %v794, %v762
      %v1115 = vpack.c.b16 %v795, %v763
      %v1116 = vpack.c.b16 %v796, %v764
      %v1117 = vpack.c.b16 %v797, %v765
      %v1118 = vpack.c.b16 %v798, %v766
      %v1119 = vpack.c.b16 %v799, %v767
      %v1120 = vpack.c.b16 %v800, %v768
      %v1121 = vpack.c.b16 %v801, %v769
      %v1122 = vpack.c.b16 %v802, %v770
      %v1123 = vpack.c.b16 %v803, %v771
      %v1124 = vpack.c.b16 %v804, %v772
      %v1125 = vpack.c.b16 %v805, %v773
      %v1126 = vpack.c.b16 %v806, %v774
      %v1127 = vpack.c.b16 %v807, %v775
      %v1128 = vpack.c.b16 %v808, %v776
      %v1129 = vpack.c.b16 %v809, %v777
      %v1130 = vpack.c.b16 %v810, %v778
      %v1131 = vpack.c.b16 %v811, %v779
      %v1132 = vpack.c.b16 %v812, %v780
      %v1133 = vpack.c.b16 %v813, %v781
      %v1134 = vpack.c.b16 %v814, %v782
      %v1135 = vpack.c.b16 %v815, %v783
      %v1136 = vpack.c.b16 %v816, %v784
      %v1137 = vpack.c.b16 %v817, %v785
      %v1138 = vpack.c.b16 %v818, %v786
      %v1139 = vpack.c.b16 %v819, %v787
      %v1140 = vpack.c.b16 %v820, %v788
      %v1141 = vpack.c.b16 %v821, %v789
      %v1142 = vpack.c.b16 %v822, %v790
      %v1143 = vpack.c.b16 %v823, %v791
      %v1144 = vpack.c.b16 %v824, %v792
      %v1145 = vpack.c.b16 %v825, %v793
      %v1146 = vpack.c.b16 %v858, %v826
      %v1147 = vpack.c.b16 %v859, %v827
      %v1148 = vpack.c.b16 %v860, %v828
      %v1149 = vpack.c.b16 %v861, %v829
      %v1150 = vpack.c.b16 %v862, %v830
      %v1151 = vpack.c.b16 %v863, %v831
      %v1152 = vpack.c.b16 %v864, %v832
      %v1153 = vpack.c.b16 %v865, %v833
      %v1154 = vpack.c.b16 %v866, %v834
      %v1155 = vpack.c.b16 %v867, %v835
      %v1156 = vpack.c.b16 %v868, %v836
      %v1157 = vpack.c.b16 %v869, %v837
      %v1158 = vpack.c.b16 %v870, %v838
      %v1159 = vpack.c.b16 %v871, %v839
      %v1160 = vpack.c.b16 %v872, %v840
      %v1161 = vpack.c.b16 %v873, %v841
      %v1162 = vpack.c.b16 %v874, %v842
      %v1163 = vpack.c.b16 %v875, %v843
      %v1164 = vpack.c.b16 %v876, %v844
      %v1165 = vpack.c.b16 %v877, %v845
      %v1166 = vpack.c.b16 %v878, %v846
      %v1167 = vpack.c.b16 %v879, %v847
      %v1168 = vpack.c.b16 %v880, %v848
      %v1169 = vpack.c.b16 %v881, %v849
      %v1170 = vpack.c.b16 %v882, %v850
      %v1171 = vpack.c.b16 %v883, %v851
      %v1172 = vpack.c.b16 %v884, %v852
      %v1173 = vpack.c.b16 %v885, %v853
      %v1174 = vpack.c.b16 %v886, %v854
      %v1175 = vpack.c.b16 %v887, %v855
      %v1176 = vpack.c.b16 %v888, %v856
      %v1177 = vpack.c.b16 %v889, %v857
      %v1178 = vpack.c.b16 %v922, %v890
      %v1179 = vpack.c.b16 %v923, %v891
      %v1180 = vpack.c.b16 %v924, %v892
      %v1181 = vpack.c.b16 %v925, %v893
      %v1182 = vpack.c.b16 %v926, %v894
      %v1183 = vpack.c.b16 %v927, %v895
      %v1184 = vpack.c.b16 %v928, %v896
      %v1185 = vpack.c.b16 %v929, %v897
      %v1186 = vpack.c.b16 %v930, %v898
      %v1187 = vpack.c.b16 %v931, %v899
      %v1188 = vpack.c.b16 %v932, %v900
      %v1189 = vpack.c.b16 %v933, %v901
      %v1190 = vpack.c.b16 %v934, %v902
      %v1191 = vpack.c.b16 %v935, %v903
      %v1192 = vpack.c.b16 %v936, %v904
      %v1193 = vpack.c.b16 %v937, %v905
      %v1194 = vpack.c.b16 %v938, %v906
      %v1195 = vpack.c.b16 %v939, %v907
      %v1196 = vpack.c.b16 %v940, %v908
      %v1197 = vpack.c.b16 %v941, %v909
      %v1198 = vpack.c.b16 %v942, %v910
      %v1199 = vpack.c.b16 %v943, %v911
      %v1200 = vpack.c.b16 %v944, %v912
      %v1201 = vpack.c.b16 %v945, %v913
      %v1202 = vpack.c.b16 %v946, %v914
      %v1203 = vpack.c.b16 %v947, %v915
      %v1204 = vpack.c.b16 %v948, %v916
      %v1205 = vpack.c.b16 %v949, %v917
      %v1206 = vpack.c.b16 %v950, %v918
      %v1207 = vpack.c.b16 %v951, %v919
      %v1208 = vpack.c.b16 %v952, %v920
      %v1209 = vpack.c.b16 %v953, %v921
      %v1210 = vpack.c.b16 %v986, %v954
      %v1211 = vpack.c.b16 %v987, %v955
      %v1212 = vpack.c.b16 %v988, %v956
      %v1213 = vpack.c.b16 %v989, %v957
      %v1214 = vpack.c.b16 %v990, %v958
      %v1215 = vpack.c.b16 %v991, %v959
      %v1216 = vpack.c.b16 %v992, %v960
      %v1217 = vpack.c.b16 %v993, %v961
      %v1218 = vpack.c.b16 %v994, %v962
      %v1219 = vpack.c.b16 %v995, %v963
      %v1220 = vpack.c.b16 %v996, %v964
      %v1221 = vpack.c.b16 %v997, %v965
      %v1222 = vpack.c.b16 %v998, %v966
      %v1223 = vpack.c.b16 %v999, %v967
      %v1224 = vpack.c.b16 %v1000, %v968
      %v1225 = vpack.c.b16 %v1001, %v969
      %v1226 = vpack.c.b16 %v1002, %v970
      %v1227 = vpack.c.b16 %v1003, %v971
      %v1228 = vpack.c.b16 %v1004, %v972
      %v1229 = vpack.c.b16 %v1005, %v973
      %v1230 = vpack.c.b16 %v1006, %v974
      %v1231 = vpack.c.b16 %v1007, %v975
      %v1232 = vpack.c.b16 %v1008, %v976
      %v1233 = vpack.c.b16 %v1009, %v977
      %v1234 = vpack.c.b16 %v1010, %v978
      %v1235 = vpack.c.b16 %v1011, %v979
      %v1236 = vpack.c.b16 %v1012, %v980
      %v1237 = vpack.c.b16 %v1013, %v981
      %v1238 = vpack.c.b16 %v1014, %v982
      %v1239 = vpack.c.b16 %v1015, %v983
      %v1240 = vpack.c.b16 %v1016, %v984
      %v1241 = vpack.c.b16 %v1017, %v985
      %v1242 = vpack.c.b16 %v1018, %v1018
      %v1243 = vpack.c.b16 %v1019, %v1019
      %v1244 = vpack.c.b16 %v1020, %v1020
      %v1245 = vpack.c.b16 %v1021, %v1021
      %v1246 = vpack.c.b16 %v1022, %v1022
      %v1247 = vpack.c.b16 %v1023, %v1023
      %v1248 = vpack.c.b16 %v1024, %v1024
      %v1249 = vpack.c.b16 %v1025, %v1025
      %v1250 = vpack.c.b16 %v1026, %v1026
      %v1251 = vpack.c.b16 %v1027, %v1027
      %v1252 = vpack.c.b16 %v1028, %v1028
      %v1253 = vpack.c.b16 %v1029, %v1029
      %v1254 = vpack.c.b16 %v1030, %v1030
      %v1255 = vpack.c.b16 %v1031, %v1031
      %v1256 = vpack.c.b16 %v1032, %v1032
      %v1257 = vpack.c.b16 %v1033, %v1033
      %v1258 = vpack.c.b16 %v1034, %v1034
      %v1259 = vpack.c.b16 %v1035, %v1035
      %v1260 = vpack.c.b16 %v1036, %v1036
      %v1261 = vpack.c.b16 %v1037, %v1037
      %v1262 = vpack.c.b16 %v1038, %v1038
      %v1263 = vpack.c.b16 %v1039, %v1039
      %v1264 = vpack.c.b16 %v1040, %v1040
      %v1265 = vpack.c.b16 %v1041, %v1041
      %v1266 = vpack.c.b16 %v1042, %v1042
      %v1267 = vpack.c.b16 %v1043, %v1043
      %v1268 = vpack.c.b16 %v1044, %v1044
      %v1269 = vpack.c.b16 %v1045, %v1045
      %v1270 = vpack.c.b16 %v1046, %v1046
      %v1271 = vpack.c.b16 %v1047, %v1047
      %v1272 = vpack.c.b16 %v1048, %v1048
      %v1273 = vpack.c.b16 %v1049, %v1049
      %vm1466 = vcmask 818176
      %v1468 = vsel %vm1466, %v211, 0
      %vm1470 = vcmask 1041408
      %v1472 = vsel %vm1470, %v1242, 0
      %v1475 = vsel %vm1470, %v1243, 0
      %v1478 = vsel %vm1470, %v1244, 0
      %v1481 = vsel %vm1470, %v1245, 0
      %v1484 = vsel %vm1470, %v1246, 0
      %v1487 = vsel %vm1470, %v1247, 0
      %v1490 = vsel %vm1470, %v1248, 0
      %v1493 = vsel %vm1470, %v1249, 0
      %v1496 = vsel %vm1470, %v1250, 0
      %v1499 = vsel %vm1470, %v1251, 0
      %v1502 = vsel %vm1470, %v1252, 0
      %v1505 = vsel %vm1470, %v1253, 0
      %v1508 = vsel %vm1470, %v1254, 0
      %v1511 = vsel %vm1470, %v1255, 0
      %v1514 = vsel %vm1470, %v1256, 0
      %v1517 = vsel %vm1470, %v1257, 0
      %v1520 = vsel %vm1470, %v1258, 0
      %v1523 = vsel %vm1470, %v1259, 0
      %v1526 = vsel %vm1470, %v1260, 0
      %v1529 = vsel %vm1470, %v1261, 0
      %v1532 = vsel %vm1470, %v1262, 0
      %v1535 = vsel %vm1470, %v1263, 0
      %v1538 = vsel %vm1470, %v1264, 0
      %v1541 = vsel %vm1470, %v1265, 0
      %v1544 = vsel %vm1470, %v1266, 0
      %v1547 = vsel %vm1470, %v1267, 0
      %v1550 = vsel %vm1470, %v1268, 0
      %v1553 = vsel %vm1470, %v1269, 0
      %v1556 = vsel %vm1470, %v1270, 0
      %v1559 = vsel %vm1470, %v1271, 0
      %v1562 = vsel %vm1470, %v1272, 0
      %v1565 = vsel %vm1470, %v1273, 0
      %1567 = vmatpush.bf16.msra.mxu0 0
      %1568 = vmatpush.bf16.msra.mxu0 %v1472
      %1569 = vmatpush.bf16.msra.mxu0 %v1210
      %1570 = vmatpush.bf16.msra.mxu0 %v1178
      %1571 = vmatpush.bf16.msra.mxu0 %v1146
      %1572 = vmatpush.bf16.msra.mxu0 %v1114
      %1573 = vmatpush.bf16.msra.mxu0 %v1082
      %1574 = vmatpush.bf16.msra.mxu0 %v1050
      %1575 = vmatmul.bf16.gmra.mxu0 %v1468
      %v1576 = vpop.f32.mrf.mxu0
      %v1577 = vadd.f32 %v424, %v1576
      %v1578 = vpop.f32.mrf.mxu0
      %1579 = vdwg.mxu0
      %1580 = vmatpush.bf16.msra.mxu0 0
      %1581 = vmatpush.bf16.msra.mxu0 %v1475
      %1582 = vmatpush.bf16.msra.mxu0 %v1211
      %1583 = vmatpush.bf16.msra.mxu0 %v1179
      %1584 = vmatpush.bf16.msra.mxu0 %v1147
      %1585 = vmatpush.bf16.msra.mxu0 %v1115
      %1586 = vmatpush.bf16.msra.mxu0 %v1083
      %1587 = vmatpush.bf16.msra.mxu0 %v1051
      %1588 = vmatmul.bf16.gmra.mxu0 %v1468
      %v1589 = vpop.f32.mrf.mxu0
      %v1590 = vadd.f32 %v424, %v1589
      %v1591 = vpop.f32.mrf.mxu0
      %1592 = vdwg.mxu0
      %1593 = vmatpush.bf16.msra.mxu0 0
      %1594 = vmatpush.bf16.msra.mxu0 %v1478
      %1595 = vmatpush.bf16.msra.mxu0 %v1212
      %1596 = vmatpush.bf16.msra.mxu0 %v1180
      %1597 = vmatpush.bf16.msra.mxu0 %v1148
      %1598 = vmatpush.bf16.msra.mxu0 %v1116
      %1599 = vmatpush.bf16.msra.mxu0 %v1084
      %1600 = vmatpush.bf16.msra.mxu0 %v1052
      %1601 = vmatmul.bf16.gmra.mxu0 %v1468
      %v1602 = vpop.f32.mrf.mxu0
      %v1603 = vadd.f32 %v424, %v1602
      %v1604 = vpop.f32.mrf.mxu0
      %1605 = vdwg.mxu0
      %1606 = vmatpush.bf16.msra.mxu0 0
      %1607 = vmatpush.bf16.msra.mxu0 %v1481
      %1608 = vmatpush.bf16.msra.mxu0 %v1213
      %1609 = vmatpush.bf16.msra.mxu0 %v1181
      %1610 = vmatpush.bf16.msra.mxu0 %v1149
      %1611 = vmatpush.bf16.msra.mxu0 %v1117
      %1612 = vmatpush.bf16.msra.mxu0 %v1085
      %1613 = vmatpush.bf16.msra.mxu0 %v1053
      %1614 = vmatmul.bf16.gmra.mxu0 %v1468
      %v1615 = vpop.f32.mrf.mxu0
      %v1616 = vadd.f32 %v424, %v1615
      %v1617 = vpop.f32.mrf.mxu0
      %1618 = vdwg.mxu0
      %1619 = vmatpush.bf16.msra.mxu0 0
      %1620 = vmatpush.bf16.msra.mxu0 %v1484
      %1621 = vmatpush.bf16.msra.mxu0 %v1214
      %1622 = vmatpush.bf16.msra.mxu0 %v1182
      %1623 = vmatpush.bf16.msra.mxu0 %v1150
      %1624 = vmatpush.bf16.msra.mxu0 %v1118
      %1625 = vmatpush.bf16.msra.mxu0 %v1086
      %1626 = vmatpush.bf16.msra.mxu0 %v1054
      %1627 = vmatmul.bf16.gmra.mxu0 %v1468
      %v1628 = vpop.f32.mrf.mxu0
      %v1629 = vadd.f32 %v424, %v1628
      %v1630 = vpop.f32.mrf.mxu0
      %1631 = vdwg.mxu0
      %1632 = vmatpush.bf16.msra.mxu0 0
      %1633 = vmatpush.bf16.msra.mxu0 %v1487
      %1634 = vmatpush.bf16.msra.mxu0 %v1215
      %1635 = vmatpush.bf16.msra.mxu0 %v1183
      %1636 = vmatpush.bf16.msra.mxu0 %v1151
      %1637 = vmatpush.bf16.msra.mxu0 %v1119
      %1638 = vmatpush.bf16.msra.mxu0 %v1087
      %1639 = vmatpush.bf16.msra.mxu0 %v1055
      %1640 = vmatmul.bf16.gmra.mxu0 %v1468
      %v1641 = vpop.f32.mrf.mxu0
      %v1642 = vadd.f32 %v424, %v1641
      %v1643 = vpop.f32.mrf.mxu0
      %1644 = vdwg.mxu0
      %1645 = vmatpush.bf16.msra.mxu0 0
      %1646 = vmatpush.bf16.msra.mxu0 %v1490
      %1647 = vmatpush.bf16.msra.mxu0 %v1216
      %1648 = vmatpush.bf16.msra.mxu0 %v1184
      %1649 = vmatpush.bf16.msra.mxu0 %v1152
      %1650 = vmatpush.bf16.msra.mxu0 %v1120
      %1651 = vmatpush.bf16.msra.mxu0 %v1088
      %1652 = vmatpush.bf16.msra.mxu0 %v1056
      %1653 = vmatmul.bf16.gmra.mxu0 %v1468
      %v1654 = vpop.f32.mrf.mxu0
      %v1655 = vadd.f32 %v424, %v1654
      %v1656 = vpop.f32.mrf.mxu0
      %1657 = vdwg.mxu0
      %1658 = vmatpush.bf16.msra.mxu0 0
      %1659 = vmatpush.bf16.msra.mxu0 %v1493
      %1660 = vmatpush.bf16.msra.mxu0 %v1217
      %1661 = vmatpush.bf16.msra.mxu0 %v1185
      %1662 = vmatpush.bf16.msra.mxu0 %v1153
      %1663 = vmatpush.bf16.msra.mxu0 %v1121
      %1664 = vmatpush.bf16.msra.mxu0 %v1089
      %1665 = vmatpush.bf16.msra.mxu0 %v1057
      %1666 = vmatmul.bf16.gmra.mxu0 %v1468
      %v1667 = vpop.f32.mrf.mxu0
      %v1668 = vadd.f32 %v424, %v1667
      %v1669 = vpop.f32.mrf.mxu0
      %1670 = vdwg.mxu0
      %1671 = vmatpush.bf16.msra.mxu0 0
      %1672 = vmatpush.bf16.msra.mxu0 %v1496
      %1673 = vmatpush.bf16.msra.mxu0 %v1218
      %1674 = vmatpush.bf16.msra.mxu0 %v1186
      %1675 = vmatpush.bf16.msra.mxu0 %v1154
      %1676 = vmatpush.bf16.msra.mxu0 %v1122
      %1677 = vmatpush.bf16.msra.mxu0 %v1090
      %1678 = vmatpush.bf16.msra.mxu0 %v1058
      %1679 = vmatmul.bf16.gmra.mxu0 %v1468
      %v1680 = vpop.f32.mrf.mxu0
      %v1681 = vadd.f32 %v424, %v1680
      %v1682 = vpop.f32.mrf.mxu0
      %1683 = vdwg.mxu0
      %1684 = vmatpush.bf16.msra.mxu0 0
      %1685 = vmatpush.bf16.msra.mxu0 %v1499
      %1686 = vmatpush.bf16.msra.mxu0 %v1219
      %1687 = vmatpush.bf16.msra.mxu0 %v1187
      %1688 = vmatpush.bf16.msra.mxu0 %v1155
      %1689 = vmatpush.bf16.msra.mxu0 %v1123
      %1690 = vmatpush.bf16.msra.mxu0 %v1091
      %1691 = vmatpush.bf16.msra.mxu0 %v1059
      %1692 = vmatmul.bf16.gmra.mxu0 %v1468
      %v1693 = vpop.f32.mrf.mxu0
      %v1694 = vadd.f32 %v424, %v1693
      %v1695 = vpop.f32.mrf.mxu0
      %1696 = vdwg.mxu0
      %1697 = vmatpush.bf16.msra.mxu0 0
      %1698 = vmatpush.bf16.msra.mxu0 %v1502
      %1699 = vmatpush.bf16.msra.mxu0 %v1220
      %1700 = vmatpush.bf16.msra.mxu0 %v1188
      %1701 = vmatpush.bf16.msra.mxu0 %v1156
      %1702 = vmatpush.bf16.msra.mxu0 %v1124
      %1703 = vmatpush.bf16.msra.mxu0 %v1092
      %1704 = vmatpush.bf16.msra.mxu0 %v1060
      %1705 = vmatmul.bf16.gmra.mxu0 %v1468
      %v1706 = vpop.f32.mrf.mxu0
      %v1707 = vadd.f32 %v424, %v1706
      %v1708 = vpop.f32.mrf.mxu0
      %1709 = vdwg.mxu0
      %1710 = vmatpush.bf16.msra.mxu0 0
      %1711 = vmatpush.bf16.msra.mxu0 %v1505
      %1712 = vmatpush.bf16.msra.mxu0 %v1221
      %1713 = vmatpush.bf16.msra.mxu0 %v1189
      %1714 = vmatpush.bf16.msra.mxu0 %v1157
      %1715 = vmatpush.bf16.msra.mxu0 %v1125
      %1716 = vmatpush.bf16.msra.mxu0 %v1093
      %1717 = vmatpush.bf16.msra.mxu0 %v1061
      %1718 = vmatmul.bf16.gmra.mxu0 %v1468
      %v1719 = vpop.f32.mrf.mxu0
      %v1720 = vadd.f32 %v424, %v1719
      %v1721 = vpop.f32.mrf.mxu0
      %1722 = vdwg.mxu0
      %1723 = vmatpush.bf16.msra.mxu0 0
      %1724 = vmatpush.bf16.msra.mxu0 %v1508
      %1725 = vmatpush.bf16.msra.mxu0 %v1222
      %1726 = vmatpush.bf16.msra.mxu0 %v1190
      %1727 = vmatpush.bf16.msra.mxu0 %v1158
      %1728 = vmatpush.bf16.msra.mxu0 %v1126
      %1729 = vmatpush.bf16.msra.mxu0 %v1094
      %1730 = vmatpush.bf16.msra.mxu0 %v1062
      %1731 = vmatmul.bf16.gmra.mxu0 %v1468
      %v1732 = vpop.f32.mrf.mxu0
      %v1733 = vadd.f32 %v424, %v1732
      %v1734 = vpop.f32.mrf.mxu0
      %1735 = vdwg.mxu0
      %1736 = vmatpush.bf16.msra.mxu0 0
      %1737 = vmatpush.bf16.msra.mxu0 %v1511
      %1738 = vmatpush.bf16.msra.mxu0 %v1223
      %1739 = vmatpush.bf16.msra.mxu0 %v1191
      %1740 = vmatpush.bf16.msra.mxu0 %v1159
      %1741 = vmatpush.bf16.msra.mxu0 %v1127
      %1742 = vmatpush.bf16.msra.mxu0 %v1095
      %1743 = vmatpush.bf16.msra.mxu0 %v1063
      %1744 = vmatmul.bf16.gmra.mxu0 %v1468
      %v1745 = vpop.f32.mrf.mxu0
      %v1746 = vadd.f32 %v424, %v1745
      %v1747 = vpop.f32.mrf.mxu0
      %1748 = vdwg.mxu0
      %1749 = vmatpush.bf16.msra.mxu0 0
      %1750 = vmatpush.bf16.msra.mxu0 %v1514
      %1751 = vmatpush.bf16.msra.mxu0 %v1224
      %1752 = vmatpush.bf16.msra.mxu0 %v1192
      %1753 = vmatpush.bf16.msra.mxu0 %v1160
      %1754 = vmatpush.bf16.msra.mxu0 %v1128
      %1755 = vmatpush.bf16.msra.mxu0 %v1096
      %1756 = vmatpush.bf16.msra.mxu0 %v1064
      %1757 = vmatmul.bf16.gmra.mxu0 %v1468
      %v1758 = vpop.f32.mrf.mxu0
      %v1759 = vadd.f32 %v424, %v1758
      %v1760 = vpop.f32.mrf.mxu0
      %1761 = vdwg.mxu0
      %1762 = vmatpush.bf16.msra.mxu0 0
      %1763 = vmatpush.bf16.msra.mxu0 %v1517
      %1764 = vmatpush.bf16.msra.mxu0 %v1225
      %1765 = vmatpush.bf16.msra.mxu0 %v1193
      %1766 = vmatpush.bf16.msra.mxu0 %v1161
      %1767 = vmatpush.bf16.msra.mxu0 %v1129
      %1768 = vmatpush.bf16.msra.mxu0 %v1097
      %1769 = vmatpush.bf16.msra.mxu0 %v1065
      %1770 = vmatmul.bf16.gmra.mxu0 %v1468
      %v1771 = vpop.f32.mrf.mxu0
      %v1772 = vadd.f32 %v424, %v1771
      %v1773 = vpop.f32.mrf.mxu0
      %1774 = vdwg.mxu0
      %1775 = vmatpush.bf16.msra.mxu0 0
      %1776 = vmatpush.bf16.msra.mxu0 %v1520
      %1777 = vmatpush.bf16.msra.mxu0 %v1226
      %1778 = vmatpush.bf16.msra.mxu0 %v1194
      %1779 = vmatpush.bf16.msra.mxu0 %v1162
      %1780 = vmatpush.bf16.msra.mxu0 %v1130
      %1781 = vmatpush.bf16.msra.mxu0 %v1098
      %1782 = vmatpush.bf16.msra.mxu0 %v1066
      %1783 = vmatmul.bf16.gmra.mxu0 %v1468
      %v1784 = vpop.f32.mrf.mxu0
      %v1785 = vadd.f32 %v424, %v1784
      %v1786 = vpop.f32.mrf.mxu0
      %1787 = vdwg.mxu0
      %1788 = vmatpush.bf16.msra.mxu0 0
      %1789 = vmatpush.bf16.msra.mxu0 %v1523
      %1790 = vmatpush.bf16.msra.mxu0 %v1227
      %1791 = vmatpush.bf16.msra.mxu0 %v1195
      %1792 = vmatpush.bf16.msra.mxu0 %v1163
      %1793 = vmatpush.bf16.msra.mxu0 %v1131
      %1794 = vmatpush.bf16.msra.mxu0 %v1099
      %1795 = vmatpush.bf16.msra.mxu0 %v1067
      %1796 = vmatmul.bf16.gmra.mxu0 %v1468
      %v1797 = vpop.f32.mrf.mxu0
      %v1798 = vadd.f32 %v424, %v1797
      %v1799 = vpop.f32.mrf.mxu0
      %1800 = vdwg.mxu0
      %1801 = vmatpush.bf16.msra.mxu0 0
      %1802 = vmatpush.bf16.msra.mxu0 %v1526
      %1803 = vmatpush.bf16.msra.mxu0 %v1228
      %1804 = vmatpush.bf16.msra.mxu0 %v1196
      %1805 = vmatpush.bf16.msra.mxu0 %v1164
      %1806 = vmatpush.bf16.msra.mxu0 %v1132
      %1807 = vmatpush.bf16.msra.mxu0 %v1100
      %1808 = vmatpush.bf16.msra.mxu0 %v1068
      %1809 = vmatmul.bf16.gmra.mxu0 %v1468
      %v1810 = vpop.f32.mrf.mxu0
      %v1811 = vadd.f32 %v424, %v1810
      %v1812 = vpop.f32.mrf.mxu0
      %1813 = vdwg.mxu0
      %1814 = vmatpush.bf16.msra.mxu0 0
      %1815 = vmatpush.bf16.msra.mxu0 %v1529
      %1816 = vmatpush.bf16.msra.mxu0 %v1229
      %1817 = vmatpush.bf16.msra.mxu0 %v1197
      %1818 = vmatpush.bf16.msra.mxu0 %v1165
      %1819 = vmatpush.bf16.msra.mxu0 %v1133
      %1820 = vmatpush.bf16.msra.mxu0 %v1101
      %1821 = vmatpush.bf16.msra.mxu0 %v1069
      %1822 = vmatmul.bf16.gmra.mxu0 %v1468
      %v1823 = vpop.f32.mrf.mxu0
      %v1824 = vadd.f32 %v424, %v1823
      %v1825 = vpop.f32.mrf.mxu0
      %1826 = vdwg.mxu0
      %1827 = vmatpush.bf16.msra.mxu0 0
      %1828 = vmatpush.bf16.msra.mxu0 %v1532
      %1829 = vmatpush.bf16.msra.mxu0 %v1230
      %1830 = vmatpush.bf16.msra.mxu0 %v1198
      %1831 = vmatpush.bf16.msra.mxu0 %v1166
      %1832 = vmatpush.bf16.msra.mxu0 %v1134
      %1833 = vmatpush.bf16.msra.mxu0 %v1102
      %1834 = vmatpush.bf16.msra.mxu0 %v1070
      %1835 = vmatmul.bf16.gmra.mxu0 %v1468
      %v1836 = vpop.f32.mrf.mxu0
      %v1837 = vadd.f32 %v424, %v1836
      %v1838 = vpop.f32.mrf.mxu0
      %1839 = vdwg.mxu0
      %1840 = vmatpush.bf16.msra.mxu0 0
      %1841 = vmatpush.bf16.msra.mxu0 %v1535
      %1842 = vmatpush.bf16.msra.mxu0 %v1231
      %1843 = vmatpush.bf16.msra.mxu0 %v1199
      %1844 = vmatpush.bf16.msra.mxu0 %v1167
      %1845 = vmatpush.bf16.msra.mxu0 %v1135
      %1846 = vmatpush.bf16.msra.mxu0 %v1103
      %1847 = vmatpush.bf16.msra.mxu0 %v1071
      %1848 = vmatmul.bf16.gmra.mxu0 %v1468
      %v1849 = vpop.f32.mrf.mxu0
      %v1850 = vadd.f32 %v424, %v1849
      %v1851 = vpop.f32.mrf.mxu0
      %1852 = vdwg.mxu0
      %1853 = vmatpush.bf16.msra.mxu0 0
      %1854 = vmatpush.bf16.msra.mxu0 %v1538
      %1855 = vmatpush.bf16.msra.mxu0 %v1232
      %1856 = vmatpush.bf16.msra.mxu0 %v1200
      %1857 = vmatpush.bf16.msra.mxu0 %v1168
      %1858 = vmatpush.bf16.msra.mxu0 %v1136
      %1859 = vmatpush.bf16.msra.mxu0 %v1104
      %1860 = vmatpush.bf16.msra.mxu0 %v1072
      %1861 = vmatmul.bf16.gmra.mxu0 %v1468
      %v1862 = vpop.f32.mrf.mxu0
      %v1863 = vadd.f32 %v424, %v1862
      %v1864 = vpop.f32.mrf.mxu0
      %1865 = vdwg.mxu0
      %1866 = vmatpush.bf16.msra.mxu0 0
      %1867 = vmatpush.bf16.msra.mxu0 %v1541
      %1868 = vmatpush.bf16.msra.mxu0 %v1233
      %1869 = vmatpush.bf16.msra.mxu0 %v1201
      %1870 = vmatpush.bf16.msra.mxu0 %v1169
      %1871 = vmatpush.bf16.msra.mxu0 %v1137
      %1872 = vmatpush.bf16.msra.mxu0 %v1105
      %1873 = vmatpush.bf16.msra.mxu0 %v1073
      %1874 = vmatmul.bf16.gmra.mxu0 %v1468
      %v1875 = vpop.f32.mrf.mxu0
      %v1876 = vadd.f32 %v424, %v1875
      %v1877 = vpop.f32.mrf.mxu0
      %1878 = vdwg.mxu0
      %1879 = vmatpush.bf16.msra.mxu0 0
      %1880 = vmatpush.bf16.msra.mxu0 %v1544
      %1881 = vmatpush.bf16.msra.mxu0 %v1234
      %1882 = vmatpush.bf16.msra.mxu0 %v1202
      %1883 = vmatpush.bf16.msra.mxu0 %v1170
      %1884 = vmatpush.bf16.msra.mxu0 %v1138
      %1885 = vmatpush.bf16.msra.mxu0 %v1106
      %1886 = vmatpush.bf16.msra.mxu0 %v1074
      %1887 = vmatmul.bf16.gmra.mxu0 %v1468
      %v1888 = vpop.f32.mrf.mxu0
      %v1889 = vadd.f32 %v424, %v1888
      %v1890 = vpop.f32.mrf.mxu0
      %1891 = vdwg.mxu0
      %1892 = vmatpush.bf16.msra.mxu0 0
      %1893 = vmatpush.bf16.msra.mxu0 %v1547
      %1894 = vmatpush.bf16.msra.mxu0 %v1235
      %1895 = vmatpush.bf16.msra.mxu0 %v1203
      %1896 = vmatpush.bf16.msra.mxu0 %v1171
      %1897 = vmatpush.bf16.msra.mxu0 %v1139
      %1898 = vmatpush.bf16.msra.mxu0 %v1107
      %1899 = vmatpush.bf16.msra.mxu0 %v1075
      %1900 = vmatmul.bf16.gmra.mxu0 %v1468
      %v1901 = vpop.f32.mrf.mxu0
      %v1902 = vadd.f32 %v424, %v1901
      %v1903 = vpop.f32.mrf.mxu0
      %1904 = vdwg.mxu0
      %1905 = vmatpush.bf16.msra.mxu0 0
      %1906 = vmatpush.bf16.msra.mxu0 %v1550
      %1907 = vmatpush.bf16.msra.mxu0 %v1236
      %1908 = vmatpush.bf16.msra.mxu0 %v1204
      %1909 = vmatpush.bf16.msra.mxu0 %v1172
      %1910 = vmatpush.bf16.msra.mxu0 %v1140
      %1911 = vmatpush.bf16.msra.mxu0 %v1108
      %1912 = vmatpush.bf16.msra.mxu0 %v1076
      %1913 = vmatmul.bf16.gmra.mxu0 %v1468
      %v1914 = vpop.f32.mrf.mxu0
      %v1915 = vadd.f32 %v424, %v1914
      %v1916 = vpop.f32.mrf.mxu0
      %1917 = vdwg.mxu0
      %1918 = vmatpush.bf16.msra.mxu0 0
      %1919 = vmatpush.bf16.msra.mxu0 %v1553
      %1920 = vmatpush.bf16.msra.mxu0 %v1237
      %1921 = vmatpush.bf16.msra.mxu0 %v1205
      %1922 = vmatpush.bf16.msra.mxu0 %v1173
      %1923 = vmatpush.bf16.msra.mxu0 %v1141
      %1924 = vmatpush.bf16.msra.mxu0 %v1109
      %1925 = vmatpush.bf16.msra.mxu0 %v1077
      %1926 = vmatmul.bf16.gmra.mxu0 %v1468
      %v1927 = vpop.f32.mrf.mxu0
      %v1928 = vadd.f32 %v424, %v1927
      %v1929 = vpop.f32.mrf.mxu0
      %1930 = vdwg.mxu0
      %1931 = vmatpush.bf16.msra.mxu0 0
      %1932 = vmatpush.bf16.msra.mxu0 %v1556
      %1933 = vmatpush.bf16.msra.mxu0 %v1238
      %1934 = vmatpush.bf16.msra.mxu0 %v1206
      %1935 = vmatpush.bf16.msra.mxu0 %v1174
      %1936 = vmatpush.bf16.msra.mxu0 %v1142
      %1937 = vmatpush.bf16.msra.mxu0 %v1110
      %1938 = vmatpush.bf16.msra.mxu0 %v1078
      %1939 = vmatmul.bf16.gmra.mxu0 %v1468
      %v1940 = vpop.f32.mrf.mxu0
      %v1941 = vadd.f32 %v424, %v1940
      %v1942 = vpop.f32.mrf.mxu0
      %1943 = vdwg.mxu0
      %1944 = vmatpush.bf16.msra.mxu0 0
      %1945 = vmatpush.bf16.msra.mxu0 %v1559
      %1946 = vmatpush.bf16.msra.mxu0 %v1239
      %1947 = vmatpush.bf16.msra.mxu0 %v1207
      %1948 = vmatpush.bf16.msra.mxu0 %v1175
      %1949 = vmatpush.bf16.msra.mxu0 %v1143
      %1950 = vmatpush.bf16.msra.mxu0 %v1111
      %1951 = vmatpush.bf16.msra.mxu0 %v1079
      %1952 = vmatmul.bf16.gmra.mxu0 %v1468
      %v1953 = vpop.f32.mrf.mxu0
      %v1954 = vadd.f32 %v424, %v1953
      %v1955 = vpop.f32.mrf.mxu0
      %1956 = vdwg.mxu0
      %1957 = vmatpush.bf16.msra.mxu0 0
      %1958 = vmatpush.bf16.msra.mxu0 %v1562
      %1959 = vmatpush.bf16.msra.mxu0 %v1240
      %1960 = vmatpush.bf16.msra.mxu0 %v1208
      %1961 = vmatpush.bf16.msra.mxu0 %v1176
      %1962 = vmatpush.bf16.msra.mxu0 %v1144
      %1963 = vmatpush.bf16.msra.mxu0 %v1112
      %1964 = vmatpush.bf16.msra.mxu0 %v1080
      %1965 = vmatmul.bf16.gmra.mxu0 %v1468
      %v1966 = vpop.f32.mrf.mxu0
      %v1967 = vadd.f32 %v424, %v1966
      %v1968 = vpop.f32.mrf.mxu0
      %1969 = vdwg.mxu0
      %1970 = vmatpush.bf16.msra.mxu0 0
      %1971 = vmatpush.bf16.msra.mxu0 %v1565
      %1972 = vmatpush.bf16.msra.mxu0 %v1241
      %1973 = vmatpush.bf16.msra.mxu0 %v1209
      %1974 = vmatpush.bf16.msra.mxu0 %v1177
      %1975 = vmatpush.bf16.msra.mxu0 %v1145
      %1976 = vmatpush.bf16.msra.mxu0 %v1113
      %1977 = vmatpush.bf16.msra.mxu0 %v1081
      %1978 = vmatmul.bf16.gmra.mxu0 %v1468
      %v1979 = vpop.f32.mrf.mxu0
      %v1980 = vadd.f32 %v424, %v1979
      %v1981 = vpop.f32.mrf.mxu0
      %1982 = vdwg.mxu0
      %vm1983 = vcmp.ge.f32.partialorder %v1577, 0.0
      %vm1984 = vcmp.ge.f32.partialorder %v1590, 0.0
      %vm1985 = vcmp.ge.f32.partialorder %v1603, 0.0
      %vm1986 = vcmp.ge.f32.partialorder %v1616, 0.0
      %vm1987 = vcmp.ge.f32.partialorder %v1629, 0.0
      %vm1988 = vcmp.ge.f32.partialorder %v1642, 0.0
      %vm1989 = vcmp.ge.f32.partialorder %v1655, 0.0
      %vm1990 = vcmp.ge.f32.partialorder %v1668, 0.0
      %vm1991 = vcmp.ge.f32.partialorder %v1681, 0.0
      %vm1992 = vcmp.ge.f32.partialorder %v1694, 0.0
      %vm1993 = vcmp.ge.f32.partialorder %v1707, 0.0
      %vm1994 = vcmp.ge.f32.partialorder %v1720, 0.0
      %vm1995 = vcmp.ge.f32.partialorder %v1733, 0.0
      %vm1996 = vcmp.ge.f32.partialorder %v1746, 0.0
      %vm1997 = vcmp.ge.f32.partialorder %v1759, 0.0
      %vm1998 = vcmp.ge.f32.partialorder %v1772, 0.0
      %vm1999 = vcmp.ge.f32.partialorder %v1785, 0.0
      %vm2000 = vcmp.ge.f32.partialorder %v1798, 0.0
      %vm2001 = vcmp.ge.f32.partialorder %v1811, 0.0
      %vm2002 = vcmp.ge.f32.partialorder %v1824, 0.0
      %vm2003 = vcmp.ge.f32.partialorder %v1837, 0.0
      %vm2004 = vcmp.ge.f32.partialorder %v1850, 0.0
      %vm2005 = vcmp.ge.f32.partialorder %v1863, 0.0
      %vm2006 = vcmp.ge.f32.partialorder %v1876, 0.0
      %vm2007 = vcmp.ge.f32.partialorder %v1889, 0.0
      %vm2008 = vcmp.ge.f32.partialorder %v1902, 0.0
      %vm2009 = vcmp.ge.f32.partialorder %v1915, 0.0
      %vm2010 = vcmp.ge.f32.partialorder %v1928, 0.0
      %vm2011 = vcmp.ge.f32.partialorder %v1941, 0.0
      %vm2012 = vcmp.ge.f32.partialorder %v1954, 0.0
      %vm2013 = vcmp.ge.f32.partialorder %v1967, 0.0
      %vm2014 = vcmp.ge.f32.partialorder %v1980, 0.0
      %v2015 = vmul.f32 %v1577, 0.2
      %v2016 = vmul.f32 %v1590, 0.2
      %v2017 = vmul.f32 %v1603, 0.2
      %v2018 = vmul.f32 %v1616, 0.2
      %v2019 = vmul.f32 %v1629, 0.2
      %v2020 = vmul.f32 %v1642, 0.2
      %v2021 = vmul.f32 %v1655, 0.2
      %v2022 = vmul.f32 %v1668, 0.2
      %v2023 = vmul.f32 %v1681, 0.2
      %v2024 = vmul.f32 %v1694, 0.2
      %v2025 = vmul.f32 %v1707, 0.2
      %v2026 = vmul.f32 %v1720, 0.2
      %v2027 = vmul.f32 %v1733, 0.2
      %v2028 = vmul.f32 %v1746, 0.2
      %v2029 = vmul.f32 %v1759, 0.2
      %v2030 = vmul.f32 %v1772, 0.2
      %v2031 = vmul.f32 %v1785, 0.2
      %v2032 = vmul.f32 %v1798, 0.2
      %v2033 = vmul.f32 %v1811, 0.2
      %v2034 = vmul.f32 %v1824, 0.2
      %v2035 = vmul.f32 %v1837, 0.2
      %v2036 = vmul.f32 %v1850, 0.2
      %v2037 = vmul.f32 %v1863, 0.2
      %v2038 = vmul.f32 %v1876, 0.2
      %v2039 = vmul.f32 %v1889, 0.2
      %v2040 = vmul.f32 %v1902, 0.2
      %v2041 = vmul.f32 %v1915, 0.2
      %v2042 = vmul.f32 %v1928, 0.2
      %v2043 = vmul.f32 %v1941, 0.2
      %v2044 = vmul.f32 %v1954, 0.2
      %v2045 = vmul.f32 %v1967, 0.2
      %v2046 = vmul.f32 %v1980, 0.2
      %v2047 = vsel %vm1983, %v1577, %v2015
      %v2048 = vsel %vm1984, %v1590, %v2016
      %v2049 = vsel %vm1985, %v1603, %v2017
      %v2050 = vsel %vm1986, %v1616, %v2018
      %v2051 = vsel %vm1987, %v1629, %v2019
      %v2052 = vsel %vm1988, %v1642, %v2020
      %v2053 = vsel %vm1989, %v1655, %v2021
      %v2054 = vsel %vm1990, %v1668, %v2022
      %v2055 = vsel %vm1991, %v1681, %v2023
      %v2056 = vsel %vm1992, %v1694, %v2024
      %v2057 = vsel %vm1993, %v1707, %v2025
      %v2058 = vsel %vm1994, %v1720, %v2026
      %v2059 = vsel %vm1995, %v1733, %v2027
      %v2060 = vsel %vm1996, %v1746, %v2028
      %v2061 = vsel %vm1997, %v1759, %v2029
      %v2062 = vsel %vm1998, %v1772, %v2030
      %v2063 = vsel %vm1999, %v1785, %v2031
      %v2064 = vsel %vm2000, %v1798, %v2032
      %v2065 = vsel %vm2001, %v1811, %v2033
      %v2066 = vsel %vm2002, %v1824, %v2034
      %v2067 = vsel %vm2003, %v1837, %v2035
      %v2068 = vsel %vm2004, %v1850, %v2036
      %v2069 = vsel %vm2005, %v1863, %v2037
      %v2070 = vsel %vm2006, %v1876, %v2038
      %v2071 = vsel %vm2007, %v1889, %v2039
      %v2072 = vsel %vm2008, %v1902, %v2040
      %v2073 = vsel %vm2009, %v1915, %v2041
      %v2074 = vsel %vm2010, %v1928, %v2042
      %v2075 = vsel %vm2011, %v1941, %v2043
      %v2076 = vsel %vm2012, %v1954, %v2044
      %v2077 = vsel %vm2013, %v1967, %v2045
      %v2078 = vsel %vm2014, %v1980, %v2046
      %v2079 = vpack.c.bf16 %v2048, %v2047
      %v2080 = vpack.c.bf16 %v2050, %v2049
      %v2081 = vpack.c.bf16 %v2052, %v2051
      %v2082 = vpack.c.bf16 %v2054, %v2053
      %v2083 = vpack.c.bf16 %v2056, %v2055
      %v2084 = vpack.c.bf16 %v2058, %v2057
      %v2085 = vpack.c.bf16 %v2060, %v2059
      %v2086 = vpack.c.bf16 %v2062, %v2061
      %v2087 = vpack.c.bf16 %v2064, %v2063
      %v2088 = vpack.c.bf16 %v2066, %v2065
      %v2089 = vpack.c.bf16 %v2068, %v2067
      %v2090 = vpack.c.bf16 %v2070, %v2069
      %v2091 = vpack.c.bf16 %v2072, %v2071
      %v2092 = vpack.c.bf16 %v2074, %v2073
      %v2093 = vpack.c.bf16 %v2076, %v2075
      %v2094 = vpack.c.bf16 %v2078, %v2077
      %2095 = vst [vmem:[%s208] sm:$0xff] %v2079
      %2096 = vst [vmem:[%s208 + $0x8] sm:$0xff] %v2080
      %2097 = vst [vmem:[%s208 + $0x10] sm:$0xff] %v2081
      %2098 = vst [vmem:[%s208 + $0x18] sm:$0xff] %v2082
      %2099 = vst [vmem:[%s208 + $0x20] sm:$0xff] %v2083
      %2100 = vst [vmem:[%s208 + $0x28] sm:$0xff] %v2084
      %2101 = vst [vmem:[%s208 + $0x30] sm:$0xff] %v2085
      %2102 = vst [vmem:[%s208 + $0x38] sm:$0xff] %v2086
      %2103 = vst [vmem:[%s208 + $0x40] sm:$0xff] %v2087
      %2104 = vst [vmem:[%s208 + $0x48] sm:$0xff] %v2088
      %2105 = vst [vmem:[%s208 + $0x50] sm:$0xff] %v2089
      %2106 = vst [vmem:[%s208 + $0x58] sm:$0xff] %v2090
      %2107 = vst [vmem:[%s208 + $0x60] sm:$0xff] %v2091
      %2108 = vst [vmem:[%s208 + $0x68] sm:$0xff] %v2092
      %2109 = vst [vmem:[%s208 + $0x70] sm:$0xff] %v2093
      %2110 = vst [vmem:[%s208 + $0x78] sm:$0xff] %v2094
      %s2111 = smul.u32 32, %s19
      %p2112 = scmp.lt.s32.totalorder %s18, 1
      %s2113 = scalar_select %p2112, %s18, 1
      %p2114 = scmp.lt.s32.totalorder %s2111, 31
      %s2115 = scalar_select %p2114, %s2111, 31
      %s2116 = smul.addr %s2113, 32
      %s2117 = sadd.s32 %s2115, %s2116
      %s2118 = smul.addr %s2117, 4
      %s2119 = scalar_lea.vmem %s3, %s2118
      // Predicated region
      $region33: #{global_dis_forward.5} parent=31 // pred_check
        %p2120 = pneg %p116
      $region34: #{global_dis_forward.5} parent=31 // pred_check_branch
        %2122 = sbr.rel (%p2120) target = $region36
      $region35: #{global_dis_forward.5} parent=31 // pred_region
        %s2123 = smul.u32 32, %s19
      $region36: #{global_dis_forward.5} parent=31 // pred_fallthru
        _
    $region32: #{global_dis_forward.5} parent=5 // pred_fallthru
      _
    %p2124 = scmp.le.s32.totalorder 2, %s9
    // Predicated region
    $region37: #{global_dis_forward.5} parent=5 // pred_check
      %p2125 = pneg %p2124
    $region38: #{global_dis_forward.5} parent=5 // pred_check_branch
      %2127 = sbr.rel (%p2125) target = $region40
    $region39: #{global_dis_forward.5} parent=5 // pred_region
      %s2128 = ssub.s32 %s9, 2
      // Predicated region
      $region41: #{global_dis_forward.5} parent=39 // pred_check
        %p2129 = pneg %p122
      $region42: #{global_dis_forward.5} parent=39 // pred_check_branch
        %2131 = sbr.rel (%p2129) target = $region44
      $region43: #{global_dis_forward.5} parent=39 // pred_region
        %s2132 = smul.u32 32, %s21
        %p2133 = scmp.lt.s32.totalorder %s20, 1
        %s2134 = scalar_select %p2133, %s20, 1
        %p2135 = scmp.lt.s32.totalorder %s2132, 31
        %s2136 = scalar_select %p2135, %s2132, 31
        %s2137 = smul.addr %s2134, 32
        %s2138 = sadd.s32 %s2136, %s2137
        %s2139 = smul.addr %s2138, 4
        %s2140 = scalar_lea.vmem %s3, %s2139
      $region44: #{global_dis_forward.5} parent=39 // pred_fallthru
        _
    $region40: #{global_dis_forward.5} parent=5 // pred_fallthru
      _
  $region6: #{global_dis_forward.5} parent=0 // loop_footer
    %s13 = sadd.s32 1, %s9
  $region7: #{global_dis_forward.5} parent=0 // loop_footer_branch
    %8 = sbr.rel target = $region3
  $region8: #{global_dis_forward.5} parent=0 // loop_exit
    _

// kernel: global_dis_forward.6
$region0: #{global_dis_forward.6}
  #allocation0 [shape = 'u32[]', space=smem, size = 0x4, offset = 0x4, fixed_abs, tag = 'smem constant byte address 0x4 - core index']
  #allocation1 [shape = 'u32[72,128]{1,0:T(1,128)}', space=vmem, size = 0x9000, scoped, tag = 'internal scratch']
  %s0 = inlined_call_operand.vmem [shape: bf16[16,200], index: 0, kind: input, shape index: {}]
  %s1 = inlined_call_operand.vmem [shape: f32[16,1], index: 1, kind: input, shape index: {}]
  %s2 = inlined_call_operand.vmem [shape: bf16[2,200,1024], index: 2, kind: input, shape index: {}]
  %s3 = inlined_call_operand.vmem [shape: bf16[2,16,1024], index: 3, kind: output, shape index: {}]
  %s4 = sld [smem:[#allocation0]]
  $region45: #{global_dis_forward.6} parent=0
    _
  %s6 = ssub.s32 1, %s4
  %s7 = scalar_select 0, %s6, %s4
  loop: start=0, step=1, limit=4
  $region2: #{global_dis_forward.6} parent=0 // loop_pre_header
    _
  $region3: #{global_dis_forward.6} parent=0 // loop_header
    %s9 = sphi 0, %s13
    %p10 = scmp.ge.s32.totalorder %s9, 4
    %s16 = sphi 0, %s28
    %s17 = sphi 0, %s24
    %s18 = sphi 0, %s16
    %s19 = sphi 0, %s17
    %s20 = sphi 0, %s18
    %s21 = sphi 0, %s19
    %s29 = sphi 0, %s29
    %s31 = sphi 0, %s29
    %s32 = sphi 0, %s31
    %s46 = sphi 0, %s32
    %s50 = sphi 0, %s50
    %s52 = sphi 0, %s50
    %s53 = sphi 0, %s52
    %s67 = sphi 0, %s53
    %s75 = sphi 0, %s77
    %s78 = sphi 0, %s75
    %s79 = sphi 0, %s78
    %s95 = sphi 0, %s79
    %s103 = sphi 0, %s105
    %s106 = sphi 0, %s103
    %s107 = sphi 0, %s106
    %s123 = sphi 0, %s107
  $region4: #{global_dis_forward.6} parent=0 // loop_header_branch
    %12 = sbr.rel (%p10) target = $region8
  $region5: #{global_dis_forward.6} parent=0 // loop_body
    %s14 = ssub.s32 %s9, 1
    %s15 = ssub.s32 %s9, 2
    %s22 = sadd.s32 1, %s17
    %p23 = scmp.ge.s32.totalorder %s22, 1
    %s24 = scalar_select %p23, 0, %s22
    %s25 = sadd.s32 1, %s16
    %s26 = scalar_select %p23, %s25, %s16
    %p27 = scmp.ge.s32.totalorder %s26, 2
    %s28 = scalar_select %p27, 0, %s26
    %s30 = sadd.s32 %s29, 1
    %p33 = scmp.eq.s32.totalorder %s9, 1
    %p34 = scmp.ne.s32.totalorder %s29, %s31
    %p35 = scmp.eq.s32.totalorder %s9, 0
    %p36 = por %p34, %p35
    %p37 = scmp.ne.s32.totalorder %s29, %s31
    %p38 = scmp.eq.s32.totalorder %s14, 1
    %p39 = por %p37, %p38
    %p40 = scmp.ne.s32.totalorder %s31, %s32
    %p41 = scmp.eq.s32.totalorder %s14, 0
    %p42 = por %p40, %p41
    %p43 = scmp.ne.s32.totalorder %s31, %s32
    %p44 = scmp.eq.s32.totalorder %s15, 1
    %p45 = por %p43, %p44
    %p47 = scmp.ne.s32.totalorder %s32, %s46
    %p48 = scmp.eq.s32.totalorder %s15, 0
    %p49 = por %p47, %p48
    %s51 = sadd.s32 %s50, 1
    %p54 = scmp.eq.s32.totalorder %s9, 1
    %p55 = scmp.ne.s32.totalorder %s50, %s52
    %p56 = scmp.eq.s32.totalorder %s9, 0
    %p57 = por %p55, %p56
    %p58 = scmp.ne.s32.totalorder %s50, %s52
    %p59 = scmp.eq.s32.totalorder %s14, 1
    %p60 = por %p58, %p59
    %p61 = scmp.ne.s32.totalorder %s52, %s53
    %p62 = scmp.eq.s32.totalorder %s14, 0
    %p63 = por %p61, %p62
    %p64 = scmp.ne.s32.totalorder %s52, %s53
    %p65 = scmp.eq.s32.totalorder %s15, 1
    %p66 = por %p64, %p65
    %p68 = scmp.ne.s32.totalorder %s53, %s67
    %p69 = scmp.eq.s32.totalorder %s15, 0
    %p70 = por %p68, %p69
    %s71 = ssub.s32 %s16, %s28
    %s72 = ssub.s32 %s17, %s24
    %s73 = sor.u32 %s71, %s72
    %p74 = scmp.eq.s32.totalorder %s73, 0
    %s76 = sadd.s32 %s75, 1
    %s77 = scalar_select %p74, %s75, %s76
    %p80 = pneg %p74
    %p81 = scmp.eq.s32.totalorder %s9, 1
    %p82 = por %p80, %p81
    %p83 = scmp.ne.s32.totalorder %s75, %s78
    %p84 = scmp.eq.s32.totalorder %s9, 0
    %p85 = por %p83, %p84
    %p86 = scmp.ne.s32.totalorder %s75, %s78
    %p87 = scmp.eq.s32.totalorder %s14, 1
    %p88 = por %p86, %p87
    %p89 = scmp.ne.s32.totalorder %s78, %s79
    %p90 = scmp.eq.s32.totalorder %s14, 0
    %p91 = por %p89, %p90
    %p92 = scmp.ne.s32.totalorder %s78, %s79
    %p93 = scmp.eq.s32.totalorder %s15, 1
    %p94 = por %p92, %p93
    %p96 = scmp.ne.s32.totalorder %s79, %s95
    %p97 = scmp.eq.s32.totalorder %s15, 0
    %p98 = por %p96, %p97
    %s99 = ssub.s32 %s16, %s28
    %s100 = ssub.s32 %s17, %s24
    %s101 = sor.u32 %s99, %s100
    %p102 = scmp.eq.s32.totalorder %s101, 0
    %s104 = sadd.s32 %s103, 1
    %s105 = scalar_select %p102, %s103, %s104
    %p108 = pneg %p102
    %p109 = scmp.eq.s32.totalorder %s9, 1
    %p110 = por %p108, %p109
    %p111 = scmp.ne.s32.totalorder %s103, %s106
    %p112 = scmp.eq.s32.totalorder %s9, 0
    %p113 = por %p111, %p112
    %p114 = scmp.ne.s32.totalorder %s103, %s106
    %p115 = scmp.eq.s32.totalorder %s14, 1
    %p116 = por %p114, %p115
    %p117 = scmp.ne.s32.totalorder %s106, %s107
    %p118 = scmp.eq.s32.totalorder %s14, 0
    %p119 = por %p117, %p118
    %p120 = scmp.ne.s32.totalorder %s106, %s107
    %p121 = scmp.eq.s32.totalorder %s15, 1
    %p122 = por %p120, %p121
    %p124 = scmp.ne.s32.totalorder %s107, %s123
    %p125 = scmp.eq.s32.totalorder %s15, 0
    %p126 = por %p124, %p125
    %p127 = scmp.le.s32.totalorder 1, %s9
    %p128 = scmp.lt.s32.totalorder %s9, 3
    %p129 = pnand %p127, %p128
    %p130 = pneg %p129
    // Predicated region
    $region9: #{global_dis_forward.6} parent=5 // pred_check
      _
    $region10: #{global_dis_forward.6} parent=5 // pred_check_branch
      %132 = sbr.rel (%p129) target = $region12
    $region11: #{global_dis_forward.6} parent=5 // pred_region
      %s133 = ssub.s32 %s9, 1
      // Predicated region
      $region13: #{global_dis_forward.6} parent=11 // pred_check
        %p134 = pneg %p42
      $region14: #{global_dis_forward.6} parent=11 // pred_check_branch
        %136 = sbr.rel (%p134) target = $region16
      $region15: #{global_dis_forward.6} parent=11 // pred_region
        _
      $region16: #{global_dis_forward.6} parent=11 // pred_fallthru
        _
      // Predicated region
      $region17: #{global_dis_forward.6} parent=11 // pred_check
        %p137 = pneg %p63
      $region18: #{global_dis_forward.6} parent=11 // pred_check_branch
        %139 = sbr.rel (%p137) target = $region20
      $region19: #{global_dis_forward.6} parent=11 // pred_region
        _
      $region20: #{global_dis_forward.6} parent=11 // pred_fallthru
        _
    $region12: #{global_dis_forward.6} parent=5 // pred_fallthru
      _
    %p140 = scmp.lt.s32.totalorder %s9, 2
    // Predicated region
    $region21: #{global_dis_forward.6} parent=5 // pred_check
      %p141 = pneg %p140
    $region22: #{global_dis_forward.6} parent=5 // pred_check_branch
      %143 = sbr.rel (%p141) target = $region24
    $region23: #{global_dis_forward.6} parent=5 // pred_region
      // Predicated region
      $region25: #{global_dis_forward.6} parent=23 // pred_check
        %p144 = pneg %p85
      $region26: #{global_dis_forward.6} parent=23 // pred_check_branch
        %146 = sbr.rel (%p144) target = $region28
      $region27: #{global_dis_forward.6} parent=23 // pred_region
        %s147 = smul.u32 8, %s17
        %p148 = scmp.lt.s32.totalorder %s16, 1
        %s149 = scalar_select %p148, %s16, 1
        %p150 = scmp.lt.s32.totalorder %s147, 7
        %s151 = scalar_select %p150, %s147, 7
        %s152 = smul.addr %s149, 200
        %s153 = sadd.s32 %s151, %s152
        %s154 = smul.addr %s153, 4
        %s155 = scalar_lea.vmem %s2, %s154
        %s156 = smul.u32 8, %s17
      $region28: #{global_dis_forward.6} parent=23 // pred_fallthru
        _
    $region24: #{global_dis_forward.6} parent=5 // pred_fallthru
      _
    %p157 = scmp.le.s32.totalorder 1, %s9
    %p158 = scmp.lt.s32.totalorder %s9, 3
    %p159 = pnand %p157, %p158
    %p160 = pneg %p159
    // Predicated region
    $region29: #{global_dis_forward.6} parent=5 // pred_check
      _
    $region30: #{global_dis_forward.6} parent=5 // pred_check_branch
      %162 = sbr.rel (%p159) target = $region32
    $region31: #{global_dis_forward.6} parent=5 // pred_region
      %s163 = ssub.s32 %s9, 1
      %p164 = pneg %p42
      %p165 = pneg %p39
      %p166 = pneg %p63
      %p167 = pneg %p60
      %s168 = smul.u32 8, %s19
      %p169 = scmp.lt.s32.totalorder %s18, 1
      %s170 = scalar_select %p169, %s18, 1
      %p171 = scmp.lt.s32.totalorder %s168, 7
      %s172 = scalar_select %p171, %s168, 7
      %s173 = smul.addr %s170, 200
      %s174 = sadd.s32 %s172, %s173
      %s175 = smul.addr %s174, 4
      %s176 = scalar_lea.vmem %s2, %s175
      %p177 = pneg %p91
      %p178 = pneg %p88
      %p179 = pneg %p119
      %p180 = pneg %p116
      %s181 = smul.u32 8, %s19
      %p182 = scmp.lt.s32.totalorder %s18, 1
      %s183 = scalar_select %p182, %s18, 1
      %p184 = scmp.lt.s32.totalorder %s181, 7
      %s185 = scalar_select %p184, %s181, 7
      %s186 = smul.addr %s183, 16
      %s187 = sadd.s32 %s185, %s186
      %s188 = smul.addr %s187, 4
      %s189 = scalar_lea.vmem %s3, %s188
      %s190 = smul.u32 8, %s19
      %p191 = scmp.lt.s32.totalorder %s18, 1
      %s192 = scalar_select %p191, %s18, 1
      %p193 = scmp.lt.s32.totalorder %s190, 7
      %s194 = scalar_select %p193, %s190, 7
      %s195 = smul.addr %s192, 200
      %s196 = sadd.s32 %s194, %s195
      %s197 = smul.addr %s196, 4
      %s198 = scalar_lea.vmem %s2, %s197
      %s199 = smul.u32 8, %s19
      %s200 = smul.u32 8, %s19
      %p201 = scmp.lt.s32.totalorder %s18, 1
      %s202 = scalar_select %p201, %s18, 1
      %p203 = scmp.lt.s32.totalorder %s200, 7
      %s204 = scalar_select %p203, %s200, 7
      %s205 = smul.addr %s202, 16
      %s206 = sadd.s32 %s204, %s205
      %s207 = smul.addr %s206, 4
      %s208 = scalar_lea.vmem %s3, %s207
      %s209 = smul.u32 8, %s19
      %v211 = vld [vmem:[%s0] sm:$0xff]
      %v212 = vld [vmem:[%s0 + $0x8] sm:$0xff]
      %v213 = vld [vmem:[%s198] sm:$0xff]
      %v214 = vld [vmem:[%s198 + $0x8] sm:$0xff]
      %v215 = vld [vmem:[%s198 + $0x10] sm:$0xff]
      %v216 = vld [vmem:[%s198 + $0x18] sm:$0xff]
      %v217 = vld [vmem:[%s198 + $0x20] sm:$0xff]
      %v218 = vld [vmem:[%s198 + $0x28] sm:$0xff]
      %v219 = vld [vmem:[%s198 + $0x30] sm:$0xff]
      %v220 = vld [vmem:[%s198 + $0x38] sm:$0xff]
      %v221 = vld [vmem:[%s198 + $0x40] sm:$0xff]
      %v222 = vld [vmem:[%s198 + $0x48] sm:$0xff]
      %v223 = vld [vmem:[%s198 + $0x50] sm:$0xff]
      %v224 = vld [vmem:[%s198 + $0x58] sm:$0xff]
      %v225 = vld [vmem:[%s198 + $0x60] sm:$0xff]
      %v226 = vld [vmem:[%s198 + $0x68] sm:$0xff]
      %v227 = vld [vmem:[%s198 + $0x70] sm:$0xff]
      %v228 = vld [vmem:[%s198 + $0x78] sm:$0xff]
      %v229 = vld [vmem:[%s198 + $0x80] sm:$0xff]
      %v230 = vld [vmem:[%s198 + $0x88] sm:$0xff]
      %v231 = vld [vmem:[%s198 + $0x90] sm:$0xff]
      %v232 = vld [vmem:[%s198 + $0x98] sm:$0xff]
      %v233 = vld [vmem:[%s198 + $0xa0] sm:$0xff]
      %v234 = vld [vmem:[%s198 + $0xa8] sm:$0xff]
      %v235 = vld [vmem:[%s198 + $0xb0] sm:$0xff]
      %v236 = vld [vmem:[%s198 + $0xb8] sm:$0xff]
      %v237 = vld [vmem:[%s198 + $0xc0] sm:$0xff]
      %v238 = vld [vmem:[%s198 + $0xc8] sm:$0xff]
      %v239 = vld [vmem:[%s198 + $0xd0] sm:$0xff]
      %v240 = vld [vmem:[%s198 + $0xd8] sm:$0xff]
      %v241 = vld [vmem:[%s198 + $0xe0] sm:$0xff]
      %v242 = vld [vmem:[%s198 + $0xe8] sm:$0xff]
      %v243 = vld [vmem:[%s198 + $0xf0] sm:$0xff]
      %v244 = vld [vmem:[%s198 + $0xf8] sm:$0xff]
      %v245 = vld [vmem:[%s198 + $0x100] sm:$0xff]
      %v246 = vld [vmem:[%s198 + $0x108] sm:$0xff]
      %v247 = vld [vmem:[%s198 + $0x110] sm:$0xff]
      %v248 = vld [vmem:[%s198 + $0x118] sm:$0xff]
      %v249 = vld [vmem:[%s198 + $0x120] sm:$0xff]
      %v250 = vld [vmem:[%s198 + $0x128] sm:$0xff]
      %v251 = vld [vmem:[%s198 + $0x130] sm:$0xff]
      %v252 = vld [vmem:[%s198 + $0x138] sm:$0xff]
      %v253 = vld [vmem:[%s198 + $0x140] sm:$0xff]
      %v254 = vld [vmem:[%s198 + $0x148] sm:$0xff]
      %v255 = vld [vmem:[%s198 + $0x150] sm:$0xff]
      %v256 = vld [vmem:[%s198 + $0x158] sm:$0xff]
      %v257 = vld [vmem:[%s198 + $0x160] sm:$0xff]
      %v258 = vld [vmem:[%s198 + $0x168] sm:$0xff]
      %v259 = vld [vmem:[%s198 + $0x170] sm:$0xff]
      %v260 = vld [vmem:[%s198 + $0x178] sm:$0xff]
      %v261 = vld [vmem:[%s198 + $0x180] sm:$0xff]
      %v262 = vld [vmem:[%s198 + $0x188] sm:$0xff]
      %v263 = vld [vmem:[%s198 + $0x190] sm:$0xff]
      %v264 = vld [vmem:[%s198 + $0x198] sm:$0xff]
      %v265 = vld [vmem:[%s198 + $0x1a0] sm:$0xff]
      %v266 = vld [vmem:[%s198 + $0x1a8] sm:$0xff]
      %v267 = vld [vmem:[%s198 + $0x1b0] sm:$0xff]
      %v268 = vld [vmem:[%s198 + $0x1b8] sm:$0xff]
      %v269 = vld [vmem:[%s198 + $0x1c0] sm:$0xff]
      %v270 = vld [vmem:[%s198 + $0x1c8] sm:$0xff]
      %v271 = vld [vmem:[%s198 + $0x1d0] sm:$0xff]
      %v272 = vld [vmem:[%s198 + $0x1d8] sm:$0xff]
      %v273 = vld [vmem:[%s198 + $0x1e0] sm:$0xff]
      %v274 = vld [vmem:[%s198 + $0x1e8] sm:$0xff]
      %v275 = vld [vmem:[%s198 + $0x1f0] sm:$0xff]
      %v276 = vld [vmem:[%s198 + $0x1f8] sm:$0xff]
      %v277 = vld [vmem:[%s198 + $0x200] sm:$0xff]
      %v278 = vld [vmem:[%s198 + $0x208] sm:$0xff]
      %v279 = vld [vmem:[%s198 + $0x210] sm:$0xff]
      %v280 = vld [vmem:[%s198 + $0x218] sm:$0xff]
      %v281 = vld [vmem:[%s198 + $0x220] sm:$0xff]
      %v282 = vld [vmem:[%s198 + $0x228] sm:$0xff]
      %v283 = vld [vmem:[%s198 + $0x230] sm:$0xff]
      %v284 = vld [vmem:[%s198 + $0x238] sm:$0xff]
      %v285 = vld [vmem:[%s198 + $0x240] sm:$0xff]
      %v286 = vld [vmem:[%s198 + $0x248] sm:$0xff]
      %v287 = vld [vmem:[%s198 + $0x250] sm:$0xff]
      %v288 = vld [vmem:[%s198 + $0x258] sm:$0xff]
      %v289 = vld [vmem:[%s198 + $0x260] sm:$0xff]
      %v290 = vld [vmem:[%s198 + $0x268] sm:$0xff]
      %v291 = vld [vmem:[%s198 + $0x270] sm:$0xff]
      %v292 = vld [vmem:[%s198 + $0x278] sm:$0xff]
      %v293 = vld [vmem:[%s198 + $0x280] sm:$0xff]
      %v294 = vld [vmem:[%s198 + $0x288] sm:$0xff]
      %v295 = vld [vmem:[%s198 + $0x290] sm:$0xff]
      %v296 = vld [vmem:[%s198 + $0x298] sm:$0xff]
      %v297 = vld [vmem:[%s198 + $0x2a0] sm:$0xff]
      %v298 = vld [vmem:[%s198 + $0x2a8] sm:$0xff]
      %v299 = vld [vmem:[%s198 + $0x2b0] sm:$0xff]
      %v300 = vld [vmem:[%s198 + $0x2b8] sm:$0xff]
      %v301 = vld [vmem:[%s198 + $0x2c0] sm:$0xff]
      %v302 = vld [vmem:[%s198 + $0x2c8] sm:$0xff]
      %v303 = vld [vmem:[%s198 + $0x2d0] sm:$0xff]
      %v304 = vld [vmem:[%s198 + $0x2d8] sm:$0xff]
      %v305 = vld [vmem:[%s198 + $0x2e0] sm:$0xff]
      %v306 = vld [vmem:[%s198 + $0x2e8] sm:$0xff]
      %v307 = vld [vmem:[%s198 + $0x2f0] sm:$0xff]
      %v308 = vld [vmem:[%s198 + $0x2f8] sm:$0xff]
      %v309 = vld [vmem:[%s198 + $0x300] sm:$0xff]
      %v310 = vld [vmem:[%s198 + $0x308] sm:$0xff]
      %v311 = vld [vmem:[%s198 + $0x310] sm:$0xff]
      %v312 = vld [vmem:[%s198 + $0x318] sm:$0xff]
      %v313 = vld [vmem:[%s1] sm:$0xff]
      %v314 = vld [vmem:[%s1 + $0x8] sm:$0xff]
      %316 = vset.pattern.permute.xlu0 0
      %317 = vperm.xlu0 %316, %v313
      %v318 = vpop.permute.xlu0 %317
      %321 = vset.pattern.permute.xlu0 0
      %322 = vperm.xlu0 %321, %v314
      %v323 = vpop.permute.xlu0 %322
      %v327 = vunpack.c.l.b16 %v211
      %v328 = vunpack.c.h.b16 %v211
      %v329 = vunpack.c.l.b16 %v212
      %v330 = vunpack.c.h.b16 %v212
      %v331 = vpack.c.b16 %v329, %v327
      %v332 = vpack.c.b16 %v330, %v328
      %v434 = vunpack.c.l.b16 %v213
      %v435 = vunpack.c.h.b16 %v213
      %v436 = vunpack.c.l.b16 %v214
      %v437 = vunpack.c.h.b16 %v214
      %v438 = vunpack.c.l.b16 %v215
      %v439 = vunpack.c.h.b16 %v215
      %v440 = vunpack.c.l.b16 %v216
      %v441 = vunpack.c.h.b16 %v216
      %v442 = vunpack.c.l.b16 %v217
      %v443 = vunpack.c.h.b16 %v217
      %v444 = vunpack.c.l.b16 %v218
      %v445 = vunpack.c.h.b16 %v218
      %v446 = vunpack.c.l.b16 %v219
      %v447 = vunpack.c.h.b16 %v219
      %v448 = vunpack.c.l.b16 %v220
      %v449 = vunpack.c.h.b16 %v220
      %v450 = vunpack.c.l.b16 %v221
      %v451 = vunpack.c.h.b16 %v221
      %v452 = vunpack.c.l.b16 %v222
      %v453 = vunpack.c.h.b16 %v222
      %v454 = vunpack.c.l.b16 %v223
      %v455 = vunpack.c.h.b16 %v223
      %v456 = vunpack.c.l.b16 %v224
      %v457 = vunpack.c.h.b16 %v224
      %v458 = vunpack.c.l.b16 %v225
      %v459 = vunpack.c.h.b16 %v225
      %v460 = vunpack.c.l.b16 %v226
      %v461 = vunpack.c.h.b16 %v226
      %v462 = vunpack.c.l.b16 %v227
      %v463 = vunpack.c.h.b16 %v227
      %v464 = vunpack.c.l.b16 %v228
      %v465 = vunpack.c.h.b16 %v228
      %v466 = vunpack.c.l.b16 %v229
      %v467 = vunpack.c.h.b16 %v229
      %v468 = vunpack.c.l.b16 %v230
      %v469 = vunpack.c.h.b16 %v230
      %v470 = vunpack.c.l.b16 %v231
      %v471 = vunpack.c.h.b16 %v231
      %v472 = vunpack.c.l.b16 %v232
      %v473 = vunpack.c.h.b16 %v232
      %v474 = vunpack.c.l.b16 %v233
      %v475 = vunpack.c.h.b16 %v233
      %v476 = vunpack.c.l.b16 %v234
      %v477 = vunpack.c.h.b16 %v234
      %v478 = vunpack.c.l.b16 %v235
      %v479 = vunpack.c.h.b16 %v235
      %v480 = vunpack.c.l.b16 %v236
      %v481 = vunpack.c.h.b16 %v236
      %v482 = vunpack.c.l.b16 %v237
      %v483 = vunpack.c.h.b16 %v237
      %v484 = vunpack.c.l.b16 %v238
      %v485 = vunpack.c.h.b16 %v238
      %v486 = vunpack.c.l.b16 %v239
      %v487 = vunpack.c.h.b16 %v239
      %v488 = vunpack.c.l.b16 %v240
      %v489 = vunpack.c.h.b16 %v240
      %v490 = vunpack.c.l.b16 %v241
      %v491 = vunpack.c.h.b16 %v241
      %v492 = vunpack.c.l.b16 %v242
      %v493 = vunpack.c.h.b16 %v242
      %v494 = vunpack.c.l.b16 %v243
      %v495 = vunpack.c.h.b16 %v243
      %v496 = vunpack.c.l.b16 %v244
      %v497 = vunpack.c.h.b16 %v244
      %v498 = vunpack.c.l.b16 %v245
      %v499 = vunpack.c.h.b16 %v245
      %v500 = vunpack.c.l.b16 %v246
      %v501 = vunpack.c.h.b16 %v246
      %v502 = vunpack.c.l.b16 %v247
      %v503 = vunpack.c.h.b16 %v247
      %v504 = vunpack.c.l.b16 %v248
      %v505 = vunpack.c.h.b16 %v248
      %v506 = vunpack.c.l.b16 %v249
      %v507 = vunpack.c.h.b16 %v249
      %v508 = vunpack.c.l.b16 %v250
      %v509 = vunpack.c.h.b16 %v250
      %v510 = vunpack.c.l.b16 %v251
      %v511 = vunpack.c.h.b16 %v251
      %v512 = vunpack.c.l.b16 %v252
      %v513 = vunpack.c.h.b16 %v252
      %v514 = vunpack.c.l.b16 %v253
      %v515 = vunpack.c.h.b16 %v253
      %v516 = vunpack.c.l.b16 %v254
      %v517 = vunpack.c.h.b16 %v254
      %v518 = vunpack.c.l.b16 %v255
      %v519 = vunpack.c.h.b16 %v255
      %v520 = vunpack.c.l.b16 %v256
      %v521 = vunpack.c.h.b16 %v256
      %v522 = vunpack.c.l.b16 %v257
      %v523 = vunpack.c.h.b16 %v257
      %v524 = vunpack.c.l.b16 %v258
      %v525 = vunpack.c.h.b16 %v258
      %v526 = vunpack.c.l.b16 %v259
      %v527 = vunpack.c.h.b16 %v259
      %v528 = vunpack.c.l.b16 %v260
      %v529 = vunpack.c.h.b16 %v260
      %v530 = vunpack.c.l.b16 %v261
      %v531 = vunpack.c.h.b16 %v261
      %v532 = vunpack.c.l.b16 %v262
      %v533 = vunpack.c.h.b16 %v262
      %v534 = vunpack.c.l.b16 %v263
      %v535 = vunpack.c.h.b16 %v263
      %v536 = vunpack.c.l.b16 %v264
      %v537 = vunpack.c.h.b16 %v264
      %v538 = vunpack.c.l.b16 %v265
      %v539 = vunpack.c.h.b16 %v265
      %v540 = vunpack.c.l.b16 %v266
      %v541 = vunpack.c.h.b16 %v266
      %v542 = vunpack.c.l.b16 %v267
      %v543 = vunpack.c.h.b16 %v267
      %v544 = vunpack.c.l.b16 %v268
      %v545 = vunpack.c.h.b16 %v268
      %v546 = vunpack.c.l.b16 %v269
      %v547 = vunpack.c.h.b16 %v269
      %v548 = vunpack.c.l.b16 %v270
      %v549 = vunpack.c.h.b16 %v270
      %v550 = vunpack.c.l.b16 %v271
      %v551 = vunpack.c.h.b16 %v271
      %v552 = vunpack.c.l.b16 %v272
      %v553 = vunpack.c.h.b16 %v272
      %v554 = vunpack.c.l.b16 %v273
      %v555 = vunpack.c.h.b16 %v273
      %v556 = vunpack.c.l.b16 %v274
      %v557 = vunpack.c.h.b16 %v274
      %v558 = vunpack.c.l.b16 %v275
      %v559 = vunpack.c.h.b16 %v275
      %v560 = vunpack.c.l.b16 %v276
      %v561 = vunpack.c.h.b16 %v276
      %v562 = vunpack.c.l.b16 %v277
      %v563 = vunpack.c.h.b16 %v277
      %v564 = vunpack.c.l.b16 %v278
      %v565 = vunpack.c.h.b16 %v278
      %v566 = vunpack.c.l.b16 %v279
      %v567 = vunpack.c.h.b16 %v279
      %v568 = vunpack.c.l.b16 %v280
      %v569 = vunpack.c.h.b16 %v280
      %v570 = vunpack.c.l.b16 %v281
      %v571 = vunpack.c.h.b16 %v281
      %v572 = vunpack.c.l.b16 %v282
      %v573 = vunpack.c.h.b16 %v282
      %v574 = vunpack.c.l.b16 %v283
      %v575 = vunpack.c.h.b16 %v283
      %v576 = vunpack.c.l.b16 %v284
      %v577 = vunpack.c.h.b16 %v284
      %v578 = vunpack.c.l.b16 %v285
      %v579 = vunpack.c.h.b16 %v285
      %v580 = vunpack.c.l.b16 %v286
      %v581 = vunpack.c.h.b16 %v286
      %v582 = vunpack.c.l.b16 %v287
      %v583 = vunpack.c.h.b16 %v287
      %v584 = vunpack.c.l.b16 %v288
      %v585 = vunpack.c.h.b16 %v288
      %v586 = vunpack.c.l.b16 %v289
      %v587 = vunpack.c.h.b16 %v289
      %v588 = vunpack.c.l.b16 %v290
      %v589 = vunpack.c.h.b16 %v290
      %v590 = vunpack.c.l.b16 %v291
      %v591 = vunpack.c.h.b16 %v291
      %v592 = vunpack.c.l.b16 %v292
      %v593 = vunpack.c.h.b16 %v292
      %v594 = vunpack.c.l.b16 %v293
      %v595 = vunpack.c.h.b16 %v293
      %v596 = vunpack.c.l.b16 %v294
      %v597 = vunpack.c.h.b16 %v294
      %v598 = vunpack.c.l.b16 %v295
      %v599 = vunpack.c.h.b16 %v295
      %v600 = vunpack.c.l.b16 %v296
      %v601 = vunpack.c.h.b16 %v296
      %v602 = vunpack.c.l.b16 %v297
      %v603 = vunpack.c.h.b16 %v297
      %v604 = vunpack.c.l.b16 %v298
      %v605 = vunpack.c.h.b16 %v298
      %v606 = vunpack.c.l.b16 %v299
      %v607 = vunpack.c.h.b16 %v299
      %v608 = vunpack.c.l.b16 %v300
      %v609 = vunpack.c.h.b16 %v300
      %v610 = vunpack.c.l.b16 %v301
      %v611 = vunpack.c.h.b16 %v301
      %v612 = vunpack.c.l.b16 %v302
      %v613 = vunpack.c.h.b16 %v302
      %v614 = vunpack.c.l.b16 %v303
      %v615 = vunpack.c.h.b16 %v303
      %v616 = vunpack.c.l.b16 %v304
      %v617 = vunpack.c.h.b16 %v304
      %v618 = vunpack.c.l.b16 %v305
      %v619 = vunpack.c.h.b16 %v305
      %v620 = vunpack.c.l.b16 %v306
      %v621 = vunpack.c.h.b16 %v306
      %v622 = vunpack.c.l.b16 %v307
      %v623 = vunpack.c.h.b16 %v307
      %v624 = vunpack.c.l.b16 %v308
      %v625 = vunpack.c.h.b16 %v308
      %v626 = vunpack.c.l.b16 %v309
      %v627 = vunpack.c.h.b16 %v309
      %v628 = vunpack.c.l.b16 %v310
      %v629 = vunpack.c.h.b16 %v310
      %v630 = vunpack.c.l.b16 %v311
      %v631 = vunpack.c.h.b16 %v311
      %v632 = vunpack.c.l.b16 %v312
      %v633 = vunpack.c.h.b16 %v312
      %v634 = vpack.c.b16 %v442, %v434
      %v635 = vpack.c.b16 %v443, %v435
      %v636 = vpack.c.b16 %v444, %v436
      %v637 = vpack.c.b16 %v445, %v437
      %v638 = vpack.c.b16 %v446, %v438
      %v639 = vpack.c.b16 %v447, %v439
      %v640 = vpack.c.b16 %v448, %v440
      %v641 = vpack.c.b16 %v449, %v441
      %v642 = vpack.c.b16 %v458, %v450
      %v643 = vpack.c.b16 %v459, %v451
      %v644 = vpack.c.b16 %v460, %v452
      %v645 = vpack.c.b16 %v461, %v453
      %v646 = vpack.c.b16 %v462, %v454
      %v647 = vpack.c.b16 %v463, %v455
      %v648 = vpack.c.b16 %v464, %v456
      %v649 = vpack.c.b16 %v465, %v457
      %v650 = vpack.c.b16 %v474, %v466
      %v651 = vpack.c.b16 %v475, %v467
      %v652 = vpack.c.b16 %v476, %v468
      %v653 = vpack.c.b16 %v477, %v469
      %v654 = vpack.c.b16 %v478, %v470
      %v655 = vpack.c.b16 %v479, %v471
      %v656 = vpack.c.b16 %v480, %v472
      %v657 = vpack.c.b16 %v481, %v473
      %v658 = vpack.c.b16 %v490, %v482
      %v659 = vpack.c.b16 %v491, %v483
      %v660 = vpack.c.b16 %v492, %v484
      %v661 = vpack.c.b16 %v493, %v485
      %v662 = vpack.c.b16 %v494, %v486
      %v663 = vpack.c.b16 %v495, %v487
      %v664 = vpack.c.b16 %v496, %v488
      %v665 = vpack.c.b16 %v497, %v489
      %v666 = vpack.c.b16 %v506, %v498
      %v667 = vpack.c.b16 %v507, %v499
      %v668 = vpack.c.b16 %v508, %v500
      %v669 = vpack.c.b16 %v509, %v501
      %v670 = vpack.c.b16 %v510, %v502
      %v671 = vpack.c.b16 %v511, %v503
      %v672 = vpack.c.b16 %v512, %v504
      %v673 = vpack.c.b16 %v513, %v505
      %v674 = vpack.c.b16 %v522, %v514
      %v675 = vpack.c.b16 %v523, %v515
      %v676 = vpack.c.b16 %v524, %v516
      %v677 = vpack.c.b16 %v525, %v517
      %v678 = vpack.c.b16 %v526, %v518
      %v679 = vpack.c.b16 %v527, %v519
      %v680 = vpack.c.b16 %v528, %v520
      %v681 = vpack.c.b16 %v529, %v521
      %v682 = vpack.c.b16 %v538, %v530
      %v683 = vpack.c.b16 %v539, %v531
      %v684 = vpack.c.b16 %v540, %v532
      %v685 = vpack.c.b16 %v541, %v533
      %v686 = vpack.c.b16 %v542, %v534
      %v687 = vpack.c.b16 %v543, %v535
      %v688 = vpack.c.b16 %v544, %v536
      %v689 = vpack.c.b16 %v545, %v537
      %v690 = vpack.c.b16 %v554, %v546
      %v691 = vpack.c.b16 %v555, %v547
      %v692 = vpack.c.b16 %v556, %v548
      %v693 = vpack.c.b16 %v557, %v549
      %v694 = vpack.c.b16 %v558, %v550
      %v695 = vpack.c.b16 %v559, %v551
      %v696 = vpack.c.b16 %v560, %v552
      %v697 = vpack.c.b16 %v561, %v553
      %v698 = vpack.c.b16 %v570, %v562
      %v699 = vpack.c.b16 %v571, %v563
      %v700 = vpack.c.b16 %v572, %v564
      %v701 = vpack.c.b16 %v573, %v565
      %v702 = vpack.c.b16 %v574, %v566
      %v703 = vpack.c.b16 %v575, %v567
      %v704 = vpack.c.b16 %v576, %v568
      %v705 = vpack.c.b16 %v577, %v569
      %v706 = vpack.c.b16 %v586, %v578
      %v707 = vpack.c.b16 %v587, %v579
      %v708 = vpack.c.b16 %v588, %v580
      %v709 = vpack.c.b16 %v589, %v581
      %v710 = vpack.c.b16 %v590, %v582
      %v711 = vpack.c.b16 %v591, %v583
      %v712 = vpack.c.b16 %v592, %v584
      %v713 = vpack.c.b16 %v593, %v585
      %v714 = vpack.c.b16 %v602, %v594
      %v715 = vpack.c.b16 %v603, %v595
      %v716 = vpack.c.b16 %v604, %v596
      %v717 = vpack.c.b16 %v605, %v597
      %v718 = vpack.c.b16 %v606, %v598
      %v719 = vpack.c.b16 %v607, %v599
      %v720 = vpack.c.b16 %v608, %v600
      %v721 = vpack.c.b16 %v609, %v601
      %v722 = vpack.c.b16 %v618, %v610
      %v723 = vpack.c.b16 %v619, %v611
      %v724 = vpack.c.b16 %v620, %v612
      %v725 = vpack.c.b16 %v621, %v613
      %v726 = vpack.c.b16 %v622, %v614
      %v727 = vpack.c.b16 %v623, %v615
      %v728 = vpack.c.b16 %v624, %v616
      %v729 = vpack.c.b16 %v625, %v617
      %v730 = vpack.c.b16 %v626, %v626
      %v731 = vpack.c.b16 %v627, %v627
      %v732 = vpack.c.b16 %v628, %v628
      %v733 = vpack.c.b16 %v629, %v629
      %v734 = vpack.c.b16 %v630, %v630
      %v735 = vpack.c.b16 %v631, %v631
      %v736 = vpack.c.b16 %v632, %v632
      %v737 = vpack.c.b16 %v633, %v633
      %vm834 = vcmask 588800
      %v836 = vsel %vm834, %v332, 0
      %vm838 = vcmask 1043456
      %v840 = vsel %vm838, %v730, 0
      %v843 = vsel %vm838, %v731, 0
      %v846 = vsel %vm838, %v732, 0
      %v849 = vsel %vm838, %v733, 0
      %v852 = vsel %vm838, %v734, 0
      %v855 = vsel %vm838, %v735, 0
      %v858 = vsel %vm838, %v736, 0
      %v861 = vsel %vm838, %v737, 0
      %863 = vmatpush.bf16.msra.mxu0 %v690
      %864 = vmatpush.bf16.msra.mxu0 %v682
      %865 = vmatpush.bf16.msra.mxu0 %v674
      %866 = vmatpush.bf16.msra.mxu0 %v666
      %867 = vmatpush.bf16.msra.mxu0 %v658
      %868 = vmatpush.bf16.msra.mxu0 %v650
      %869 = vmatpush.bf16.msra.mxu0 %v642
      %870 = vmatpush.bf16.msra.mxu0 %v634
      %871 = vmatmul.bf16.gmra.mxu0 %v331
      %v872 = vpop.f32.mrf.mxu0
      %v873 = vadd.f32 %v318, %v872
      %v874 = vpop.f32.mrf.mxu0
      %v875 = vadd.f32 %v323, %v874
      %876 = vdwg.mxu0
      %877 = vmatpush.bf16.msra.mxu0 0
      %878 = vmatpush.bf16.msra.mxu0 0
      %879 = vmatpush.bf16.msra.mxu0 0
      %880 = vmatpush.bf16.msra.mxu0 %v840
      %881 = vmatpush.bf16.msra.mxu0 %v722
      %882 = vmatpush.bf16.msra.mxu0 %v714
      %883 = vmatpush.bf16.msra.mxu0 %v706
      %884 = vmatpush.bf16.msra.mxu0 %v698
      %885 = vmatmul.bf16.gmra.mxu0 %v836
      %v886 = vpop.f32.mrf.mxu0
      %v887 = vadd.f32 %v873, %v886
      %v888 = vpop.f32.mrf.mxu0
      %v889 = vadd.f32 %v875, %v888
      %890 = vdwg.mxu0
      %891 = vmatpush.bf16.msra.mxu0 %v691
      %892 = vmatpush.bf16.msra.mxu0 %v683
      %893 = vmatpush.bf16.msra.mxu0 %v675
      %894 = vmatpush.bf16.msra.mxu0 %v667
      %895 = vmatpush.bf16.msra.mxu0 %v659
      %896 = vmatpush.bf16.msra.mxu0 %v651
      %897 = vmatpush.bf16.msra.mxu0 %v643
      %898 = vmatpush.bf16.msra.mxu0 %v635
      %899 = vmatmul.bf16.gmra.mxu0 %v331
      %v900 = vpop.f32.mrf.mxu0
      %v901 = vadd.f32 %v318, %v900
      %v902 = vpop.f32.mrf.mxu0
      %v903 = vadd.f32 %v323, %v902
      %904 = vdwg.mxu0
      %905 = vmatpush.bf16.msra.mxu0 0
      %906 = vmatpush.bf16.msra.mxu0 0
      %907 = vmatpush.bf16.msra.mxu0 0
      %908 = vmatpush.bf16.msra.mxu0 %v843
      %909 = vmatpush.bf16.msra.mxu0 %v723
      %910 = vmatpush.bf16.msra.mxu0 %v715
      %911 = vmatpush.bf16.msra.mxu0 %v707
      %912 = vmatpush.bf16.msra.mxu0 %v699
      %913 = vmatmul.bf16.gmra.mxu0 %v836
      %v914 = vpop.f32.mrf.mxu0
      %v915 = vadd.f32 %v901, %v914
      %v916 = vpop.f32.mrf.mxu0
      %v917 = vadd.f32 %v903, %v916
      %918 = vdwg.mxu0
      %919 = vmatpush.bf16.msra.mxu0 %v692
      %920 = vmatpush.bf16.msra.mxu0 %v684
      %921 = vmatpush.bf16.msra.mxu0 %v676
      %922 = vmatpush.bf16.msra.mxu0 %v668
      %923 = vmatpush.bf16.msra.mxu0 %v660
      %924 = vmatpush.bf16.msra.mxu0 %v652
      %925 = vmatpush.bf16.msra.mxu0 %v644
      %926 = vmatpush.bf16.msra.mxu0 %v636
      %927 = vmatmul.bf16.gmra.mxu0 %v331
      %v928 = vpop.f32.mrf.mxu0
      %v929 = vadd.f32 %v318, %v928
      %v930 = vpop.f32.mrf.mxu0
      %v931 = vadd.f32 %v323, %v930
      %932 = vdwg.mxu0
      %933 = vmatpush.bf16.msra.mxu0 0
      %934 = vmatpush.bf16.msra.mxu0 0
      %935 = vmatpush.bf16.msra.mxu0 0
      %936 = vmatpush.bf16.msra.mxu0 %v846
      %937 = vmatpush.bf16.msra.mxu0 %v724
      %938 = vmatpush.bf16.msra.mxu0 %v716
      %939 = vmatpush.bf16.msra.mxu0 %v708
      %940 = vmatpush.bf16.msra.mxu0 %v700
      %941 = vmatmul.bf16.gmra.mxu0 %v836
      %v942 = vpop.f32.mrf.mxu0
      %v943 = vadd.f32 %v929, %v942
      %v944 = vpop.f32.mrf.mxu0
      %v945 = vadd.f32 %v931, %v944
      %946 = vdwg.mxu0
      %947 = vmatpush.bf16.msra.mxu0 %v693
      %948 = vmatpush.bf16.msra.mxu0 %v685
      %949 = vmatpush.bf16.msra.mxu0 %v677
      %950 = vmatpush.bf16.msra.mxu0 %v669
      %951 = vmatpush.bf16.msra.mxu0 %v661
      %952 = vmatpush.bf16.msra.mxu0 %v653
      %953 = vmatpush.bf16.msra.mxu0 %v645
      %954 = vmatpush.bf16.msra.mxu0 %v637
      %955 = vmatmul.bf16.gmra.mxu0 %v331
      %v956 = vpop.f32.mrf.mxu0
      %v957 = vadd.f32 %v318, %v956
      %v958 = vpop.f32.mrf.mxu0
      %v959 = vadd.f32 %v323, %v958
      %960 = vdwg.mxu0
      %961 = vmatpush.bf16.msra.mxu0 0
      %962 = vmatpush.bf16.msra.mxu0 0
      %963 = vmatpush.bf16.msra.mxu0 0
      %964 = vmatpush.bf16.msra.mxu0 %v849
      %965 = vmatpush.bf16.msra.mxu0 %v725
      %966 = vmatpush.bf16.msra.mxu0 %v717
      %967 = vmatpush.bf16.msra.mxu0 %v709
      %968 = vmatpush.bf16.msra.mxu0 %v701
      %969 = vmatmul.bf16.gmra.mxu0 %v836
      %v970 = vpop.f32.mrf.mxu0
      %v971 = vadd.f32 %v957, %v970
      %v972 = vpop.f32.mrf.mxu0
      %v973 = vadd.f32 %v959, %v972
      %974 = vdwg.mxu0
      %975 = vmatpush.bf16.msra.mxu0 %v694
      %976 = vmatpush.bf16.msra.mxu0 %v686
      %977 = vmatpush.bf16.msra.mxu0 %v678
      %978 = vmatpush.bf16.msra.mxu0 %v670
      %979 = vmatpush.bf16.msra.mxu0 %v662
      %980 = vmatpush.bf16.msra.mxu0 %v654
      %981 = vmatpush.bf16.msra.mxu0 %v646
      %982 = vmatpush.bf16.msra.mxu0 %v638
      %983 = vmatmul.bf16.gmra.mxu0 %v331
      %v984 = vpop.f32.mrf.mxu0
      %v985 = vadd.f32 %v318, %v984
      %v986 = vpop.f32.mrf.mxu0
      %v987 = vadd.f32 %v323, %v986
      %988 = vdwg.mxu0
      %989 = vmatpush.bf16.msra.mxu0 0
      %990 = vmatpush.bf16.msra.mxu0 0
      %991 = vmatpush.bf16.msra.mxu0 0
      %992 = vmatpush.bf16.msra.mxu0 %v852
      %993 = vmatpush.bf16.msra.mxu0 %v726
      %994 = vmatpush.bf16.msra.mxu0 %v718
      %995 = vmatpush.bf16.msra.mxu0 %v710
      %996 = vmatpush.bf16.msra.mxu0 %v702
      %997 = vmatmul.bf16.gmra.mxu0 %v836
      %v998 = vpop.f32.mrf.mxu0
      %v999 = vadd.f32 %v985, %v998
      %v1000 = vpop.f32.mrf.mxu0
      %v1001 = vadd.f32 %v987, %v1000
      %1002 = vdwg.mxu0
      %1003 = vmatpush.bf16.msra.mxu0 %v695
      %1004 = vmatpush.bf16.msra.mxu0 %v687
      %1005 = vmatpush.bf16.msra.mxu0 %v679
      %1006 = vmatpush.bf16.msra.mxu0 %v671
      %1007 = vmatpush.bf16.msra.mxu0 %v663
      %1008 = vmatpush.bf16.msra.mxu0 %v655
      %1009 = vmatpush.bf16.msra.mxu0 %v647
      %1010 = vmatpush.bf16.msra.mxu0 %v639
      %1011 = vmatmul.bf16.gmra.mxu0 %v331
      %v1012 = vpop.f32.mrf.mxu0
      %v1013 = vadd.f32 %v318, %v1012
      %v1014 = vpop.f32.mrf.mxu0
      %v1015 = vadd.f32 %v323, %v1014
      %1016 = vdwg.mxu0
      %1017 = vmatpush.bf16.msra.mxu0 0
      %1018 = vmatpush.bf16.msra.mxu0 0
      %1019 = vmatpush.bf16.msra.mxu0 0
      %1020 = vmatpush.bf16.msra.mxu0 %v855
      %1021 = vmatpush.bf16.msra.mxu0 %v727
      %1022 = vmatpush.bf16.msra.mxu0 %v719
      %1023 = vmatpush.bf16.msra.mxu0 %v711
      %1024 = vmatpush.bf16.msra.mxu0 %v703
      %1025 = vmatmul.bf16.gmra.mxu0 %v836
      %v1026 = vpop.f32.mrf.mxu0
      %v1027 = vadd.f32 %v1013, %v1026
      %v1028 = vpop.f32.mrf.mxu0
      %v1029 = vadd.f32 %v1015, %v1028
      %1030 = vdwg.mxu0
      %1031 = vmatpush.bf16.msra.mxu0 %v696
      %1032 = vmatpush.bf16.msra.mxu0 %v688
      %1033 = vmatpush.bf16.msra.mxu0 %v680
      %1034 = vmatpush.bf16.msra.mxu0 %v672
      %1035 = vmatpush.bf16.msra.mxu0 %v664
      %1036 = vmatpush.bf16.msra.mxu0 %v656
      %1037 = vmatpush.bf16.msra.mxu0 %v648
      %1038 = vmatpush.bf16.msra.mxu0 %v640
      %1039 = vmatmul.bf16.gmra.mxu0 %v331
      %v1040 = vpop.f32.mrf.mxu0
      %v1041 = vadd.f32 %v318, %v1040
      %v1042 = vpop.f32.mrf.mxu0
      %v1043 = vadd.f32 %v323, %v1042
      %1044 = vdwg.mxu0
      %1045 = vmatpush.bf16.msra.mxu0 0
      %1046 = vmatpush.bf16.msra.mxu0 0
      %1047 = vmatpush.bf16.msra.mxu0 0
      %1048 = vmatpush.bf16.msra.mxu0 %v858
      %1049 = vmatpush.bf16.msra.mxu0 %v728
      %1050 = vmatpush.bf16.msra.mxu0 %v720
      %1051 = vmatpush.bf16.msra.mxu0 %v712
      %1052 = vmatpush.bf16.msra.mxu0 %v704
      %1053 = vmatmul.bf16.gmra.mxu0 %v836
      %v1054 = vpop.f32.mrf.mxu0
      %v1055 = vadd.f32 %v1041, %v1054
      %v1056 = vpop.f32.mrf.mxu0
      %v1057 = vadd.f32 %v1043, %v1056
      %1058 = vdwg.mxu0
      %1059 = vmatpush.bf16.msra.mxu0 %v697
      %1060 = vmatpush.bf16.msra.mxu0 %v689
      %1061 = vmatpush.bf16.msra.mxu0 %v681
      %1062 = vmatpush.bf16.msra.mxu0 %v673
      %1063 = vmatpush.bf16.msra.mxu0 %v665
      %1064 = vmatpush.bf16.msra.mxu0 %v657
      %1065 = vmatpush.bf16.msra.mxu0 %v649
      %1066 = vmatpush.bf16.msra.mxu0 %v641
      %1067 = vmatmul.bf16.gmra.mxu0 %v331
      %v1068 = vpop.f32.mrf.mxu0
      %v1069 = vadd.f32 %v318, %v1068
      %v1070 = vpop.f32.mrf.mxu0
      %v1071 = vadd.f32 %v323, %v1070
      %1072 = vdwg.mxu0
      %1073 = vmatpush.bf16.msra.mxu0 0
      %1074 = vmatpush.bf16.msra.mxu0 0
      %1075 = vmatpush.bf16.msra.mxu0 0
      %1076 = vmatpush.bf16.msra.mxu0 %v861
      %1077 = vmatpush.bf16.msra.mxu0 %v729
      %1078 = vmatpush.bf16.msra.mxu0 %v721
      %1079 = vmatpush.bf16.msra.mxu0 %v713
      %1080 = vmatpush.bf16.msra.mxu0 %v705
      %1081 = vmatmul.bf16.gmra.mxu0 %v836
      %v1082 = vpop.f32.mrf.mxu0
      %v1083 = vadd.f32 %v1069, %v1082
      %v1084 = vpop.f32.mrf.mxu0
      %v1085 = vadd.f32 %v1071, %v1084
      %1086 = vdwg.mxu0
      %vm1087 = vcmp.ge.f32.partialorder %v887, 0.0
      %vm1088 = vcmp.ge.f32.partialorder %v915, 0.0
      %vm1089 = vcmp.ge.f32.partialorder %v943, 0.0
      %vm1090 = vcmp.ge.f32.partialorder %v971, 0.0
      %vm1091 = vcmp.ge.f32.partialorder %v999, 0.0
      %vm1092 = vcmp.ge.f32.partialorder %v1027, 0.0
      %vm1093 = vcmp.ge.f32.partialorder %v1055, 0.0
      %vm1094 = vcmp.ge.f32.partialorder %v1083, 0.0
      %vm1095 = vcmp.ge.f32.partialorder %v889, 0.0
      %vm1096 = vcmp.ge.f32.partialorder %v917, 0.0
      %vm1097 = vcmp.ge.f32.partialorder %v945, 0.0
      %vm1098 = vcmp.ge.f32.partialorder %v973, 0.0
      %vm1099 = vcmp.ge.f32.partialorder %v1001, 0.0
      %vm1100 = vcmp.ge.f32.partialorder %v1029, 0.0
      %vm1101 = vcmp.ge.f32.partialorder %v1057, 0.0
      %vm1102 = vcmp.ge.f32.partialorder %v1085, 0.0
      %v1103 = vmul.f32 %v887, 0.2
      %v1104 = vmul.f32 %v915, 0.2
      %v1105 = vmul.f32 %v943, 0.2
      %v1106 = vmul.f32 %v971, 0.2
      %v1107 = vmul.f32 %v999, 0.2
      %v1108 = vmul.f32 %v1027, 0.2
      %v1109 = vmul.f32 %v1055, 0.2
      %v1110 = vmul.f32 %v1083, 0.2
      %v1111 = vmul.f32 %v889, 0.2
      %v1112 = vmul.f32 %v917, 0.2
      %v1113 = vmul.f32 %v945, 0.2
      %v1114 = vmul.f32 %v973, 0.2
      %v1115 = vmul.f32 %v1001, 0.2
      %v1116 = vmul.f32 %v1029, 0.2
      %v1117 = vmul.f32 %v1057, 0.2
      %v1118 = vmul.f32 %v1085, 0.2
      %v1119 = vsel %vm1087, %v887, %v1103
      %v1120 = vsel %vm1088, %v915, %v1104
      %v1121 = vsel %vm1089, %v943, %v1105
      %v1122 = vsel %vm1090, %v971, %v1106
      %v1123 = vsel %vm1091, %v999, %v1107
      %v1124 = vsel %vm1092, %v1027, %v1108
      %v1125 = vsel %vm1093, %v1055, %v1109
      %v1126 = vsel %vm1094, %v1083, %v1110
      %v1127 = vsel %vm1095, %v889, %v1111
      %v1128 = vsel %vm1096, %v917, %v1112
      %v1129 = vsel %vm1097, %v945, %v1113
      %v1130 = vsel %vm1098, %v973, %v1114
      %v1131 = vsel %vm1099, %v1001, %v1115
      %v1132 = vsel %vm1100, %v1029, %v1116
      %v1133 = vsel %vm1101, %v1057, %v1117
      %v1134 = vsel %vm1102, %v1085, %v1118
      %v1135 = vpack.c.bf16 %v1120, %v1119
      %v1136 = vpack.c.bf16 %v1122, %v1121
      %v1137 = vpack.c.bf16 %v1124, %v1123
      %v1138 = vpack.c.bf16 %v1126, %v1125
      %v1139 = vpack.c.bf16 %v1128, %v1127
      %v1140 = vpack.c.bf16 %v1130, %v1129
      %v1141 = vpack.c.bf16 %v1132, %v1131
      %v1142 = vpack.c.bf16 %v1134, %v1133
      %1143 = vst [vmem:[%s208] sm:$0xff] %v1135
      %1144 = vst [vmem:[%s208 + $0x8] sm:$0xff] %v1136
      %1145 = vst [vmem:[%s208 + $0x10] sm:$0xff] %v1137
      %1146 = vst [vmem:[%s208 + $0x18] sm:$0xff] %v1138
      %1147 = vst [vmem:[%s208 + $0x20] sm:$0xff] %v1139
      %1148 = vst [vmem:[%s208 + $0x28] sm:$0xff] %v1140
      %1149 = vst [vmem:[%s208 + $0x30] sm:$0xff] %v1141
      %1150 = vst [vmem:[%s208 + $0x38] sm:$0xff] %v1142
      %s1151 = smul.u32 8, %s19
      %p1152 = scmp.lt.s32.totalorder %s18, 1
      %s1153 = scalar_select %p1152, %s18, 1
      %p1154 = scmp.lt.s32.totalorder %s1151, 7
      %s1155 = scalar_select %p1154, %s1151, 7
      %s1156 = smul.addr %s1153, 16
      %s1157 = sadd.s32 %s1155, %s1156
      %s1158 = smul.addr %s1157, 4
      %s1159 = scalar_lea.vmem %s3, %s1158
      // Predicated region
      $region33: #{global_dis_forward.6} parent=31 // pred_check
        %p1160 = pneg %p116
      $region34: #{global_dis_forward.6} parent=31 // pred_check_branch
        %1162 = sbr.rel (%p1160) target = $region36
      $region35: #{global_dis_forward.6} parent=31 // pred_region
        %s1163 = smul.u32 8, %s19
      $region36: #{global_dis_forward.6} parent=31 // pred_fallthru
        _
    $region32: #{global_dis_forward.6} parent=5 // pred_fallthru
      _
    %p1164 = scmp.le.s32.totalorder 2, %s9
    // Predicated region
    $region37: #{global_dis_forward.6} parent=5 // pred_check
      %p1165 = pneg %p1164
    $region38: #{global_dis_forward.6} parent=5 // pred_check_branch
      %1167 = sbr.rel (%p1165) target = $region40
    $region39: #{global_dis_forward.6} parent=5 // pred_region
      %s1168 = ssub.s32 %s9, 2
      // Predicated region
      $region41: #{global_dis_forward.6} parent=39 // pred_check
        %p1169 = pneg %p122
      $region42: #{global_dis_forward.6} parent=39 // pred_check_branch
        %1171 = sbr.rel (%p1169) target = $region44
      $region43: #{global_dis_forward.6} parent=39 // pred_region
        %s1172 = smul.u32 8, %s21
        %p1173 = scmp.lt.s32.totalorder %s20, 1
        %s1174 = scalar_select %p1173, %s20, 1
        %p1175 = scmp.lt.s32.totalorder %s1172, 7
        %s1176 = scalar_select %p1175, %s1172, 7
        %s1177 = smul.addr %s1174, 16
        %s1178 = sadd.s32 %s1176, %s1177
        %s1179 = smul.addr %s1178, 4
        %s1180 = scalar_lea.vmem %s3, %s1179
      $region44: #{global_dis_forward.6} parent=39 // pred_fallthru
        _
    $region40: #{global_dis_forward.6} parent=5 // pred_fallthru
      _
  $region6: #{global_dis_forward.6} parent=0 // loop_footer
    %s13 = sadd.s32 1, %s9
  $region7: #{global_dis_forward.6} parent=0 // loop_footer_branch
    %8 = sbr.rel target = $region3
  $region8: #{global_dis_forward.6} parent=0 // loop_exit
    _

// kernel: global_dis_forward.7
$region0: #{global_dis_forward.7}
  #allocation0 [shape = 'u32[]', space=smem, size = 0x4, offset = 0x4, fixed_abs, tag = 'smem constant byte address 0x4 - core index']
  #allocation1 [shape = 'u32[72,128]{1,0:T(1,128)}', space=vmem, size = 0x9000, scoped, tag = 'internal scratch']
  %s0 = inlined_call_operand.vmem [shape: bf16[16,400], index: 0, kind: input, shape index: {}]
  %s1 = inlined_call_operand.vmem [shape: f32[16,1], index: 1, kind: input, shape index: {}]
  %s2 = inlined_call_operand.vmem [shape: bf16[2,400,256], index: 2, kind: input, shape index: {}]
  %s3 = inlined_call_operand.vmem [shape: f32[2,16,256], index: 3, kind: output, shape index: {}]
  %s4 = sld [smem:[#allocation0]]
  $region45: #{global_dis_forward.7} parent=0
    _
  %s6 = ssub.s32 1, %s4
  %s7 = scalar_select 0, %s6, %s4
  loop: start=0, step=1, limit=4
  $region2: #{global_dis_forward.7} parent=0 // loop_pre_header
    _
  $region3: #{global_dis_forward.7} parent=0 // loop_header
    %s9 = sphi 0, %s13
    %p10 = scmp.ge.s32.totalorder %s9, 4
    %s16 = sphi 0, %s28
    %s17 = sphi 0, %s24
    %s18 = sphi 0, %s16
    %s19 = sphi 0, %s17
    %s20 = sphi 0, %s18
    %s21 = sphi 0, %s19
    %s29 = sphi 0, %s29
    %s31 = sphi 0, %s29
    %s32 = sphi 0, %s31
    %s46 = sphi 0, %s32
    %s50 = sphi 0, %s50
    %s52 = sphi 0, %s50
    %s53 = sphi 0, %s52
    %s67 = sphi 0, %s53
    %s75 = sphi 0, %s77
    %s78 = sphi 0, %s75
    %s79 = sphi 0, %s78
    %s95 = sphi 0, %s79
    %s103 = sphi 0, %s105
    %s106 = sphi 0, %s103
    %s107 = sphi 0, %s106
    %s123 = sphi 0, %s107
  $region4: #{global_dis_forward.7} parent=0 // loop_header_branch
    %12 = sbr.rel (%p10) target = $region8
  $region5: #{global_dis_forward.7} parent=0 // loop_body
    %s14 = ssub.s32 %s9, 1
    %s15 = ssub.s32 %s9, 2
    %s22 = sadd.s32 1, %s17
    %p23 = scmp.ge.s32.totalorder %s22, 1
    %s24 = scalar_select %p23, 0, %s22
    %s25 = sadd.s32 1, %s16
    %s26 = scalar_select %p23, %s25, %s16
    %p27 = scmp.ge.s32.totalorder %s26, 2
    %s28 = scalar_select %p27, 0, %s26
    %s30 = sadd.s32 %s29, 1
    %p33 = scmp.eq.s32.totalorder %s9, 1
    %p34 = scmp.ne.s32.totalorder %s29, %s31
    %p35 = scmp.eq.s32.totalorder %s9, 0
    %p36 = por %p34, %p35
    %p37 = scmp.ne.s32.totalorder %s29, %s31
    %p38 = scmp.eq.s32.totalorder %s14, 1
    %p39 = por %p37, %p38
    %p40 = scmp.ne.s32.totalorder %s31, %s32
    %p41 = scmp.eq.s32.totalorder %s14, 0
    %p42 = por %p40, %p41
    %p43 = scmp.ne.s32.totalorder %s31, %s32
    %p44 = scmp.eq.s32.totalorder %s15, 1
    %p45 = por %p43, %p44
    %p47 = scmp.ne.s32.totalorder %s32, %s46
    %p48 = scmp.eq.s32.totalorder %s15, 0
    %p49 = por %p47, %p48
    %s51 = sadd.s32 %s50, 1
    %p54 = scmp.eq.s32.totalorder %s9, 1
    %p55 = scmp.ne.s32.totalorder %s50, %s52
    %p56 = scmp.eq.s32.totalorder %s9, 0
    %p57 = por %p55, %p56
    %p58 = scmp.ne.s32.totalorder %s50, %s52
    %p59 = scmp.eq.s32.totalorder %s14, 1
    %p60 = por %p58, %p59
    %p61 = scmp.ne.s32.totalorder %s52, %s53
    %p62 = scmp.eq.s32.totalorder %s14, 0
    %p63 = por %p61, %p62
    %p64 = scmp.ne.s32.totalorder %s52, %s53
    %p65 = scmp.eq.s32.totalorder %s15, 1
    %p66 = por %p64, %p65
    %p68 = scmp.ne.s32.totalorder %s53, %s67
    %p69 = scmp.eq.s32.totalorder %s15, 0
    %p70 = por %p68, %p69
    %s71 = ssub.s32 %s16, %s28
    %s72 = ssub.s32 %s17, %s24
    %s73 = sor.u32 %s71, %s72
    %p74 = scmp.eq.s32.totalorder %s73, 0
    %s76 = sadd.s32 %s75, 1
    %s77 = scalar_select %p74, %s75, %s76
    %p80 = pneg %p74
    %p81 = scmp.eq.s32.totalorder %s9, 1
    %p82 = por %p80, %p81
    %p83 = scmp.ne.s32.totalorder %s75, %s78
    %p84 = scmp.eq.s32.totalorder %s9, 0
    %p85 = por %p83, %p84
    %p86 = scmp.ne.s32.totalorder %s75, %s78
    %p87 = scmp.eq.s32.totalorder %s14, 1
    %p88 = por %p86, %p87
    %p89 = scmp.ne.s32.totalorder %s78, %s79
    %p90 = scmp.eq.s32.totalorder %s14, 0
    %p91 = por %p89, %p90
    %p92 = scmp.ne.s32.totalorder %s78, %s79
    %p93 = scmp.eq.s32.totalorder %s15, 1
    %p94 = por %p92, %p93
    %p96 = scmp.ne.s32.totalorder %s79, %s95
    %p97 = scmp.eq.s32.totalorder %s15, 0
    %p98 = por %p96, %p97
    %s99 = ssub.s32 %s16, %s28
    %s100 = ssub.s32 %s17, %s24
    %s101 = sor.u32 %s99, %s100
    %p102 = scmp.eq.s32.totalorder %s101, 0
    %s104 = sadd.s32 %s103, 1
    %s105 = scalar_select %p102, %s103, %s104
    %p108 = pneg %p102
    %p109 = scmp.eq.s32.totalorder %s9, 1
    %p110 = por %p108, %p109
    %p111 = scmp.ne.s32.totalorder %s103, %s106
    %p112 = scmp.eq.s32.totalorder %s9, 0
    %p113 = por %p111, %p112
    %p114 = scmp.ne.s32.totalorder %s103, %s106
    %p115 = scmp.eq.s32.totalorder %s14, 1
    %p116 = por %p114, %p115
    %p117 = scmp.ne.s32.totalorder %s106, %s107
    %p118 = scmp.eq.s32.totalorder %s14, 0
    %p119 = por %p117, %p118
    %p120 = scmp.ne.s32.totalorder %s106, %s107
    %p121 = scmp.eq.s32.totalorder %s15, 1
    %p122 = por %p120, %p121
    %p124 = scmp.ne.s32.totalorder %s107, %s123
    %p125 = scmp.eq.s32.totalorder %s15, 0
    %p126 = por %p124, %p125
    %p127 = scmp.le.s32.totalorder 1, %s9
    %p128 = scmp.lt.s32.totalorder %s9, 3
    %p129 = pnand %p127, %p128
    %p130 = pneg %p129
    // Predicated region
    $region9: #{global_dis_forward.7} parent=5 // pred_check
      _
    $region10: #{global_dis_forward.7} parent=5 // pred_check_branch
      %132 = sbr.rel (%p129) target = $region12
    $region11: #{global_dis_forward.7} parent=5 // pred_region
      %s133 = ssub.s32 %s9, 1
      // Predicated region
      $region13: #{global_dis_forward.7} parent=11 // pred_check
        %p134 = pneg %p42
      $region14: #{global_dis_forward.7} parent=11 // pred_check_branch
        %136 = sbr.rel (%p134) target = $region16
      $region15: #{global_dis_forward.7} parent=11 // pred_region
        _
      $region16: #{global_dis_forward.7} parent=11 // pred_fallthru
        _
      // Predicated region
      $region17: #{global_dis_forward.7} parent=11 // pred_check
        %p137 = pneg %p63
      $region18: #{global_dis_forward.7} parent=11 // pred_check_branch
        %139 = sbr.rel (%p137) target = $region20
      $region19: #{global_dis_forward.7} parent=11 // pred_region
        _
      $region20: #{global_dis_forward.7} parent=11 // pred_fallthru
        _
    $region12: #{global_dis_forward.7} parent=5 // pred_fallthru
      _
    %p140 = scmp.lt.s32.totalorder %s9, 2
    // Predicated region
    $region21: #{global_dis_forward.7} parent=5 // pred_check
      %p141 = pneg %p140
    $region22: #{global_dis_forward.7} parent=5 // pred_check_branch
      %143 = sbr.rel (%p141) target = $region24
    $region23: #{global_dis_forward.7} parent=5 // pred_region
      // Predicated region
      $region25: #{global_dis_forward.7} parent=23 // pred_check
        %p144 = pneg %p85
      $region26: #{global_dis_forward.7} parent=23 // pred_check_branch
        %146 = sbr.rel (%p144) target = $region28
      $region27: #{global_dis_forward.7} parent=23 // pred_region
        %s147 = smul.u32 2, %s17
        %p148 = scmp.lt.s32.totalorder %s16, 1
        %s149 = scalar_select %p148, %s16, 1
        %p150 = scmp.lt.s32.totalorder %s147, 1
        %s151 = scalar_select %p150, %s147, 1
        %s152 = smul.addr %s149, 100
        %s153 = sadd.s32 %s151, %s152
        %s154 = smul.addr %s153, 4
        %s155 = scalar_lea.vmem %s2, %s154
        %s156 = smul.u32 2, %s17
      $region28: #{global_dis_forward.7} parent=23 // pred_fallthru
        _
    $region24: #{global_dis_forward.7} parent=5 // pred_fallthru
      _
    %p157 = scmp.le.s32.totalorder 1, %s9
    %p158 = scmp.lt.s32.totalorder %s9, 3
    %p159 = pnand %p157, %p158
    %p160 = pneg %p159
    // Predicated region
    $region29: #{global_dis_forward.7} parent=5 // pred_check
      _
    $region30: #{global_dis_forward.7} parent=5 // pred_check_branch
      %162 = sbr.rel (%p159) target = $region32
    $region31: #{global_dis_forward.7} parent=5 // pred_region
      %s163 = ssub.s32 %s9, 1
      %p164 = pneg %p42
      %p165 = pneg %p39
      %p166 = pneg %p63
      %p167 = pneg %p60
      %s168 = smul.u32 2, %s19
      %p169 = scmp.lt.s32.totalorder %s18, 1
      %s170 = scalar_select %p169, %s18, 1
      %p171 = scmp.lt.s32.totalorder %s168, 1
      %s172 = scalar_select %p171, %s168, 1
      %s173 = smul.addr %s170, 100
      %s174 = sadd.s32 %s172, %s173
      %s175 = smul.addr %s174, 4
      %s176 = scalar_lea.vmem %s2, %s175
      %p177 = pneg %p91
      %p178 = pneg %p88
      %p179 = pneg %p119
      %p180 = pneg %p116
      %s181 = smul.u32 2, %s19
      %p182 = scmp.lt.s32.totalorder %s18, 1
      %s183 = scalar_select %p182, %s18, 1
      %p184 = scmp.lt.s32.totalorder %s181, 1
      %s185 = scalar_select %p184, %s181, 1
      %s186 = smul.addr %s183, 4
      %s187 = sadd.s32 %s185, %s186
      %s188 = smul.addr %s187, 8
      %s189 = scalar_lea.vmem %s3, %s188
      %s190 = smul.u32 2, %s19
      %p191 = scmp.lt.s32.totalorder %s18, 1
      %s192 = scalar_select %p191, %s18, 1
      %p193 = scmp.lt.s32.totalorder %s190, 1
      %s194 = scalar_select %p193, %s190, 1
      %s195 = smul.addr %s192, 100
      %s196 = sadd.s32 %s194, %s195
      %s197 = smul.addr %s196, 4
      %s198 = scalar_lea.vmem %s2, %s197
      %s199 = smul.u32 2, %s19
      %s200 = smul.u32 2, %s19
      %p201 = scmp.lt.s32.totalorder %s18, 1
      %s202 = scalar_select %p201, %s18, 1
      %p203 = scmp.lt.s32.totalorder %s200, 1
      %s204 = scalar_select %p203, %s200, 1
      %s205 = smul.addr %s202, 4
      %s206 = sadd.s32 %s204, %s205
      %s207 = smul.addr %s206, 8
      %s208 = scalar_lea.vmem %s3, %s207
      %s209 = smul.u32 2, %s19
      %v211 = vld [vmem:[%s0] sm:$0xff]
      %v212 = vld [vmem:[%s0 + $0x8] sm:$0xff]
      %v213 = vld [vmem:[%s0 + $0x10] sm:$0xff]
      %v214 = vld [vmem:[%s0 + $0x18] sm:$0xff]
      %v215 = vld [vmem:[%s198] sm:$0xff]
      %v216 = vld [vmem:[%s198 + $0x8] sm:$0xff]
      %v217 = vld [vmem:[%s198 + $0x10] sm:$0xff]
      %v218 = vld [vmem:[%s198 + $0x18] sm:$0xff]
      %v219 = vld [vmem:[%s198 + $0x20] sm:$0xff]
      %v220 = vld [vmem:[%s198 + $0x28] sm:$0xff]
      %v221 = vld [vmem:[%s198 + $0x30] sm:$0xff]
      %v222 = vld [vmem:[%s198 + $0x38] sm:$0xff]
      %v223 = vld [vmem:[%s198 + $0x40] sm:$0xff]
      %v224 = vld [vmem:[%s198 + $0x48] sm:$0xff]
      %v225 = vld [vmem:[%s198 + $0x50] sm:$0xff]
      %v226 = vld [vmem:[%s198 + $0x58] sm:$0xff]
      %v227 = vld [vmem:[%s198 + $0x60] sm:$0xff]
      %v228 = vld [vmem:[%s198 + $0x68] sm:$0xff]
      %v229 = vld [vmem:[%s198 + $0x70] sm:$0xff]
      %v230 = vld [vmem:[%s198 + $0x78] sm:$0xff]
      %v231 = vld [vmem:[%s198 + $0x80] sm:$0xff]
      %v232 = vld [vmem:[%s198 + $0x88] sm:$0xff]
      %v233 = vld [vmem:[%s198 + $0x90] sm:$0xff]
      %v234 = vld [vmem:[%s198 + $0x98] sm:$0xff]
      %v235 = vld [vmem:[%s198 + $0xa0] sm:$0xff]
      %v236 = vld [vmem:[%s198 + $0xa8] sm:$0xff]
      %v237 = vld [vmem:[%s198 + $0xb0] sm:$0xff]
      %v238 = vld [vmem:[%s198 + $0xb8] sm:$0xff]
      %v239 = vld [vmem:[%s198 + $0xc0] sm:$0xff]
      %v240 = vld [vmem:[%s198 + $0xc8] sm:$0xff]
      %v241 = vld [vmem:[%s198 + $0xd0] sm:$0xff]
      %v242 = vld [vmem:[%s198 + $0xd8] sm:$0xff]
      %v243 = vld [vmem:[%s198 + $0xe0] sm:$0xff]
      %v244 = vld [vmem:[%s198 + $0xe8] sm:$0xff]
      %v245 = vld [vmem:[%s198 + $0xf0] sm:$0xff]
      %v246 = vld [vmem:[%s198 + $0xf8] sm:$0xff]
      %v247 = vld [vmem:[%s198 + $0x100] sm:$0xff]
      %v248 = vld [vmem:[%s198 + $0x108] sm:$0xff]
      %v249 = vld [vmem:[%s198 + $0x110] sm:$0xff]
      %v250 = vld [vmem:[%s198 + $0x118] sm:$0xff]
      %v251 = vld [vmem:[%s198 + $0x120] sm:$0xff]
      %v252 = vld [vmem:[%s198 + $0x128] sm:$0xff]
      %v253 = vld [vmem:[%s198 + $0x130] sm:$0xff]
      %v254 = vld [vmem:[%s198 + $0x138] sm:$0xff]
      %v255 = vld [vmem:[%s198 + $0x140] sm:$0xff]
      %v256 = vld [vmem:[%s198 + $0x148] sm:$0xff]
      %v257 = vld [vmem:[%s198 + $0x150] sm:$0xff]
      %v258 = vld [vmem:[%s198 + $0x158] sm:$0xff]
      %v259 = vld [vmem:[%s198 + $0x160] sm:$0xff]
      %v260 = vld [vmem:[%s198 + $0x168] sm:$0xff]
      %v261 = vld [vmem:[%s198 + $0x170] sm:$0xff]
      %v262 = vld [vmem:[%s198 + $0x178] sm:$0xff]
      %v263 = vld [vmem:[%s198 + $0x180] sm:$0xff]
      %v264 = vld [vmem:[%s198 + $0x188] sm:$0xff]
      %v265 = vld [vmem:[%s1] sm:$0xff]
      %v266 = vld [vmem:[%s1 + $0x8] sm:$0xff]
      %268 = vset.pattern.permute.xlu0 0
      %269 = vperm.xlu0 %268, %v265
      %v270 = vpop.permute.xlu0 %269
      %273 = vset.pattern.permute.xlu0 0
      %274 = vperm.xlu0 %273, %v266
      %v275 = vpop.permute.xlu0 %274
      %v281 = vunpack.c.l.b16 %v211
      %v282 = vunpack.c.h.b16 %v211
      %v283 = vunpack.c.l.b16 %v212
      %v284 = vunpack.c.h.b16 %v212
      %v285 = vunpack.c.l.b16 %v213
      %v286 = vunpack.c.h.b16 %v213
      %v287 = vunpack.c.l.b16 %v214
      %v288 = vunpack.c.h.b16 %v214
      %v289 = vpack.c.b16 %v285, %v281
      %v290 = vpack.c.b16 %v286, %v282
      %v291 = vpack.c.b16 %v287, %v283
      %v292 = vpack.c.b16 %v288, %v284
      %v346 = vunpack.c.l.b16 %v215
      %v347 = vunpack.c.h.b16 %v215
      %v348 = vunpack.c.l.b16 %v216
      %v349 = vunpack.c.h.b16 %v216
      %v350 = vunpack.c.l.b16 %v217
      %v351 = vunpack.c.h.b16 %v217
      %v352 = vunpack.c.l.b16 %v218
      %v353 = vunpack.c.h.b16 %v218
      %v354 = vunpack.c.l.b16 %v219
      %v355 = vunpack.c.h.b16 %v219
      %v356 = vunpack.c.l.b16 %v220
      %v357 = vunpack.c.h.b16 %v220
      %v358 = vunpack.c.l.b16 %v221
      %v359 = vunpack.c.h.b16 %v221
      %v360 = vunpack.c.l.b16 %v222
      %v361 = vunpack.c.h.b16 %v222
      %v362 = vunpack.c.l.b16 %v223
      %v363 = vunpack.c.h.b16 %v223
      %v364 = vunpack.c.l.b16 %v224
      %v365 = vunpack.c.h.b16 %v224
      %v366 = vunpack.c.l.b16 %v225
      %v367 = vunpack.c.h.b16 %v225
      %v368 = vunpack.c.l.b16 %v226
      %v369 = vunpack.c.h.b16 %v226
      %v370 = vunpack.c.l.b16 %v227
      %v371 = vunpack.c.h.b16 %v227
      %v372 = vunpack.c.l.b16 %v228
      %v373 = vunpack.c.h.b16 %v228
      %v374 = vunpack.c.l.b16 %v229
      %v375 = vunpack.c.h.b16 %v229
      %v376 = vunpack.c.l.b16 %v230
      %v377 = vunpack.c.h.b16 %v230
      %v378 = vunpack.c.l.b16 %v231
      %v379 = vunpack.c.h.b16 %v231
      %v380 = vunpack.c.l.b16 %v232
      %v381 = vunpack.c.h.b16 %v232
      %v382 = vunpack.c.l.b16 %v233
      %v383 = vunpack.c.h.b16 %v233
      %v384 = vunpack.c.l.b16 %v234
      %v385 = vunpack.c.h.b16 %v234
      %v386 = vunpack.c.l.b16 %v235
      %v387 = vunpack.c.h.b16 %v235
      %v388 = vunpack.c.l.b16 %v236
      %v389 = vunpack.c.h.b16 %v236
      %v390 = vunpack.c.l.b16 %v237
      %v391 = vunpack.c.h.b16 %v237
      %v392 = vunpack.c.l.b16 %v238
      %v393 = vunpack.c.h.b16 %v238
      %v394 = vunpack.c.l.b16 %v239
      %v395 = vunpack.c.h.b16 %v239
      %v396 = vunpack.c.l.b16 %v240
      %v397 = vunpack.c.h.b16 %v240
      %v398 = vunpack.c.l.b16 %v241
      %v399 = vunpack.c.h.b16 %v241
      %v400 = vunpack.c.l.b16 %v242
      %v401 = vunpack.c.h.b16 %v242
      %v402 = vunpack.c.l.b16 %v243
      %v403 = vunpack.c.h.b16 %v243
      %v404 = vunpack.c.l.b16 %v244
      %v405 = vunpack.c.h.b16 %v244
      %v406 = vunpack.c.l.b16 %v245
      %v407 = vunpack.c.h.b16 %v245
      %v408 = vunpack.c.l.b16 %v246
      %v409 = vunpack.c.h.b16 %v246
      %v410 = vunpack.c.l.b16 %v247
      %v411 = vunpack.c.h.b16 %v247
      %v412 = vunpack.c.l.b16 %v248
      %v413 = vunpack.c.h.b16 %v248
      %v414 = vunpack.c.l.b16 %v249
      %v415 = vunpack.c.h.b16 %v249
      %v416 = vunpack.c.l.b16 %v250
      %v417 = vunpack.c.h.b16 %v250
      %v418 = vunpack.c.l.b16 %v251
      %v419 = vunpack.c.h.b16 %v251
      %v420 = vunpack.c.l.b16 %v252
      %v421 = vunpack.c.h.b16 %v252
      %v422 = vunpack.c.l.b16 %v253
      %v423 = vunpack.c.h.b16 %v253
      %v424 = vunpack.c.l.b16 %v254
      %v425 = vunpack.c.h.b16 %v254
      %v426 = vunpack.c.l.b16 %v255
      %v427 = vunpack.c.h.b16 %v255
      %v428 = vunpack.c.l.b16 %v256
      %v429 = vunpack.c.h.b16 %v256
      %v430 = vunpack.c.l.b16 %v257
      %v431 = vunpack.c.h.b16 %v257
      %v432 = vunpack.c.l.b16 %v258
      %v433 = vunpack.c.h.b16 %v258
      %v434 = vunpack.c.l.b16 %v259
      %v435 = vunpack.c.h.b16 %v259
      %v436 = vunpack.c.l.b16 %v260
      %v437 = vunpack.c.h.b16 %v260
      %v438 = vunpack.c.l.b16 %v261
      %v439 = vunpack.c.h.b16 %v261
      %v440 = vunpack.c.l.b16 %v262
      %v441 = vunpack.c.h.b16 %v262
      %v442 = vunpack.c.l.b16 %v263
      %v443 = vunpack.c.h.b16 %v263
      %v444 = vunpack.c.l.b16 %v264
      %v445 = vunpack.c.h.b16 %v264
      %v446 = vpack.c.b16 %v348, %v346
      %v447 = vpack.c.b16 %v349, %v347
      %v448 = vpack.c.b16 %v352, %v350
      %v449 = vpack.c.b16 %v353, %v351
      %v450 = vpack.c.b16 %v356, %v354
      %v451 = vpack.c.b16 %v357, %v355
      %v452 = vpack.c.b16 %v360, %v358
      %v453 = vpack.c.b16 %v361, %v359
      %v454 = vpack.c.b16 %v364, %v362
      %v455 = vpack.c.b16 %v365, %v363
      %v456 = vpack.c.b16 %v368, %v366
      %v457 = vpack.c.b16 %v369, %v367
      %v458 = vpack.c.b16 %v372, %v370
      %v459 = vpack.c.b16 %v373, %v371
      %v460 = vpack.c.b16 %v376, %v374
      %v461 = vpack.c.b16 %v377, %v375
      %v462 = vpack.c.b16 %v380, %v378
      %v463 = vpack.c.b16 %v381, %v379
      %v464 = vpack.c.b16 %v384, %v382
      %v465 = vpack.c.b16 %v385, %v383
      %v466 = vpack.c.b16 %v388, %v386
      %v467 = vpack.c.b16 %v389, %v387
      %v468 = vpack.c.b16 %v392, %v390
      %v469 = vpack.c.b16 %v393, %v391
      %v470 = vpack.c.b16 %v396, %v394
      %v471 = vpack.c.b16 %v397, %v395
      %v472 = vpack.c.b16 %v400, %v398
      %v473 = vpack.c.b16 %v401, %v399
      %v474 = vpack.c.b16 %v404, %v402
      %v475 = vpack.c.b16 %v405, %v403
      %v476 = vpack.c.b16 %v408, %v406
      %v477 = vpack.c.b16 %v409, %v407
      %v478 = vpack.c.b16 %v412, %v410
      %v479 = vpack.c.b16 %v413, %v411
      %v480 = vpack.c.b16 %v416, %v414
      %v481 = vpack.c.b16 %v417, %v415
      %v482 = vpack.c.b16 %v420, %v418
      %v483 = vpack.c.b16 %v421, %v419
      %v484 = vpack.c.b16 %v424, %v422
      %v485 = vpack.c.b16 %v425, %v423
      %v486 = vpack.c.b16 %v428, %v426
      %v487 = vpack.c.b16 %v429, %v427
      %v488 = vpack.c.b16 %v432, %v430
      %v489 = vpack.c.b16 %v433, %v431
      %v490 = vpack.c.b16 %v436, %v434
      %v491 = vpack.c.b16 %v437, %v435
      %v492 = vpack.c.b16 %v440, %v438
      %v493 = vpack.c.b16 %v441, %v439
      %v494 = vpack.c.b16 %v444, %v442
      %v495 = vpack.c.b16 %v445, %v443
      %vm546 = vcmask 130048
      %v548 = vsel %vm546, %v292, 0
      %550 = vmatpush.bf16.msra.mxu0 %v460
      %551 = vmatpush.bf16.msra.mxu0 %v458
      %552 = vmatpush.bf16.msra.mxu0 %v456
      %553 = vmatpush.bf16.msra.mxu0 %v454
      %554 = vmatpush.bf16.msra.mxu0 %v452
      %555 = vmatpush.bf16.msra.mxu0 %v450
      %556 = vmatpush.bf16.msra.mxu0 %v448
      %557 = vmatpush.bf16.msra.mxu0 %v446
      %558 = vmatmul.bf16.gmra.mxu0 %v289
      %v559 = vpop.f32.mrf.mxu0
      %v560 = vadd.f32 %v270, %v559
      %v561 = vpop.f32.mrf.mxu0
      %v562 = vadd.f32 %v275, %v561
      %563 = vdwg.mxu0
      %564 = vmatpush.bf16.msra.mxu0 %v476
      %565 = vmatpush.bf16.msra.mxu0 %v474
      %566 = vmatpush.bf16.msra.mxu0 %v472
      %567 = vmatpush.bf16.msra.mxu0 %v470
      %568 = vmatpush.bf16.msra.mxu0 %v468
      %569 = vmatpush.bf16.msra.mxu0 %v466
      %570 = vmatpush.bf16.msra.mxu0 %v464
      %571 = vmatpush.bf16.msra.mxu0 %v462
      %572 = vmatmul.bf16.gmra.mxu0 %v290
      %v573 = vpop.f32.mrf.mxu0
      %v574 = vadd.f32 %v560, %v573
      %v575 = vpop.f32.mrf.mxu0
      %v576 = vadd.f32 %v562, %v575
      %577 = vdwg.mxu0
      %578 = vmatpush.bf16.msra.mxu0 %v492
      %579 = vmatpush.bf16.msra.mxu0 %v490
      %580 = vmatpush.bf16.msra.mxu0 %v488
      %581 = vmatpush.bf16.msra.mxu0 %v486
      %582 = vmatpush.bf16.msra.mxu0 %v484
      %583 = vmatpush.bf16.msra.mxu0 %v482
      %584 = vmatpush.bf16.msra.mxu0 %v480
      %585 = vmatpush.bf16.msra.mxu0 %v478
      %586 = vmatmul.bf16.gmra.mxu0 %v291
      %v587 = vpop.f32.mrf.mxu0
      %v588 = vadd.f32 %v574, %v587
      %v589 = vpop.f32.mrf.mxu0
      %v590 = vadd.f32 %v576, %v589
      %591 = vdwg.mxu0
      %592 = vmatpush.bf16.msra.mxu0 0
      %593 = vmatpush.bf16.msra.mxu0 0
      %594 = vmatpush.bf16.msra.mxu0 0
      %595 = vmatpush.bf16.msra.mxu0 0
      %596 = vmatpush.bf16.msra.mxu0 0
      %597 = vmatpush.bf16.msra.mxu0 0
      %598 = vmatpush.bf16.msra.mxu0 0
      %599 = vmatpush.bf16.msra.mxu0 %v494
      %600 = vmatmul.bf16.gmra.mxu0 %v548
      %v601 = vpop.f32.mrf.mxu0
      %v602 = vadd.f32 %v588, %v601
      %v603 = vpop.f32.mrf.mxu0
      %v604 = vadd.f32 %v590, %v603
      %605 = vdwg.mxu0
      %606 = vmatpush.bf16.msra.mxu0 %v461
      %607 = vmatpush.bf16.msra.mxu0 %v459
      %608 = vmatpush.bf16.msra.mxu0 %v457
      %609 = vmatpush.bf16.msra.mxu0 %v455
      %610 = vmatpush.bf16.msra.mxu0 %v453
      %611 = vmatpush.bf16.msra.mxu0 %v451
      %612 = vmatpush.bf16.msra.mxu0 %v449
      %613 = vmatpush.bf16.msra.mxu0 %v447
      %614 = vmatmul.bf16.gmra.mxu0 %v289
      %v615 = vpop.f32.mrf.mxu0
      %v616 = vadd.f32 %v270, %v615
      %v617 = vpop.f32.mrf.mxu0
      %v618 = vadd.f32 %v275, %v617
      %619 = vdwg.mxu0
      %620 = vmatpush.bf16.msra.mxu0 %v477
      %621 = vmatpush.bf16.msra.mxu0 %v475
      %622 = vmatpush.bf16.msra.mxu0 %v473
      %623 = vmatpush.bf16.msra.mxu0 %v471
      %624 = vmatpush.bf16.msra.mxu0 %v469
      %625 = vmatpush.bf16.msra.mxu0 %v467
      %626 = vmatpush.bf16.msra.mxu0 %v465
      %627 = vmatpush.bf16.msra.mxu0 %v463
      %628 = vmatmul.bf16.gmra.mxu0 %v290
      %v629 = vpop.f32.mrf.mxu0
      %v630 = vadd.f32 %v616, %v629
      %v631 = vpop.f32.mrf.mxu0
      %v632 = vadd.f32 %v618, %v631
      %633 = vdwg.mxu0
      %634 = vmatpush.bf16.msra.mxu0 %v493
      %635 = vmatpush.bf16.msra.mxu0 %v491
      %636 = vmatpush.bf16.msra.mxu0 %v489
      %637 = vmatpush.bf16.msra.mxu0 %v487
      %638 = vmatpush.bf16.msra.mxu0 %v485
      %639 = vmatpush.bf16.msra.mxu0 %v483
      %640 = vmatpush.bf16.msra.mxu0 %v481
      %641 = vmatpush.bf16.msra.mxu0 %v479
      %642 = vmatmul.bf16.gmra.mxu0 %v291
      %v643 = vpop.f32.mrf.mxu0
      %v644 = vadd.f32 %v630, %v643
      %v645 = vpop.f32.mrf.mxu0
      %v646 = vadd.f32 %v632, %v645
      %647 = vdwg.mxu0
      %648 = vmatpush.bf16.msra.mxu0 0
      %649 = vmatpush.bf16.msra.mxu0 0
      %650 = vmatpush.bf16.msra.mxu0 0
      %651 = vmatpush.bf16.msra.mxu0 0
      %652 = vmatpush.bf16.msra.mxu0 0
      %653 = vmatpush.bf16.msra.mxu0 0
      %654 = vmatpush.bf16.msra.mxu0 0
      %655 = vmatpush.bf16.msra.mxu0 %v495
      %656 = vmatmul.bf16.gmra.mxu0 %v548
      %v657 = vpop.f32.mrf.mxu0
      %v658 = vadd.f32 %v644, %v657
      %v659 = vpop.f32.mrf.mxu0
      %v660 = vadd.f32 %v646, %v659
      %661 = vdwg.mxu0
      %vm662 = vcmp.ge.f32.partialorder %v602, 0.0
      %vm663 = vcmp.ge.f32.partialorder %v658, 0.0
      %vm664 = vcmp.ge.f32.partialorder %v604, 0.0
      %vm665 = vcmp.ge.f32.partialorder %v660, 0.0
      %v666 = vmul.f32 %v602, 0.2
      %v667 = vmul.f32 %v658, 0.2
      %v668 = vmul.f32 %v604, 0.2
      %v669 = vmul.f32 %v660, 0.2
      %v670 = vsel %vm662, %v602, %v666
      %v671 = vsel %vm663, %v658, %v667
      %v672 = vsel %vm664, %v604, %v668
      %v673 = vsel %vm665, %v660, %v669
      %674 = vst [vmem:[%s208] sm:$0xff] %v670
      %675 = vst [vmem:[%s208 + $0x8] sm:$0xff] %v671
      %676 = vst [vmem:[%s208 + $0x10] sm:$0xff] %v672
      %677 = vst [vmem:[%s208 + $0x18] sm:$0xff] %v673
      %s678 = smul.u32 2, %s19
      %p679 = scmp.lt.s32.totalorder %s18, 1
      %s680 = scalar_select %p679, %s18, 1
      %p681 = scmp.lt.s32.totalorder %s678, 1
      %s682 = scalar_select %p681, %s678, 1
      %s683 = smul.addr %s680, 4
      %s684 = sadd.s32 %s682, %s683
      %s685 = smul.addr %s684, 8
      %s686 = scalar_lea.vmem %s3, %s685
      // Predicated region
      $region33: #{global_dis_forward.7} parent=31 // pred_check
        %p687 = pneg %p116
      $region34: #{global_dis_forward.7} parent=31 // pred_check_branch
        %689 = sbr.rel (%p687) target = $region36
      $region35: #{global_dis_forward.7} parent=31 // pred_region
        %s690 = smul.u32 2, %s19
      $region36: #{global_dis_forward.7} parent=31 // pred_fallthru
        _
    $region32: #{global_dis_forward.7} parent=5 // pred_fallthru
      _
    %p691 = scmp.le.s32.totalorder 2, %s9
    // Predicated region
    $region37: #{global_dis_forward.7} parent=5 // pred_check
      %p692 = pneg %p691
    $region38: #{global_dis_forward.7} parent=5 // pred_check_branch
      %694 = sbr.rel (%p692) target = $region40
    $region39: #{global_dis_forward.7} parent=5 // pred_region
      %s695 = ssub.s32 %s9, 2
      // Predicated region
      $region41: #{global_dis_forward.7} parent=39 // pred_check
        %p696 = pneg %p122
      $region42: #{global_dis_forward.7} parent=39 // pred_check_branch
        %698 = sbr.rel (%p696) target = $region44
      $region43: #{global_dis_forward.7} parent=39 // pred_region
        %s699 = smul.u32 2, %s21
        %p700 = scmp.lt.s32.totalorder %s20, 1
        %s701 = scalar_select %p700, %s20, 1
        %p702 = scmp.lt.s32.totalorder %s699, 1
        %s703 = scalar_select %p702, %s699, 1
        %s704 = smul.addr %s701, 4
        %s705 = sadd.s32 %s703, %s704
        %s706 = smul.addr %s705, 8
        %s707 = scalar_lea.vmem %s3, %s706
      $region44: #{global_dis_forward.7} parent=39 // pred_fallthru
        _
    $region40: #{global_dis_forward.7} parent=5 // pred_fallthru
      _
  $region6: #{global_dis_forward.7} parent=0 // loop_footer
    %s13 = sadd.s32 1, %s9
  $region7: #{global_dis_forward.7} parent=0 // loop_footer_branch
    %8 = sbr.rel target = $region3
  $region8: #{global_dis_forward.7} parent=0 // loop_exit
    _

</llo_original>
